<compile_context>
chip_gen: v5e
topology: v5e:2x2
jax: 0.10.0
libtpu: 0.0.40
codegen_flags: <defaults>
</compile_context>

<pallas_src>
import functools
import numpy as np

import jax
import jax.numpy as jnp
from jax.experimental import pallas as pl
from jax.experimental.pallas import tpu as pltpu

BN_EPS = 1e-5


def _compiler_params():
    return pltpu.CompilerParams(
        dimension_semantics=("parallel",),
        vmem_limit_bytes=64 * 1024 * 1024,
    )


# --------------------------------------------------------------------------
# Host-side bilinear (align_corners=True) matrices.
# --------------------------------------------------------------------------
def _bilinear_matrix(out_size: int, in_size: int) -> np.ndarray:
    A = np.zeros((out_size, in_size), np.float32)
    if out_size == 1:
        A[0, 0] = 1.0
        return A
    for i in range(out_size):
        src = i * (in_size - 1) / (out_size - 1)
        i0 = min(int(np.floor(src)), in_size - 1)
        i1 = min(i0 + 1, in_size - 1)
        w = src - i0
        A[i, i0] += 1.0 - w
        A[i, i1] += w
    return A


def _w_resize_matrix(out_w: int, in_w: int, C: int) -> np.ndarray:
    """(in_w*C, out_w*C): W-axis bilinear resize acting on the row-flattened
    NHWC layout (channels kept in place, NOT embedded into a wider range)."""
    aw = _bilinear_matrix(out_w, in_w)                       # (out_w, in_w)
    return np.kron(aw.T, np.eye(C, dtype=np.float32))        # (in_w*C, out_w*C)


# --------------------------------------------------------------------------
# Kernel 1: bilinear resize on the row-flattened NHWC layout.
#   W-resize first (small M = H_in), then H-resize.  bf16 MXU operands,
#   f32 accumulation.  Optional fused BN+ReLU on the input (used for outUp).
# --------------------------------------------------------------------------
def _resize_kernel(x_ref, ah_ref, m_ref, o_ref):
    x = x_ref[0]                                                   # (Hin, Win*C) f32
    t = jnp.dot(x.astype(jnp.bfloat16), m_ref[...],
                preferred_element_type=jnp.float32)                # (Hin, Wout*C)
    o = jnp.dot(ah_ref[...], t.astype(jnp.bfloat16),
                preferred_element_type=jnp.float32)                # (Hout, Wout*C)
    o_ref[0] = o.astype(o_ref.dtype)


def _bnrelu_resize_kernel(x_ref, scale_ref, shift_ref, ah_ref, m_ref, o_ref):
    z = jnp.maximum(x_ref[0] * scale_ref[...] + shift_ref[...], 0.0)   # f32 VPU
    t = jnp.dot(z.astype(jnp.bfloat16), m_ref[...],
                preferred_element_type=jnp.float32)
    o = jnp.dot(ah_ref[...], t.astype(jnp.bfloat16),
                preferred_element_type=jnp.float32)
    o_ref[0] = o.astype(o_ref.dtype)


def bilinear_resize(x_rows, H_in, W_in, C, H_out, W_out):
    """x_rows: (N, H_in, W_in*C) f32 -> (N, H_out, W_out*C) f32."""
    N = x_rows.shape[0]
    ah = jnp.asarray(_bilinear_matrix(H_out, H_in), dtype=jnp.bfloat16)
    m = jnp.asarray(_w_resize_matrix(W_out, W_in, C), dtype=jnp.bfloat16)
    return pl.pallas_call(
        _resize_kernel,
        out_shape=jax.ShapeDtypeStruct((N, H_out, W_out * C), jnp.float32),
        grid=(N,),
        in_specs=[
            pl.BlockSpec((1, H_in, W_in * C), lambda n: (n, 0, 0)),
            pl.BlockSpec((H_out, H_in), lambda n: (0, 0)),
            pl.BlockSpec((W_in * C, W_out * C), lambda n: (0, 0)),
        ],
        out_specs=pl.BlockSpec((1, H_out, W_out * C), lambda n: (n, 0, 0)),
        compiler_params=_compiler_params(),
    )(x_rows, ah, m)


def bn_relu_resize(y_rows, H, W, C, scale, shift, H_out, W_out):
    """BN+ReLU fused into the final bilinear upsample (self.outUp)."""
    N = y_rows.shape[0]
    ah = jnp.asarray(_bilinear_matrix(H_out, H), dtype=jnp.bfloat16)
    m = jnp.asarray(_w_resize_matrix(W_out, W, C), dtype=jnp.bfloat16)
    scale_t = jnp.tile(scale.astype(jnp.float32), W).reshape(1, W * C)
    shift_t = jnp.tile(shift.astype(jnp.float32), W).reshape(1, W * C)
    return pl.pallas_call(
        _bnrelu_resize_kernel,
        out_shape=jax.ShapeDtypeStruct((N, H_out, W_out * C), jnp.float32),
        grid=(N,),
        in_specs=[
            pl.BlockSpec((1, H, W * C), lambda n: (n, 0, 0)),
            pl.BlockSpec((1, W * C), lambda n: (0, 0)),
            pl.BlockSpec((1, W * C), lambda n: (0, 0)),
            pl.BlockSpec((H_out, H), lambda n: (0, 0)),
            pl.BlockSpec((W * C, W_out * C), lambda n: (0, 0)),
        ],
        out_specs=pl.BlockSpec((1, H_out, W_out * C), lambda n: (n, 0, 0)),
        compiler_params=_compiler_params(),
    )(y_rows, scale_t, shift_t, ah, m)


# --------------------------------------------------------------------------
# Kernel 2: 3x3 conv (padding=1, bias) via a single K = 9*Cin im2col matmul,
# with the channel-concat fused into the patches buffer, a fused per-block
# (sum, centered-M2) BatchNorm statistics epilogue, and (for conv2) the
# previous layer's BN+ReLU fused into the input path.
# --------------------------------------------------------------------------
def _pad_and_im2col(xp_ref, patch_ref, x, c_off, ct):
    """Write x (H, W, Cin) zero-padded into xp_ref (H+2, W+2, Cin) and scatter
    its 9 tap slices into columns [t*ct + c_off, ...) of patch_ref."""
    Hp, Wp, Cin = xp_ref.shape
    H, W = Hp - 2, Wp - 2
    # Zero only the 1-pixel border; the interior is fully overwritten below.
    zrow = jnp.zeros((1, Wp, Cin), jnp.float32)
    xp_ref[0:1, :, :] = zrow
    xp_ref[Hp - 1:Hp, :, :] = zrow
    zcol = jnp.zeros((Hp, 1, Cin), jnp.float32)
    xp_ref[:, 0:1, :] = zcol
    xp_ref[:, Wp - 1:Wp, :] = zcol
    xp_ref[1:H + 1, 1:W + 1, :] = x
    for dy in range(3):
        for dx in range(3):
            t = 3 * dy + dx
            col = t * ct + c_off
            patch_ref[:, col:col + Cin] = (
                xp_ref[dy:dy + H, dx:dx + W, :].reshape(H * W, Cin))


def _conv_matmul_epilogue(patch_ref, w_ref, b_ref, y_ref, stats_ref, inv_count):
    acc = jnp.dot(patch_ref[...].astype(jnp.bfloat16), w_ref[...],
                  preferred_element_type=jnp.float32)          # (H*W, Cout)
    y = acc + b_ref[...]
    y_ref[0] = y.astype(y_ref.dtype)
    # Per-block centered statistics (combined across blocks on the host with
    # Chan's formula) -> avoids E[x^2] - mean^2 cancellation.
    s = jnp.sum(y, axis=0, keepdims=True)                      # (1, Cout)
    mu = s * inv_count
    d = y - mu
    m2 = jnp.sum(d * d, axis=0, keepdims=True)                 # (1, Cout)
    stats_ref[0] = jnp.concatenate([s, m2], axis=0)            # (2, Cout)


def _conv_cat_kernel(xa_ref, xb_ref, w_ref, b_ref, y_ref, stats_ref,
                     xpa_ref, xpb_ref, patch_ref, *, ca_off, cb_off, ct,
                     inv_count):
    # conv(cat([xa, xb], channel)) == split-weight conv over the two inputs;
    # both land in the same patches buffer, so the concat never materializes.
    _pad_and_im2col(xpa_ref, patch_ref, xa_ref[0], ca_off, ct)
    _pad_and_im2col(xpb_ref, patch_ref, xb_ref[0], cb_off, ct)
    _conv_matmul_epilogue(patch_ref, w_ref, b_ref, y_ref, stats_ref, inv_count)


def _conv_bnrelu_kernel(x_ref, scale_ref, shift_ref, w_ref, b_ref, y_ref,
                        stats_ref, xp_ref, patch_ref, *, ct, inv_count):
    # BN + ReLU of the previous layer fused into the conv input path (f32 VPU).
    x = jnp.maximum(x_ref[0] * scale_ref[...] + shift_ref[...], 0.0)
    _pad_and_im2col(xp_ref, patch_ref, x, 0, ct)
    _conv_matmul_epilogue(patch_ref, w_ref, b_ref, y_ref, stats_ref, inv_count)


def conv3x3_cat_bn_stats(xa, xb, w, b):
    """3x3 conv over cat([xa, xb], channel).  xa occupies input channels
    [0, Ca), xb occupies [Ca, Ca+Cb).  Returns (y (N,H*W,Cout), stats)."""
    N, H, W, Ca = xa.shape
    Cb = xb.shape[-1]
    Ct = Ca + Cb
    Cout = w.shape[-1]
    wmat = w.reshape(9 * Ct, Cout).astype(jnp.bfloat16)
    b2 = b.reshape(1, Cout).astype(jnp.float32)
    kernel = functools.partial(_conv_cat_kernel, ca_off=0, cb_off=Ca, ct=Ct,
                               inv_count=1.0 / float(H * W))
    return pl.pallas_call(
        kernel,
        out_shape=(jax.ShapeDtypeStruct((N, H * W, Cout), jnp.float32),
                   jax.ShapeDtypeStruct((N, 2, Cout), jnp.float32)),
        grid=(N,),
        in_specs=[
            pl.BlockSpec((1, H, W, Ca), lambda n: (n, 0, 0, 0)),
            pl.BlockSpec((1, H, W, Cb), lambda n: (n, 0, 0, 0)),
            pl.BlockSpec((9 * Ct, Cout), lambda n: (0, 0)),
            pl.BlockSpec((1, Cout), lambda n: (0, 0)),
        ],
        out_specs=(pl.BlockSpec((1, H * W, Cout), lambda n: (n, 0, 0)),
                   pl.BlockSpec((1, 2, Cout), lambda n: (n, 0, 0))),
        scratch_shapes=[
            pltpu.VMEM((H + 2, W + 2, Ca), jnp.float32),
            pltpu.VMEM((H + 2, W + 2, Cb), jnp.float32),
            pltpu.VMEM((H * W, 9 * Ct), jnp.float32),
        ],
        compiler_params=_compiler_params(),
    )(xa, xb, wmat, b2)


def conv3x3_bnrelu_stats(x, scale, shift, w, b):
    """BN+ReLU (scale/shift of the previous BN) fused into a 3x3 conv."""
    N, H, W, Cin = x.shape
    Cout = w.shape[-1]
    wmat = w.reshape(9 * Cin, Cout).astype(jnp.bfloat16)
    b2 = b.reshape(1, Cout).astype(jnp.float32)
    scale2 = scale.reshape(1, Cin).astype(jnp.float32)
    shift2 = shift.reshape(1, Cin).astype(jnp.float32)
    kernel = functools.partial(_conv_bnrelu_kernel, ct=Cin,
                               inv_count=1.0 / float(H * W))
    return pl.pallas_call(
        kernel,
        out_shape=(jax.ShapeDtypeStruct((N, H * W, Cout), jnp.float32),
                   jax.ShapeDtypeStruct((N, 2, Cout), jnp.float32)),
        grid=(N,),
        in_specs=[
            pl.BlockSpec((1, H, W, Cin), lambda n: (n, 0, 0, 0)),
            pl.BlockSpec((1, Cin), lambda n: (0, 0)),
            pl.BlockSpec((1, Cin), lambda n: (0, 0)),
            pl.BlockSpec((9 * Cin, Cout), lambda n: (0, 0)),
            pl.BlockSpec((1, Cout), lambda n: (0, 0)),
        ],
        out_specs=(pl.BlockSpec((1, H * W, Cout), lambda n: (n, 0, 0)),
                   pl.BlockSpec((1, 2, Cout), lambda n: (n, 0, 0))),
        scratch_shapes=[
            pltpu.VMEM((H + 2, W + 2, Cin), jnp.float32),
            pltpu.VMEM((H * W, 9 * Cin), jnp.float32),
        ],
        compiler_params=_compiler_params(),
    )(x, scale2, shift2, wmat, b2)


# --------------------------------------------------------------------------
# BatchNorm (training-mode batch statistics) scale/shift from per-block stats
# using Chan's parallel combine (numerically safe, biased variance, eps=1e-5).
# --------------------------------------------------------------------------
def _bn_scale_shift(stats, gamma, beta, block_count):
    # stats: (n_blocks, 2, C) with per-block (sum, centered M2), each over
    # block_count elements.
    sums = stats[:, 0, :]                          # (n_blocks, C)
    m2s = stats[:, 1, :]                           # (n_blocks, C)
    n_blocks = stats.shape[0]
    total = float(n_blocks * block_count)
    grand_sum = jnp.sum(sums, axis=0)              # (C,)
    grand_mean = grand_sum / total
    block_mean = sums / float(block_count)         # (n_blocks, C)
    m2_total = (jnp.sum(m2s, axis=0)
                + float(block_count) * jnp.sum((block_mean - grand_mean) ** 2,
                                               axis=0))
    var = m2_total / total                         # biased variance
    inv = gamma / jnp.sqrt(var + BN_EPS)
    return inv, beta - grand_mean * inv


# --------------------------------------------------------------------------
# Up module: params + forward
# --------------------------------------------------------------------------
def init_up_params(key, in_channels, out_channels, bilinear=True):
    assert bilinear, "only the bilinear branch is implemented"
    mid = in_channels // 2
    k1, k2, k3, k4 = jax.random.split(key, 4)
    # Conv weights in HWIO layout: (3, 3, Cin, Cout); Cin ordering of w1
    # matches torch.cat([x2, x1], dim=1) (x2's channels first).
    return {
        "w1": jax.random.normal(k1, (3, 3, in_channels, mid), jnp.float32) * 0.1,
        "b1": jax.random.normal(k2, (mid,), jnp.float32) * 0.1,
        "g1": jnp.ones((mid,), jnp.float32),
        "be1": jnp.zeros((mid,), jnp.float32),
        "w2": jax.random.normal(k3, (3, 3, mid, out_channels), jnp.float32) * 0.1,
        "b2": jax.random.normal(k4, (out_channels,), jnp.float32) * 0.1,
        "g2": jnp.ones((out_channels,), jnp.float32),
        "be2": jnp.zeros((out_channels,), jnp.float32),
    }


def up_forward(params, x1, x2, out_up_scale=(2, 2)):
    # x1, x2: NCHW float32
    N, C1, H1, W1 = x1.shape
    _, C2, H2, W2 = x2.shape
    H, W = 2 * H1, 2 * W1                      # self.up doubles x1's spatial size

    # Boundary layout conversion only; all intermediates stay NHWC / row-flat.
    x1_nhwc = jnp.transpose(x1, (0, 2, 3, 1))
    x2_nhwc = jnp.transpose(x2, (0, 2, 3, 1))

    # self.up(x1): bilinear 2x, align_corners=True.
    x1u = bilinear_resize(x1_nhwc.reshape(N, H1, W1 * C1), H1, W1, C1, H, W)
    x1u = x1u.reshape(N, H, W, C1)

    # self.matchUp(x2): resize x2 to up(x1)'s size; exact identity if equal.
    if (H2, W2) == (H, W):
        x2u = x2_nhwc
    else:
        x2u = bilinear_resize(x2_nhwc.reshape(N, H2, W2 * C2),
                              H2, W2, C2, H, W).reshape(N, H, W, C2)

    # F.pad: diffX = diffY = 0 because matchUp targets exactly up(x1)'s size.
    assert x1u.shape[1:3] == x2u.shape[1:3], (x1u.shape, x2u.shape)

    # conv1 over cat([x2u, x1u], channel); the concat is fused into im2col.
    y1, st1 = conv3x3_cat_bn_stats(x2u, x1u, params["w1"], params["b1"])
    scale1, shift1 = _bn_scale_shift(st1, params["g1"], params["be1"], H * W)

    # conv2 with BN1+ReLU fused into its input path.
    Cmid = params["w1"].shape[-1]
    y1_4d = y1.reshape(N, H, W, Cmid)          # free (metadata) reshape
    y2, st2 = conv3x3_bnrelu_stats(y1_4d, scale1, shift1,
                                   params["w2"], params["b2"])
    scale2, shift2 = _bn_scale_shift(st2, params["g2"], params["be2"], H * W)

    # BN2 + ReLU fused into the final bilinear upsample (self.outUp).
    Cout = params["w2"].shape[-1]
    sh, sw = out_up_scale
    out = bn_relu_resize(y2.reshape(N, H, W * Cout), H, W, Cout,
                         scale2, shift2, H * sh, W * sw)
    out = out.reshape(N, H * sh, W * sw, Cout)
    return jnp.transpose(out, (0, 3, 1, 2))    # back to NCHW at the boundary


if __name__ == "__main__":
    key = jax.random.PRNGKey(0)
    kx1, kx2, kp = jax.random.split(key, 3)

    in_channels, out_channels = 8, 8
    # UNet-style inputs: x1 is the deeper (smaller) feature map, x2 the skip.
    x1 = jax.random.normal(kx1, (2, 4, 8, 8), jnp.float32)
    x2 = jax.random.normal(kx2, (2, 4, 16, 16), jnp.float32)

    params = init_up_params(kp, in_channels, out_channels, bilinear=True)
    fwd = jax.jit(up_forward, static_argnames=("out_up_scale",))
    out = fwd(params, x1, x2, out_up_scale=(2, 2))
    out = jax.block_until_ready(out)
    assert out.shape == (2, out_channels, 32, 32), out.shape
    assert bool(jnp.all(jnp.isfinite(out)))
    print("KERNEL_OK")
</pallas_src>

<mosaic_0001>
module attributes {stable_mosaic.version = 11 : i64} {
  func.func @_resize_kernel(%arg0: i32, %arg1: memref<1x8x32xf32, #tpu.memory_space<vmem>>, %arg2: memref<16x8xbf16, #tpu.memory_space<vmem>>, %arg3: memref<32x64xbf16, #tpu.memory_space<vmem>>, %arg4: memref<1x16x64xf32, #tpu.memory_space<vmem>>) attributes {dimension_semantics = [#tpu.dimension_semantics<parallel>], iteration_bounds = array<i64: 2>, scalar_prefetch = 0 : i64, scratch_operands = 0 : i64, tpu.core_type = #tpu.core_type<tc>, window_params = [{transform_indices = @transform_0, window_bounds = array<i64: 1, 8, 32>}, {pipeline_mode = #tpu.pipeline_mode<synchronous>, transform_indices = @transform_1, window_bounds = array<i64: 16, 8>}, {pipeline_mode = #tpu.pipeline_mode<synchronous>, transform_indices = @transform_2, window_bounds = array<i64: 32, 64>}, {transform_indices = @transform_3, window_bounds = array<i64: 1, 16, 64>}]} {
    %c0 = arith.constant 0 : index
    %c0_0 = arith.constant 0 : index
    %c0_1 = arith.constant 0 : index
    %0 = vector.load %arg1[%c0, %c0_0, %c0_1] : memref<1x8x32xf32, #tpu.memory_space<vmem>>, vector<1x8x32xf32>
    %1 = vector.shape_cast %0 : vector<1x8x32xf32> to vector<8x32xf32>
    %2 = arith.truncf %1 : vector<8x32xf32> to vector<8x32xbf16>
    %c0_2 = arith.constant 0 : index
    %c0_3 = arith.constant 0 : index
    %3 = vector.load %arg3[%c0_2, %c0_3] : memref<32x64xbf16, #tpu.memory_space<vmem>>, vector<32x64xbf16>
    %cst = arith.constant dense<0.000000e+00> : vector<8x64xf32>
    %4 = tpu.matmul %2, %3, %cst {dimension_numbers = #tpu.dot_dimension_numbers<[1], [0], [0], [1], [0, 0, 1, 1], [], []>} : vector<8x32xbf16>, vector<32x64xbf16>, vector<8x64xf32> -> vector<8x64xf32>
    %c0_4 = arith.constant 0 : index
    %c0_5 = arith.constant 0 : index
    %5 = vector.load %arg2[%c0_4, %c0_5] : memref<16x8xbf16, #tpu.memory_space<vmem>>, vector<16x8xbf16>
    %6 = arith.truncf %4 : vector<8x64xf32> to vector<8x64xbf16>
    %cst_6 = arith.constant dense<0.000000e+00> : vector<16x64xf32>
    %7 = tpu.matmul %5, %6, %cst_6 {dimension_numbers = #tpu.dot_dimension_numbers<[1], [0], [0], [1], [0, 0, 1, 1], [], []>} : vector<16x8xbf16>, vector<8x64xbf16>, vector<16x64xf32> -> vector<16x64xf32>
    %c0_7 = arith.constant 0 : index
    %c0_8 = arith.constant 0 : index
    %c0_9 = arith.constant 0 : index
    %8 = vector.load %arg4[%c0_7, %c0_8, %c0_9] : memref<1x16x64xf32, #tpu.memory_space<vmem>>, vector<1x16x64xf32>
    %9 = vector.shape_cast %8 : vector<1x16x64xf32> to vector<16x64xf32>
    %10 = vector.shape_cast %7 : vector<16x64xf32> to vector<1x16x64xf32>
    tpu.vector_store %arg4[%c0_7, %c0_8, %c0_9], %10 {strides = array<i32>} : memref<1x16x64xf32, #tpu.memory_space<vmem>>, vector<1x16x64xf32>,
    return
  }
  func.func @transform_0(%arg0: i32) -> (i32, i32, i32) {
    %c0_i32 = arith.constant 0 : i32
    %c0_i32_0 = arith.constant 0 : i32
    %c0_i32_1 = arith.constant 0 : i32
    return %arg0, %c0_i32, %c0_i32_0 : i32, i32, i32
  }
  func.func @transform_1(%arg0: i32) -> (i32, i32) {
    %c0_i32 = arith.constant 0 : i32
    %c0_i32_0 = arith.constant 0 : i32
    %c0_i32_1 = arith.constant 0 : i32
    return %c0_i32, %c0_i32_0 : i32, i32
  }
  func.func @transform_2(%arg0: i32) -> (i32, i32) {
    %c0_i32 = arith.constant 0 : i32
    %c0_i32_0 = arith.constant 0 : i32
    %c0_i32_1 = arith.constant 0 : i32
    return %c0_i32, %c0_i32_0 : i32, i32
  }
  func.func @transform_3(%arg0: i32) -> (i32, i32, i32) {
    %c0_i32 = arith.constant 0 : i32
    %c0_i32_0 = arith.constant 0 : i32
    %c0_i32_1 = arith.constant 0 : i32
    return %arg0, %c0_i32, %c0_i32_0 : i32, i32, i32
  }
}

module attributes {stable_mosaic.version = 11 : i64} {
  func.func @_conv_cat_kernel(%arg0: i32, %arg1: memref<1x16x16x4xf32, #tpu.memory_space<vmem>>, %arg2: memref<1x16x16x4xf32, #tpu.memory_space<vmem>>, %arg3: memref<72x4xbf16, #tpu.memory_space<vmem>>, %arg4: memref<1x4xf32, #tpu.memory_space<vmem>>, %arg5: memref<1x256x4xf32, #tpu.memory_space<vmem>>, %arg6: memref<1x2x4xf32, #tpu.memory_space<vmem>>, %arg7: memref<18x18x4xf32, #tpu.memory_space<vmem>>, %arg8: memref<18x18x4xf32, #tpu.memory_space<vmem>>, %arg9: memref<256x72xf32, #tpu.memory_space<vmem>>) attributes {dimension_semantics = [#tpu.dimension_semantics<parallel>], iteration_bounds = array<i64: 2>, scalar_prefetch = 0 : i64, scratch_operands = 3 : i64, tpu.core_type = #tpu.core_type<tc>, window_params = [{transform_indices = @transform_0, window_bounds = array<i64: 1, 16, 16, 4>}, {transform_indices = @transform_1, window_bounds = array<i64: 1, 16, 16, 4>}, {pipeline_mode = #tpu.pipeline_mode<synchronous>, transform_indices = @transform_2, window_bounds = array<i64: 72, 4>}, {pipeline_mode = #tpu.pipeline_mode<synchronous>, transform_indices = @transform_3, window_bounds = array<i64: 1, 4>}, {transform_indices = @transform_4, window_bounds = array<i64: 1, 256, 4>}, {transform_indices = @transform_5, window_bounds = array<i64: 1, 2, 4>}]} {
    %c0 = arith.constant 0 : index
    %c0_0 = arith.constant 0 : index
    %c0_1 = arith.constant 0 : index
    %c0_2 = arith.constant 0 : index
    %0 = vector.load %arg1[%c0, %c0_0, %c0_1, %c0_2] : memref<1x16x16x4xf32, #tpu.memory_space<vmem>>, vector<1x16x16x4xf32>
    %1 = vector.shape_cast %0 : vector<1x16x16x4xf32> to vector<16x16x4xf32>
    %cst = arith.constant 0.000000e+00 : f32
    %2 = vector.broadcast %cst : f32 to vector<1x18x4xf32>
    %c0_3 = arith.constant 0 : index
    %c0_4 = arith.constant 0 : index
    %c0_5 = arith.constant 0 : index
    %3 = vector.load %arg7[%c0_3, %c0_4, %c0_5] : memref<18x18x4xf32, #tpu.memory_space<vmem>>, vector<1x18x4xf32>
    tpu.vector_store %arg7[%c0_3, %c0_4, %c0_5], %2 {strides = array<i32>} : memref<18x18x4xf32, #tpu.memory_space<vmem>>, vector<1x18x4xf32>,
    %c17 = arith.constant 17 : index
    %c0_6 = arith.constant 0 : index
    %c0_7 = arith.constant 0 : index
    %4 = vector.load %arg7[%c17, %c0_6, %c0_7] : memref<18x18x4xf32, #tpu.memory_space<vmem>>, vector<1x18x4xf32>
    tpu.vector_store %arg7[%c17, %c0_6, %c0_7], %2 {strides = array<i32>} : memref<18x18x4xf32, #tpu.memory_space<vmem>>, vector<1x18x4xf32>,
    %cst_8 = arith.constant 0.000000e+00 : f32
    %5 = vector.broadcast %cst_8 : f32 to vector<18x1x4xf32>
    %c0_9 = arith.constant 0 : index
    %c0_10 = arith.constant 0 : index
    %c0_11 = arith.constant 0 : index
    %6 = vector.load %arg7[%c0_9, %c0_10, %c0_11] : memref<18x18x4xf32, #tpu.memory_space<vmem>>, vector<18x1x4xf32>
    tpu.vector_store %arg7[%c0_9, %c0_10, %c0_11], %5 {strides = array<i32>} : memref<18x18x4xf32, #tpu.memory_space<vmem>>, vector<18x1x4xf32>,
    %c0_12 = arith.constant 0 : index
    %c17_13 = arith.constant 17 : index
    %c0_14 = arith.constant 0 : index
    %7 = vector.load %arg7[%c0_12, %c17_13, %c0_14] : memref<18x18x4xf32, #tpu.memory_space<vmem>>, vector<18x1x4xf32>
    tpu.vector_store %arg7[%c0_12, %c17_13, %c0_14], %5 {strides = array<i32>} : memref<18x18x4xf32, #tpu.memory_space<vmem>>, vector<18x1x4xf32>,
    %c1 = arith.constant 1 : index
    %c1_15 = arith.constant 1 : index
    %c0_16 = arith.constant 0 : index
    %8 = vector.load %arg7[%c1, %c1_15, %c0_16] : memref<18x18x4xf32, #tpu.memory_space<vmem>>, vector<16x16x4xf32>
    tpu.vector_store %arg7[%c1, %c1_15, %c0_16], %1 {strides = array<i32>} : memref<18x18x4xf32, #tpu.memory_space<vmem>>, vector<16x16x4xf32>,
    %c0_17 = arith.constant 0 : index
    %c0_18 = arith.constant 0 : index
    %c0_19 = arith.constant 0 : index
    %9 = vector.load %arg7[%c0_17, %c0_18, %c0_19] : memref<18x18x4xf32, #tpu.memory_space<vmem>>, vector<16x16x4xf32>
    %10 = vector.shape_cast %9 : vector<16x16x4xf32> to vector<256x4xf32>
    %c0_20 = arith.constant 0 : index
    %c0_21 = arith.constant 0 : index
    %11 = vector.load %arg9[%c0_20, %c0_21] : memref<256x72xf32, #tpu.memory_space<vmem>>, vector<256x4xf32>
    tpu.vector_store %arg9[%c0_20, %c0_21], %10 {strides = array<i32>} : memref<256x72xf32, #tpu.memory_space<vmem>>, vector<256x4xf32>,
    %c0_22 = arith.constant 0 : index
    %c1_23 = arith.constant 1 : index
    %c0_24 = arith.constant 0 : index
    %12 = vector.load %arg7[%c0_22, %c1_23, %c0_24] : memref<18x18x4xf32, #tpu.memory_space<vmem>>, vector<16x16x4xf32>
    %13 = vector.shape_cast %12 : vector<16x16x4xf32> to vector<256x4xf32>
    %c0_25 = arith.constant 0 : index
    %c8 = arith.constant 8 : index
    %14 = vector.load %arg9[%c0_25, %c8] : memref<256x72xf32, #tpu.memory_space<vmem>>, vector<256x4xf32>
    tpu.vector_store %arg9[%c0_25, %c8], %13 {strides = array<i32>} : memref<256x72xf32, #tpu.memory_space<vmem>>, vector<256x4xf32>,
    %c0_26 = arith.constant 0 : index
    %c2 = arith.constant 2 : index
    %c0_27 = arith.constant 0 : index
    %15 = vector.load %arg7[%c0_26, %c2, %c0_27] : memref<18x18x4xf32, #tpu.memory_space<vmem>>, vector<16x16x4xf32>
    %16 = vector.shape_cast %15 : vector<16x16x4xf32> to vector<256x4xf32>
    %c0_28 = arith.constant 0 : index
    %c16 = arith.constant 16 : index
    %17 = vector.load %arg9[%c0_28, %c16] : memref<256x72xf32, #tpu.memory_space<vmem>>, vector<256x4xf32>
    tpu.vector_store %arg9[%c0_28, %c16], %16 {strides = array<i32>} : memref<256x72xf32, #tpu.memory_space<vmem>>, vector<256x4xf32>,
    %c1_29 = arith.constant 1 : index
    %c0_30 = arith.constant 0 : index
    %c0_31 = arith.constant 0 : index
    %18 = vector.load %arg7[%c1_29, %c0_30, %c0_31] : memref<18x18x4xf32, #tpu.memory_space<vmem>>, vector<16x16x4xf32>
    %19 = vector.shape_cast %18 : vector<16x16x4xf32> to vector<256x4xf32>
    %c0_32 = arith.constant 0 : index
    %c24 = arith.constant 24 : index
    %20 = vector.load %arg9[%c0_32, %c24] : memref<256x72xf32, #tpu.memory_space<vmem>>, vector<256x4xf32>
    tpu.vector_store %arg9[%c0_32, %c24], %19 {strides = array<i32>} : memref<256x72xf32, #tpu.memory_space<vmem>>, vector<256x4xf32>,
    %c1_33 = arith.constant 1 : index
    %c1_34 = arith.constant 1 : index
    %c0_35 = arith.constant 0 : index
    %21 = vector.load %arg7[%c1_33, %c1_34, %c0_35] : memref<18x18x4xf32, #tpu.memory_space<vmem>>, vector<16x16x4xf32>
    %22 = vector.shape_cast %21 : vector<16x16x4xf32> to vector<256x4xf32>
    %c0_36 = arith.constant 0 : index
    %c32 = arith.constant 32 : index
    %23 = vector.load %arg9[%c0_36, %c32] : memref<256x72xf32, #tpu.memory_space<vmem>>, vector<256x4xf32>
    tpu.vector_store %arg9[%c0_36, %c32], %22 {strides = array<i32>} : memref<256x72xf32, #tpu.memory_space<vmem>>, vector<256x4xf32>,
    %c1_37 = arith.constant 1 : index
    %c2_38 = arith.constant 2 : index
    %c0_39 = arith.constant 0 : index
    %24 = vector.load %arg7[%c1_37, %c2_38, %c0_39] : memref<18x18x4xf32, #tpu.memory_space<vmem>>, vector<16x16x4xf32>
    %25 = vector.shape_cast %24 : vector<16x16x4xf32> to vector<256x4xf32>
    %c0_40 = arith.constant 0 : index
    %c40 = arith.constant 40 : index
    %26 = vector.load %arg9[%c0_40, %c40] : memref<256x72xf32, #tpu.memory_space<vmem>>, vector<256x4xf32>
    tpu.vector_store %arg9[%c0_40, %c40], %25 {strides = array<i32>} : memref<256x72xf32, #tpu.memory_space<vmem>>, vector<256x4xf32>,
    %c2_41 = arith.constant 2 : index
    %c0_42 = arith.constant 0 : index
    %c0_43 = arith.constant 0 : index
    %27 = vector.load %arg7[%c2_41, %c0_42, %c0_43] : memref<18x18x4xf32, #tpu.memory_space<vmem>>, vector<16x16x4xf32>
    %28 = vector.shape_cast %27 : vector<16x16x4xf32> to vector<256x4xf32>
    %c0_44 = arith.constant 0 : index
    %c48 = arith.constant 48 : index
    %29 = vector.load %arg9[%c0_44, %c48] : memref<256x72xf32, #tpu.memory_space<vmem>>, vector<256x4xf32>
    tpu.vector_store %arg9[%c0_44, %c48], %28 {strides = array<i32>} : memref<256x72xf32, #tpu.memory_space<vmem>>, vector<256x4xf32>,
    %c2_45 = arith.constant 2 : index
    %c1_46 = arith.constant 1 : index
    %c0_47 = arith.constant 0 : index
    %30 = vector.load %arg7[%c2_45, %c1_46, %c0_47] : memref<18x18x4xf32, #tpu.memory_space<vmem>>, vector<16x16x4xf32>
    %31 = vector.shape_cast %30 : vector<16x16x4xf32> to vector<256x4xf32>
    %c0_48 = arith.constant 0 : index
    %c56 = arith.constant 56 : index
    %32 = vector.load %arg9[%c0_48, %c56] : memref<256x72xf32, #tpu.memory_space<vmem>>, vector<256x4xf32>
    tpu.vector_store %arg9[%c0_48, %c56], %31 {strides = array<i32>} : memref<256x72xf32, #tpu.memory_space<vmem>>, vector<256x4xf32>,
    %c2_49 = arith.constant 2 : index
    %c2_50 = arith.constant 2 : index
    %c0_51 = arith.constant 0 : index
    %33 = vector.load %arg7[%c2_49, %c2_50, %c0_51] : memref<18x18x4xf32, #tpu.memory_space<vmem>>, vector<16x16x4xf32>
    %34 = vector.shape_cast %33 : vector<16x16x4xf32> to vector<256x4xf32>
    %c0_52 = arith.constant 0 : index
    %c64 = arith.constant 64 : index
    %35 = vector.load %arg9[%c0_52, %c64] : memref<256x72xf32, #tpu.memory_space<vmem>>, vector<256x4xf32>
    tpu.vector_store %arg9[%c0_52, %c64], %34 {strides = array<i32>} : memref<256x72xf32, #tpu.memory_space<vmem>>, vector<256x4xf32>,
    %c0_53 = arith.constant 0 : index
    %c0_54 = arith.constant 0 : index
    %c0_55 = arith.constant 0 : index
    %c0_56 = arith.constant 0 : index
    %36 = vector.load %arg2[%c0_53, %c0_54, %c0_55, %c0_56] : memref<1x16x16x4xf32, #tpu.memory_space<vmem>>, vector<1x16x16x4xf32>
    %37 = vector.shape_cast %36 : vector<1x16x16x4xf32> to vector<16x16x4xf32>
    %cst_57 = arith.constant 0.000000e+00 : f32
    %38 = vector.broadcast %cst_57 : f32 to vector<1x18x4xf32>
    %c0_58 = arith.constant 0 : index
    %c0_59 = arith.constant 0 : index
    %c0_60 = arith.constant 0 : index
    %39 = vector.load %arg8[%c0_58, %c0_59, %c0_60] : memref<18x18x4xf32, #tpu.memory_space<vmem>>, vector<1x18x4xf32>
    tpu.vector_store %arg8[%c0_58, %c0_59, %c0_60], %38 {strides = array<i32>} : memref<18x18x4xf32, #tpu.memory_space<vmem>>, vector<1x18x4xf32>,
    %c17_61 = arith.constant 17 : index
    %c0_62 = arith.constant 0 : index
    %c0_63 = arith.constant 0 : index
    %40 = vector.load %arg8[%c17_61, %c0_62, %c0_63] : memref<18x18x4xf32, #tpu.memory_space<vmem>>, vector<1x18x4xf32>
    tpu.vector_store %arg8[%c17_61, %c0_62, %c0_63], %38 {strides = array<i32>} : memref<18x18x4xf32, #tpu.memory_space<vmem>>, vector<1x18x4xf32>,
    %cst_64 = arith.constant 0.000000e+00 : f32
    %41 = vector.broadcast %cst_64 : f32 to vector<18x1x4xf32>
    %c0_65 = arith.constant 0 : index
    %c0_66 = arith.constant 0 : index
    %c0_67 = arith.constant 0 : index
    %42 = vector.load %arg8[%c0_65, %c0_66, %c0_67] : memref<18x18x4xf32, #tpu.memory_space<vmem>>, vector<18x1x4xf32>
    tpu.vector_store %arg8[%c0_65, %c0_66, %c0_67], %41 {strides = array<i32>} : memref<18x18x4xf32, #tpu.memory_space<vmem>>, vector<18x1x4xf32>,
    %c0_68 = arith.constant 0 : index
    %c17_69 = arith.constant 17 : index
    %c0_70 = arith.constant 0 : index
    %43 = vector.load %arg8[%c0_68, %c17_69, %c0_70] : memref<18x18x4xf32, #tpu.memory_space<vmem>>, vector<18x1x4xf32>
    tpu.vector_store %arg8[%c0_68, %c17_69, %c0_70], %41 {strides = array<i32>} : memref<18x18x4xf32, #tpu.memory_space<vmem>>, vector<18x1x4xf32>,
    %c1_71 = arith.constant 1 : index
    %c1_72 = arith.constant 1 : index
    %c0_73 = arith.constant 0 : index
    %44 = vector.load %arg8[%c1_71, %c1_72, %c0_73] : memref<18x18x4xf32, #tpu.memory_space<vmem>>, vector<16x16x4xf32>
    tpu.vector_store %arg8[%c1_71, %c1_72, %c0_73], %37 {strides = array<i32>} : memref<18x18x4xf32, #tpu.memory_space<vmem>>, vector<16x16x4xf32>,
    %c0_74 = arith.constant 0 : index
    %c0_75 = arith.constant 0 : index
    %c0_76 = arith.constant 0 : index
    %45 = vector.load %arg8[%c0_74, %c0_75, %c0_76] : memref<18x18x4xf32, #tpu.memory_space<vmem>>, vector<16x16x4xf32>
    %46 = vector.shape_cast %45 : vector<16x16x4xf32> to vector<256x4xf32>
    %c0_77 = arith.constant 0 : index
    %c4 = arith.constant 4 : index
    %47 = vector.load %arg9[%c0_77, %c4] : memref<256x72xf32, #tpu.memory_space<vmem>>, vector<256x4xf32>
    tpu.vector_store %arg9[%c0_77, %c4], %46 {strides = array<i32>} : memref<256x72xf32, #tpu.memory_space<vmem>>, vector<256x4xf32>,
    %c0_78 = arith.constant 0 : index
    %c1_79 = arith.constant 1 : index
    %c0_80 = arith.constant 0 : index
    %48 = vector.load %arg8[%c0_78, %c1_79, %c0_80] : memref<18x18x4xf32, #tpu.memory_space<vmem>>, vector<16x16x4xf32>
    %49 = vector.shape_cast %48 : vector<16x16x4xf32> to vector<256x4xf32>
    %c0_81 = arith.constant 0 : index
    %c12 = arith.constant 12 : index
    %50 = vector.load %arg9[%c0_81, %c12] : memref<256x72xf32, #tpu.memory_space<vmem>>, vector<256x4xf32>
    tpu.vector_store %arg9[%c0_81, %c12], %49 {strides = array<i32>} : memref<256x72xf32, #tpu.memory_space<vmem>>, vector<256x4xf32>,
    %c0_82 = arith.constant 0 : index
    %c2_83 = arith.constant 2 : index
    %c0_84 = arith.constant 0 : index
    %51 = vector.load %arg8[%c0_82, %c2_83, %c0_84] : memref<18x18x4xf32, #tpu.memory_space<vmem>>, vector<16x16x4xf32>
    %52 = vector.shape_cast %51 : vector<16x16x4xf32> to vector<256x4xf32>
    %c0_85 = arith.constant 0 : index
    %c20 = arith.constant 20 : index
    %53 = vector.load %arg9[%c0_85, %c20] : memref<256x72xf32, #tpu.memory_space<vmem>>, vector<256x4xf32>
    tpu.vector_store %arg9[%c0_85, %c20], %52 {strides = array<i32>} : memref<256x72xf32, #tpu.memory_space<vmem>>, vector<256x4xf32>,
    %c1_86 = arith.constant 1 : index
    %c0_87 = arith.constant 0 : index
    %c0_88 = arith.constant 0 : index
    %54 = vector.load %arg8[%c1_86, %c0_87, %c0_88] : memref<18x18x4xf32, #tpu.memory_space<vmem>>, vector<16x16x4xf32>
    %55 = vector.shape_cast %54 : vector<16x16x4xf32> to vector<256x4xf32>
    %c0_89 = arith.constant 0 : index
    %c28 = arith.constant 28 : index
    %56 = vector.load %arg9[%c0_89, %c28] : memref<256x72xf32, #tpu.memory_space<vmem>>, vector<256x4xf32>
    tpu.vector_store %arg9[%c0_89, %c28], %55 {strides = array<i32>} : memref<256x72xf32, #tpu.memory_space<vmem>>, vector<256x4xf32>,
    %c1_90 = arith.constant 1 : index
    %c1_91 = arith.constant 1 : index
    %c0_92 = arith.constant 0 : index
    %57 = vector.load %arg8[%c1_90, %c1_91, %c0_92] : memref<18x18x4xf32, #tpu.memory_space<vmem>>, vector<16x16x4xf32>
    %58 = vector.shape_cast %57 : vector<16x16x4xf32> to vector<256x4xf32>
    %c0_93 = arith.constant 0 : index
    %c36 = arith.constant 36 : index
    %59 = vector.load %arg9[%c0_93, %c36] : memref<256x72xf32, #tpu.memory_space<vmem>>, vector<256x4xf32>
    tpu.vector_store %arg9[%c0_93, %c36], %58 {strides = array<i32>} : memref<256x72xf32, #tpu.memory_space<vmem>>, vector<256x4xf32>,
    %c1_94 = arith.constant 1 : index
    %c2_95 = arith.constant 2 : index
    %c0_96 = arith.constant 0 : index
    %60 = vector.load %arg8[%c1_94, %c2_95, %c0_96] : memref<18x18x4xf32, #tpu.memory_space<vmem>>, vector<16x16x4xf32>
    %61 = vector.shape_cast %60 : vector<16x16x4xf32> to vector<256x4xf32>
    %c0_97 = arith.constant 0 : index
    %c44 = arith.constant 44 : index
    %62 = vector.load %arg9[%c0_97, %c44] : memref<256x72xf32, #tpu.memory_space<vmem>>, vector<256x4xf32>
    tpu.vector_store %arg9[%c0_97, %c44], %61 {strides = array<i32>} : memref<256x72xf32, #tpu.memory_space<vmem>>, vector<256x4xf32>,
    %c2_98 = arith.constant 2 : index
    %c0_99 = arith.constant 0 : index
    %c0_100 = arith.constant 0 : index
    %63 = vector.load %arg8[%c2_98, %c0_99, %c0_100] : memref<18x18x4xf32, #tpu.memory_space<vmem>>, vector<16x16x4xf32>
    %64 = vector.shape_cast %63 : vector<16x16x4xf32> to vector<256x4xf32>
    %c0_101 = arith.constant 0 : index
    %c52 = arith.constant 52 : index
    %65 = vector.load %arg9[%c0_101, %c52] : memref<256x72xf32, #tpu.memory_space<vmem>>, vector<256x4xf32>
    tpu.vector_store %arg9[%c0_101, %c52], %64 {strides = array<i32>} : memref<256x72xf32, #tpu.memory_space<vmem>>, vector<256x4xf32>,
    %c2_102 = arith.constant 2 : index
    %c1_103 = arith.constant 1 : index
    %c0_104 = arith.constant 0 : index
    %66 = vector.load %arg8[%c2_102, %c1_103, %c0_104] : memref<18x18x4xf32, #tpu.memory_space<vmem>>, vector<16x16x4xf32>
    %67 = vector.shape_cast %66 : vector<16x16x4xf32> to vector<256x4xf32>
    %c0_105 = arith.constant 0 : index
    %c60 = arith.constant 60 : index
    %68 = vector.load %arg9[%c0_105, %c60] : memref<256x72xf32, #tpu.memory_space<vmem>>, vector<256x4xf32>
    tpu.vector_store %arg9[%c0_105, %c60], %67 {strides = array<i32>} : memref<256x72xf32, #tpu.memory_space<vmem>>, vector<256x4xf32>,
    %c2_106 = arith.constant 2 : index
    %c2_107 = arith.constant 2 : index
    %c0_108 = arith.constant 0 : index
    %69 = vector.load %arg8[%c2_106, %c2_107, %c0_108] : memref<18x18x4xf32, #tpu.memory_space<vmem>>, vector<16x16x4xf32>
    %70 = vector.shape_cast %69 : vector<16x16x4xf32> to vector<256x4xf32>
    %c0_109 = arith.constant 0 : index
    %c68 = arith.constant 68 : index
    %71 = vector.load %arg9[%c0_109, %c68] : memref<256x72xf32, #tpu.memory_space<vmem>>, vector<256x4xf32>
    tpu.vector_store %arg9[%c0_109, %c68], %70 {strides = array<i32>} : memref<256x72xf32, #tpu.memory_space<vmem>>, vector<256x4xf32>,
    %c0_110 = arith.constant 0 : index
    %c0_111 = arith.constant 0 : index
    %72 = vector.load %arg9[%c0_110, %c0_111] : memref<256x72xf32, #tpu.memory_space<vmem>>, vector<256x72xf32>
    %73 = arith.truncf %72 : vector<256x72xf32> to vector<256x72xbf16>
    %c0_112 = arith.constant 0 : index
    %c0_113 = arith.constant 0 : index
    %74 = vector.load %arg3[%c0_112, %c0_113] : memref<72x4xbf16, #tpu.memory_space<vmem>>, vector<72x4xbf16>
    %cst_114 = arith.constant dense<0.000000e+00> : vector<256x4xf32>
    %75 = tpu.matmul %73, %74, %cst_114 {dimension_numbers = #tpu.dot_dimension_numbers<[1], [0], [0], [1], [0, 0, 1, 1], [], []>} : vector<256x72xbf16>, vector<72x4xbf16>, vector<256x4xf32> -> vector<256x4xf32>
    %c0_115 = arith.constant 0 : index
    %c0_116 = arith.constant 0 : index
    %76 = vector.load %arg4[%c0_115, %c0_116] : memref<1x4xf32, #tpu.memory_space<vmem>>, vector<1x4xf32>
    %77 = vector.broadcast %76 : vector<1x4xf32> to vector<256x4xf32>
    %78 = arith.addf %75, %77 : vector<256x4xf32>
    %c0_117 = arith.constant 0 : index
    %c0_118 = arith.constant 0 : index
    %c0_119 = arith.constant 0 : index
    %79 = vector.load %arg5[%c0_117, %c0_118, %c0_119] : memref<1x256x4xf32, #tpu.memory_space<vmem>>, vector<1x256x4xf32>
    %80 = vector.shape_cast %79 : vector<1x256x4xf32> to vector<256x4xf32>
    %81 = vector.shape_cast %78 : vector<256x4xf32> to vector<1x256x4xf32>
    tpu.vector_store %arg5[%c0_117, %c0_118, %c0_119], %81 {strides = array<i32>} : memref<1x256x4xf32, #tpu.memory_space<vmem>>, vector<1x256x4xf32>,
    %cst_120 = arith.constant dense<0.000000e+00> : vector<4xf32>
    %82 = vector.multi_reduction <add>, %78, %cst_120 [0] : vector<256x4xf32> to vector<4xf32>
    %83 = vector.shape_cast %82 : vector<4xf32> to vector<1x4xf32>
    %cst_121 = arith.constant 3.906250e-03 : f32
    %84 = vector.broadcast %cst_121 : f32 to vector<1x4xf32>
    %85 = arith.mulf %83, %84 : vector<1x4xf32>
    %86 = vector.broadcast %85 : vector<1x4xf32> to vector<256x4xf32>
    %87 = arith.subf %78, %86 : vector<256x4xf32>
    %88 = arith.mulf %87, %87 : vector<256x4xf32>
    %cst_122 = arith.constant dense<0.000000e+00> : vector<4xf32>
    %89 = vector.multi_reduction <add>, %88, %cst_122 [0] : vector<256x4xf32> to vector<4xf32>
    %90 = vector.shape_cast %89 : vector<4xf32> to vector<1x4xf32>
    %91 = tpu.concatenate %83, %90 in 0 : vector<1x4xf32>, vector<1x4xf32> -> vector<2x4xf32>
    %c0_123 = arith.constant 0 : index
    %c0_124 = arith.constant 0 : index
    %c0_125 = arith.constant 0 : index
    %92 = vector.load %arg6[%c0_123, %c0_124, %c0_125] : memref<1x2x4xf32, #tpu.memory_space<vmem>>, vector<1x2x4xf32>
    %93 = vector.shape_cast %92 : vector<1x2x4xf32> to vector<2x4xf32>
    %94 = vector.shape_cast %91 : vector<2x4xf32> to vector<1x2x4xf32>
    tpu.vector_store %arg6[%c0_123, %c0_124, %c0_125], %94 {strides = array<i32>} : memref<1x2x4xf32, #tpu.memory_space<vmem>>, vector<1x2x4xf32>,
    return
  }
  func.func @transform_0(%arg0: i32) -> (i32, i32, i32, i32) {
    %c0_i32 = arith.constant 0 : i32
    %c0_i32_0 = arith.constant 0 : i32
    %c0_i32_1 = arith.constant 0 : i32
    %c0_i32_2 = arith.constant 0 : i32
    return %arg0, %c0_i32, %c0_i32_0, %c0_i32_1 : i32, i32, i32, i32
  }
  func.func @transform_1(%arg0: i32) -> (i32, i32, i32, i32) {
    %c0_i32 = arith.constant 0 : i32
    %c0_i32_0 = arith.constant 0 : i32
    %c0_i32_1 = arith.constant 0 : i32
    %c0_i32_2 = arith.constant 0 : i32
    return %arg0, %c0_i32, %c0_i32_0, %c0_i32_1 : i32, i32, i32, i32
  }
  func.func @transform_2(%arg0: i32) -> (i32, i32) {
    %c0_i32 = arith.constant 0 : i32
    %c0_i32_0 = arith.constant 0 : i32
    %c0_i32_1 = arith.constant 0 : i32
    return %c0_i32, %c0_i32_0 : i32, i32
  }
  func.func @transform_3(%arg0: i32) -> (i32, i32) {
    %c0_i32 = arith.constant 0 : i32
    %c0_i32_0 = arith.constant 0 : i32
    %c0_i32_1 = arith.constant 0 : i32
    return %c0_i32, %c0_i32_0 : i32, i32
  }
  func.func @transform_4(%arg0: i32) -> (i32, i32, i32) {
    %c0_i32 = arith.constant 0 : i32
    %c0_i32_0 = arith.constant 0 : i32
    %c0_i32_1 = arith.constant 0 : i32
    return %arg0, %c0_i32, %c0_i32_0 : i32, i32, i32
  }
  func.func @transform_5(%arg0: i32) -> (i32, i32, i32) {
    %c0_i32 = arith.constant 0 : i32
    %c0_i32_0 = arith.constant 0 : i32
    %c0_i32_1 = arith.constant 0 : i32
    return %arg0, %c0_i32, %c0_i32_0 : i32, i32, i32
  }
}

module attributes {stable_mosaic.version = 11 : i64} {
  func.func @_conv_bnrelu_kernel(%arg0: i32, %arg1: memref<1x16x16x4xf32, #tpu.memory_space<vmem>>, %arg2: memref<1x4xf32, #tpu.memory_space<vmem>>, %arg3: memref<1x4xf32, #tpu.memory_space<vmem>>, %arg4: memref<36x8xbf16, #tpu.memory_space<vmem>>, %arg5: memref<1x8xf32, #tpu.memory_space<vmem>>, %arg6: memref<1x256x8xf32, #tpu.memory_space<vmem>>, %arg7: memref<1x2x8xf32, #tpu.memory_space<vmem>>, %arg8: memref<18x18x4xf32, #tpu.memory_space<vmem>>, %arg9: memref<256x36xf32, #tpu.memory_space<vmem>>) attributes {dimension_semantics = [#tpu.dimension_semantics<parallel>], iteration_bounds = array<i64: 2>, scalar_prefetch = 0 : i64, scratch_operands = 2 : i64, tpu.core_type = #tpu.core_type<tc>, window_params = [{transform_indices = @transform_0, window_bounds = array<i64: 1, 16, 16, 4>}, {pipeline_mode = #tpu.pipeline_mode<synchronous>, transform_indices = @transform_1, window_bounds = array<i64: 1, 4>}, {pipeline_mode = #tpu.pipeline_mode<synchronous>, transform_indices = @transform_2, window_bounds = array<i64: 1, 4>}, {pipeline_mode = #tpu.pipeline_mode<synchronous>, transform_indices = @transform_3, window_bounds = array<i64: 36, 8>}, {pipeline_mode = #tpu.pipeline_mode<synchronous>, transform_indices = @transform_4, window_bounds = array<i64: 1, 8>}, {transform_indices = @transform_5, window_bounds = array<i64: 1, 256, 8>}, {transform_indices = @transform_6, window_bounds = array<i64: 1, 2, 8>}]} {
    %c0 = arith.constant 0 : index
    %c0_0 = arith.constant 0 : index
    %c0_1 = arith.constant 0 : index
    %c0_2 = arith.constant 0 : index
    %0 = vector.load %arg1[%c0, %c0_0, %c0_1, %c0_2] : memref<1x16x16x4xf32, #tpu.memory_space<vmem>>, vector<1x16x16x4xf32>
    %1 = vector.shape_cast %0 : vector<1x16x16x4xf32> to vector<16x16x4xf32>
    %c0_3 = arith.constant 0 : index
    %c0_4 = arith.constant 0 : index
    %2 = vector.load %arg2[%c0_3, %c0_4] : memref<1x4xf32, #tpu.memory_space<vmem>>, vector<1x4xf32>
    %3 = vector.shape_cast %2 : vector<1x4xf32> to vector<1x1x4xf32>
    %4 = vector.broadcast %3 : vector<1x1x4xf32> to vector<16x16x4xf32>
    %5 = arith.mulf %1, %4 : vector<16x16x4xf32>
    %c0_5 = arith.constant 0 : index
    %c0_6 = arith.constant 0 : index
    %6 = vector.load %arg3[%c0_5, %c0_6] : memref<1x4xf32, #tpu.memory_space<vmem>>, vector<1x4xf32>
    %7 = vector.shape_cast %6 : vector<1x4xf32> to vector<1x1x4xf32>
    %8 = vector.broadcast %7 : vector<1x1x4xf32> to vector<16x16x4xf32>
    %9 = arith.addf %5, %8 : vector<16x16x4xf32>
    %cst = arith.constant 0.000000e+00 : f32
    %10 = vector.broadcast %cst : f32 to vector<16x16x4xf32>
    %11 = arith.maximumf %9, %10 : vector<16x16x4xf32>
    %cst_7 = arith.constant 0.000000e+00 : f32
    %12 = vector.broadcast %cst_7 : f32 to vector<1x18x4xf32>
    %c0_8 = arith.constant 0 : index
    %c0_9 = arith.constant 0 : index
    %c0_10 = arith.constant 0 : index
    %13 = vector.load %arg8[%c0_8, %c0_9, %c0_10] : memref<18x18x4xf32, #tpu.memory_space<vmem>>, vector<1x18x4xf32>
    tpu.vector_store %arg8[%c0_8, %c0_9, %c0_10], %12 {strides = array<i32>} : memref<18x18x4xf32, #tpu.memory_space<vmem>>, vector<1x18x4xf32>,
    %c17 = arith.constant 17 : index
    %c0_11 = arith.constant 0 : index
    %c0_12 = arith.constant 0 : index
    %14 = vector.load %arg8[%c17, %c0_11, %c0_12] : memref<18x18x4xf32, #tpu.memory_space<vmem>>, vector<1x18x4xf32>
    tpu.vector_store %arg8[%c17, %c0_11, %c0_12], %12 {strides = array<i32>} : memref<18x18x4xf32, #tpu.memory_space<vmem>>, vector<1x18x4xf32>,
    %cst_13 = arith.constant 0.000000e+00 : f32
    %15 = vector.broadcast %cst_13 : f32 to vector<18x1x4xf32>
    %c0_14 = arith.constant 0 : index
    %c0_15 = arith.constant 0 : index
    %c0_16 = arith.constant 0 : index
    %16 = vector.load %arg8[%c0_14, %c0_15, %c0_16] : memref<18x18x4xf32, #tpu.memory_space<vmem>>, vector<18x1x4xf32>
    tpu.vector_store %arg8[%c0_14, %c0_15, %c0_16], %15 {strides = array<i32>} : memref<18x18x4xf32, #tpu.memory_space<vmem>>, vector<18x1x4xf32>,
    %c0_17 = arith.constant 0 : index
    %c17_18 = arith.constant 17 : index
    %c0_19 = arith.constant 0 : index
    %17 = vector.load %arg8[%c0_17, %c17_18, %c0_19] : memref<18x18x4xf32, #tpu.memory_space<vmem>>, vector<18x1x4xf32>
    tpu.vector_store %arg8[%c0_17, %c17_18, %c0_19], %15 {strides = array<i32>} : memref<18x18x4xf32, #tpu.memory_space<vmem>>, vector<18x1x4xf32>,
    %c1 = arith.constant 1 : index
    %c1_20 = arith.constant 1 : index
    %c0_21 = arith.constant 0 : index
    %18 = vector.load %arg8[%c1, %c1_20, %c0_21] : memref<18x18x4xf32, #tpu.memory_space<vmem>>, vector<16x16x4xf32>
    tpu.vector_store %arg8[%c1, %c1_20, %c0_21], %11 {strides = array<i32>} : memref<18x18x4xf32, #tpu.memory_space<vmem>>, vector<16x16x4xf32>,
    %c0_22 = arith.constant 0 : index
    %c0_23 = arith.constant 0 : index
    %c0_24 = arith.constant 0 : index
    %19 = vector.load %arg8[%c0_22, %c0_23, %c0_24] : memref<18x18x4xf32, #tpu.memory_space<vmem>>, vector<16x16x4xf32>
    %20 = vector.shape_cast %19 : vector<16x16x4xf32> to vector<256x4xf32>
    %c0_25 = arith.constant 0 : index
    %c0_26 = arith.constant 0 : index
    %21 = vector.load %arg9[%c0_25, %c0_26] : memref<256x36xf32, #tpu.memory_space<vmem>>, vector<256x4xf32>
    tpu.vector_store %arg9[%c0_25, %c0_26], %20 {strides = array<i32>} : memref<256x36xf32, #tpu.memory_space<vmem>>, vector<256x4xf32>,
    %c0_27 = arith.constant 0 : index
    %c1_28 = arith.constant 1 : index
    %c0_29 = arith.constant 0 : index
    %22 = vector.load %arg8[%c0_27, %c1_28, %c0_29] : memref<18x18x4xf32, #tpu.memory_space<vmem>>, vector<16x16x4xf32>
    %23 = vector.shape_cast %22 : vector<16x16x4xf32> to vector<256x4xf32>
    %c0_30 = arith.constant 0 : index
    %c4 = arith.constant 4 : index
    %24 = vector.load %arg9[%c0_30, %c4] : memref<256x36xf32, #tpu.memory_space<vmem>>, vector<256x4xf32>
    tpu.vector_store %arg9[%c0_30, %c4], %23 {strides = array<i32>} : memref<256x36xf32, #tpu.memory_space<vmem>>, vector<256x4xf32>,
    %c0_31 = arith.constant 0 : index
    %c2 = arith.constant 2 : index
    %c0_32 = arith.constant 0 : index
    %25 = vector.load %arg8[%c0_31, %c2, %c0_32] : memref<18x18x4xf32, #tpu.memory_space<vmem>>, vector<16x16x4xf32>
    %26 = vector.shape_cast %25 : vector<16x16x4xf32> to vector<256x4xf32>
    %c0_33 = arith.constant 0 : index
    %c8 = arith.constant 8 : index
    %27 = vector.load %arg9[%c0_33, %c8] : memref<256x36xf32, #tpu.memory_space<vmem>>, vector<256x4xf32>
    tpu.vector_store %arg9[%c0_33, %c8], %26 {strides = array<i32>} : memref<256x36xf32, #tpu.memory_space<vmem>>, vector<256x4xf32>,
    %c1_34 = arith.constant 1 : index
    %c0_35 = arith.constant 0 : index
    %c0_36 = arith.constant 0 : index
    %28 = vector.load %arg8[%c1_34, %c0_35, %c0_36] : memref<18x18x4xf32, #tpu.memory_space<vmem>>, vector<16x16x4xf32>
    %29 = vector.shape_cast %28 : vector<16x16x4xf32> to vector<256x4xf32>
    %c0_37 = arith.constant 0 : index
    %c12 = arith.constant 12 : index
    %30 = vector.load %arg9[%c0_37, %c12] : memref<256x36xf32, #tpu.memory_space<vmem>>, vector<256x4xf32>
    tpu.vector_store %arg9[%c0_37, %c12], %29 {strides = array<i32>} : memref<256x36xf32, #tpu.memory_space<vmem>>, vector<256x4xf32>,
    %c1_38 = arith.constant 1 : index
    %c1_39 = arith.constant 1 : index
    %c0_40 = arith.constant 0 : index
    %31 = vector.load %arg8[%c1_38, %c1_39, %c0_40] : memref<18x18x4xf32, #tpu.memory_space<vmem>>, vector<16x16x4xf32>
    %32 = vector.shape_cast %31 : vector<16x16x4xf32> to vector<256x4xf32>
    %c0_41 = arith.constant 0 : index
    %c16 = arith.constant 16 : index
    %33 = vector.load %arg9[%c0_41, %c16] : memref<256x36xf32, #tpu.memory_space<vmem>>, vector<256x4xf32>
    tpu.vector_store %arg9[%c0_41, %c16], %32 {strides = array<i32>} : memref<256x36xf32, #tpu.memory_space<vmem>>, vector<256x4xf32>,
    %c1_42 = arith.constant 1 : index
    %c2_43 = arith.constant 2 : index
    %c0_44 = arith.constant 0 : index
    %34 = vector.load %arg8[%c1_42, %c2_43, %c0_44] : memref<18x18x4xf32, #tpu.memory_space<vmem>>, vector<16x16x4xf32>
    %35 = vector.shape_cast %34 : vector<16x16x4xf32> to vector<256x4xf32>
    %c0_45 = arith.constant 0 : index
    %c20 = arith.constant 20 : index
    %36 = vector.load %arg9[%c0_45, %c20] : memref<256x36xf32, #tpu.memory_space<vmem>>, vector<256x4xf32>
    tpu.vector_store %arg9[%c0_45, %c20], %35 {strides = array<i32>} : memref<256x36xf32, #tpu.memory_space<vmem>>, vector<256x4xf32>,
    %c2_46 = arith.constant 2 : index
    %c0_47 = arith.constant 0 : index
    %c0_48 = arith.constant 0 : index
    %37 = vector.load %arg8[%c2_46, %c0_47, %c0_48] : memref<18x18x4xf32, #tpu.memory_space<vmem>>, vector<16x16x4xf32>
    %38 = vector.shape_cast %37 : vector<16x16x4xf32> to vector<256x4xf32>
    %c0_49 = arith.constant 0 : index
    %c24 = arith.constant 24 : index
    %39 = vector.load %arg9[%c0_49, %c24] : memref<256x36xf32, #tpu.memory_space<vmem>>, vector<256x4xf32>
    tpu.vector_store %arg9[%c0_49, %c24], %38 {strides = array<i32>} : memref<256x36xf32, #tpu.memory_space<vmem>>, vector<256x4xf32>,
    %c2_50 = arith.constant 2 : index
    %c1_51 = arith.constant 1 : index
    %c0_52 = arith.constant 0 : index
    %40 = vector.load %arg8[%c2_50, %c1_51, %c0_52] : memref<18x18x4xf32, #tpu.memory_space<vmem>>, vector<16x16x4xf32>
    %41 = vector.shape_cast %40 : vector<16x16x4xf32> to vector<256x4xf32>
    %c0_53 = arith.constant 0 : index
    %c28 = arith.constant 28 : index
    %42 = vector.load %arg9[%c0_53, %c28] : memref<256x36xf32, #tpu.memory_space<vmem>>, vector<256x4xf32>
    tpu.vector_store %arg9[%c0_53, %c28], %41 {strides = array<i32>} : memref<256x36xf32, #tpu.memory_space<vmem>>, vector<256x4xf32>,
    %c2_54 = arith.constant 2 : index
    %c2_55 = arith.constant 2 : index
    %c0_56 = arith.constant 0 : index
    %43 = vector.load %arg8[%c2_54, %c2_55, %c0_56] : memref<18x18x4xf32, #tpu.memory_space<vmem>>, vector<16x16x4xf32>
    %44 = vector.shape_cast %43 : vector<16x16x4xf32> to vector<256x4xf32>
    %c0_57 = arith.constant 0 : index
    %c32 = arith.constant 32 : index
    %45 = vector.load %arg9[%c0_57, %c32] : memref<256x36xf32, #tpu.memory_space<vmem>>, vector<256x4xf32>
    tpu.vector_store %arg9[%c0_57, %c32], %44 {strides = array<i32>} : memref<256x36xf32, #tpu.memory_space<vmem>>, vector<256x4xf32>,
    %c0_58 = arith.constant 0 : index
    %c0_59 = arith.constant 0 : index
    %46 = vector.load %arg9[%c0_58, %c0_59] : memref<256x36xf32, #tpu.memory_space<vmem>>, vector<256x36xf32>
    %47 = arith.truncf %46 : vector<256x36xf32> to vector<256x36xbf16>
    %c0_60 = arith.constant 0 : index
    %c0_61 = arith.constant 0 : index
    %48 = vector.load %arg4[%c0_60, %c0_61] : memref<36x8xbf16, #tpu.memory_space<vmem>>, vector<36x8xbf16>
    %cst_62 = arith.constant dense<0.000000e+00> : vector<256x8xf32>
    %49 = tpu.matmul %47, %48, %cst_62 {dimension_numbers = #tpu.dot_dimension_numbers<[1], [0], [0], [1], [0, 0, 1, 1], [], []>} : vector<256x36xbf16>, vector<36x8xbf16>, vector<256x8xf32> -> vector<256x8xf32>
    %c0_63 = arith.constant 0 : index
    %c0_64 = arith.constant 0 : index
    %50 = vector.load %arg5[%c0_63, %c0_64] : memref<1x8xf32, #tpu.memory_space<vmem>>, vector<1x8xf32>
    %51 = vector.broadcast %50 : vector<1x8xf32> to vector<256x8xf32>
    %52 = arith.addf %49, %51 : vector<256x8xf32>
    %c0_65 = arith.constant 0 : index
    %c0_66 = arith.constant 0 : index
    %c0_67 = arith.constant 0 : index
    %53 = vector.load %arg6[%c0_65, %c0_66, %c0_67] : memref<1x256x8xf32, #tpu.memory_space<vmem>>, vector<1x256x8xf32>
    %54 = vector.shape_cast %53 : vector<1x256x8xf32> to vector<256x8xf32>
    %55 = vector.shape_cast %52 : vector<256x8xf32> to vector<1x256x8xf32>
    tpu.vector_store %arg6[%c0_65, %c0_66, %c0_67], %55 {strides = array<i32>} : memref<1x256x8xf32, #tpu.memory_space<vmem>>, vector<1x256x8xf32>,
    %cst_68 = arith.constant dense<0.000000e+00> : vector<8xf32>
    %56 = vector.multi_reduction <add>, %52, %cst_68 [0] : vector<256x8xf32> to vector<8xf32>
    %57 = vector.shape_cast %56 : vector<8xf32> to vector<1x8xf32>
    %cst_69 = arith.constant 3.906250e-03 : f32
    %58 = vector.broadcast %cst_69 : f32 to vector<1x8xf32>
    %59 = arith.mulf %57, %58 : vector<1x8xf32>
    %60 = vector.broadcast %59 : vector<1x8xf32> to vector<256x8xf32>
    %61 = arith.subf %52, %60 : vector<256x8xf32>
    %62 = arith.mulf %61, %61 : vector<256x8xf32>
    %cst_70 = arith.constant dense<0.000000e+00> : vector<8xf32>
    %63 = vector.multi_reduction <add>, %62, %cst_70 [0] : vector<256x8xf32> to vector<8xf32>
    %64 = vector.shape_cast %63 : vector<8xf32> to vector<1x8xf32>
    %65 = tpu.concatenate %57, %64 in 0 : vector<1x8xf32>, vector<1x8xf32> -> vector<2x8xf32>
    %c0_71 = arith.constant 0 : index
    %c0_72 = arith.constant 0 : index
    %c0_73 = arith.constant 0 : index
    %66 = vector.load %arg7[%c0_71, %c0_72, %c0_73] : memref<1x2x8xf32, #tpu.memory_space<vmem>>, vector<1x2x8xf32>
    %67 = vector.shape_cast %66 : vector<1x2x8xf32> to vector<2x8xf32>
    %68 = vector.shape_cast %65 : vector<2x8xf32> to vector<1x2x8xf32>
    tpu.vector_store %arg7[%c0_71, %c0_72, %c0_73], %68 {strides = array<i32>} : memref<1x2x8xf32, #tpu.memory_space<vmem>>, vector<1x2x8xf32>,
    return
  }
  func.func @transform_0(%arg0: i32) -> (i32, i32, i32, i32) {
    %c0_i32 = arith.constant 0 : i32
    %c0_i32_0 = arith.constant 0 : i32
    %c0_i32_1 = arith.constant 0 : i32
    %c0_i32_2 = arith.constant 0 : i32
    return %arg0, %c0_i32, %c0_i32_0, %c0_i32_1 : i32, i32, i32, i32
  }
  func.func @transform_1(%arg0: i32) -> (i32, i32) {
    %c0_i32 = arith.constant 0 : i32
    %c0_i32_0 = arith.constant 0 : i32
    %c0_i32_1 = arith.constant 0 : i32
    return %c0_i32, %c0_i32_0 : i32, i32
  }
  func.func @transform_2(%arg0: i32) -> (i32, i32) {
    %c0_i32 = arith.constant 0 : i32
    %c0_i32_0 = arith.constant 0 : i32
    %c0_i32_1 = arith.constant 0 : i32
    return %c0_i32, %c0_i32_0 : i32, i32
  }
  func.func @transform_3(%arg0: i32) -> (i32, i32) {
    %c0_i32 = arith.constant 0 : i32
    %c0_i32_0 = arith.constant 0 : i32
    %c0_i32_1 = arith.constant 0 : i32
    return %c0_i32, %c0_i32_0 : i32, i32
  }
  func.func @transform_4(%arg0: i32) -> (i32, i32) {
    %c0_i32 = arith.constant 0 : i32
    %c0_i32_0 = arith.constant 0 : i32
    %c0_i32_1 = arith.constant 0 : i32
    return %c0_i32, %c0_i32_0 : i32, i32
  }
  func.func @transform_5(%arg0: i32) -> (i32, i32, i32) {
    %c0_i32 = arith.constant 0 : i32
    %c0_i32_0 = arith.constant 0 : i32
    %c0_i32_1 = arith.constant 0 : i32
    return %arg0, %c0_i32, %c0_i32_0 : i32, i32, i32
  }
  func.func @transform_6(%arg0: i32) -> (i32, i32, i32) {
    %c0_i32 = arith.constant 0 : i32
    %c0_i32_0 = arith.constant 0 : i32
    %c0_i32_1 = arith.constant 0 : i32
    return %arg0, %c0_i32, %c0_i32_0 : i32, i32, i32
  }
}

module attributes {stable_mosaic.version = 11 : i64} {
  func.func @_bnrelu_resize_kernel(%arg0: i32, %arg1: memref<1x16x128xf32, #tpu.memory_space<vmem>>, %arg2: memref<1x128xf32, #tpu.memory_space<vmem>>, %arg3: memref<1x128xf32, #tpu.memory_space<vmem>>, %arg4: memref<32x16xbf16, #tpu.memory_space<vmem>>, %arg5: memref<128x256xbf16, #tpu.memory_space<vmem>>, %arg6: memref<1x32x256xf32, #tpu.memory_space<vmem>>) attributes {dimension_semantics = [#tpu.dimension_semantics<parallel>], iteration_bounds = array<i64: 2>, scalar_prefetch = 0 : i64, scratch_operands = 0 : i64, tpu.core_type = #tpu.core_type<tc>, window_params = [{transform_indices = @transform_0, window_bounds = array<i64: 1, 16, 128>}, {pipeline_mode = #tpu.pipeline_mode<synchronous>, transform_indices = @transform_1, window_bounds = array<i64: 1, 128>}, {pipeline_mode = #tpu.pipeline_mode<synchronous>, transform_indices = @transform_2, window_bounds = array<i64: 1, 128>}, {pipeline_mode = #tpu.pipeline_mode<synchronous>, transform_indices = @transform_3, window_bounds = array<i64: 32, 16>}, {pipeline_mode = #tpu.pipeline_mode<synchronous>, transform_indices = @transform_4, window_bounds = array<i64: 128, 256>}, {transform_indices = @transform_5, window_bounds = array<i64: 1, 32, 256>}]} {
    %c0 = arith.constant 0 : index
    %c0_0 = arith.constant 0 : index
    %c0_1 = arith.constant 0 : index
    %0 = vector.load %arg1[%c0, %c0_0, %c0_1] : memref<1x16x128xf32, #tpu.memory_space<vmem>>, vector<1x16x128xf32>
    %1 = vector.shape_cast %0 : vector<1x16x128xf32> to vector<16x128xf32>
    %c0_2 = arith.constant 0 : index
    %c0_3 = arith.constant 0 : index
    %2 = vector.load %arg2[%c0_2, %c0_3] : memref<1x128xf32, #tpu.memory_space<vmem>>, vector<1x128xf32>
    %3 = vector.broadcast %2 : vector<1x128xf32> to vector<16x128xf32>
    %4 = arith.mulf %1, %3 : vector<16x128xf32>
    %c0_4 = arith.constant 0 : index
    %c0_5 = arith.constant 0 : index
    %5 = vector.load %arg3[%c0_4, %c0_5] : memref<1x128xf32, #tpu.memory_space<vmem>>, vector<1x128xf32>
    %6 = vector.broadcast %5 : vector<1x128xf32> to vector<16x128xf32>
    %7 = arith.addf %4, %6 : vector<16x128xf32>
    %cst = arith.constant 0.000000e+00 : f32
    %8 = vector.broadcast %cst : f32 to vector<16x128xf32>
    %9 = arith.maximumf %7, %8 : vector<16x128xf32>
    %10 = arith.truncf %9 : vector<16x128xf32> to vector<16x128xbf16>
    %c0_6 = arith.constant 0 : index
    %c0_7 = arith.constant 0 : index
    %11 = vector.load %arg5[%c0_6, %c0_7] : memref<128x256xbf16, #tpu.memory_space<vmem>>, vector<128x256xbf16>
    %cst_8 = arith.constant dense<0.000000e+00> : vector<16x256xf32>
    %12 = tpu.matmul %10, %11, %cst_8 {dimension_numbers = #tpu.dot_dimension_numbers<[1], [0], [0], [1], [0, 0, 1, 1], [], []>} : vector<16x128xbf16>, vector<128x256xbf16>, vector<16x256xf32> -> vector<16x256xf32>
    %c0_9 = arith.constant 0 : index
    %c0_10 = arith.constant 0 : index
    %13 = vector.load %arg4[%c0_9, %c0_10] : memref<32x16xbf16, #tpu.memory_space<vmem>>, vector<32x16xbf16>
    %14 = arith.truncf %12 : vector<16x256xf32> to vector<16x256xbf16>
    %cst_11 = arith.constant dense<0.000000e+00> : vector<32x256xf32>
    %15 = tpu.matmul %13, %14, %cst_11 {dimension_numbers = #tpu.dot_dimension_numbers<[1], [0], [0], [1], [0, 0, 1, 1], [], []>} : vector<32x16xbf16>, vector<16x256xbf16>, vector<32x256xf32> -> vector<32x256xf32>
    %c0_12 = arith.constant 0 : index
    %c0_13 = arith.constant 0 : index
    %c0_14 = arith.constant 0 : index
    %16 = vector.load %arg6[%c0_12, %c0_13, %c0_14] : memref<1x32x256xf32, #tpu.memory_space<vmem>>, vector<1x32x256xf32>
    %17 = vector.shape_cast %16 : vector<1x32x256xf32> to vector<32x256xf32>
    %18 = vector.shape_cast %15 : vector<32x256xf32> to vector<1x32x256xf32>
    tpu.vector_store %arg6[%c0_12, %c0_13, %c0_14], %18 {strides = array<i32>} : memref<1x32x256xf32, #tpu.memory_space<vmem>>, vector<1x32x256xf32>,
    return
  }
  func.func @transform_0(%arg0: i32) -> (i32, i32, i32) {
    %c0_i32 = arith.constant 0 : i32
    %c0_i32_0 = arith.constant 0 : i32
    %c0_i32_1 = arith.constant 0 : i32
    return %arg0, %c0_i32, %c0_i32_0 : i32, i32, i32
  }
  func.func @transform_1(%arg0: i32) -> (i32, i32) {
    %c0_i32 = arith.constant 0 : i32
    %c0_i32_0 = arith.constant 0 : i32
    %c0_i32_1 = arith.constant 0 : i32
    return %c0_i32, %c0_i32_0 : i32, i32
  }
  func.func @transform_2(%arg0: i32) -> (i32, i32) {
    %c0_i32 = arith.constant 0 : i32
    %c0_i32_0 = arith.constant 0 : i32
    %c0_i32_1 = arith.constant 0 : i32
    return %c0_i32, %c0_i32_0 : i32, i32
  }
  func.func @transform_3(%arg0: i32) -> (i32, i32) {
    %c0_i32 = arith.constant 0 : i32
    %c0_i32_0 = arith.constant 0 : i32
    %c0_i32_1 = arith.constant 0 : i32
    return %c0_i32, %c0_i32_0 : i32, i32
  }
  func.func @transform_4(%arg0: i32) -> (i32, i32) {
    %c0_i32 = arith.constant 0 : i32
    %c0_i32_0 = arith.constant 0 : i32
    %c0_i32_1 = arith.constant 0 : i32
    return %c0_i32, %c0_i32_0 : i32, i32
  }
  func.func @transform_5(%arg0: i32) -> (i32, i32, i32) {
    %c0_i32 = arith.constant 0 : i32
    %c0_i32_0 = arith.constant 0 : i32
    %c0_i32_1 = arith.constant 0 : i32
    return %arg0, %c0_i32, %c0_i32_0 : i32, i32, i32
  }
}

</mosaic_0001>

<llo_original>
// kernel: up_forward.4
$region0: #{up_forward.4}
  #allocation0 [shape = 'u32[]', space=smem, size = 0x4, offset = 0x4, fixed_abs, tag = 'smem constant byte address 0x4 - core index']
  #allocation1 [shape = 'u32[72,128]{1,0:T(1,128)}', space=vmem, size = 0x9000, scoped, tag = 'internal scratch']
  %s0 = inlined_call_operand.vmem [shape: f32[2,8,32], index: 0, kind: input, shape index: {}]
  %s1 = inlined_call_operand.vmem [shape: bf16[16,8], index: 1, kind: input, shape index: {}]
  %s2 = inlined_call_operand.vmem [shape: bf16[32,64], index: 2, kind: input, shape index: {}]
  %s3 = inlined_call_operand.vmem [shape: f32[2,16,64], index: 3, kind: output, shape index: {}]
  %s4 = sld [smem:[#allocation0]]
  $region45: #{up_forward.4} parent=0
    _
  %s6 = ssub.s32 1, %s4
  %s7 = scalar_select 0, %s6, %s4
  loop: start=0, step=1, limit=4
  $region2: #{up_forward.4} parent=0 // loop_pre_header
    _
  $region3: #{up_forward.4} parent=0 // loop_header
    %s9 = sphi 0, %s13
    %p10 = scmp.ge.s32.totalorder %s9, 4
    %s19 = sphi 0, %s21
    %s22 = sphi 0, %s19
    %s23 = sphi 0, %s22
    %s39 = sphi 0, %s23
    %s43 = sphi 0, %s43
    %s45 = sphi 0, %s43
    %s46 = sphi 0, %s45
    %s60 = sphi 0, %s46
    %s64 = sphi 0, %s64
    %s66 = sphi 0, %s64
    %s67 = sphi 0, %s66
    %s81 = sphi 0, %s67
    %s87 = sphi 0, %s89
    %s90 = sphi 0, %s87
    %s91 = sphi 0, %s90
    %s107 = sphi 0, %s91
  $region4: #{up_forward.4} parent=0 // loop_header_branch
    %12 = sbr.rel (%p10) target = $region8
  $region5: #{up_forward.4} parent=0 // loop_body
    %s14 = ssub.s32 %s9, 1
    %s15 = ssub.s32 %s9, 2
    %s16 = sadd.s32 %s9, 1
    %s17 = ssub.s32 %s9, %s16
    %p18 = scmp.eq.s32.totalorder %s17, 0
    %s20 = sadd.s32 %s19, 1
    %s21 = scalar_select %p18, %s19, %s20
    %p24 = pneg %p18
    %p25 = scmp.eq.s32.totalorder %s9, 1
    %p26 = por %p24, %p25
    %p27 = scmp.ne.s32.totalorder %s19, %s22
    %p28 = scmp.eq.s32.totalorder %s9, 0
    %p29 = por %p27, %p28
    %p30 = scmp.ne.s32.totalorder %s19, %s22
    %p31 = scmp.eq.s32.totalorder %s14, 1
    %p32 = por %p30, %p31
    %p33 = scmp.ne.s32.totalorder %s22, %s23
    %p34 = scmp.eq.s32.totalorder %s14, 0
    %p35 = por %p33, %p34
    %p36 = scmp.ne.s32.totalorder %s22, %s23
    %p37 = scmp.eq.s32.totalorder %s15, 1
    %p38 = por %p36, %p37
    %p40 = scmp.ne.s32.totalorder %s23, %s39
    %p41 = scmp.eq.s32.totalorder %s15, 0
    %p42 = por %p40, %p41
    %s44 = sadd.s32 %s43, 1
    %p47 = scmp.eq.s32.totalorder %s9, 1
    %p48 = scmp.ne.s32.totalorder %s43, %s45
    %p49 = scmp.eq.s32.totalorder %s9, 0
    %p50 = por %p48, %p49
    %p51 = scmp.ne.s32.totalorder %s43, %s45
    %p52 = scmp.eq.s32.totalorder %s14, 1
    %p53 = por %p51, %p52
    %p54 = scmp.ne.s32.totalorder %s45, %s46
    %p55 = scmp.eq.s32.totalorder %s14, 0
    %p56 = por %p54, %p55
    %p57 = scmp.ne.s32.totalorder %s45, %s46
    %p58 = scmp.eq.s32.totalorder %s15, 1
    %p59 = por %p57, %p58
    %p61 = scmp.ne.s32.totalorder %s46, %s60
    %p62 = scmp.eq.s32.totalorder %s15, 0
    %p63 = por %p61, %p62
    %s65 = sadd.s32 %s64, 1
    %p68 = scmp.eq.s32.totalorder %s9, 1
    %p69 = scmp.ne.s32.totalorder %s64, %s66
    %p70 = scmp.eq.s32.totalorder %s9, 0
    %p71 = por %p69, %p70
    %p72 = scmp.ne.s32.totalorder %s64, %s66
    %p73 = scmp.eq.s32.totalorder %s14, 1
    %p74 = por %p72, %p73
    %p75 = scmp.ne.s32.totalorder %s66, %s67
    %p76 = scmp.eq.s32.totalorder %s14, 0
    %p77 = por %p75, %p76
    %p78 = scmp.ne.s32.totalorder %s66, %s67
    %p79 = scmp.eq.s32.totalorder %s15, 1
    %p80 = por %p78, %p79
    %p82 = scmp.ne.s32.totalorder %s67, %s81
    %p83 = scmp.eq.s32.totalorder %s15, 0
    %p84 = por %p82, %p83
    %s85 = ssub.s32 %s9, %s16
    %p86 = scmp.eq.s32.totalorder %s85, 0
    %s88 = sadd.s32 %s87, 1
    %s89 = scalar_select %p86, %s87, %s88
    %p92 = pneg %p86
    %p93 = scmp.eq.s32.totalorder %s9, 1
    %p94 = por %p92, %p93
    %p95 = scmp.ne.s32.totalorder %s87, %s90
    %p96 = scmp.eq.s32.totalorder %s9, 0
    %p97 = por %p95, %p96
    %p98 = scmp.ne.s32.totalorder %s87, %s90
    %p99 = scmp.eq.s32.totalorder %s14, 1
    %p100 = por %p98, %p99
    %p101 = scmp.ne.s32.totalorder %s90, %s91
    %p102 = scmp.eq.s32.totalorder %s14, 0
    %p103 = por %p101, %p102
    %p104 = scmp.ne.s32.totalorder %s90, %s91
    %p105 = scmp.eq.s32.totalorder %s15, 1
    %p106 = por %p104, %p105
    %p108 = scmp.ne.s32.totalorder %s91, %s107
    %p109 = scmp.eq.s32.totalorder %s15, 0
    %p110 = por %p108, %p109
    %p111 = scmp.le.s32.totalorder 1, %s9
    %p112 = scmp.lt.s32.totalorder %s9, 3
    %p113 = pnand %p111, %p112
    %p114 = pneg %p113
    // Predicated region
    $region9: #{up_forward.4} parent=5 // pred_check
      _
    $region10: #{up_forward.4} parent=5 // pred_check_branch
      %116 = sbr.rel (%p113) target = $region12
    $region11: #{up_forward.4} parent=5 // pred_region
      %s117 = ssub.s32 %s9, 1
      // Predicated region
      $region13: #{up_forward.4} parent=11 // pred_check
        %p118 = pneg %p56
      $region14: #{up_forward.4} parent=11 // pred_check_branch
        %120 = sbr.rel (%p118) target = $region16
      $region15: #{up_forward.4} parent=11 // pred_region
        _
      $region16: #{up_forward.4} parent=11 // pred_fallthru
        _
      // Predicated region
      $region17: #{up_forward.4} parent=11 // pred_check
        %p121 = pneg %p77
      $region18: #{up_forward.4} parent=11 // pred_check_branch
        %123 = sbr.rel (%p121) target = $region20
      $region19: #{up_forward.4} parent=11 // pred_region
        _
      $region20: #{up_forward.4} parent=11 // pred_fallthru
        _
    $region12: #{up_forward.4} parent=5 // pred_fallthru
      _
    %p124 = scmp.lt.s32.totalorder %s9, 2
    // Predicated region
    $region21: #{up_forward.4} parent=5 // pred_check
      %p125 = pneg %p124
    $region22: #{up_forward.4} parent=5 // pred_check_branch
      %127 = sbr.rel (%p125) target = $region24
    $region23: #{up_forward.4} parent=5 // pred_region
      // Predicated region
      $region25: #{up_forward.4} parent=23 // pred_check
        %p128 = pneg %p29
      $region26: #{up_forward.4} parent=23 // pred_check_branch
        %130 = sbr.rel (%p128) target = $region28
      $region27: #{up_forward.4} parent=23 // pred_region
        %p131 = scmp.lt.s32.totalorder %s9, 1
        %s132 = scalar_select %p131, %s9, 1
        %s133 = smul.addr %s132, 8
        %s134 = scalar_lea.vmem %s0, %s133
      $region28: #{up_forward.4} parent=23 // pred_fallthru
        _
    $region24: #{up_forward.4} parent=5 // pred_fallthru
      _
    %p135 = scmp.le.s32.totalorder 1, %s9
    %p136 = scmp.lt.s32.totalorder %s9, 3
    %p137 = pnand %p135, %p136
    %p138 = pneg %p137
    // Predicated region
    $region29: #{up_forward.4} parent=5 // pred_check
      _
    $region30: #{up_forward.4} parent=5 // pred_check_branch
      %140 = sbr.rel (%p137) target = $region32
    $region31: #{up_forward.4} parent=5 // pred_region
      %s141 = ssub.s32 %s9, 1
      %p142 = scmp.lt.s32.totalorder %s14, 1
      %s143 = scalar_select %p142, %s14, 1
      %s144 = smul.addr %s143, 8
      %s145 = scalar_lea.vmem %s0, %s144
      %p146 = pneg %p35
      %p147 = pneg %p32
      %p148 = pneg %p56
      %p149 = pneg %p53
      %p150 = pneg %p77
      %p151 = pneg %p74
      %p152 = pneg %p103
      %p153 = pneg %p100
      %p154 = scmp.lt.s32.totalorder %s14, 1
      %s155 = scalar_select %p154, %s14, 1
      %s156 = smul.addr %s155, 2
      %s157 = smul.addr %s156, 8
      %s158 = scalar_lea.vmem %s3, %s157
      %p159 = scmp.lt.s32.totalorder %s14, 1
      %s160 = scalar_select %p159, %s14, 1
      %s161 = smul.addr %s160, 8
      %s162 = scalar_lea.vmem %s0, %s161
      %p163 = scmp.lt.s32.totalorder %s14, 1
      %s164 = scalar_select %p163, %s14, 1
      %s165 = smul.addr %s164, 2
      %s166 = smul.addr %s165, 8
      %s167 = scalar_lea.vmem %s3, %s166
      %v169 = vld [vmem:[%s162] sm:$0xff]
      %v170 = vpack.c.bf16 %v169, %v169
      %v171 = vld [vmem:[%s2] sm:$0xf]
      %v172 = vld [vmem:[%s2 + $0x4] sm:$0xf]
      %v173 = vld [vmem:[%s2 + $0x8] sm:$0xf]
      %v174 = vld [vmem:[%s2 + $0xc] sm:$0xf]
      %v179 = vunpack.c.l.b16 %v171
      %v180 = vunpack.c.l.b16 %v172
      %v181 = vunpack.c.l.b16 %v173
      %v182 = vunpack.c.l.b16 %v174
      %v183 = vpack.c.b16 %v180, %v179
      %v184 = vpack.c.b16 %v182, %v181
      %vm187 = vcmask 261120
      %v189 = vsel %vm187, %v170, 0
      %191 = vmatpush.bf16.msra.mxu0 0
      %192 = vmatpush.bf16.msra.mxu0 0
      %193 = vmatpush.bf16.msra.mxu0 0
      %194 = vmatpush.bf16.msra.mxu0 0
      %195 = vmatpush.bf16.msra.mxu0 0
      %196 = vmatpush.bf16.msra.mxu0 0
      %197 = vmatpush.bf16.msra.mxu0 %v184
      %198 = vmatpush.bf16.msra.mxu0 %v183
      %199 = vmatmul.bf16.gmra.mxu0 %v189
      %v200 = vpop.f32.mrf.mxu0
      %v201 = vadd.f32 0.0, %v200
      %v202 = vpop.f32.mrf.mxu0
      %203 = vdwg.mxu0
      %v204 = vld [vmem:[%s1] sm:$0xf]
      %v205 = vld [vmem:[%s1 + $0x4] sm:$0xf]
      %v206 = vpack.c.bf16 %v201, %v201
      %v209 = vunpack.c.l.b16 %v204
      %v210 = vunpack.c.l.b16 %v205
      %v211 = vpack.c.b16 %v210, %v209
      %vm212 = vcmask 64512
      %v214 = vsel %vm212, %v211, 0
      %vm216 = vcmask 1043456
      %v218 = vsel %vm216, %v206, 0
      %220 = vmatpush.bf16.msra.mxu0 0
      %221 = vmatpush.bf16.msra.mxu0 0
      %222 = vmatpush.bf16.msra.mxu0 0
      %223 = vmatpush.bf16.msra.mxu0 0
      %224 = vmatpush.bf16.msra.mxu0 0
      %225 = vmatpush.bf16.msra.mxu0 0
      %226 = vmatpush.bf16.msra.mxu0 0
      %227 = vmatpush.bf16.msra.mxu0 %v218
      %228 = vmatmul.bf16.gmra.mxu0 %v214
      %v229 = vpop.f32.mrf.mxu0
      %v230 = vadd.f32 0.0, %v229
      %v231 = vpop.f32.mrf.mxu0
      %v232 = vadd.f32 0.0, %v231
      %233 = vdwg.mxu0
      %vm234 = vcmask 523264
      %235 = vst.msk [vmem:[%s167] sm:$0xff] %vm234, %v230
      %236 = vst.msk [vmem:[%s167 + $0x8] sm:$0xff] %vm234, %v232
      %p237 = scmp.lt.s32.totalorder %s14, 1
      %s238 = scalar_select %p237, %s14, 1
      %s239 = smul.addr %s238, 2
      %s240 = smul.addr %s239, 8
      %s241 = scalar_lea.vmem %s3, %s240
      // Predicated region
      $region33: #{up_forward.4} parent=31 // pred_check
        %p242 = pneg %p100
      $region34: #{up_forward.4} parent=31 // pred_check_branch
        %244 = sbr.rel (%p242) target = $region36
      $region35: #{up_forward.4} parent=31 // pred_region
        _
      $region36: #{up_forward.4} parent=31 // pred_fallthru
        _
    $region32: #{up_forward.4} parent=5 // pred_fallthru
      _
    %p245 = scmp.le.s32.totalorder 2, %s9
    // Predicated region
    $region37: #{up_forward.4} parent=5 // pred_check
      %p246 = pneg %p245
    $region38: #{up_forward.4} parent=5 // pred_check_branch
      %248 = sbr.rel (%p246) target = $region40
    $region39: #{up_forward.4} parent=5 // pred_region
      %s249 = ssub.s32 %s9, 2
      // Predicated region
      $region41: #{up_forward.4} parent=39 // pred_check
        %p250 = pneg %p106
      $region42: #{up_forward.4} parent=39 // pred_check_branch
        %252 = sbr.rel (%p250) target = $region44
      $region43: #{up_forward.4} parent=39 // pred_region
        %p253 = scmp.lt.s32.totalorder %s15, 1
        %s254 = scalar_select %p253, %s15, 1
        %s255 = smul.addr %s254, 2
        %s256 = smul.addr %s255, 8
        %s257 = scalar_lea.vmem %s3, %s256
      $region44: #{up_forward.4} parent=39 // pred_fallthru
        _
    $region40: #{up_forward.4} parent=5 // pred_fallthru
      _
  $region6: #{up_forward.4} parent=0 // loop_footer
    %s13 = sadd.s32 1, %s9
  $region7: #{up_forward.4} parent=0 // loop_footer_branch
    %8 = sbr.rel target = $region3
  $region8: #{up_forward.4} parent=0 // loop_exit
    _

// kernel: tile.13
$region0: #{tile.13}
  #allocation0 [shape = 's32[1]{0}', space=sflag, size = 0x4, scoped, tag = 'scoped memory for tile.13']
  %s0 = inlined_call_operand.vmem [shape: f32[8], index: 0, kind: input, shape index: {}]
  %s1 = inlined_call_operand.vmem [shape: f32[16,8], index: 1, kind: output, shape index: {}]
  // Predicated region
  $region2: #{tile.13} parent=0 // pred_check
    _
  $region3: #{tile.13} parent=0 // pred_check_branch
    %3 = sbr.rel (0) target = $region5
  $region4: #{tile.13} parent=0 // pred_region
    _
  $region5: #{tile.13} parent=0 // pred_fallthru
    _
  %v4 = vld [vmem:[%s0] ss:$0 sm:$0xff]
  %5 = vst [vmem:[%s1] sm:$0xff] %v4
  %s6 = scalar_lea.vmem %s1, 8
  %7 = vst [vmem:[%s6] sm:$0xff] %v4

// kernel: tile.14
$region0: #{tile.14}
  %s0 = inlined_call_operand.vmem [shape: f32[16,8], index: 0, kind: input, shape index: {}]
  %s1 = inlined_call_operand.vmem [shape: f32[1,128], index: 1, kind: output, shape index: {}]
  $region1: #{tile.14} parent=0
    #allocation0 [shape = 'u8[4096]{0}', space=vmem, size = 0x1000, scoped, tag = 'scoped mem for output reshape']
    %v2 = vld [vmem:[%s0] sm:$0x1]
    %vm3 = vcmask 64512
    %4 = vst.msk [vmem:[#allocation0] sm:$0x1] %vm3, %v2
    %s5 = scalar_lea.vmem %s0, 15
    %v6 = vld [vmem:[%s5] sm:$0x1]
    %7 = vrot.lane.b32.xlu0 %v6, 120
    %v8 = vpop.permute.xlu0 %7
    %vm9 = vcmask 1048512
    %10 = vst.msk [vmem:[#allocation0] sm:$0x1] %vm9, %v8
    %s11 = scalar_lea.vmem %s0, 14
    %v12 = vld [vmem:[%s11] sm:$0x1]
    %13 = vrot.lane.b32.xlu0 %v12, 112
    %v14 = vpop.permute.xlu0 %13
    %vm15 = vcmask 982912
    %16 = vst.msk [vmem:[#allocation0] sm:$0x1] %vm15, %v14
    %s17 = scalar_lea.vmem %s0, 13
    %v18 = vld [vmem:[%s17] sm:$0x1]
    %19 = vrot.lane.b32.xlu0 %v18, 104
    %v20 = vpop.permute.xlu0 %19
    %vm21 = vcmask 917312
    %22 = vst.msk [vmem:[#allocation0] sm:$0x1] %vm21, %v20
    %s23 = scalar_lea.vmem %s0, 12
    %v24 = vld [vmem:[%s23] sm:$0x1]
    %25 = vrot.lane.b32.xlu0 %v24, 96
    %v26 = vpop.permute.xlu0 %25
    %vm27 = vcmask 851712
    %28 = vst.msk [vmem:[#allocation0] sm:$0x1] %vm27, %v26
    %s29 = scalar_lea.vmem %s0, 11
    %v30 = vld [vmem:[%s29] sm:$0x1]
    %31 = vrot.lane.b32.xlu0 %v30, 88
    %v32 = vpop.permute.xlu0 %31
    %vm33 = vcmask 786112
    %34 = vst.msk [vmem:[#allocation0] sm:$0x1] %vm33, %v32
    %s35 = scalar_lea.vmem %s0, 10
    %v36 = vld [vmem:[%s35] sm:$0x1]
    %37 = vrot.lane.b32.xlu0 %v36, 80
    %v38 = vpop.permute.xlu0 %37
    %vm39 = vcmask 720512
    %40 = vst.msk [vmem:[#allocation0] sm:$0x1] %vm39, %v38
    %s41 = scalar_lea.vmem %s0, 9
    %v42 = vld [vmem:[%s41] sm:$0x1]
    %43 = vrot.lane.b32.xlu0 %v42, 72
    %v44 = vpop.permute.xlu0 %43
    %vm45 = vcmask 654912
    %46 = vst.msk [vmem:[#allocation0] sm:$0x1] %vm45, %v44
    %s47 = scalar_lea.vmem %s0, 8
    %v48 = vld [vmem:[%s47] sm:$0x1]
    %49 = vrot.lane.b32.xlu0 %v48, 64
    %v50 = vpop.permute.xlu0 %49
    %vm51 = vcmask 589312
    %52 = vst.msk [vmem:[#allocation0] sm:$0x1] %vm51, %v50
    %s53 = scalar_lea.vmem %s0, 7
    %v54 = vld [vmem:[%s53] sm:$0x1]
    %55 = vrot.lane.b32.xlu0 %v54, 56
    %v56 = vpop.permute.xlu0 %55
    %vm57 = vcmask 523712
    %58 = vst.msk [vmem:[#allocation0] sm:$0x1] %vm57, %v56
    %s59 = scalar_lea.vmem %s0, 6
    %v60 = vld [vmem:[%s59] sm:$0x1]
    %61 = vrot.lane.b32.xlu0 %v60, 48
    %v62 = vpop.permute.xlu0 %61
    %vm63 = vcmask 458112
    %64 = vst.msk [vmem:[#allocation0] sm:$0x1] %vm63, %v62
    %s65 = scalar_lea.vmem %s0, 5
    %v66 = vld [vmem:[%s65] sm:$0x1]
    %67 = vrot.lane.b32.xlu0 %v66, 40
    %v68 = vpop.permute.xlu0 %67
    %vm69 = vcmask 392512
    %70 = vst.msk [vmem:[#allocation0] sm:$0x1] %vm69, %v68
    %s71 = scalar_lea.vmem %s0, 4
    %v72 = vld [vmem:[%s71] sm:$0x1]
    %73 = vrot.lane.b32.xlu0 %v72, 32
    %v74 = vpop.permute.xlu0 %73
    %vm75 = vcmask 326912
    %76 = vst.msk [vmem:[#allocation0] sm:$0x1] %vm75, %v74
    %s77 = scalar_lea.vmem %s0, 3
    %v78 = vld [vmem:[%s77] sm:$0x1]
    %79 = vrot.lane.b32.xlu0 %v78, 24
    %v80 = vpop.permute.xlu0 %79
    %vm81 = vcmask 261312
    %82 = vst.msk [vmem:[#allocation0] sm:$0x1] %vm81, %v80
    %s83 = scalar_lea.vmem %s0, 2
    %v84 = vld [vmem:[%s83] sm:$0x1]
    %85 = vrot.lane.b32.xlu0 %v84, 16
    %v86 = vpop.permute.xlu0 %85
    %vm87 = vcmask 195712
    %88 = vst.msk [vmem:[#allocation0] sm:$0x1] %vm87, %v86
    %s89 = scalar_lea.vmem %s0, 1
    %v90 = vld [vmem:[%s89] sm:$0x1]
    %91 = vrot.lane.b32.xlu0 %v90, 8
    %v92 = vpop.permute.xlu0 %91
    %vm93 = vcmask 130112
    %94 = vst.msk [vmem:[#allocation0] sm:$0x1] %vm93, %v92
    %s96 = ssub.s32 2, 1
    %v97 = vld [vmem:[#allocation0] sm:%s96]
    %s99 = ssub.s32 2, 1
    %100 = vst [vmem:[%s1] sm:%s99] %v97

// kernel: up_forward.7
$region0: #{up_forward.7}
  #allocation0 [shape = 'u32[]', space=smem, size = 0x4, offset = 0x4, fixed_abs, tag = 'smem constant byte address 0x4 - core index']
  #allocation1 [shape = 'u32[72,128]{1,0:T(1,128)}', space=vmem, size = 0x9000, scoped, tag = 'internal scratch']
  %s0 = inlined_call_operand.vmem [shape: f32[2,16,128], index: 0, kind: input, shape index: {}]
  %s1 = inlined_call_operand.vmem [shape: f32[1,128], index: 1, kind: input, shape index: {}]
  %s2 = inlined_call_operand.vmem [shape: f32[1,128], index: 2, kind: input, shape index: {}]
  %s3 = inlined_call_operand.vmem [shape: bf16[32,16], index: 3, kind: input, shape index: {}]
  %s4 = inlined_call_operand.vmem [shape: bf16[128,256], index: 4, kind: input, shape index: {}]
  %s5 = inlined_call_operand.vmem [shape: f32[2,32,256], index: 5, kind: output, shape index: {}]
  %s6 = sld [smem:[#allocation0]]
  $region53: #{up_forward.7} parent=0
    _
  %s8 = ssub.s32 1, %s6
  %s9 = scalar_select 0, %s8, %s6
  loop: start=0, step=1, limit=4
  $region2: #{up_forward.7} parent=0 // loop_pre_header
    _
  $region3: #{up_forward.7} parent=0 // loop_header
    %s11 = sphi 0, %s15
    %p12 = scmp.ge.s32.totalorder %s11, 4
    %s21 = sphi 0, %s23
    %s24 = sphi 0, %s21
    %s25 = sphi 0, %s24
    %s41 = sphi 0, %s25
    %s45 = sphi 0, %s45
    %s47 = sphi 0, %s45
    %s48 = sphi 0, %s47
    %s62 = sphi 0, %s48
    %s66 = sphi 0, %s66
    %s68 = sphi 0, %s66
    %s69 = sphi 0, %s68
    %s83 = sphi 0, %s69
    %s87 = sphi 0, %s87
    %s89 = sphi 0, %s87
    %s90 = sphi 0, %s89
    %s104 = sphi 0, %s90
    %s108 = sphi 0, %s108
    %s110 = sphi 0, %s108
    %s111 = sphi 0, %s110
    %s125 = sphi 0, %s111
    %s131 = sphi 0, %s133
    %s134 = sphi 0, %s131
    %s135 = sphi 0, %s134
    %s151 = sphi 0, %s135
  $region4: #{up_forward.7} parent=0 // loop_header_branch
    %14 = sbr.rel (%p12) target = $region8
  $region5: #{up_forward.7} parent=0 // loop_body
    %s16 = ssub.s32 %s11, 1
    %s17 = ssub.s32 %s11, 2
    %s18 = sadd.s32 %s11, 1
    %s19 = ssub.s32 %s11, %s18
    %p20 = scmp.eq.s32.totalorder %s19, 0
    %s22 = sadd.s32 %s21, 1
    %s23 = scalar_select %p20, %s21, %s22
    %p26 = pneg %p20
    %p27 = scmp.eq.s32.totalorder %s11, 1
    %p28 = por %p26, %p27
    %p29 = scmp.ne.s32.totalorder %s21, %s24
    %p30 = scmp.eq.s32.totalorder %s11, 0
    %p31 = por %p29, %p30
    %p32 = scmp.ne.s32.totalorder %s21, %s24
    %p33 = scmp.eq.s32.totalorder %s16, 1
    %p34 = por %p32, %p33
    %p35 = scmp.ne.s32.totalorder %s24, %s25
    %p36 = scmp.eq.s32.totalorder %s16, 0
    %p37 = por %p35, %p36
    %p38 = scmp.ne.s32.totalorder %s24, %s25
    %p39 = scmp.eq.s32.totalorder %s17, 1
    %p40 = por %p38, %p39
    %p42 = scmp.ne.s32.totalorder %s25, %s41
    %p43 = scmp.eq.s32.totalorder %s17, 0
    %p44 = por %p42, %p43
    %s46 = sadd.s32 %s45, 1
    %p49 = scmp.eq.s32.totalorder %s11, 1
    %p50 = scmp.ne.s32.totalorder %s45, %s47
    %p51 = scmp.eq.s32.totalorder %s11, 0
    %p52 = por %p50, %p51
    %p53 = scmp.ne.s32.totalorder %s45, %s47
    %p54 = scmp.eq.s32.totalorder %s16, 1
    %p55 = por %p53, %p54
    %p56 = scmp.ne.s32.totalorder %s47, %s48
    %p57 = scmp.eq.s32.totalorder %s16, 0
    %p58 = por %p56, %p57
    %p59 = scmp.ne.s32.totalorder %s47, %s48
    %p60 = scmp.eq.s32.totalorder %s17, 1
    %p61 = por %p59, %p60
    %p63 = scmp.ne.s32.totalorder %s48, %s62
    %p64 = scmp.eq.s32.totalorder %s17, 0
    %p65 = por %p63, %p64
    %s67 = sadd.s32 %s66, 1
    %p70 = scmp.eq.s32.totalorder %s11, 1
    %p71 = scmp.ne.s32.totalorder %s66, %s68
    %p72 = scmp.eq.s32.totalorder %s11, 0
    %p73 = por %p71, %p72
    %p74 = scmp.ne.s32.totalorder %s66, %s68
    %p75 = scmp.eq.s32.totalorder %s16, 1
    %p76 = por %p74, %p75
    %p77 = scmp.ne.s32.totalorder %s68, %s69
    %p78 = scmp.eq.s32.totalorder %s16, 0
    %p79 = por %p77, %p78
    %p80 = scmp.ne.s32.totalorder %s68, %s69
    %p81 = scmp.eq.s32.totalorder %s17, 1
    %p82 = por %p80, %p81
    %p84 = scmp.ne.s32.totalorder %s69, %s83
    %p85 = scmp.eq.s32.totalorder %s17, 0
    %p86 = por %p84, %p85
    %s88 = sadd.s32 %s87, 1
    %p91 = scmp.eq.s32.totalorder %s11, 1
    %p92 = scmp.ne.s32.totalorder %s87, %s89
    %p93 = scmp.eq.s32.totalorder %s11, 0
    %p94 = por %p92, %p93
    %p95 = scmp.ne.s32.totalorder %s87, %s89
    %p96 = scmp.eq.s32.totalorder %s16, 1
    %p97 = por %p95, %p96
    %p98 = scmp.ne.s32.totalorder %s89, %s90
    %p99 = scmp.eq.s32.totalorder %s16, 0
    %p100 = por %p98, %p99
    %p101 = scmp.ne.s32.totalorder %s89, %s90
    %p102 = scmp.eq.s32.totalorder %s17, 1
    %p103 = por %p101, %p102
    %p105 = scmp.ne.s32.totalorder %s90, %s104
    %p106 = scmp.eq.s32.totalorder %s17, 0
    %p107 = por %p105, %p106
    %s109 = sadd.s32 %s108, 1
    %p112 = scmp.eq.s32.totalorder %s11, 1
    %p113 = scmp.ne.s32.totalorder %s108, %s110
    %p114 = scmp.eq.s32.totalorder %s11, 0
    %p115 = por %p113, %p114
    %p116 = scmp.ne.s32.totalorder %s108, %s110
    %p117 = scmp.eq.s32.totalorder %s16, 1
    %p118 = por %p116, %p117
    %p119 = scmp.ne.s32.totalorder %s110, %s111
    %p120 = scmp.eq.s32.totalorder %s16, 0
    %p121 = por %p119, %p120
    %p122 = scmp.ne.s32.totalorder %s110, %s111
    %p123 = scmp.eq.s32.totalorder %s17, 1
    %p124 = por %p122, %p123
    %p126 = scmp.ne.s32.totalorder %s111, %s125
    %p127 = scmp.eq.s32.totalorder %s17, 0
    %p128 = por %p126, %p127
    %s129 = ssub.s32 %s11, %s18
    %p130 = scmp.eq.s32.totalorder %s129, 0
    %s132 = sadd.s32 %s131, 1
    %s133 = scalar_select %p130, %s131, %s132
    %p136 = pneg %p130
    %p137 = scmp.eq.s32.totalorder %s11, 1
    %p138 = por %p136, %p137
    %p139 = scmp.ne.s32.totalorder %s131, %s134
    %p140 = scmp.eq.s32.totalorder %s11, 0
    %p141 = por %p139, %p140
    %p142 = scmp.ne.s32.totalorder %s131, %s134
    %p143 = scmp.eq.s32.totalorder %s16, 1
    %p144 = por %p142, %p143
    %p145 = scmp.ne.s32.totalorder %s134, %s135
    %p146 = scmp.eq.s32.totalorder %s16, 0
    %p147 = por %p145, %p146
    %p148 = scmp.ne.s32.totalorder %s134, %s135
    %p149 = scmp.eq.s32.totalorder %s17, 1
    %p150 = por %p148, %p149
    %p152 = scmp.ne.s32.totalorder %s135, %s151
    %p153 = scmp.eq.s32.totalorder %s17, 0
    %p154 = por %p152, %p153
    %p155 = scmp.le.s32.totalorder 1, %s11
    %p156 = scmp.lt.s32.totalorder %s11, 3
    %p157 = pnand %p155, %p156
    %p158 = pneg %p157
    // Predicated region
    $region9: #{up_forward.7} parent=5 // pred_check
      _
    $region10: #{up_forward.7} parent=5 // pred_check_branch
      %160 = sbr.rel (%p157) target = $region12
    $region11: #{up_forward.7} parent=5 // pred_region
      %s161 = ssub.s32 %s11, 1
      // Predicated region
      $region13: #{up_forward.7} parent=11 // pred_check
        %p162 = pneg %p58
      $region14: #{up_forward.7} parent=11 // pred_check_branch
        %164 = sbr.rel (%p162) target = $region16
      $region15: #{up_forward.7} parent=11 // pred_region
        _
      $region16: #{up_forward.7} parent=11 // pred_fallthru
        _
      // Predicated region
      $region17: #{up_forward.7} parent=11 // pred_check
        %p165 = pneg %p79
      $region18: #{up_forward.7} parent=11 // pred_check_branch
        %167 = sbr.rel (%p165) target = $region20
      $region19: #{up_forward.7} parent=11 // pred_region
        _
      $region20: #{up_forward.7} parent=11 // pred_fallthru
        _
      // Predicated region
      $region21: #{up_forward.7} parent=11 // pred_check
        %p168 = pneg %p100
      $region22: #{up_forward.7} parent=11 // pred_check_branch
        %170 = sbr.rel (%p168) target = $region24
      $region23: #{up_forward.7} parent=11 // pred_region
        _
      $region24: #{up_forward.7} parent=11 // pred_fallthru
        _
      // Predicated region
      $region25: #{up_forward.7} parent=11 // pred_check
        %p171 = pneg %p121
      $region26: #{up_forward.7} parent=11 // pred_check_branch
        %173 = sbr.rel (%p171) target = $region28
      $region27: #{up_forward.7} parent=11 // pred_region
        _
      $region28: #{up_forward.7} parent=11 // pred_fallthru
        _
    $region12: #{up_forward.7} parent=5 // pred_fallthru
      _
    %p174 = scmp.lt.s32.totalorder %s11, 2
    // Predicated region
    $region29: #{up_forward.7} parent=5 // pred_check
      %p175 = pneg %p174
    $region30: #{up_forward.7} parent=5 // pred_check_branch
      %177 = sbr.rel (%p175) target = $region32
    $region31: #{up_forward.7} parent=5 // pred_region
      // Predicated region
      $region33: #{up_forward.7} parent=31 // pred_check
        %p178 = pneg %p31
      $region34: #{up_forward.7} parent=31 // pred_check_branch
        %180 = sbr.rel (%p178) target = $region36
      $region35: #{up_forward.7} parent=31 // pred_region
        %p181 = scmp.lt.s32.totalorder %s11, 1
        %s182 = scalar_select %p181, %s11, 1
        %s183 = smul.addr %s182, 2
        %s184 = smul.addr %s183, 8
        %s185 = scalar_lea.vmem %s0, %s184
      $region36: #{up_forward.7} parent=31 // pred_fallthru
        _
    $region32: #{up_forward.7} parent=5 // pred_fallthru
      _
    %p186 = scmp.le.s32.totalorder 1, %s11
    %p187 = scmp.lt.s32.totalorder %s11, 3
    %p188 = pnand %p186, %p187
    %p189 = pneg %p188
    // Predicated region
    $region37: #{up_forward.7} parent=5 // pred_check
      _
    $region38: #{up_forward.7} parent=5 // pred_check_branch
      %191 = sbr.rel (%p188) target = $region40
    $region39: #{up_forward.7} parent=5 // pred_region
      %s192 = ssub.s32 %s11, 1
      %p193 = scmp.lt.s32.totalorder %s16, 1
      %s194 = scalar_select %p193, %s16, 1
      %s195 = smul.addr %s194, 2
      %s196 = smul.addr %s195, 8
      %s197 = scalar_lea.vmem %s0, %s196
      %p198 = pneg %p37
      %p199 = pneg %p34
      %p200 = pneg %p58
      %p201 = pneg %p55
      %p202 = pneg %p79
      %p203 = pneg %p76
      %p204 = pneg %p100
      %p205 = pneg %p97
      %p206 = pneg %p121
      %p207 = pneg %p118
      %p208 = pneg %p147
      %p209 = pneg %p144
      %p210 = scmp.lt.s32.totalorder %s16, 1
      %s211 = scalar_select %p210, %s16, 1
      %s212 = smul.addr %s211, 8
      %s213 = smul.addr %s212, 8
      %s214 = scalar_lea.vmem %s5, %s213
      %p215 = scmp.lt.s32.totalorder %s16, 1
      %s216 = scalar_select %p215, %s16, 1
      %s217 = smul.addr %s216, 2
      %s218 = smul.addr %s217, 8
      %s219 = scalar_lea.vmem %s0, %s218
      %p220 = scmp.lt.s32.totalorder %s16, 1
      %s221 = scalar_select %p220, %s16, 1
      %s222 = smul.addr %s221, 8
      %s223 = smul.addr %s222, 8
      %s224 = scalar_lea.vmem %s5, %s223
      %v226 = vld [vmem:[%s219] sm:$0xff]
      %v227 = vld [vmem:[%s219 + $0x8] sm:$0xff]
      %v228 = vld [vmem:[%s1] sm:$0x1]
      %v230 = vperm.slane %v228, 0
      %v232 = vmul.f32 %v226, %v230
      %v233 = vmul.f32 %v227, %v230
      %v234 = vld [vmem:[%s2] sm:$0x1]
      %v236 = vperm.slane %v234, 0
      %v238 = vadd.f32 %v232, %v236
      %v239 = vadd.f32 %v233, %v236
      %v240 = vmax.f32 %v238, 0.0
      %v241 = vmax.f32 %v239, 0.0
      %v242 = vpack.c.bf16 %v241, %v240
      %v243 = vld [vmem:[%s4] sm:$0xff]
      %v244 = vld [vmem:[%s4 + $0x8] sm:$0xff]
      %v245 = vld [vmem:[%s4 + $0x10] sm:$0xff]
      %v246 = vld [vmem:[%s4 + $0x18] sm:$0xff]
      %v247 = vld [vmem:[%s4 + $0x20] sm:$0xff]
      %v248 = vld [vmem:[%s4 + $0x28] sm:$0xff]
      %v249 = vld [vmem:[%s4 + $0x30] sm:$0xff]
      %v250 = vld [vmem:[%s4 + $0x38] sm:$0xff]
      %v251 = vld [vmem:[%s4 + $0x40] sm:$0xff]
      %v252 = vld [vmem:[%s4 + $0x48] sm:$0xff]
      %v253 = vld [vmem:[%s4 + $0x50] sm:$0xff]
      %v254 = vld [vmem:[%s4 + $0x58] sm:$0xff]
      %v255 = vld [vmem:[%s4 + $0x60] sm:$0xff]
      %v256 = vld [vmem:[%s4 + $0x68] sm:$0xff]
      %v257 = vld [vmem:[%s4 + $0x70] sm:$0xff]
      %v258 = vld [vmem:[%s4 + $0x78] sm:$0xff]
      %v275 = vunpack.c.l.b16 %v243
      %v276 = vunpack.c.h.b16 %v243
      %v277 = vunpack.c.l.b16 %v244
      %v278 = vunpack.c.h.b16 %v244
      %v279 = vunpack.c.l.b16 %v245
      %v280 = vunpack.c.h.b16 %v245
      %v281 = vunpack.c.l.b16 %v246
      %v282 = vunpack.c.h.b16 %v246
      %v283 = vunpack.c.l.b16 %v247
      %v284 = vunpack.c.h.b16 %v247
      %v285 = vunpack.c.l.b16 %v248
      %v286 = vunpack.c.h.b16 %v248
      %v287 = vunpack.c.l.b16 %v249
      %v288 = vunpack.c.h.b16 %v249
      %v289 = vunpack.c.l.b16 %v250
      %v290 = vunpack.c.h.b16 %v250
      %v291 = vunpack.c.l.b16 %v251
      %v292 = vunpack.c.h.b16 %v251
      %v293 = vunpack.c.l.b16 %v252
      %v294 = vunpack.c.h.b16 %v252
      %v295 = vunpack.c.l.b16 %v253
      %v296 = vunpack.c.h.b16 %v253
      %v297 = vunpack.c.l.b16 %v254
      %v298 = vunpack.c.h.b16 %v254
      %v299 = vunpack.c.l.b16 %v255
      %v300 = vunpack.c.h.b16 %v255
      %v301 = vunpack.c.l.b16 %v256
      %v302 = vunpack.c.h.b16 %v256
      %v303 = vunpack.c.l.b16 %v257
      %v304 = vunpack.c.h.b16 %v257
      %v305 = vunpack.c.l.b16 %v258
      %v306 = vunpack.c.h.b16 %v258
      %v307 = vpack.c.b16 %v277, %v275
      %v308 = vpack.c.b16 %v278, %v276
      %v309 = vpack.c.b16 %v281, %v279
      %v310 = vpack.c.b16 %v282, %v280
      %v311 = vpack.c.b16 %v285, %v283
      %v312 = vpack.c.b16 %v286, %v284
      %v313 = vpack.c.b16 %v289, %v287
      %v314 = vpack.c.b16 %v290, %v288
      %v315 = vpack.c.b16 %v293, %v291
      %v316 = vpack.c.b16 %v294, %v292
      %v317 = vpack.c.b16 %v297, %v295
      %v318 = vpack.c.b16 %v298, %v296
      %v319 = vpack.c.b16 %v301, %v299
      %v320 = vpack.c.b16 %v302, %v300
      %v321 = vpack.c.b16 %v305, %v303
      %v322 = vpack.c.b16 %v306, %v304
      %339 = vmatpush.bf16.msra.mxu0 %v321
      %340 = vmatpush.bf16.msra.mxu0 %v319
      %341 = vmatpush.bf16.msra.mxu0 %v317
      %342 = vmatpush.bf16.msra.mxu0 %v315
      %343 = vmatpush.bf16.msra.mxu0 %v313
      %344 = vmatpush.bf16.msra.mxu0 %v311
      %345 = vmatpush.bf16.msra.mxu0 %v309
      %346 = vmatpush.bf16.msra.mxu0 %v307
      %347 = vmatmul.bf16.gmra.mxu0 %v242
      %v348 = vpop.f32.mrf.mxu0
      %v349 = vadd.f32 0.0, %v348
      %v350 = vpop.f32.mrf.mxu0
      %v351 = vadd.f32 0.0, %v350
      %352 = vdwg.mxu0
      %353 = vmatpush.bf16.msra.mxu0 %v322
      %354 = vmatpush.bf16.msra.mxu0 %v320
      %355 = vmatpush.bf16.msra.mxu0 %v318
      %356 = vmatpush.bf16.msra.mxu0 %v316
      %357 = vmatpush.bf16.msra.mxu0 %v314
      %358 = vmatpush.bf16.msra.mxu0 %v312
      %359 = vmatpush.bf16.msra.mxu0 %v310
      %360 = vmatpush.bf16.msra.mxu0 %v308
      %361 = vmatmul.bf16.gmra.mxu0 %v242
      %v362 = vpop.f32.mrf.mxu0
      %v363 = vadd.f32 0.0, %v362
      %v364 = vpop.f32.mrf.mxu0
      %v365 = vadd.f32 0.0, %v364
      %366 = vdwg.mxu0
      %v367 = vld [vmem:[%s3] sm:$0xf]
      %v368 = vld [vmem:[%s3 + $0x4] sm:$0xf]
      %v369 = vld [vmem:[%s3 + $0x8] sm:$0xf]
      %v370 = vld [vmem:[%s3 + $0xc] sm:$0xf]
      %v371 = vpack.c.bf16 %v351, %v349
      %v372 = vpack.c.bf16 %v365, %v363
      %v377 = vunpack.c.l.b16 %v367
      %v378 = vunpack.c.l.b16 %v368
      %v379 = vunpack.c.l.b16 %v369
      %v380 = vunpack.c.l.b16 %v370
      %v381 = vpack.c.b16 %v378, %v377
      %v382 = vpack.c.b16 %v380, %v379
      %vm383 = vcmask 130048
      %v385 = vsel %vm383, %v381, 0
      %v388 = vsel %vm383, %v382, 0
      %390 = vmatpush.bf16.msra.mxu0 0
      %391 = vmatpush.bf16.msra.mxu0 0
      %392 = vmatpush.bf16.msra.mxu0 0
      %393 = vmatpush.bf16.msra.mxu0 0
      %394 = vmatpush.bf16.msra.mxu0 0
      %395 = vmatpush.bf16.msra.mxu0 0
      %396 = vmatpush.bf16.msra.mxu0 0
      %397 = vmatpush.bf16.msra.mxu0 %v371
      %398 = vmatmul.bf16.gmra.mxu0 %v385
      %v399 = vpop.f32.mrf.mxu0
      %v400 = vadd.f32 0.0, %v399
      %v401 = vpop.f32.mrf.mxu0
      %v402 = vadd.f32 0.0, %v401
      %403 = vmatmul.bf16.gmra.mxu0 %v388
      %v404 = vpop.f32.mrf.mxu0
      %v405 = vadd.f32 0.0, %v404
      %v406 = vpop.f32.mrf.mxu0
      %v407 = vadd.f32 0.0, %v406
      %408 = vdwg.mxu0
      %409 = vmatpush.bf16.msra.mxu0 0
      %410 = vmatpush.bf16.msra.mxu0 0
      %411 = vmatpush.bf16.msra.mxu0 0
      %412 = vmatpush.bf16.msra.mxu0 0
      %413 = vmatpush.bf16.msra.mxu0 0
      %414 = vmatpush.bf16.msra.mxu0 0
      %415 = vmatpush.bf16.msra.mxu0 0
      %416 = vmatpush.bf16.msra.mxu0 %v372
      %417 = vmatmul.bf16.gmra.mxu0 %v385
      %v418 = vpop.f32.mrf.mxu0
      %v419 = vadd.f32 0.0, %v418
      %v420 = vpop.f32.mrf.mxu0
      %v421 = vadd.f32 0.0, %v420
      %422 = vmatmul.bf16.gmra.mxu0 %v388
      %v423 = vpop.f32.mrf.mxu0
      %v424 = vadd.f32 0.0, %v423
      %v425 = vpop.f32.mrf.mxu0
      %v426 = vadd.f32 0.0, %v425
      %427 = vdwg.mxu0
      %428 = vst [vmem:[%s224] sm:$0xff] %v400
      %429 = vst [vmem:[%s224 + $0x8] sm:$0xff] %v419
      %430 = vst [vmem:[%s224 + $0x10] sm:$0xff] %v402
      %431 = vst [vmem:[%s224 + $0x18] sm:$0xff] %v421
      %432 = vst [vmem:[%s224 + $0x20] sm:$0xff] %v405
      %433 = vst [vmem:[%s224 + $0x28] sm:$0xff] %v424
      %434 = vst [vmem:[%s224 + $0x30] sm:$0xff] %v407
      %435 = vst [vmem:[%s224 + $0x38] sm:$0xff] %v426
      %p436 = scmp.lt.s32.totalorder %s16, 1
      %s437 = scalar_select %p436, %s16, 1
      %s438 = smul.addr %s437, 8
      %s439 = smul.addr %s438, 8
      %s440 = scalar_lea.vmem %s5, %s439
      // Predicated region
      $region41: #{up_forward.7} parent=39 // pred_check
        %p441 = pneg %p144
      $region42: #{up_forward.7} parent=39 // pred_check_branch
        %443 = sbr.rel (%p441) target = $region44
      $region43: #{up_forward.7} parent=39 // pred_region
        _
      $region44: #{up_forward.7} parent=39 // pred_fallthru
        _
    $region40: #{up_forward.7} parent=5 // pred_fallthru
      _
    %p444 = scmp.le.s32.totalorder 2, %s11
    // Predicated region
    $region45: #{up_forward.7} parent=5 // pred_check
      %p445 = pneg %p444
    $region46: #{up_forward.7} parent=5 // pred_check_branch
      %447 = sbr.rel (%p445) target = $region48
    $region47: #{up_forward.7} parent=5 // pred_region
      %s448 = ssub.s32 %s11, 2
      // Predicated region
      $region49: #{up_forward.7} parent=47 // pred_check
        %p449 = pneg %p150
      $region50: #{up_forward.7} parent=47 // pred_check_branch
        %451 = sbr.rel (%p449) target = $region52
      $region51: #{up_forward.7} parent=47 // pred_region
        %p452 = scmp.lt.s32.totalorder %s17, 1
        %s453 = scalar_select %p452, %s17, 1
        %s454 = smul.addr %s453, 8
        %s455 = smul.addr %s454, 8
        %s456 = scalar_lea.vmem %s5, %s455
      $region52: #{up_forward.7} parent=47 // pred_fallthru
        _
    $region48: #{up_forward.7} parent=5 // pred_fallthru
      _
  $region6: #{up_forward.7} parent=0 // loop_footer
    %s15 = sadd.s32 1, %s11
  $region7: #{up_forward.7} parent=0 // loop_footer_branch
    %10 = sbr.rel target = $region3
  $region8: #{up_forward.7} parent=0 // loop_exit
    _

// kernel: up_forward.6
$region0: #{up_forward.6}
  #allocation0 [shape = 'u32[]', space=smem, size = 0x4, offset = 0x4, fixed_abs, tag = 'smem constant byte address 0x4 - core index']
  #allocation1 [shape = 'u32[72,128]{1,0:T(1,128)}', space=vmem, size = 0x9000, scoped, tag = 'internal scratch']
  #allocation2 [shape = 'f32[18,18,4]{2,1,0:T(8,128)}', space=vmem, size = 0x36000, scoped, tag = 'scratch operand']
  #allocation3 [shape = 'f32[256,36]{1,0:T(8,128)}', space=vmem, size = 0x20000, scoped, tag = 'scratch operand']
  %s0 = inlined_call_operand.vmem [shape: f32[2,16,16,4], index: 0, kind: input, shape index: {}]
  %s1 = inlined_call_operand.vmem [shape: f32[1,4], index: 1, kind: input, shape index: {}]
  %s2 = inlined_call_operand.vmem [shape: f32[1,4], index: 2, kind: input, shape index: {}]
  %s3 = inlined_call_operand.vmem [shape: bf16[36,8], index: 3, kind: input, shape index: {}]
  %s4 = inlined_call_operand.vmem [shape: f32[1,8], index: 4, kind: input, shape index: {}]
  %s5 = inlined_call_operand.vmem [shape: f32[2,256,8], index: 5, kind: output, shape index: {0}]
  %s6 = inlined_call_operand.vmem [shape: f32[2,2,8], index: 6, kind: output, shape index: {1}]
  %7 = xla_tuple %s5, %s6
  %s8 = sld [smem:[#allocation0]]
  $region61: #{up_forward.6} parent=0
    _
  %s10 = ssub.s32 1, %s8
  %s11 = scalar_select 0, %s10, %s8
  loop: start=0, step=1, limit=4
  $region2: #{up_forward.6} parent=0 // loop_pre_header
    _
  $region3: #{up_forward.6} parent=0 // loop_header
    %s13 = sphi 0, %s17
    %p14 = scmp.ge.s32.totalorder %s13, 4
    %s23 = sphi 0, %s25
    %s26 = sphi 0, %s23
    %s27 = sphi 0, %s26
    %s43 = sphi 0, %s27
    %s47 = sphi 0, %s47
    %s49 = sphi 0, %s47
    %s50 = sphi 0, %s49
    %s64 = sphi 0, %s50
    %s68 = sphi 0, %s68
    %s70 = sphi 0, %s68
    %s71 = sphi 0, %s70
    %s85 = sphi 0, %s71
    %s89 = sphi 0, %s89
    %s91 = sphi 0, %s89
    %s92 = sphi 0, %s91
    %s106 = sphi 0, %s92
    %s110 = sphi 0, %s110
    %s112 = sphi 0, %s110
    %s113 = sphi 0, %s112
    %s127 = sphi 0, %s113
    %s133 = sphi 0, %s135
    %s136 = sphi 0, %s133
    %s137 = sphi 0, %s136
    %s153 = sphi 0, %s137
    %s159 = sphi 0, %s161
    %s162 = sphi 0, %s159
    %s163 = sphi 0, %s162
    %s179 = sphi 0, %s163
  $region4: #{up_forward.6} parent=0 // loop_header_branch
    %16 = sbr.rel (%p14) target = $region8
  $region5: #{up_forward.6} parent=0 // loop_body
    %s18 = ssub.s32 %s13, 1
    %s19 = ssub.s32 %s13, 2
    %s20 = sadd.s32 %s13, 1
    %s21 = ssub.s32 %s13, %s20
    %p22 = scmp.eq.s32.totalorder %s21, 0
    %s24 = sadd.s32 %s23, 1
    %s25 = scalar_select %p22, %s23, %s24
    %p28 = pneg %p22
    %p29 = scmp.eq.s32.totalorder %s13, 1
    %p30 = por %p28, %p29
    %p31 = scmp.ne.s32.totalorder %s23, %s26
    %p32 = scmp.eq.s32.totalorder %s13, 0
    %p33 = por %p31, %p32
    %p34 = scmp.ne.s32.totalorder %s23, %s26
    %p35 = scmp.eq.s32.totalorder %s18, 1
    %p36 = por %p34, %p35
    %p37 = scmp.ne.s32.totalorder %s26, %s27
    %p38 = scmp.eq.s32.totalorder %s18, 0
    %p39 = por %p37, %p38
    %p40 = scmp.ne.s32.totalorder %s26, %s27
    %p41 = scmp.eq.s32.totalorder %s19, 1
    %p42 = por %p40, %p41
    %p44 = scmp.ne.s32.totalorder %s27, %s43
    %p45 = scmp.eq.s32.totalorder %s19, 0
    %p46 = por %p44, %p45
    %s48 = sadd.s32 %s47, 1
    %p51 = scmp.eq.s32.totalorder %s13, 1
    %p52 = scmp.ne.s32.totalorder %s47, %s49
    %p53 = scmp.eq.s32.totalorder %s13, 0
    %p54 = por %p52, %p53
    %p55 = scmp.ne.s32.totalorder %s47, %s49
    %p56 = scmp.eq.s32.totalorder %s18, 1
    %p57 = por %p55, %p56
    %p58 = scmp.ne.s32.totalorder %s49, %s50
    %p59 = scmp.eq.s32.totalorder %s18, 0
    %p60 = por %p58, %p59
    %p61 = scmp.ne.s32.totalorder %s49, %s50
    %p62 = scmp.eq.s32.totalorder %s19, 1
    %p63 = por %p61, %p62
    %p65 = scmp.ne.s32.totalorder %s50, %s64
    %p66 = scmp.eq.s32.totalorder %s19, 0
    %p67 = por %p65, %p66
    %s69 = sadd.s32 %s68, 1
    %p72 = scmp.eq.s32.totalorder %s13, 1
    %p73 = scmp.ne.s32.totalorder %s68, %s70
    %p74 = scmp.eq.s32.totalorder %s13, 0
    %p75 = por %p73, %p74
    %p76 = scmp.ne.s32.totalorder %s68, %s70
    %p77 = scmp.eq.s32.totalorder %s18, 1
    %p78 = por %p76, %p77
    %p79 = scmp.ne.s32.totalorder %s70, %s71
    %p80 = scmp.eq.s32.totalorder %s18, 0
    %p81 = por %p79, %p80
    %p82 = scmp.ne.s32.totalorder %s70, %s71
    %p83 = scmp.eq.s32.totalorder %s19, 1
    %p84 = por %p82, %p83
    %p86 = scmp.ne.s32.totalorder %s71, %s85
    %p87 = scmp.eq.s32.totalorder %s19, 0
    %p88 = por %p86, %p87
    %s90 = sadd.s32 %s89, 1
    %p93 = scmp.eq.s32.totalorder %s13, 1
    %p94 = scmp.ne.s32.totalorder %s89, %s91
    %p95 = scmp.eq.s32.totalorder %s13, 0
    %p96 = por %p94, %p95
    %p97 = scmp.ne.s32.totalorder %s89, %s91
    %p98 = scmp.eq.s32.totalorder %s18, 1
    %p99 = por %p97, %p98
    %p100 = scmp.ne.s32.totalorder %s91, %s92
    %p101 = scmp.eq.s32.totalorder %s18, 0
    %p102 = por %p100, %p101
    %p103 = scmp.ne.s32.totalorder %s91, %s92
    %p104 = scmp.eq.s32.totalorder %s19, 1
    %p105 = por %p103, %p104
    %p107 = scmp.ne.s32.totalorder %s92, %s106
    %p108 = scmp.eq.s32.totalorder %s19, 0
    %p109 = por %p107, %p108
    %s111 = sadd.s32 %s110, 1
    %p114 = scmp.eq.s32.totalorder %s13, 1
    %p115 = scmp.ne.s32.totalorder %s110, %s112
    %p116 = scmp.eq.s32.totalorder %s13, 0
    %p117 = por %p115, %p116
    %p118 = scmp.ne.s32.totalorder %s110, %s112
    %p119 = scmp.eq.s32.totalorder %s18, 1
    %p120 = por %p118, %p119
    %p121 = scmp.ne.s32.totalorder %s112, %s113
    %p122 = scmp.eq.s32.totalorder %s18, 0
    %p123 = por %p121, %p122
    %p124 = scmp.ne.s32.totalorder %s112, %s113
    %p125 = scmp.eq.s32.totalorder %s19, 1
    %p126 = por %p124, %p125
    %p128 = scmp.ne.s32.totalorder %s113, %s127
    %p129 = scmp.eq.s32.totalorder %s19, 0
    %p130 = por %p128, %p129
    %s131 = ssub.s32 %s13, %s20
    %p132 = scmp.eq.s32.totalorder %s131, 0
    %s134 = sadd.s32 %s133, 1
    %s135 = scalar_select %p132, %s133, %s134
    %p138 = pneg %p132
    %p139 = scmp.eq.s32.totalorder %s13, 1
    %p140 = por %p138, %p139
    %p141 = scmp.ne.s32.totalorder %s133, %s136
    %p142 = scmp.eq.s32.totalorder %s13, 0
    %p143 = por %p141, %p142
    %p144 = scmp.ne.s32.totalorder %s133, %s136
    %p145 = scmp.eq.s32.totalorder %s18, 1
    %p146 = por %p144, %p145
    %p147 = scmp.ne.s32.totalorder %s136, %s137
    %p148 = scmp.eq.s32.totalorder %s18, 0
    %p149 = por %p147, %p148
    %p150 = scmp.ne.s32.totalorder %s136, %s137
    %p151 = scmp.eq.s32.totalorder %s19, 1
    %p152 = por %p150, %p151
    %p154 = scmp.ne.s32.totalorder %s137, %s153
    %p155 = scmp.eq.s32.totalorder %s19, 0
    %p156 = por %p154, %p155
    %s157 = ssub.s32 %s13, %s20
    %p158 = scmp.eq.s32.totalorder %s157, 0
    %s160 = sadd.s32 %s159, 1
    %s161 = scalar_select %p158, %s159, %s160
    %p164 = pneg %p158
    %p165 = scmp.eq.s32.totalorder %s13, 1
    %p166 = por %p164, %p165
    %p167 = scmp.ne.s32.totalorder %s159, %s162
    %p168 = scmp.eq.s32.totalorder %s13, 0
    %p169 = por %p167, %p168
    %p170 = scmp.ne.s32.totalorder %s159, %s162
    %p171 = scmp.eq.s32.totalorder %s18, 1
    %p172 = por %p170, %p171
    %p173 = scmp.ne.s32.totalorder %s162, %s163
    %p174 = scmp.eq.s32.totalorder %s18, 0
    %p175 = por %p173, %p174
    %p176 = scmp.ne.s32.totalorder %s162, %s163
    %p177 = scmp.eq.s32.totalorder %s19, 1
    %p178 = por %p176, %p177
    %p180 = scmp.ne.s32.totalorder %s163, %s179
    %p181 = scmp.eq.s32.totalorder %s19, 0
    %p182 = por %p180, %p181
    %p183 = scmp.le.s32.totalorder 1, %s13
    %p184 = scmp.lt.s32.totalorder %s13, 3
    %p185 = pnand %p183, %p184
    %p186 = pneg %p185
    // Predicated region
    $region9: #{up_forward.6} parent=5 // pred_check
      _
    $region10: #{up_forward.6} parent=5 // pred_check_branch
      %188 = sbr.rel (%p185) target = $region12
    $region11: #{up_forward.6} parent=5 // pred_region
      %s189 = ssub.s32 %s13, 1
      // Predicated region
      $region13: #{up_forward.6} parent=11 // pred_check
        %p190 = pneg %p60
      $region14: #{up_forward.6} parent=11 // pred_check_branch
        %192 = sbr.rel (%p190) target = $region16
      $region15: #{up_forward.6} parent=11 // pred_region
        _
      $region16: #{up_forward.6} parent=11 // pred_fallthru
        _
      // Predicated region
      $region17: #{up_forward.6} parent=11 // pred_check
        %p193 = pneg %p81
      $region18: #{up_forward.6} parent=11 // pred_check_branch
        %195 = sbr.rel (%p193) target = $region20
      $region19: #{up_forward.6} parent=11 // pred_region
        _
      $region20: #{up_forward.6} parent=11 // pred_fallthru
        _
      // Predicated region
      $region21: #{up_forward.6} parent=11 // pred_check
        %p196 = pneg %p102
      $region22: #{up_forward.6} parent=11 // pred_check_branch
        %198 = sbr.rel (%p196) target = $region24
      $region23: #{up_forward.6} parent=11 // pred_region
        _
      $region24: #{up_forward.6} parent=11 // pred_fallthru
        _
      // Predicated region
      $region25: #{up_forward.6} parent=11 // pred_check
        %p199 = pneg %p123
      $region26: #{up_forward.6} parent=11 // pred_check_branch
        %201 = sbr.rel (%p199) target = $region28
      $region27: #{up_forward.6} parent=11 // pred_region
        _
      $region28: #{up_forward.6} parent=11 // pred_fallthru
        _
    $region12: #{up_forward.6} parent=5 // pred_fallthru
      _
    %p202 = scmp.lt.s32.totalorder %s13, 2
    // Predicated region
    $region29: #{up_forward.6} parent=5 // pred_check
      %p203 = pneg %p202
    $region30: #{up_forward.6} parent=5 // pred_check_branch
      %205 = sbr.rel (%p203) target = $region32
    $region31: #{up_forward.6} parent=5 // pred_region
      // Predicated region
      $region33: #{up_forward.6} parent=31 // pred_check
        %p206 = pneg %p33
      $region34: #{up_forward.6} parent=31 // pred_check_branch
        %208 = sbr.rel (%p206) target = $region36
      $region35: #{up_forward.6} parent=31 // pred_region
        %p209 = scmp.lt.s32.totalorder %s13, 1
        %s210 = scalar_select %p209, %s13, 1
        %s211 = smul.addr %s210, 32
        %s212 = smul.addr %s211, 8
        %s213 = scalar_lea.vmem %s0, %s212
      $region36: #{up_forward.6} parent=31 // pred_fallthru
        _
    $region32: #{up_forward.6} parent=5 // pred_fallthru
      _
    %p214 = scmp.le.s32.totalorder 1, %s13
    %p215 = scmp.lt.s32.totalorder %s13, 3
    %p216 = pnand %p214, %p215
    %p217 = pneg %p216
    // Predicated region
    $region37: #{up_forward.6} parent=5 // pred_check
      _
    $region38: #{up_forward.6} parent=5 // pred_check_branch
      %219 = sbr.rel (%p216) target = $region40
    $region39: #{up_forward.6} parent=5 // pred_region
      %s220 = ssub.s32 %s13, 1
      %p221 = scmp.lt.s32.totalorder %s18, 1
      %s222 = scalar_select %p221, %s18, 1
      %s223 = smul.addr %s222, 32
      %s224 = smul.addr %s223, 8
      %s225 = scalar_lea.vmem %s0, %s224
      %p226 = pneg %p39
      %p227 = pneg %p36
      %p228 = pneg %p60
      %p229 = pneg %p57
      %p230 = pneg %p81
      %p231 = pneg %p78
      %p232 = pneg %p102
      %p233 = pneg %p99
      %p234 = pneg %p123
      %p235 = pneg %p120
      %p236 = pneg %p149
      %p237 = pneg %p146
      %p238 = scmp.lt.s32.totalorder %s18, 1
      %s239 = scalar_select %p238, %s18, 1
      %s240 = smul.addr %s239, 32
      %s241 = smul.addr %s240, 8
      %s242 = scalar_lea.vmem %s5, %s241
      %p243 = pneg %p175
      %p244 = pneg %p172
      %p245 = scmp.lt.s32.totalorder %s18, 1
      %s246 = scalar_select %p245, %s18, 1
      %s247 = smul.addr %s246, 2
      %s248 = scalar_lea.vmem %s6, %s247
      %p249 = scmp.lt.s32.totalorder %s18, 1
      %s250 = scalar_select %p249, %s18, 1
      %s251 = smul.addr %s250, 32
      %s252 = smul.addr %s251, 8
      %s253 = scalar_lea.vmem %s0, %s252
      %p254 = scmp.lt.s32.totalorder %s18, 1
      %s255 = scalar_select %p254, %s18, 1
      %s256 = smul.addr %s255, 32
      %s257 = smul.addr %s256, 8
      %s258 = scalar_lea.vmem %s5, %s257
      %p259 = scmp.lt.s32.totalorder %s18, 1
      %s260 = scalar_select %p259, %s18, 1
      %s261 = smul.addr %s260, 2
      %s262 = scalar_lea.vmem %s6, %s261
      %v264 = vld [vmem:[%s253] sm:$0xff]
      %v265 = vld [vmem:[%s253 + $0x8] sm:$0xff]
      %v266 = vld [vmem:[%s253 + $0x10] sm:$0xff]
      %v267 = vld [vmem:[%s253 + $0x18] sm:$0xff]
      %v268 = vld [vmem:[%s253 + $0x20] sm:$0xff]
      %v269 = vld [vmem:[%s253 + $0x28] sm:$0xff]
      %v270 = vld [vmem:[%s253 + $0x30] sm:$0xff]
      %v271 = vld [vmem:[%s253 + $0x38] sm:$0xff]
      %v272 = vld [vmem:[%s253 + $0x40] sm:$0xff]
      %v273 = vld [vmem:[%s253 + $0x48] sm:$0xff]
      %v274 = vld [vmem:[%s253 + $0x50] sm:$0xff]
      %v275 = vld [vmem:[%s253 + $0x58] sm:$0xff]
      %v276 = vld [vmem:[%s253 + $0x60] sm:$0xff]
      %v277 = vld [vmem:[%s253 + $0x68] sm:$0xff]
      %v278 = vld [vmem:[%s253 + $0x70] sm:$0xff]
      %v279 = vld [vmem:[%s253 + $0x78] sm:$0xff]
      %v280 = vld [vmem:[%s253 + $0x80] sm:$0xff]
      %v281 = vld [vmem:[%s253 + $0x88] sm:$0xff]
      %v282 = vld [vmem:[%s253 + $0x90] sm:$0xff]
      %v283 = vld [vmem:[%s253 + $0x98] sm:$0xff]
      %v284 = vld [vmem:[%s253 + $0xa0] sm:$0xff]
      %v285 = vld [vmem:[%s253 + $0xa8] sm:$0xff]
      %v286 = vld [vmem:[%s253 + $0xb0] sm:$0xff]
      %v287 = vld [vmem:[%s253 + $0xb8] sm:$0xff]
      %v288 = vld [vmem:[%s253 + $0xc0] sm:$0xff]
      %v289 = vld [vmem:[%s253 + $0xc8] sm:$0xff]
      %v290 = vld [vmem:[%s253 + $0xd0] sm:$0xff]
      %v291 = vld [vmem:[%s253 + $0xd8] sm:$0xff]
      %v292 = vld [vmem:[%s253 + $0xe0] sm:$0xff]
      %v293 = vld [vmem:[%s253 + $0xe8] sm:$0xff]
      %v294 = vld [vmem:[%s253 + $0xf0] sm:$0xff]
      %v295 = vld [vmem:[%s253 + $0xf8] sm:$0xff]
      %v296 = vld [vmem:[%s1] sm:$0x1]
      %v298 = vperm.slane %v296, 0
      %v300 = vmul.f32 %v264, %v298
      %v301 = vmul.f32 %v265, %v298
      %v302 = vmul.f32 %v266, %v298
      %v303 = vmul.f32 %v267, %v298
      %v304 = vmul.f32 %v268, %v298
      %v305 = vmul.f32 %v269, %v298
      %v306 = vmul.f32 %v270, %v298
      %v307 = vmul.f32 %v271, %v298
      %v308 = vmul.f32 %v272, %v298
      %v309 = vmul.f32 %v273, %v298
      %v310 = vmul.f32 %v274, %v298
      %v311 = vmul.f32 %v275, %v298
      %v312 = vmul.f32 %v276, %v298
      %v313 = vmul.f32 %v277, %v298
      %v314 = vmul.f32 %v278, %v298
      %v315 = vmul.f32 %v279, %v298
      %v316 = vmul.f32 %v280, %v298
      %v317 = vmul.f32 %v281, %v298
      %v318 = vmul.f32 %v282, %v298
      %v319 = vmul.f32 %v283, %v298
      %v320 = vmul.f32 %v284, %v298
      %v321 = vmul.f32 %v285, %v298
      %v322 = vmul.f32 %v286, %v298
      %v323 = vmul.f32 %v287, %v298
      %v324 = vmul.f32 %v288, %v298
      %v325 = vmul.f32 %v289, %v298
      %v326 = vmul.f32 %v290, %v298
      %v327 = vmul.f32 %v291, %v298
      %v328 = vmul.f32 %v292, %v298
      %v329 = vmul.f32 %v293, %v298
      %v330 = vmul.f32 %v294, %v298
      %v331 = vmul.f32 %v295, %v298
      %v332 = vld [vmem:[%s2] sm:$0x1]
      %v334 = vperm.slane %v332, 0
      %v336 = vadd.f32 %v300, %v334
      %v337 = vadd.f32 %v301, %v334
      %v338 = vadd.f32 %v302, %v334
      %v339 = vadd.f32 %v303, %v334
      %v340 = vadd.f32 %v304, %v334
      %v341 = vadd.f32 %v305, %v334
      %v342 = vadd.f32 %v306, %v334
      %v343 = vadd.f32 %v307, %v334
      %v344 = vadd.f32 %v308, %v334
      %v345 = vadd.f32 %v309, %v334
      %v346 = vadd.f32 %v310, %v334
      %v347 = vadd.f32 %v311, %v334
      %v348 = vadd.f32 %v312, %v334
      %v349 = vadd.f32 %v313, %v334
      %v350 = vadd.f32 %v314, %v334
      %v351 = vadd.f32 %v315, %v334
      %v352 = vadd.f32 %v316, %v334
      %v353 = vadd.f32 %v317, %v334
      %v354 = vadd.f32 %v318, %v334
      %v355 = vadd.f32 %v319, %v334
      %v356 = vadd.f32 %v320, %v334
      %v357 = vadd.f32 %v321, %v334
      %v358 = vadd.f32 %v322, %v334
      %v359 = vadd.f32 %v323, %v334
      %v360 = vadd.f32 %v324, %v334
      %v361 = vadd.f32 %v325, %v334
      %v362 = vadd.f32 %v326, %v334
      %v363 = vadd.f32 %v327, %v334
      %v364 = vadd.f32 %v328, %v334
      %v365 = vadd.f32 %v329, %v334
      %v366 = vadd.f32 %v330, %v334
      %v367 = vadd.f32 %v331, %v334
      %v368 = vmax.f32 %v336, 0.0
      %v369 = vmax.f32 %v337, 0.0
      %v370 = vmax.f32 %v338, 0.0
      %v371 = vmax.f32 %v339, 0.0
      %v372 = vmax.f32 %v340, 0.0
      %v373 = vmax.f32 %v341, 0.0
      %v374 = vmax.f32 %v342, 0.0
      %v375 = vmax.f32 %v343, 0.0
      %v376 = vmax.f32 %v344, 0.0
      %v377 = vmax.f32 %v345, 0.0
      %v378 = vmax.f32 %v346, 0.0
      %v379 = vmax.f32 %v347, 0.0
      %v380 = vmax.f32 %v348, 0.0
      %v381 = vmax.f32 %v349, 0.0
      %v382 = vmax.f32 %v350, 0.0
      %v383 = vmax.f32 %v351, 0.0
      %v384 = vmax.f32 %v352, 0.0
      %v385 = vmax.f32 %v353, 0.0
      %v386 = vmax.f32 %v354, 0.0
      %v387 = vmax.f32 %v355, 0.0
      %v388 = vmax.f32 %v356, 0.0
      %v389 = vmax.f32 %v357, 0.0
      %v390 = vmax.f32 %v358, 0.0
      %v391 = vmax.f32 %v359, 0.0
      %v392 = vmax.f32 %v360, 0.0
      %v393 = vmax.f32 %v361, 0.0
      %v394 = vmax.f32 %v362, 0.0
      %v395 = vmax.f32 %v363, 0.0
      %v396 = vmax.f32 %v364, 0.0
      %v397 = vmax.f32 %v365, 0.0
      %v398 = vmax.f32 %v366, 0.0
      %v399 = vmax.f32 %v367, 0.0
      %vm400 = vcmask 31744
      %401 = vst.msk [vmem:[#allocation2] sm:$0xff] %vm400, 0.0
      %402 = vst.msk [vmem:[#allocation2 + $0x8] sm:$0xff] %vm400, 0.0
      %vm403 = vcmask 25600
      %404 = vst.msk [vmem:[#allocation2 + $0x10] sm:$0x3] %vm403, 0.0
      %s405 = scalar_lea.vmem [#allocation2], 408
      %406 = vst.msk [vmem:[%s405] sm:$0xff] %vm400, 0.0
      %407 = vst.msk [vmem:[%s405 + $0x8] sm:$0xff] %vm400, 0.0
      %408 = vst.msk [vmem:[%s405 + $0x10] sm:$0x3] %vm403, 0.0
      %vm409 = vcmask 24576
      %410 = vst.msk [vmem:[#allocation2] sm:$0x1] %vm409, 0.0
      %411 = vst.msk [vmem:[#allocation2 + $0x18] sm:$0x1] %vm409, 0.0
      %412 = vst.msk [vmem:[#allocation2 + $0x30] sm:$0x1] %vm409, 0.0
      %413 = vst.msk [vmem:[#allocation2 + $0x48] sm:$0x1] %vm409, 0.0
      %414 = vst.msk [vmem:[#allocation2 + $0x60] sm:$0x1] %vm409, 0.0
      %415 = vst.msk [vmem:[#allocation2 + $0x78] sm:$0x1] %vm409, 0.0
      %416 = vst.msk [vmem:[#allocation2 + $0x90] sm:$0x1] %vm409, 0.0
      %417 = vst.msk [vmem:[#allocation2 + $0xa8] sm:$0x1] %vm409, 0.0
      %418 = vst.msk [vmem:[#allocation2 + $0xc0] sm:$0x1] %vm409, 0.0
      %419 = vst.msk [vmem:[#allocation2 + $0xd8] sm:$0x1] %vm409, 0.0
      %420 = vst.msk [vmem:[#allocation2 + $0xf0] sm:$0x1] %vm409, 0.0
      %421 = vst.msk [vmem:[#allocation2 + $0x108] sm:$0x1] %vm409, 0.0
      %422 = vst.msk [vmem:[#allocation2 + $0x120] sm:$0x1] %vm409, 0.0
      %423 = vst.msk [vmem:[#allocation2 + $0x138] sm:$0x1] %vm409, 0.0
      %424 = vst.msk [vmem:[#allocation2 + $0x150] sm:$0x1] %vm409, 0.0
      %425 = vst.msk [vmem:[#allocation2 + $0x168] sm:$0x1] %vm409, 0.0
      %426 = vst.msk [vmem:[#allocation2 + $0x180] sm:$0x1] %vm409, 0.0
      %427 = vst.msk [vmem:[#allocation2 + $0x198] sm:$0x1] %vm409, 0.0
      %428 = vst.msk [vmem:[#allocation2 + $0x11] sm:$0x1] %vm409, 0.0
      %429 = vst.msk [vmem:[#allocation2 + $0x29] sm:$0x1] %vm409, 0.0
      %430 = vst.msk [vmem:[#allocation2 + $0x41] sm:$0x1] %vm409, 0.0
      %431 = vst.msk [vmem:[#allocation2 + $0x59] sm:$0x1] %vm409, 0.0
      %432 = vst.msk [vmem:[#allocation2 + $0x71] sm:$0x1] %vm409, 0.0
      %433 = vst.msk [vmem:[#allocation2 + $0x89] sm:$0x1] %vm409, 0.0
      %434 = vst.msk [vmem:[#allocation2 + $0xa1] sm:$0x1] %vm409, 0.0
      %435 = vst.msk [vmem:[#allocation2 + $0xb9] sm:$0x1] %vm409, 0.0
      %436 = vst.msk [vmem:[#allocation2 + $0xd1] sm:$0x1] %vm409, 0.0
      %437 = vst.msk [vmem:[#allocation2 + $0xe9] sm:$0x1] %vm409, 0.0
      %438 = vst.msk [vmem:[#allocation2 + $0x101] sm:$0x1] %vm409, 0.0
      %439 = vst.msk [vmem:[#allocation2 + $0x119] sm:$0x1] %vm409, 0.0
      %440 = vst.msk [vmem:[#allocation2 + $0x131] sm:$0x1] %vm409, 0.0
      %441 = vst.msk [vmem:[#allocation2 + $0x149] sm:$0x1] %vm409, 0.0
      %442 = vst.msk [vmem:[#allocation2 + $0x161] sm:$0x1] %vm409, 0.0
      %443 = vst.msk [vmem:[#allocation2 + $0x179] sm:$0x1] %vm409, 0.0
      %444 = vst.msk [vmem:[#allocation2 + $0x191] sm:$0x1] %vm409, 0.0
      %445 = vst.msk [vmem:[#allocation2 + $0x1a9] sm:$0x1] %vm409, 0.0
      %s446 = scalar_lea.vmem [#allocation2], 24
      %447 = vst.msk [vmem:[%s446 + $0x1] sm:$0xff] %vm400, %v368
      %448 = vst.msk [vmem:[%s446 + $0x9] sm:$0xff] %vm400, %v369
      %449 = vst.msk [vmem:[%s446 + $0x19] sm:$0xff] %vm400, %v370
      %450 = vst.msk [vmem:[%s446 + $0x21] sm:$0xff] %vm400, %v371
      %451 = vst.msk [vmem:[%s446 + $0x31] sm:$0xff] %vm400, %v372
      %452 = vst.msk [vmem:[%s446 + $0x39] sm:$0xff] %vm400, %v373
      %453 = vst.msk [vmem:[%s446 + $0x49] sm:$0xff] %vm400, %v374
      %454 = vst.msk [vmem:[%s446 + $0x51] sm:$0xff] %vm400, %v375
      %455 = vst.msk [vmem:[%s446 + $0x61] sm:$0xff] %vm400, %v376
      %456 = vst.msk [vmem:[%s446 + $0x69] sm:$0xff] %vm400, %v377
      %457 = vst.msk [vmem:[%s446 + $0x79] sm:$0xff] %vm400, %v378
      %458 = vst.msk [vmem:[%s446 + $0x81] sm:$0xff] %vm400, %v379
      %459 = vst.msk [vmem:[%s446 + $0x91] sm:$0xff] %vm400, %v380
      %460 = vst.msk [vmem:[%s446 + $0x99] sm:$0xff] %vm400, %v381
      %461 = vst.msk [vmem:[%s446 + $0xa9] sm:$0xff] %vm400, %v382
      %462 = vst.msk [vmem:[%s446 + $0xb1] sm:$0xff] %vm400, %v383
      %463 = vst.msk [vmem:[%s446 + $0xc1] sm:$0xff] %vm400, %v384
      %464 = vst.msk [vmem:[%s446 + $0xc9] sm:$0xff] %vm400, %v385
      %465 = vst.msk [vmem:[%s446 + $0xd9] sm:$0xff] %vm400, %v386
      %466 = vst.msk [vmem:[%s446 + $0xe1] sm:$0xff] %vm400, %v387
      %467 = vst.msk [vmem:[%s446 + $0xf1] sm:$0xff] %vm400, %v388
      %468 = vst.msk [vmem:[%s446 + $0xf9] sm:$0xff] %vm400, %v389
      %469 = vst.msk [vmem:[%s446 + $0x109] sm:$0xff] %vm400, %v390
      %470 = vst.msk [vmem:[%s446 + $0x111] sm:$0xff] %vm400, %v391
      %471 = vst.msk [vmem:[%s446 + $0x121] sm:$0xff] %vm400, %v392
      %472 = vst.msk [vmem:[%s446 + $0x129] sm:$0xff] %vm400, %v393
      %473 = vst.msk [vmem:[%s446 + $0x139] sm:$0xff] %vm400, %v394
      %474 = vst.msk [vmem:[%s446 + $0x141] sm:$0xff] %vm400, %v395
      %475 = vst.msk [vmem:[%s446 + $0x151] sm:$0xff] %vm400, %v396
      %476 = vst.msk [vmem:[%s446 + $0x159] sm:$0xff] %vm400, %v397
      %477 = vst.msk [vmem:[%s446 + $0x169] sm:$0xff] %vm400, %v398
      %478 = vst.msk [vmem:[%s446 + $0x171] sm:$0xff] %vm400, %v399
      %v479 = vld [vmem:[#allocation2] sm:$0xff]
      %v480 = vld [vmem:[#allocation2 + $0x8] sm:$0xff]
      %v481 = vld [vmem:[#allocation2 + $0x18] sm:$0xff]
      %v482 = vld [vmem:[#allocation2 + $0x20] sm:$0xff]
      %v483 = vld [vmem:[#allocation2 + $0x30] sm:$0xff]
      %v484 = vld [vmem:[#allocation2 + $0x38] sm:$0xff]
      %v485 = vld [vmem:[#allocation2 + $0x48] sm:$0xff]
      %v486 = vld [vmem:[#allocation2 + $0x50] sm:$0xff]
      %v487 = vld [vmem:[#allocation2 + $0x60] sm:$0xff]
      %v488 = vld [vmem:[#allocation2 + $0x68] sm:$0xff]
      %v489 = vld [vmem:[#allocation2 + $0x78] sm:$0xff]
      %v490 = vld [vmem:[#allocation2 + $0x80] sm:$0xff]
      %v491 = vld [vmem:[#allocation2 + $0x90] sm:$0xff]
      %v492 = vld [vmem:[#allocation2 + $0x98] sm:$0xff]
      %v493 = vld [vmem:[#allocation2 + $0xa8] sm:$0xff]
      %v494 = vld [vmem:[#allocation2 + $0xb0] sm:$0xff]
      %v495 = vld [vmem:[#allocation2 + $0xc0] sm:$0xff]
      %v496 = vld [vmem:[#allocation2 + $0xc8] sm:$0xff]
      %v497 = vld [vmem:[#allocation2 + $0xd8] sm:$0xff]
      %v498 = vld [vmem:[#allocation2 + $0xe0] sm:$0xff]
      %v499 = vld [vmem:[#allocation2 + $0xf0] sm:$0xff]
      %v500 = vld [vmem:[#allocation2 + $0xf8] sm:$0xff]
      %v501 = vld [vmem:[#allocation2 + $0x108] sm:$0xff]
      %v502 = vld [vmem:[#allocation2 + $0x110] sm:$0xff]
      %v503 = vld [vmem:[#allocation2 + $0x120] sm:$0xff]
      %v504 = vld [vmem:[#allocation2 + $0x128] sm:$0xff]
      %v505 = vld [vmem:[#allocation2 + $0x138] sm:$0xff]
      %v506 = vld [vmem:[#allocation2 + $0x140] sm:$0xff]
      %v507 = vld [vmem:[#allocation2 + $0x150] sm:$0xff]
      %v508 = vld [vmem:[#allocation2 + $0x158] sm:$0xff]
      %v509 = vld [vmem:[#allocation2 + $0x168] sm:$0xff]
      %v510 = vld [vmem:[#allocation2 + $0x170] sm:$0xff]
      %511 = vst.msk [vmem:[#allocation3] sm:$0xff] %vm400, %v479
      %512 = vst.msk [vmem:[#allocation3 + $0x8] sm:$0xff] %vm400, %v480
      %513 = vst.msk [vmem:[#allocation3 + $0x10] sm:$0xff] %vm400, %v481
      %514 = vst.msk [vmem:[#allocation3 + $0x18] sm:$0xff] %vm400, %v482
      %515 = vst.msk [vmem:[#allocation3 + $0x20] sm:$0xff] %vm400, %v483
      %516 = vst.msk [vmem:[#allocation3 + $0x28] sm:$0xff] %vm400, %v484
      %517 = vst.msk [vmem:[#allocation3 + $0x30] sm:$0xff] %vm400, %v485
      %518 = vst.msk [vmem:[#allocation3 + $0x38] sm:$0xff] %vm400, %v486
      %519 = vst.msk [vmem:[#allocation3 + $0x40] sm:$0xff] %vm400, %v487
      %520 = vst.msk [vmem:[#allocation3 + $0x48] sm:$0xff] %vm400, %v488
      %521 = vst.msk [vmem:[#allocation3 + $0x50] sm:$0xff] %vm400, %v489
      %522 = vst.msk [vmem:[#allocation3 + $0x58] sm:$0xff] %vm400, %v490
      %523 = vst.msk [vmem:[#allocation3 + $0x60] sm:$0xff] %vm400, %v491
      %524 = vst.msk [vmem:[#allocation3 + $0x68] sm:$0xff] %vm400, %v492
      %525 = vst.msk [vmem:[#allocation3 + $0x70] sm:$0xff] %vm400, %v493
      %526 = vst.msk [vmem:[#allocation3 + $0x78] sm:$0xff] %vm400, %v494
      %527 = vst.msk [vmem:[#allocation3 + $0x80] sm:$0xff] %vm400, %v495
      %528 = vst.msk [vmem:[#allocation3 + $0x88] sm:$0xff] %vm400, %v496
      %529 = vst.msk [vmem:[#allocation3 + $0x90] sm:$0xff] %vm400, %v497
      %530 = vst.msk [vmem:[#allocation3 + $0x98] sm:$0xff] %vm400, %v498
      %531 = vst.msk [vmem:[#allocation3 + $0xa0] sm:$0xff] %vm400, %v499
      %532 = vst.msk [vmem:[#allocation3 + $0xa8] sm:$0xff] %vm400, %v500
      %533 = vst.msk [vmem:[#allocation3 + $0xb0] sm:$0xff] %vm400, %v501
      %534 = vst.msk [vmem:[#allocation3 + $0xb8] sm:$0xff] %vm400, %v502
      %535 = vst.msk [vmem:[#allocation3 + $0xc0] sm:$0xff] %vm400, %v503
      %536 = vst.msk [vmem:[#allocation3 + $0xc8] sm:$0xff] %vm400, %v504
      %537 = vst.msk [vmem:[#allocation3 + $0xd0] sm:$0xff] %vm400, %v505
      %538 = vst.msk [vmem:[#allocation3 + $0xd8] sm:$0xff] %vm400, %v506
      %539 = vst.msk [vmem:[#allocation3 + $0xe0] sm:$0xff] %vm400, %v507
      %540 = vst.msk [vmem:[#allocation3 + $0xe8] sm:$0xff] %vm400, %v508
      %541 = vst.msk [vmem:[#allocation3 + $0xf0] sm:$0xff] %vm400, %v509
      %542 = vst.msk [vmem:[#allocation3 + $0xf8] sm:$0xff] %vm400, %v510
      %v543 = vld [vmem:[#allocation2 + $0x1] sm:$0xff]
      %v544 = vld [vmem:[#allocation2 + $0x9] sm:$0xff]
      %v545 = vld [vmem:[#allocation2 + $0x19] sm:$0xff]
      %v546 = vld [vmem:[#allocation2 + $0x21] sm:$0xff]
      %v547 = vld [vmem:[#allocation2 + $0x31] sm:$0xff]
      %v548 = vld [vmem:[#allocation2 + $0x39] sm:$0xff]
      %v549 = vld [vmem:[#allocation2 + $0x49] sm:$0xff]
      %v550 = vld [vmem:[#allocation2 + $0x51] sm:$0xff]
      %v551 = vld [vmem:[#allocation2 + $0x61] sm:$0xff]
      %v552 = vld [vmem:[#allocation2 + $0x69] sm:$0xff]
      %v553 = vld [vmem:[#allocation2 + $0x79] sm:$0xff]
      %v554 = vld [vmem:[#allocation2 + $0x81] sm:$0xff]
      %v555 = vld [vmem:[#allocation2 + $0x91] sm:$0xff]
      %v556 = vld [vmem:[#allocation2 + $0x99] sm:$0xff]
      %v557 = vld [vmem:[#allocation2 + $0xa9] sm:$0xff]
      %v558 = vld [vmem:[#allocation2 + $0xb1] sm:$0xff]
      %v559 = vld [vmem:[#allocation2 + $0xc1] sm:$0xff]
      %v560 = vld [vmem:[#allocation2 + $0xc9] sm:$0xff]
      %v561 = vld [vmem:[#allocation2 + $0xd9] sm:$0xff]
      %v562 = vld [vmem:[#allocation2 + $0xe1] sm:$0xff]
      %v563 = vld [vmem:[#allocation2 + $0xf1] sm:$0xff]
      %v564 = vld [vmem:[#allocation2 + $0xf9] sm:$0xff]
      %v565 = vld [vmem:[#allocation2 + $0x109] sm:$0xff]
      %v566 = vld [vmem:[#allocation2 + $0x111] sm:$0xff]
      %v567 = vld [vmem:[#allocation2 + $0x121] sm:$0xff]
      %v568 = vld [vmem:[#allocation2 + $0x129] sm:$0xff]
      %v569 = vld [vmem:[#allocation2 + $0x139] sm:$0xff]
      %v570 = vld [vmem:[#allocation2 + $0x141] sm:$0xff]
      %v571 = vld [vmem:[#allocation2 + $0x151] sm:$0xff]
      %v572 = vld [vmem:[#allocation2 + $0x159] sm:$0xff]
      %v573 = vld [vmem:[#allocation2 + $0x169] sm:$0xff]
      %v574 = vld [vmem:[#allocation2 + $0x171] sm:$0xff]
      %607 = vrot.lane.b32.xlu0 %v543, 4
      %v608 = vpop.permute.xlu0 %607
      %609 = vrot.lane.b32.xlu0 %v544, 4
      %v610 = vpop.permute.xlu0 %609
      %611 = vrot.lane.b32.xlu0 %v545, 4
      %v612 = vpop.permute.xlu0 %611
      %613 = vrot.lane.b32.xlu0 %v546, 4
      %v614 = vpop.permute.xlu0 %613
      %615 = vrot.lane.b32.xlu0 %v547, 4
      %v616 = vpop.permute.xlu0 %615
      %617 = vrot.lane.b32.xlu0 %v548, 4
      %v618 = vpop.permute.xlu0 %617
      %619 = vrot.lane.b32.xlu0 %v549, 4
      %v620 = vpop.permute.xlu0 %619
      %621 = vrot.lane.b32.xlu0 %v550, 4
      %v622 = vpop.permute.xlu0 %621
      %623 = vrot.lane.b32.xlu0 %v551, 4
      %v624 = vpop.permute.xlu0 %623
      %625 = vrot.lane.b32.xlu0 %v552, 4
      %v626 = vpop.permute.xlu0 %625
      %627 = vrot.lane.b32.xlu0 %v553, 4
      %v628 = vpop.permute.xlu0 %627
      %629 = vrot.lane.b32.xlu0 %v554, 4
      %v630 = vpop.permute.xlu0 %629
      %631 = vrot.lane.b32.xlu0 %v555, 4
      %v632 = vpop.permute.xlu0 %631
      %633 = vrot.lane.b32.xlu0 %v556, 4
      %v634 = vpop.permute.xlu0 %633
      %635 = vrot.lane.b32.xlu0 %v557, 4
      %v636 = vpop.permute.xlu0 %635
      %637 = vrot.lane.b32.xlu0 %v558, 4
      %v638 = vpop.permute.xlu0 %637
      %639 = vrot.lane.b32.xlu0 %v559, 4
      %v640 = vpop.permute.xlu0 %639
      %641 = vrot.lane.b32.xlu0 %v560, 4
      %v642 = vpop.permute.xlu0 %641
      %643 = vrot.lane.b32.xlu0 %v561, 4
      %v644 = vpop.permute.xlu0 %643
      %645 = vrot.lane.b32.xlu0 %v562, 4
      %v646 = vpop.permute.xlu0 %645
      %647 = vrot.lane.b32.xlu0 %v563, 4
      %v648 = vpop.permute.xlu0 %647
      %649 = vrot.lane.b32.xlu0 %v564, 4
      %v650 = vpop.permute.xlu0 %649
      %651 = vrot.lane.b32.xlu0 %v565, 4
      %v652 = vpop.permute.xlu0 %651
      %653 = vrot.lane.b32.xlu0 %v566, 4
      %v654 = vpop.permute.xlu0 %653
      %655 = vrot.lane.b32.xlu0 %v567, 4
      %v656 = vpop.permute.xlu0 %655
      %657 = vrot.lane.b32.xlu0 %v568, 4
      %v658 = vpop.permute.xlu0 %657
      %659 = vrot.lane.b32.xlu0 %v569, 4
      %v660 = vpop.permute.xlu0 %659
      %661 = vrot.lane.b32.xlu0 %v570, 4
      %v662 = vpop.permute.xlu0 %661
      %663 = vrot.lane.b32.xlu0 %v571, 4
      %v664 = vpop.permute.xlu0 %663
      %665 = vrot.lane.b32.xlu0 %v572, 4
      %v666 = vpop.permute.xlu0 %665
      %667 = vrot.lane.b32.xlu0 %v573, 4
      %v668 = vpop.permute.xlu0 %667
      %669 = vrot.lane.b32.xlu0 %v574, 4
      %v670 = vpop.permute.xlu0 %669
      %vm703 = vcmask 64544
      %704 = vst.msk [vmem:[#allocation3] sm:$0xff] %vm703, %v608
      %705 = vst.msk [vmem:[#allocation3 + $0x8] sm:$0xff] %vm703, %v610
      %706 = vst.msk [vmem:[#allocation3 + $0x10] sm:$0xff] %vm703, %v612
      %707 = vst.msk [vmem:[#allocation3 + $0x18] sm:$0xff] %vm703, %v614
      %708 = vst.msk [vmem:[#allocation3 + $0x20] sm:$0xff] %vm703, %v616
      %709 = vst.msk [vmem:[#allocation3 + $0x28] sm:$0xff] %vm703, %v618
      %710 = vst.msk [vmem:[#allocation3 + $0x30] sm:$0xff] %vm703, %v620
      %711 = vst.msk [vmem:[#allocation3 + $0x38] sm:$0xff] %vm703, %v622
      %712 = vst.msk [vmem:[#allocation3 + $0x40] sm:$0xff] %vm703, %v624
      %713 = vst.msk [vmem:[#allocation3 + $0x48] sm:$0xff] %vm703, %v626
      %714 = vst.msk [vmem:[#allocation3 + $0x50] sm:$0xff] %vm703, %v628
      %715 = vst.msk [vmem:[#allocation3 + $0x58] sm:$0xff] %vm703, %v630
      %716 = vst.msk [vmem:[#allocation3 + $0x60] sm:$0xff] %vm703, %v632
      %717 = vst.msk [vmem:[#allocation3 + $0x68] sm:$0xff] %vm703, %v634
      %718 = vst.msk [vmem:[#allocation3 + $0x70] sm:$0xff] %vm703, %v636
      %719 = vst.msk [vmem:[#allocation3 + $0x78] sm:$0xff] %vm703, %v638
      %720 = vst.msk [vmem:[#allocation3 + $0x80] sm:$0xff] %vm703, %v640
      %721 = vst.msk [vmem:[#allocation3 + $0x88] sm:$0xff] %vm703, %v642
      %722 = vst.msk [vmem:[#allocation3 + $0x90] sm:$0xff] %vm703, %v644
      %723 = vst.msk [vmem:[#allocation3 + $0x98] sm:$0xff] %vm703, %v646
      %724 = vst.msk [vmem:[#allocation3 + $0xa0] sm:$0xff] %vm703, %v648
      %725 = vst.msk [vmem:[#allocation3 + $0xa8] sm:$0xff] %vm703, %v650
      %726 = vst.msk [vmem:[#allocation3 + $0xb0] sm:$0xff] %vm703, %v652
      %727 = vst.msk [vmem:[#allocation3 + $0xb8] sm:$0xff] %vm703, %v654
      %728 = vst.msk [vmem:[#allocation3 + $0xc0] sm:$0xff] %vm703, %v656
      %729 = vst.msk [vmem:[#allocation3 + $0xc8] sm:$0xff] %vm703, %v658
      %730 = vst.msk [vmem:[#allocation3 + $0xd0] sm:$0xff] %vm703, %v660
      %731 = vst.msk [vmem:[#allocation3 + $0xd8] sm:$0xff] %vm703, %v662
      %732 = vst.msk [vmem:[#allocation3 + $0xe0] sm:$0xff] %vm703, %v664
      %733 = vst.msk [vmem:[#allocation3 + $0xe8] sm:$0xff] %vm703, %v666
      %734 = vst.msk [vmem:[#allocation3 + $0xf0] sm:$0xff] %vm703, %v668
      %735 = vst.msk [vmem:[#allocation3 + $0xf8] sm:$0xff] %vm703, %v670
      %v736 = vld [vmem:[#allocation2 + $0x2] sm:$0xff]
      %v737 = vld [vmem:[#allocation2 + $0xa] sm:$0xff]
      %v738 = vld [vmem:[#allocation2 + $0x1a] sm:$0xff]
      %v739 = vld [vmem:[#allocation2 + $0x22] sm:$0xff]
      %v740 = vld [vmem:[#allocation2 + $0x32] sm:$0xff]
      %v741 = vld [vmem:[#allocation2 + $0x3a] sm:$0xff]
      %v742 = vld [vmem:[#allocation2 + $0x4a] sm:$0xff]
      %v743 = vld [vmem:[#allocation2 + $0x52] sm:$0xff]
      %v744 = vld [vmem:[#allocation2 + $0x62] sm:$0xff]
      %v745 = vld [vmem:[#allocation2 + $0x6a] sm:$0xff]
      %v746 = vld [vmem:[#allocation2 + $0x7a] sm:$0xff]
      %v747 = vld [vmem:[#allocation2 + $0x82] sm:$0xff]
      %v748 = vld [vmem:[#allocation2 + $0x92] sm:$0xff]
      %v749 = vld [vmem:[#allocation2 + $0x9a] sm:$0xff]
      %v750 = vld [vmem:[#allocation2 + $0xaa] sm:$0xff]
      %v751 = vld [vmem:[#allocation2 + $0xb2] sm:$0xff]
      %v752 = vld [vmem:[#allocation2 + $0xc2] sm:$0xff]
      %v753 = vld [vmem:[#allocation2 + $0xca] sm:$0xff]
      %v754 = vld [vmem:[#allocation2 + $0xda] sm:$0xff]
      %v755 = vld [vmem:[#allocation2 + $0xe2] sm:$0xff]
      %v756 = vld [vmem:[#allocation2 + $0xf2] sm:$0xff]
      %v757 = vld [vmem:[#allocation2 + $0xfa] sm:$0xff]
      %v758 = vld [vmem:[#allocation2 + $0x10a] sm:$0xff]
      %v759 = vld [vmem:[#allocation2 + $0x112] sm:$0xff]
      %v760 = vld [vmem:[#allocation2 + $0x122] sm:$0xff]
      %v761 = vld [vmem:[#allocation2 + $0x12a] sm:$0xff]
      %v762 = vld [vmem:[#allocation2 + $0x13a] sm:$0xff]
      %v763 = vld [vmem:[#allocation2 + $0x142] sm:$0xff]
      %v764 = vld [vmem:[#allocation2 + $0x152] sm:$0xff]
      %v765 = vld [vmem:[#allocation2 + $0x15a] sm:$0xff]
      %v766 = vld [vmem:[#allocation2 + $0x16a] sm:$0xff]
      %v767 = vld [vmem:[#allocation2 + $0x172] sm:$0xff]
      %800 = vrot.lane.b32.xlu0 %v736, 8
      %v801 = vpop.permute.xlu0 %800
      %802 = vrot.lane.b32.xlu0 %v737, 8
      %v803 = vpop.permute.xlu0 %802
      %804 = vrot.lane.b32.xlu0 %v738, 8
      %v805 = vpop.permute.xlu0 %804
      %806 = vrot.lane.b32.xlu0 %v739, 8
      %v807 = vpop.permute.xlu0 %806
      %808 = vrot.lane.b32.xlu0 %v740, 8
      %v809 = vpop.permute.xlu0 %808
      %810 = vrot.lane.b32.xlu0 %v741, 8
      %v811 = vpop.permute.xlu0 %810
      %812 = vrot.lane.b32.xlu0 %v742, 8
      %v813 = vpop.permute.xlu0 %812
      %814 = vrot.lane.b32.xlu0 %v743, 8
      %v815 = vpop.permute.xlu0 %814
      %816 = vrot.lane.b32.xlu0 %v744, 8
      %v817 = vpop.permute.xlu0 %816
      %818 = vrot.lane.b32.xlu0 %v745, 8
      %v819 = vpop.permute.xlu0 %818
      %820 = vrot.lane.b32.xlu0 %v746, 8
      %v821 = vpop.permute.xlu0 %820
      %822 = vrot.lane.b32.xlu0 %v747, 8
      %v823 = vpop.permute.xlu0 %822
      %824 = vrot.lane.b32.xlu0 %v748, 8
      %v825 = vpop.permute.xlu0 %824
      %826 = vrot.lane.b32.xlu0 %v749, 8
      %v827 = vpop.permute.xlu0 %826
      %828 = vrot.lane.b32.xlu0 %v750, 8
      %v829 = vpop.permute.xlu0 %828
      %830 = vrot.lane.b32.xlu0 %v751, 8
      %v831 = vpop.permute.xlu0 %830
      %832 = vrot.lane.b32.xlu0 %v752, 8
      %v833 = vpop.permute.xlu0 %832
      %834 = vrot.lane.b32.xlu0 %v753, 8
      %v835 = vpop.permute.xlu0 %834
      %836 = vrot.lane.b32.xlu0 %v754, 8
      %v837 = vpop.permute.xlu0 %836
      %838 = vrot.lane.b32.xlu0 %v755, 8
      %v839 = vpop.permute.xlu0 %838
      %840 = vrot.lane.b32.xlu0 %v756, 8
      %v841 = vpop.permute.xlu0 %840
      %842 = vrot.lane.b32.xlu0 %v757, 8
      %v843 = vpop.permute.xlu0 %842
      %844 = vrot.lane.b32.xlu0 %v758, 8
      %v845 = vpop.permute.xlu0 %844
      %846 = vrot.lane.b32.xlu0 %v759, 8
      %v847 = vpop.permute.xlu0 %846
      %848 = vrot.lane.b32.xlu0 %v760, 8
      %v849 = vpop.permute.xlu0 %848
      %850 = vrot.lane.b32.xlu0 %v761, 8
      %v851 = vpop.permute.xlu0 %850
      %852 = vrot.lane.b32.xlu0 %v762, 8
      %v853 = vpop.permute.xlu0 %852
      %854 = vrot.lane.b32.xlu0 %v763, 8
      %v855 = vpop.permute.xlu0 %854
      %856 = vrot.lane.b32.xlu0 %v764, 8
      %v857 = vpop.permute.xlu0 %856
      %858 = vrot.lane.b32.xlu0 %v765, 8
      %v859 = vpop.permute.xlu0 %858
      %860 = vrot.lane.b32.xlu0 %v766, 8
      %v861 = vpop.permute.xlu0 %860
      %862 = vrot.lane.b32.xlu0 %v767, 8
      %v863 = vpop.permute.xlu0 %862
      %vm896 = vcmask 97344
      %897 = vst.msk [vmem:[#allocation3] sm:$0xff] %vm896, %v801
      %898 = vst.msk [vmem:[#allocation3 + $0x8] sm:$0xff] %vm896, %v803
      %899 = vst.msk [vmem:[#allocation3 + $0x10] sm:$0xff] %vm896, %v805
      %900 = vst.msk [vmem:[#allocation3 + $0x18] sm:$0xff] %vm896, %v807
      %901 = vst.msk [vmem:[#allocation3 + $0x20] sm:$0xff] %vm896, %v809
      %902 = vst.msk [vmem:[#allocation3 + $0x28] sm:$0xff] %vm896, %v811
      %903 = vst.msk [vmem:[#allocation3 + $0x30] sm:$0xff] %vm896, %v813
      %904 = vst.msk [vmem:[#allocation3 + $0x38] sm:$0xff] %vm896, %v815
      %905 = vst.msk [vmem:[#allocation3 + $0x40] sm:$0xff] %vm896, %v817
      %906 = vst.msk [vmem:[#allocation3 + $0x48] sm:$0xff] %vm896, %v819
      %907 = vst.msk [vmem:[#allocation3 + $0x50] sm:$0xff] %vm896, %v821
      %908 = vst.msk [vmem:[#allocation3 + $0x58] sm:$0xff] %vm896, %v823
      %909 = vst.msk [vmem:[#allocation3 + $0x60] sm:$0xff] %vm896, %v825
      %910 = vst.msk [vmem:[#allocation3 + $0x68] sm:$0xff] %vm896, %v827
      %911 = vst.msk [vmem:[#allocation3 + $0x70] sm:$0xff] %vm896, %v829
      %912 = vst.msk [vmem:[#allocation3 + $0x78] sm:$0xff] %vm896, %v831
      %913 = vst.msk [vmem:[#allocation3 + $0x80] sm:$0xff] %vm896, %v833
      %914 = vst.msk [vmem:[#allocation3 + $0x88] sm:$0xff] %vm896, %v835
      %915 = vst.msk [vmem:[#allocation3 + $0x90] sm:$0xff] %vm896, %v837
      %916 = vst.msk [vmem:[#allocation3 + $0x98] sm:$0xff] %vm896, %v839
      %917 = vst.msk [vmem:[#allocation3 + $0xa0] sm:$0xff] %vm896, %v841
      %918 = vst.msk [vmem:[#allocation3 + $0xa8] sm:$0xff] %vm896, %v843
      %919 = vst.msk [vmem:[#allocation3 + $0xb0] sm:$0xff] %vm896, %v845
      %920 = vst.msk [vmem:[#allocation3 + $0xb8] sm:$0xff] %vm896, %v847
      %921 = vst.msk [vmem:[#allocation3 + $0xc0] sm:$0xff] %vm896, %v849
      %922 = vst.msk [vmem:[#allocation3 + $0xc8] sm:$0xff] %vm896, %v851
      %923 = vst.msk [vmem:[#allocation3 + $0xd0] sm:$0xff] %vm896, %v853
      %924 = vst.msk [vmem:[#allocation3 + $0xd8] sm:$0xff] %vm896, %v855
      %925 = vst.msk [vmem:[#allocation3 + $0xe0] sm:$0xff] %vm896, %v857
      %926 = vst.msk [vmem:[#allocation3 + $0xe8] sm:$0xff] %vm896, %v859
      %927 = vst.msk [vmem:[#allocation3 + $0xf0] sm:$0xff] %vm896, %v861
      %928 = vst.msk [vmem:[#allocation3 + $0xf8] sm:$0xff] %vm896, %v863
      %v929 = vld [vmem:[%s446] sm:$0xff]
      %v930 = vld [vmem:[%s446 + $0x8] sm:$0xff]
      %v931 = vld [vmem:[%s446 + $0x18] sm:$0xff]
      %v932 = vld [vmem:[%s446 + $0x20] sm:$0xff]
      %v933 = vld [vmem:[%s446 + $0x30] sm:$0xff]
      %v934 = vld [vmem:[%s446 + $0x38] sm:$0xff]
      %v935 = vld [vmem:[%s446 + $0x48] sm:$0xff]
      %v936 = vld [vmem:[%s446 + $0x50] sm:$0xff]
      %v937 = vld [vmem:[%s446 + $0x60] sm:$0xff]
      %v938 = vld [vmem:[%s446 + $0x68] sm:$0xff]
      %v939 = vld [vmem:[%s446 + $0x78] sm:$0xff]
      %v940 = vld [vmem:[%s446 + $0x80] sm:$0xff]
      %v941 = vld [vmem:[%s446 + $0x90] sm:$0xff]
      %v942 = vld [vmem:[%s446 + $0x98] sm:$0xff]
      %v943 = vld [vmem:[%s446 + $0xa8] sm:$0xff]
      %v944 = vld [vmem:[%s446 + $0xb0] sm:$0xff]
      %v945 = vld [vmem:[%s446 + $0xc0] sm:$0xff]
      %v946 = vld [vmem:[%s446 + $0xc8] sm:$0xff]
      %v947 = vld [vmem:[%s446 + $0xd8] sm:$0xff]
      %v948 = vld [vmem:[%s446 + $0xe0] sm:$0xff]
      %v949 = vld [vmem:[%s446 + $0xf0] sm:$0xff]
      %v950 = vld [vmem:[%s446 + $0xf8] sm:$0xff]
      %v951 = vld [vmem:[%s446 + $0x108] sm:$0xff]
      %v952 = vld [vmem:[%s446 + $0x110] sm:$0xff]
      %v953 = vld [vmem:[%s446 + $0x120] sm:$0xff]
      %v954 = vld [vmem:[%s446 + $0x128] sm:$0xff]
      %v955 = vld [vmem:[%s446 + $0x138] sm:$0xff]
      %v956 = vld [vmem:[%s446 + $0x140] sm:$0xff]
      %v957 = vld [vmem:[%s446 + $0x150] sm:$0xff]
      %v958 = vld [vmem:[%s446 + $0x158] sm:$0xff]
      %v959 = vld [vmem:[%s446 + $0x168] sm:$0xff]
      %v960 = vld [vmem:[%s446 + $0x170] sm:$0xff]
      %993 = vrot.lane.b32.xlu0 %v929, 12
      %v994 = vpop.permute.xlu0 %993
      %995 = vrot.lane.b32.xlu0 %v930, 12
      %v996 = vpop.permute.xlu0 %995
      %997 = vrot.lane.b32.xlu0 %v931, 12
      %v998 = vpop.permute.xlu0 %997
      %999 = vrot.lane.b32.xlu0 %v932, 12
      %v1000 = vpop.permute.xlu0 %999
      %1001 = vrot.lane.b32.xlu0 %v933, 12
      %v1002 = vpop.permute.xlu0 %1001
      %1003 = vrot.lane.b32.xlu0 %v934, 12
      %v1004 = vpop.permute.xlu0 %1003
      %1005 = vrot.lane.b32.xlu0 %v935, 12
      %v1006 = vpop.permute.xlu0 %1005
      %1007 = vrot.lane.b32.xlu0 %v936, 12
      %v1008 = vpop.permute.xlu0 %1007
      %1009 = vrot.lane.b32.xlu0 %v937, 12
      %v1010 = vpop.permute.xlu0 %1009
      %1011 = vrot.lane.b32.xlu0 %v938, 12
      %v1012 = vpop.permute.xlu0 %1011
      %1013 = vrot.lane.b32.xlu0 %v939, 12
      %v1014 = vpop.permute.xlu0 %1013
      %1015 = vrot.lane.b32.xlu0 %v940, 12
      %v1016 = vpop.permute.xlu0 %1015
      %1017 = vrot.lane.b32.xlu0 %v941, 12
      %v1018 = vpop.permute.xlu0 %1017
      %1019 = vrot.lane.b32.xlu0 %v942, 12
      %v1020 = vpop.permute.xlu0 %1019
      %1021 = vrot.lane.b32.xlu0 %v943, 12
      %v1022 = vpop.permute.xlu0 %1021
      %1023 = vrot.lane.b32.xlu0 %v944, 12
      %v1024 = vpop.permute.xlu0 %1023
      %1025 = vrot.lane.b32.xlu0 %v945, 12
      %v1026 = vpop.permute.xlu0 %1025
      %1027 = vrot.lane.b32.xlu0 %v946, 12
      %v1028 = vpop.permute.xlu0 %1027
      %1029 = vrot.lane.b32.xlu0 %v947, 12
      %v1030 = vpop.permute.xlu0 %1029
      %1031 = vrot.lane.b32.xlu0 %v948, 12
      %v1032 = vpop.permute.xlu0 %1031
      %1033 = vrot.lane.b32.xlu0 %v949, 12
      %v1034 = vpop.permute.xlu0 %1033
      %1035 = vrot.lane.b32.xlu0 %v950, 12
      %v1036 = vpop.permute.xlu0 %1035
      %1037 = vrot.lane.b32.xlu0 %v951, 12
      %v1038 = vpop.permute.xlu0 %1037
      %1039 = vrot.lane.b32.xlu0 %v952, 12
      %v1040 = vpop.permute.xlu0 %1039
      %1041 = vrot.lane.b32.xlu0 %v953, 12
      %v1042 = vpop.permute.xlu0 %1041
      %1043 = vrot.lane.b32.xlu0 %v954, 12
      %v1044 = vpop.permute.xlu0 %1043
      %1045 = vrot.lane.b32.xlu0 %v955, 12
      %v1046 = vpop.permute.xlu0 %1045
      %1047 = vrot.lane.b32.xlu0 %v956, 12
      %v1048 = vpop.permute.xlu0 %1047
      %1049 = vrot.lane.b32.xlu0 %v957, 12
      %v1050 = vpop.permute.xlu0 %1049
      %1051 = vrot.lane.b32.xlu0 %v958, 12
      %v1052 = vpop.permute.xlu0 %1051
      %1053 = vrot.lane.b32.xlu0 %v959, 12
      %v1054 = vpop.permute.xlu0 %1053
      %1055 = vrot.lane.b32.xlu0 %v960, 12
      %v1056 = vpop.permute.xlu0 %1055
      %vm1089 = vcmask 130144
      %1090 = vst.msk [vmem:[#allocation3] sm:$0xff] %vm1089, %v994
      %1091 = vst.msk [vmem:[#allocation3 + $0x8] sm:$0xff] %vm1089, %v996
      %1092 = vst.msk [vmem:[#allocation3 + $0x10] sm:$0xff] %vm1089, %v998
      %1093 = vst.msk [vmem:[#allocation3 + $0x18] sm:$0xff] %vm1089, %v1000
      %1094 = vst.msk [vmem:[#allocation3 + $0x20] sm:$0xff] %vm1089, %v1002
      %1095 = vst.msk [vmem:[#allocation3 + $0x28] sm:$0xff] %vm1089, %v1004
      %1096 = vst.msk [vmem:[#allocation3 + $0x30] sm:$0xff] %vm1089, %v1006
      %1097 = vst.msk [vmem:[#allocation3 + $0x38] sm:$0xff] %vm1089, %v1008
      %1098 = vst.msk [vmem:[#allocation3 + $0x40] sm:$0xff] %vm1089, %v1010
      %1099 = vst.msk [vmem:[#allocation3 + $0x48] sm:$0xff] %vm1089, %v1012
      %1100 = vst.msk [vmem:[#allocation3 + $0x50] sm:$0xff] %vm1089, %v1014
      %1101 = vst.msk [vmem:[#allocation3 + $0x58] sm:$0xff] %vm1089, %v1016
      %1102 = vst.msk [vmem:[#allocation3 + $0x60] sm:$0xff] %vm1089, %v1018
      %1103 = vst.msk [vmem:[#allocation3 + $0x68] sm:$0xff] %vm1089, %v1020
      %1104 = vst.msk [vmem:[#allocation3 + $0x70] sm:$0xff] %vm1089, %v1022
      %1105 = vst.msk [vmem:[#allocation3 + $0x78] sm:$0xff] %vm1089, %v1024
      %1106 = vst.msk [vmem:[#allocation3 + $0x80] sm:$0xff] %vm1089, %v1026
      %1107 = vst.msk [vmem:[#allocation3 + $0x88] sm:$0xff] %vm1089, %v1028
      %1108 = vst.msk [vmem:[#allocation3 + $0x90] sm:$0xff] %vm1089, %v1030
      %1109 = vst.msk [vmem:[#allocation3 + $0x98] sm:$0xff] %vm1089, %v1032
      %1110 = vst.msk [vmem:[#allocation3 + $0xa0] sm:$0xff] %vm1089, %v1034
      %1111 = vst.msk [vmem:[#allocation3 + $0xa8] sm:$0xff] %vm1089, %v1036
      %1112 = vst.msk [vmem:[#allocation3 + $0xb0] sm:$0xff] %vm1089, %v1038
      %1113 = vst.msk [vmem:[#allocation3 + $0xb8] sm:$0xff] %vm1089, %v1040
      %1114 = vst.msk [vmem:[#allocation3 + $0xc0] sm:$0xff] %vm1089, %v1042
      %1115 = vst.msk [vmem:[#allocation3 + $0xc8] sm:$0xff] %vm1089, %v1044
      %1116 = vst.msk [vmem:[#allocation3 + $0xd0] sm:$0xff] %vm1089, %v1046
      %1117 = vst.msk [vmem:[#allocation3 + $0xd8] sm:$0xff] %vm1089, %v1048
      %1118 = vst.msk [vmem:[#allocation3 + $0xe0] sm:$0xff] %vm1089, %v1050
      %1119 = vst.msk [vmem:[#allocation3 + $0xe8] sm:$0xff] %vm1089, %v1052
      %1120 = vst.msk [vmem:[#allocation3 + $0xf0] sm:$0xff] %vm1089, %v1054
      %1121 = vst.msk [vmem:[#allocation3 + $0xf8] sm:$0xff] %vm1089, %v1056
      %v1122 = vld [vmem:[%s446 + $0x1] sm:$0xff]
      %v1123 = vld [vmem:[%s446 + $0x9] sm:$0xff]
      %v1124 = vld [vmem:[%s446 + $0x19] sm:$0xff]
      %v1125 = vld [vmem:[%s446 + $0x21] sm:$0xff]
      %v1126 = vld [vmem:[%s446 + $0x31] sm:$0xff]
      %v1127 = vld [vmem:[%s446 + $0x39] sm:$0xff]
      %v1128 = vld [vmem:[%s446 + $0x49] sm:$0xff]
      %v1129 = vld [vmem:[%s446 + $0x51] sm:$0xff]
      %v1130 = vld [vmem:[%s446 + $0x61] sm:$0xff]
      %v1131 = vld [vmem:[%s446 + $0x69] sm:$0xff]
      %v1132 = vld [vmem:[%s446 + $0x79] sm:$0xff]
      %v1133 = vld [vmem:[%s446 + $0x81] sm:$0xff]
      %v1134 = vld [vmem:[%s446 + $0x91] sm:$0xff]
      %v1135 = vld [vmem:[%s446 + $0x99] sm:$0xff]
      %v1136 = vld [vmem:[%s446 + $0xa9] sm:$0xff]
      %v1137 = vld [vmem:[%s446 + $0xb1] sm:$0xff]
      %v1138 = vld [vmem:[%s446 + $0xc1] sm:$0xff]
      %v1139 = vld [vmem:[%s446 + $0xc9] sm:$0xff]
      %v1140 = vld [vmem:[%s446 + $0xd9] sm:$0xff]
      %v1141 = vld [vmem:[%s446 + $0xe1] sm:$0xff]
      %v1142 = vld [vmem:[%s446 + $0xf1] sm:$0xff]
      %v1143 = vld [vmem:[%s446 + $0xf9] sm:$0xff]
      %v1144 = vld [vmem:[%s446 + $0x109] sm:$0xff]
      %v1145 = vld [vmem:[%s446 + $0x111] sm:$0xff]
      %v1146 = vld [vmem:[%s446 + $0x121] sm:$0xff]
      %v1147 = vld [vmem:[%s446 + $0x129] sm:$0xff]
      %v1148 = vld [vmem:[%s446 + $0x139] sm:$0xff]
      %v1149 = vld [vmem:[%s446 + $0x141] sm:$0xff]
      %v1150 = vld [vmem:[%s446 + $0x151] sm:$0xff]
      %v1151 = vld [vmem:[%s446 + $0x159] sm:$0xff]
      %v1152 = vld [vmem:[%s446 + $0x169] sm:$0xff]
      %v1153 = vld [vmem:[%s446 + $0x171] sm:$0xff]
      %1186 = vrot.lane.b32.xlu0 %v1122, 16
      %v1187 = vpop.permute.xlu0 %1186
      %1188 = vrot.lane.b32.xlu0 %v1123, 16
      %v1189 = vpop.permute.xlu0 %1188
      %1190 = vrot.lane.b32.xlu0 %v1124, 16
      %v1191 = vpop.permute.xlu0 %1190
      %1192 = vrot.lane.b32.xlu0 %v1125, 16
      %v1193 = vpop.permute.xlu0 %1192
      %1194 = vrot.lane.b32.xlu0 %v1126, 16
      %v1195 = vpop.permute.xlu0 %1194
      %1196 = vrot.lane.b32.xlu0 %v1127, 16
      %v1197 = vpop.permute.xlu0 %1196
      %1198 = vrot.lane.b32.xlu0 %v1128, 16
      %v1199 = vpop.permute.xlu0 %1198
      %1200 = vrot.lane.b32.xlu0 %v1129, 16
      %v1201 = vpop.permute.xlu0 %1200
      %1202 = vrot.lane.b32.xlu0 %v1130, 16
      %v1203 = vpop.permute.xlu0 %1202
      %1204 = vrot.lane.b32.xlu0 %v1131, 16
      %v1205 = vpop.permute.xlu0 %1204
      %1206 = vrot.lane.b32.xlu0 %v1132, 16
      %v1207 = vpop.permute.xlu0 %1206
      %1208 = vrot.lane.b32.xlu0 %v1133, 16
      %v1209 = vpop.permute.xlu0 %1208
      %1210 = vrot.lane.b32.xlu0 %v1134, 16
      %v1211 = vpop.permute.xlu0 %1210
      %1212 = vrot.lane.b32.xlu0 %v1135, 16
      %v1213 = vpop.permute.xlu0 %1212
      %1214 = vrot.lane.b32.xlu0 %v1136, 16
      %v1215 = vpop.permute.xlu0 %1214
      %1216 = vrot.lane.b32.xlu0 %v1137, 16
      %v1217 = vpop.permute.xlu0 %1216
      %1218 = vrot.lane.b32.xlu0 %v1138, 16
      %v1219 = vpop.permute.xlu0 %1218
      %1220 = vrot.lane.b32.xlu0 %v1139, 16
      %v1221 = vpop.permute.xlu0 %1220
      %1222 = vrot.lane.b32.xlu0 %v1140, 16
      %v1223 = vpop.permute.xlu0 %1222
      %1224 = vrot.lane.b32.xlu0 %v1141, 16
      %v1225 = vpop.permute.xlu0 %1224
      %1226 = vrot.lane.b32.xlu0 %v1142, 16
      %v1227 = vpop.permute.xlu0 %1226
      %1228 = vrot.lane.b32.xlu0 %v1143, 16
      %v1229 = vpop.permute.xlu0 %1228
      %1230 = vrot.lane.b32.xlu0 %v1144, 16
      %v1231 = vpop.permute.xlu0 %1230
      %1232 = vrot.lane.b32.xlu0 %v1145, 16
      %v1233 = vpop.permute.xlu0 %1232
      %1234 = vrot.lane.b32.xlu0 %v1146, 16
      %v1235 = vpop.permute.xlu0 %1234
      %1236 = vrot.lane.b32.xlu0 %v1147, 16
      %v1237 = vpop.permute.xlu0 %1236
      %1238 = vrot.lane.b32.xlu0 %v1148, 16
      %v1239 = vpop.permute.xlu0 %1238
      %1240 = vrot.lane.b32.xlu0 %v1149, 16
      %v1241 = vpop.permute.xlu0 %1240
      %1242 = vrot.lane.b32.xlu0 %v1150, 16
      %v1243 = vpop.permute.xlu0 %1242
      %1244 = vrot.lane.b32.xlu0 %v1151, 16
      %v1245 = vpop.permute.xlu0 %1244
      %1246 = vrot.lane.b32.xlu0 %v1152, 16
      %v1247 = vpop.permute.xlu0 %1246
      %1248 = vrot.lane.b32.xlu0 %v1153, 16
      %v1249 = vpop.permute.xlu0 %1248
      %vm1282 = vcmask 162944
      %1283 = vst.msk [vmem:[#allocation3] sm:$0xff] %vm1282, %v1187
      %1284 = vst.msk [vmem:[#allocation3 + $0x8] sm:$0xff] %vm1282, %v1189
      %1285 = vst.msk [vmem:[#allocation3 + $0x10] sm:$0xff] %vm1282, %v1191
      %1286 = vst.msk [vmem:[#allocation3 + $0x18] sm:$0xff] %vm1282, %v1193
      %1287 = vst.msk [vmem:[#allocation3 + $0x20] sm:$0xff] %vm1282, %v1195
      %1288 = vst.msk [vmem:[#allocation3 + $0x28] sm:$0xff] %vm1282, %v1197
      %1289 = vst.msk [vmem:[#allocation3 + $0x30] sm:$0xff] %vm1282, %v1199
      %1290 = vst.msk [vmem:[#allocation3 + $0x38] sm:$0xff] %vm1282, %v1201
      %1291 = vst.msk [vmem:[#allocation3 + $0x40] sm:$0xff] %vm1282, %v1203
      %1292 = vst.msk [vmem:[#allocation3 + $0x48] sm:$0xff] %vm1282, %v1205
      %1293 = vst.msk [vmem:[#allocation3 + $0x50] sm:$0xff] %vm1282, %v1207
      %1294 = vst.msk [vmem:[#allocation3 + $0x58] sm:$0xff] %vm1282, %v1209
      %1295 = vst.msk [vmem:[#allocation3 + $0x60] sm:$0xff] %vm1282, %v1211
      %1296 = vst.msk [vmem:[#allocation3 + $0x68] sm:$0xff] %vm1282, %v1213
      %1297 = vst.msk [vmem:[#allocation3 + $0x70] sm:$0xff] %vm1282, %v1215
      %1298 = vst.msk [vmem:[#allocation3 + $0x78] sm:$0xff] %vm1282, %v1217
      %1299 = vst.msk [vmem:[#allocation3 + $0x80] sm:$0xff] %vm1282, %v1219
      %1300 = vst.msk [vmem:[#allocation3 + $0x88] sm:$0xff] %vm1282, %v1221
      %1301 = vst.msk [vmem:[#allocation3 + $0x90] sm:$0xff] %vm1282, %v1223
      %1302 = vst.msk [vmem:[#allocation3 + $0x98] sm:$0xff] %vm1282, %v1225
      %1303 = vst.msk [vmem:[#allocation3 + $0xa0] sm:$0xff] %vm1282, %v1227
      %1304 = vst.msk [vmem:[#allocation3 + $0xa8] sm:$0xff] %vm1282, %v1229
      %1305 = vst.msk [vmem:[#allocation3 + $0xb0] sm:$0xff] %vm1282, %v1231
      %1306 = vst.msk [vmem:[#allocation3 + $0xb8] sm:$0xff] %vm1282, %v1233
      %1307 = vst.msk [vmem:[#allocation3 + $0xc0] sm:$0xff] %vm1282, %v1235
      %1308 = vst.msk [vmem:[#allocation3 + $0xc8] sm:$0xff] %vm1282, %v1237
      %1309 = vst.msk [vmem:[#allocation3 + $0xd0] sm:$0xff] %vm1282, %v1239
      %1310 = vst.msk [vmem:[#allocation3 + $0xd8] sm:$0xff] %vm1282, %v1241
      %1311 = vst.msk [vmem:[#allocation3 + $0xe0] sm:$0xff] %vm1282, %v1243
      %1312 = vst.msk [vmem:[#allocation3 + $0xe8] sm:$0xff] %vm1282, %v1245
      %1313 = vst.msk [vmem:[#allocation3 + $0xf0] sm:$0xff] %vm1282, %v1247
      %1314 = vst.msk [vmem:[#allocation3 + $0xf8] sm:$0xff] %vm1282, %v1249
      %v1315 = vld [vmem:[%s446 + $0x2] sm:$0xff]
      %v1316 = vld [vmem:[%s446 + $0xa] sm:$0xff]
      %v1317 = vld [vmem:[%s446 + $0x1a] sm:$0xff]
      %v1318 = vld [vmem:[%s446 + $0x22] sm:$0xff]
      %v1319 = vld [vmem:[%s446 + $0x32] sm:$0xff]
      %v1320 = vld [vmem:[%s446 + $0x3a] sm:$0xff]
      %v1321 = vld [vmem:[%s446 + $0x4a] sm:$0xff]
      %v1322 = vld [vmem:[%s446 + $0x52] sm:$0xff]
      %v1323 = vld [vmem:[%s446 + $0x62] sm:$0xff]
      %v1324 = vld [vmem:[%s446 + $0x6a] sm:$0xff]
      %v1325 = vld [vmem:[%s446 + $0x7a] sm:$0xff]
      %v1326 = vld [vmem:[%s446 + $0x82] sm:$0xff]
      %v1327 = vld [vmem:[%s446 + $0x92] sm:$0xff]
      %v1328 = vld [vmem:[%s446 + $0x9a] sm:$0xff]
      %v1329 = vld [vmem:[%s446 + $0xaa] sm:$0xff]
      %v1330 = vld [vmem:[%s446 + $0xb2] sm:$0xff]
      %v1331 = vld [vmem:[%s446 + $0xc2] sm:$0xff]
      %v1332 = vld [vmem:[%s446 + $0xca] sm:$0xff]
      %v1333 = vld [vmem:[%s446 + $0xda] sm:$0xff]
      %v1334 = vld [vmem:[%s446 + $0xe2] sm:$0xff]
      %v1335 = vld [vmem:[%s446 + $0xf2] sm:$0xff]
      %v1336 = vld [vmem:[%s446 + $0xfa] sm:$0xff]
      %v1337 = vld [vmem:[%s446 + $0x10a] sm:$0xff]
      %v1338 = vld [vmem:[%s446 + $0x112] sm:$0xff]
      %v1339 = vld [vmem:[%s446 + $0x122] sm:$0xff]
      %v1340 = vld [vmem:[%s446 + $0x12a] sm:$0xff]
      %v1341 = vld [vmem:[%s446 + $0x13a] sm:$0xff]
      %v1342 = vld [vmem:[%s446 + $0x142] sm:$0xff]
      %v1343 = vld [vmem:[%s446 + $0x152] sm:$0xff]
      %v1344 = vld [vmem:[%s446 + $0x15a] sm:$0xff]
      %v1345 = vld [vmem:[%s446 + $0x16a] sm:$0xff]
      %v1346 = vld [vmem:[%s446 + $0x172] sm:$0xff]
      %1379 = vrot.lane.b32.xlu0 %v1315, 20
      %v1380 = vpop.permute.xlu0 %1379
      %1381 = vrot.lane.b32.xlu0 %v1316, 20
      %v1382 = vpop.permute.xlu0 %1381
      %1383 = vrot.lane.b32.xlu0 %v1317, 20
      %v1384 = vpop.permute.xlu0 %1383
      %1385 = vrot.lane.b32.xlu0 %v1318, 20
      %v1386 = vpop.permute.xlu0 %1385
      %1387 = vrot.lane.b32.xlu0 %v1319, 20
      %v1388 = vpop.permute.xlu0 %1387
      %1389 = vrot.lane.b32.xlu0 %v1320, 20
      %v1390 = vpop.permute.xlu0 %1389
      %1391 = vrot.lane.b32.xlu0 %v1321, 20
      %v1392 = vpop.permute.xlu0 %1391
      %1393 = vrot.lane.b32.xlu0 %v1322, 20
      %v1394 = vpop.permute.xlu0 %1393
      %1395 = vrot.lane.b32.xlu0 %v1323, 20
      %v1396 = vpop.permute.xlu0 %1395
      %1397 = vrot.lane.b32.xlu0 %v1324, 20
      %v1398 = vpop.permute.xlu0 %1397
      %1399 = vrot.lane.b32.xlu0 %v1325, 20
      %v1400 = vpop.permute.xlu0 %1399
      %1401 = vrot.lane.b32.xlu0 %v1326, 20
      %v1402 = vpop.permute.xlu0 %1401
      %1403 = vrot.lane.b32.xlu0 %v1327, 20
      %v1404 = vpop.permute.xlu0 %1403
      %1405 = vrot.lane.b32.xlu0 %v1328, 20
      %v1406 = vpop.permute.xlu0 %1405
      %1407 = vrot.lane.b32.xlu0 %v1329, 20
      %v1408 = vpop.permute.xlu0 %1407
      %1409 = vrot.lane.b32.xlu0 %v1330, 20
      %v1410 = vpop.permute.xlu0 %1409
      %1411 = vrot.lane.b32.xlu0 %v1331, 20
      %v1412 = vpop.permute.xlu0 %1411
      %1413 = vrot.lane.b32.xlu0 %v1332, 20
      %v1414 = vpop.permute.xlu0 %1413
      %1415 = vrot.lane.b32.xlu0 %v1333, 20
      %v1416 = vpop.permute.xlu0 %1415
      %1417 = vrot.lane.b32.xlu0 %v1334, 20
      %v1418 = vpop.permute.xlu0 %1417
      %1419 = vrot.lane.b32.xlu0 %v1335, 20
      %v1420 = vpop.permute.xlu0 %1419
      %1421 = vrot.lane.b32.xlu0 %v1336, 20
      %v1422 = vpop.permute.xlu0 %1421
      %1423 = vrot.lane.b32.xlu0 %v1337, 20
      %v1424 = vpop.permute.xlu0 %1423
      %1425 = vrot.lane.b32.xlu0 %v1338, 20
      %v1426 = vpop.permute.xlu0 %1425
      %1427 = vrot.lane.b32.xlu0 %v1339, 20
      %v1428 = vpop.permute.xlu0 %1427
      %1429 = vrot.lane.b32.xlu0 %v1340, 20
      %v1430 = vpop.permute.xlu0 %1429
      %1431 = vrot.lane.b32.xlu0 %v1341, 20
      %v1432 = vpop.permute.xlu0 %1431
      %1433 = vrot.lane.b32.xlu0 %v1342, 20
      %v1434 = vpop.permute.xlu0 %1433
      %1435 = vrot.lane.b32.xlu0 %v1343, 20
      %v1436 = vpop.permute.xlu0 %1435
      %1437 = vrot.lane.b32.xlu0 %v1344, 20
      %v1438 = vpop.permute.xlu0 %1437
      %1439 = vrot.lane.b32.xlu0 %v1345, 20
      %v1440 = vpop.permute.xlu0 %1439
      %1441 = vrot.lane.b32.xlu0 %v1346, 20
      %v1442 = vpop.permute.xlu0 %1441
      %vm1475 = vcmask 195744
      %1476 = vst.msk [vmem:[#allocation3] sm:$0xff] %vm1475, %v1380
      %1477 = vst.msk [vmem:[#allocation3 + $0x8] sm:$0xff] %vm1475, %v1382
      %1478 = vst.msk [vmem:[#allocation3 + $0x10] sm:$0xff] %vm1475, %v1384
      %1479 = vst.msk [vmem:[#allocation3 + $0x18] sm:$0xff] %vm1475, %v1386
      %1480 = vst.msk [vmem:[#allocation3 + $0x20] sm:$0xff] %vm1475, %v1388
      %1481 = vst.msk [vmem:[#allocation3 + $0x28] sm:$0xff] %vm1475, %v1390
      %1482 = vst.msk [vmem:[#allocation3 + $0x30] sm:$0xff] %vm1475, %v1392
      %1483 = vst.msk [vmem:[#allocation3 + $0x38] sm:$0xff] %vm1475, %v1394
      %1484 = vst.msk [vmem:[#allocation3 + $0x40] sm:$0xff] %vm1475, %v1396
      %1485 = vst.msk [vmem:[#allocation3 + $0x48] sm:$0xff] %vm1475, %v1398
      %1486 = vst.msk [vmem:[#allocation3 + $0x50] sm:$0xff] %vm1475, %v1400
      %1487 = vst.msk [vmem:[#allocation3 + $0x58] sm:$0xff] %vm1475, %v1402
      %1488 = vst.msk [vmem:[#allocation3 + $0x60] sm:$0xff] %vm1475, %v1404
      %1489 = vst.msk [vmem:[#allocation3 + $0x68] sm:$0xff] %vm1475, %v1406
      %1490 = vst.msk [vmem:[#allocation3 + $0x70] sm:$0xff] %vm1475, %v1408
      %1491 = vst.msk [vmem:[#allocation3 + $0x78] sm:$0xff] %vm1475, %v1410
      %1492 = vst.msk [vmem:[#allocation3 + $0x80] sm:$0xff] %vm1475, %v1412
      %1493 = vst.msk [vmem:[#allocation3 + $0x88] sm:$0xff] %vm1475, %v1414
      %1494 = vst.msk [vmem:[#allocation3 + $0x90] sm:$0xff] %vm1475, %v1416
      %1495 = vst.msk [vmem:[#allocation3 + $0x98] sm:$0xff] %vm1475, %v1418
      %1496 = vst.msk [vmem:[#allocation3 + $0xa0] sm:$0xff] %vm1475, %v1420
      %1497 = vst.msk [vmem:[#allocation3 + $0xa8] sm:$0xff] %vm1475, %v1422
      %1498 = vst.msk [vmem:[#allocation3 + $0xb0] sm:$0xff] %vm1475, %v1424
      %1499 = vst.msk [vmem:[#allocation3 + $0xb8] sm:$0xff] %vm1475, %v1426
      %1500 = vst.msk [vmem:[#allocation3 + $0xc0] sm:$0xff] %vm1475, %v1428
      %1501 = vst.msk [vmem:[#allocation3 + $0xc8] sm:$0xff] %vm1475, %v1430
      %1502 = vst.msk [vmem:[#allocation3 + $0xd0] sm:$0xff] %vm1475, %v1432
      %1503 = vst.msk [vmem:[#allocation3 + $0xd8] sm:$0xff] %vm1475, %v1434
      %1504 = vst.msk [vmem:[#allocation3 + $0xe0] sm:$0xff] %vm1475, %v1436
      %1505 = vst.msk [vmem:[#allocation3 + $0xe8] sm:$0xff] %vm1475, %v1438
      %1506 = vst.msk [vmem:[#allocation3 + $0xf0] sm:$0xff] %vm1475, %v1440
      %1507 = vst.msk [vmem:[#allocation3 + $0xf8] sm:$0xff] %vm1475, %v1442
      %s1508 = scalar_lea.vmem [#allocation2], 48
      %v1509 = vld [vmem:[%s1508] sm:$0xff]
      %v1510 = vld [vmem:[%s1508 + $0x8] sm:$0xff]
      %v1511 = vld [vmem:[%s1508 + $0x18] sm:$0xff]
      %v1512 = vld [vmem:[%s1508 + $0x20] sm:$0xff]
      %v1513 = vld [vmem:[%s1508 + $0x30] sm:$0xff]
      %v1514 = vld [vmem:[%s1508 + $0x38] sm:$0xff]
      %v1515 = vld [vmem:[%s1508 + $0x48] sm:$0xff]
      %v1516 = vld [vmem:[%s1508 + $0x50] sm:$0xff]
      %v1517 = vld [vmem:[%s1508 + $0x60] sm:$0xff]
      %v1518 = vld [vmem:[%s1508 + $0x68] sm:$0xff]
      %v1519 = vld [vmem:[%s1508 + $0x78] sm:$0xff]
      %v1520 = vld [vmem:[%s1508 + $0x80] sm:$0xff]
      %v1521 = vld [vmem:[%s1508 + $0x90] sm:$0xff]
      %v1522 = vld [vmem:[%s1508 + $0x98] sm:$0xff]
      %v1523 = vld [vmem:[%s1508 + $0xa8] sm:$0xff]
      %v1524 = vld [vmem:[%s1508 + $0xb0] sm:$0xff]
      %v1525 = vld [vmem:[%s1508 + $0xc0] sm:$0xff]
      %v1526 = vld [vmem:[%s1508 + $0xc8] sm:$0xff]
      %v1527 = vld [vmem:[%s1508 + $0xd8] sm:$0xff]
      %v1528 = vld [vmem:[%s1508 + $0xe0] sm:$0xff]
      %v1529 = vld [vmem:[%s1508 + $0xf0] sm:$0xff]
      %v1530 = vld [vmem:[%s1508 + $0xf8] sm:$0xff]
      %v1531 = vld [vmem:[%s1508 + $0x108] sm:$0xff]
      %v1532 = vld [vmem:[%s1508 + $0x110] sm:$0xff]
      %v1533 = vld [vmem:[%s1508 + $0x120] sm:$0xff]
      %v1534 = vld [vmem:[%s1508 + $0x128] sm:$0xff]
      %v1535 = vld [vmem:[%s1508 + $0x138] sm:$0xff]
      %v1536 = vld [vmem:[%s1508 + $0x140] sm:$0xff]
      %v1537 = vld [vmem:[%s1508 + $0x150] sm:$0xff]
      %v1538 = vld [vmem:[%s1508 + $0x158] sm:$0xff]
      %v1539 = vld [vmem:[%s1508 + $0x168] sm:$0xff]
      %v1540 = vld [vmem:[%s1508 + $0x170] sm:$0xff]
      %1573 = vrot.lane.b32.xlu0 %v1509, 24
      %v1574 = vpop.permute.xlu0 %1573
      %1575 = vrot.lane.b32.xlu0 %v1510, 24
      %v1576 = vpop.permute.xlu0 %1575
      %1577 = vrot.lane.b32.xlu0 %v1511, 24
      %v1578 = vpop.permute.xlu0 %1577
      %1579 = vrot.lane.b32.xlu0 %v1512, 24
      %v1580 = vpop.permute.xlu0 %1579
      %1581 = vrot.lane.b32.xlu0 %v1513, 24
      %v1582 = vpop.permute.xlu0 %1581
      %1583 = vrot.lane.b32.xlu0 %v1514, 24
      %v1584 = vpop.permute.xlu0 %1583
      %1585 = vrot.lane.b32.xlu0 %v1515, 24
      %v1586 = vpop.permute.xlu0 %1585
      %1587 = vrot.lane.b32.xlu0 %v1516, 24
      %v1588 = vpop.permute.xlu0 %1587
      %1589 = vrot.lane.b32.xlu0 %v1517, 24
      %v1590 = vpop.permute.xlu0 %1589
      %1591 = vrot.lane.b32.xlu0 %v1518, 24
      %v1592 = vpop.permute.xlu0 %1591
      %1593 = vrot.lane.b32.xlu0 %v1519, 24
      %v1594 = vpop.permute.xlu0 %1593
      %1595 = vrot.lane.b32.xlu0 %v1520, 24
      %v1596 = vpop.permute.xlu0 %1595
      %1597 = vrot.lane.b32.xlu0 %v1521, 24
      %v1598 = vpop.permute.xlu0 %1597
      %1599 = vrot.lane.b32.xlu0 %v1522, 24
      %v1600 = vpop.permute.xlu0 %1599
      %1601 = vrot.lane.b32.xlu0 %v1523, 24
      %v1602 = vpop.permute.xlu0 %1601
      %1603 = vrot.lane.b32.xlu0 %v1524, 24
      %v1604 = vpop.permute.xlu0 %1603
      %1605 = vrot.lane.b32.xlu0 %v1525, 24
      %v1606 = vpop.permute.xlu0 %1605
      %1607 = vrot.lane.b32.xlu0 %v1526, 24
      %v1608 = vpop.permute.xlu0 %1607
      %1609 = vrot.lane.b32.xlu0 %v1527, 24
      %v1610 = vpop.permute.xlu0 %1609
      %1611 = vrot.lane.b32.xlu0 %v1528, 24
      %v1612 = vpop.permute.xlu0 %1611
      %1613 = vrot.lane.b32.xlu0 %v1529, 24
      %v1614 = vpop.permute.xlu0 %1613
      %1615 = vrot.lane.b32.xlu0 %v1530, 24
      %v1616 = vpop.permute.xlu0 %1615
      %1617 = vrot.lane.b32.xlu0 %v1531, 24
      %v1618 = vpop.permute.xlu0 %1617
      %1619 = vrot.lane.b32.xlu0 %v1532, 24
      %v1620 = vpop.permute.xlu0 %1619
      %1621 = vrot.lane.b32.xlu0 %v1533, 24
      %v1622 = vpop.permute.xlu0 %1621
      %1623 = vrot.lane.b32.xlu0 %v1534, 24
      %v1624 = vpop.permute.xlu0 %1623
      %1625 = vrot.lane.b32.xlu0 %v1535, 24
      %v1626 = vpop.permute.xlu0 %1625
      %1627 = vrot.lane.b32.xlu0 %v1536, 24
      %v1628 = vpop.permute.xlu0 %1627
      %1629 = vrot.lane.b32.xlu0 %v1537, 24
      %v1630 = vpop.permute.xlu0 %1629
      %1631 = vrot.lane.b32.xlu0 %v1538, 24
      %v1632 = vpop.permute.xlu0 %1631
      %1633 = vrot.lane.b32.xlu0 %v1539, 24
      %v1634 = vpop.permute.xlu0 %1633
      %1635 = vrot.lane.b32.xlu0 %v1540, 24
      %v1636 = vpop.permute.xlu0 %1635
      %vm1669 = vcmask 228544
      %1670 = vst.msk [vmem:[#allocation3] sm:$0xff] %vm1669, %v1574
      %1671 = vst.msk [vmem:[#allocation3 + $0x8] sm:$0xff] %vm1669, %v1576
      %1672 = vst.msk [vmem:[#allocation3 + $0x10] sm:$0xff] %vm1669, %v1578
      %1673 = vst.msk [vmem:[#allocation3 + $0x18] sm:$0xff] %vm1669, %v1580
      %1674 = vst.msk [vmem:[#allocation3 + $0x20] sm:$0xff] %vm1669, %v1582
      %1675 = vst.msk [vmem:[#allocation3 + $0x28] sm:$0xff] %vm1669, %v1584
      %1676 = vst.msk [vmem:[#allocation3 + $0x30] sm:$0xff] %vm1669, %v1586
      %1677 = vst.msk [vmem:[#allocation3 + $0x38] sm:$0xff] %vm1669, %v1588
      %1678 = vst.msk [vmem:[#allocation3 + $0x40] sm:$0xff] %vm1669, %v1590
      %1679 = vst.msk [vmem:[#allocation3 + $0x48] sm:$0xff] %vm1669, %v1592
      %1680 = vst.msk [vmem:[#allocation3 + $0x50] sm:$0xff] %vm1669, %v1594
      %1681 = vst.msk [vmem:[#allocation3 + $0x58] sm:$0xff] %vm1669, %v1596
      %1682 = vst.msk [vmem:[#allocation3 + $0x60] sm:$0xff] %vm1669, %v1598
      %1683 = vst.msk [vmem:[#allocation3 + $0x68] sm:$0xff] %vm1669, %v1600
      %1684 = vst.msk [vmem:[#allocation3 + $0x70] sm:$0xff] %vm1669, %v1602
      %1685 = vst.msk [vmem:[#allocation3 + $0x78] sm:$0xff] %vm1669, %v1604
      %1686 = vst.msk [vmem:[#allocation3 + $0x80] sm:$0xff] %vm1669, %v1606
      %1687 = vst.msk [vmem:[#allocation3 + $0x88] sm:$0xff] %vm1669, %v1608
      %1688 = vst.msk [vmem:[#allocation3 + $0x90] sm:$0xff] %vm1669, %v1610
      %1689 = vst.msk [vmem:[#allocation3 + $0x98] sm:$0xff] %vm1669, %v1612
      %1690 = vst.msk [vmem:[#allocation3 + $0xa0] sm:$0xff] %vm1669, %v1614
      %1691 = vst.msk [vmem:[#allocation3 + $0xa8] sm:$0xff] %vm1669, %v1616
      %1692 = vst.msk [vmem:[#allocation3 + $0xb0] sm:$0xff] %vm1669, %v1618
      %1693 = vst.msk [vmem:[#allocation3 + $0xb8] sm:$0xff] %vm1669, %v1620
      %1694 = vst.msk [vmem:[#allocation3 + $0xc0] sm:$0xff] %vm1669, %v1622
      %1695 = vst.msk [vmem:[#allocation3 + $0xc8] sm:$0xff] %vm1669, %v1624
      %1696 = vst.msk [vmem:[#allocation3 + $0xd0] sm:$0xff] %vm1669, %v1626
      %1697 = vst.msk [vmem:[#allocation3 + $0xd8] sm:$0xff] %vm1669, %v1628
      %1698 = vst.msk [vmem:[#allocation3 + $0xe0] sm:$0xff] %vm1669, %v1630
      %1699 = vst.msk [vmem:[#allocation3 + $0xe8] sm:$0xff] %vm1669, %v1632
      %1700 = vst.msk [vmem:[#allocation3 + $0xf0] sm:$0xff] %vm1669, %v1634
      %1701 = vst.msk [vmem:[#allocation3 + $0xf8] sm:$0xff] %vm1669, %v1636
      %v1702 = vld [vmem:[%s1508 + $0x1] sm:$0xff]
      %v1703 = vld [vmem:[%s1508 + $0x9] sm:$0xff]
      %v1704 = vld [vmem:[%s1508 + $0x19] sm:$0xff]
      %v1705 = vld [vmem:[%s1508 + $0x21] sm:$0xff]
      %v1706 = vld [vmem:[%s1508 + $0x31] sm:$0xff]
      %v1707 = vld [vmem:[%s1508 + $0x39] sm:$0xff]
      %v1708 = vld [vmem:[%s1508 + $0x49] sm:$0xff]
      %v1709 = vld [vmem:[%s1508 + $0x51] sm:$0xff]
      %v1710 = vld [vmem:[%s1508 + $0x61] sm:$0xff]
      %v1711 = vld [vmem:[%s1508 + $0x69] sm:$0xff]
      %v1712 = vld [vmem:[%s1508 + $0x79] sm:$0xff]
      %v1713 = vld [vmem:[%s1508 + $0x81] sm:$0xff]
      %v1714 = vld [vmem:[%s1508 + $0x91] sm:$0xff]
      %v1715 = vld [vmem:[%s1508 + $0x99] sm:$0xff]
      %v1716 = vld [vmem:[%s1508 + $0xa9] sm:$0xff]
      %v1717 = vld [vmem:[%s1508 + $0xb1] sm:$0xff]
      %v1718 = vld [vmem:[%s1508 + $0xc1] sm:$0xff]
      %v1719 = vld [vmem:[%s1508 + $0xc9] sm:$0xff]
      %v1720 = vld [vmem:[%s1508 + $0xd9] sm:$0xff]
      %v1721 = vld [vmem:[%s1508 + $0xe1] sm:$0xff]
      %v1722 = vld [vmem:[%s1508 + $0xf1] sm:$0xff]
      %v1723 = vld [vmem:[%s1508 + $0xf9] sm:$0xff]
      %v1724 = vld [vmem:[%s1508 + $0x109] sm:$0xff]
      %v1725 = vld [vmem:[%s1508 + $0x111] sm:$0xff]
      %v1726 = vld [vmem:[%s1508 + $0x121] sm:$0xff]
      %v1727 = vld [vmem:[%s1508 + $0x129] sm:$0xff]
      %v1728 = vld [vmem:[%s1508 + $0x139] sm:$0xff]
      %v1729 = vld [vmem:[%s1508 + $0x141] sm:$0xff]
      %v1730 = vld [vmem:[%s1508 + $0x151] sm:$0xff]
      %v1731 = vld [vmem:[%s1508 + $0x159] sm:$0xff]
      %v1732 = vld [vmem:[%s1508 + $0x169] sm:$0xff]
      %v1733 = vld [vmem:[%s1508 + $0x171] sm:$0xff]
      %1766 = vrot.lane.b32.xlu0 %v1702, 28
      %v1767 = vpop.permute.xlu0 %1766
      %1768 = vrot.lane.b32.xlu0 %v1703, 28
      %v1769 = vpop.permute.xlu0 %1768
      %1770 = vrot.lane.b32.xlu0 %v1704, 28
      %v1771 = vpop.permute.xlu0 %1770
      %1772 = vrot.lane.b32.xlu0 %v1705, 28
      %v1773 = vpop.permute.xlu0 %1772
      %1774 = vrot.lane.b32.xlu0 %v1706, 28
      %v1775 = vpop.permute.xlu0 %1774
      %1776 = vrot.lane.b32.xlu0 %v1707, 28
      %v1777 = vpop.permute.xlu0 %1776
      %1778 = vrot.lane.b32.xlu0 %v1708, 28
      %v1779 = vpop.permute.xlu0 %1778
      %1780 = vrot.lane.b32.xlu0 %v1709, 28
      %v1781 = vpop.permute.xlu0 %1780
      %1782 = vrot.lane.b32.xlu0 %v1710, 28
      %v1783 = vpop.permute.xlu0 %1782
      %1784 = vrot.lane.b32.xlu0 %v1711, 28
      %v1785 = vpop.permute.xlu0 %1784
      %1786 = vrot.lane.b32.xlu0 %v1712, 28
      %v1787 = vpop.permute.xlu0 %1786
      %1788 = vrot.lane.b32.xlu0 %v1713, 28
      %v1789 = vpop.permute.xlu0 %1788
      %1790 = vrot.lane.b32.xlu0 %v1714, 28
      %v1791 = vpop.permute.xlu0 %1790
      %1792 = vrot.lane.b32.xlu0 %v1715, 28
      %v1793 = vpop.permute.xlu0 %1792
      %1794 = vrot.lane.b32.xlu0 %v1716, 28
      %v1795 = vpop.permute.xlu0 %1794
      %1796 = vrot.lane.b32.xlu0 %v1717, 28
      %v1797 = vpop.permute.xlu0 %1796
      %1798 = vrot.lane.b32.xlu0 %v1718, 28
      %v1799 = vpop.permute.xlu0 %1798
      %1800 = vrot.lane.b32.xlu0 %v1719, 28
      %v1801 = vpop.permute.xlu0 %1800
      %1802 = vrot.lane.b32.xlu0 %v1720, 28
      %v1803 = vpop.permute.xlu0 %1802
      %1804 = vrot.lane.b32.xlu0 %v1721, 28
      %v1805 = vpop.permute.xlu0 %1804
      %1806 = vrot.lane.b32.xlu0 %v1722, 28
      %v1807 = vpop.permute.xlu0 %1806
      %1808 = vrot.lane.b32.xlu0 %v1723, 28
      %v1809 = vpop.permute.xlu0 %1808
      %1810 = vrot.lane.b32.xlu0 %v1724, 28
      %v1811 = vpop.permute.xlu0 %1810
      %1812 = vrot.lane.b32.xlu0 %v1725, 28
      %v1813 = vpop.permute.xlu0 %1812
      %1814 = vrot.lane.b32.xlu0 %v1726, 28
      %v1815 = vpop.permute.xlu0 %1814
      %1816 = vrot.lane.b32.xlu0 %v1727, 28
      %v1817 = vpop.permute.xlu0 %1816
      %1818 = vrot.lane.b32.xlu0 %v1728, 28
      %v1819 = vpop.permute.xlu0 %1818
      %1820 = vrot.lane.b32.xlu0 %v1729, 28
      %v1821 = vpop.permute.xlu0 %1820
      %1822 = vrot.lane.b32.xlu0 %v1730, 28
      %v1823 = vpop.permute.xlu0 %1822
      %1824 = vrot.lane.b32.xlu0 %v1731, 28
      %v1825 = vpop.permute.xlu0 %1824
      %1826 = vrot.lane.b32.xlu0 %v1732, 28
      %v1827 = vpop.permute.xlu0 %1826
      %1828 = vrot.lane.b32.xlu0 %v1733, 28
      %v1829 = vpop.permute.xlu0 %1828
      %vm1862 = vcmask 261344
      %1863 = vst.msk [vmem:[#allocation3] sm:$0xff] %vm1862, %v1767
      %1864 = vst.msk [vmem:[#allocation3 + $0x8] sm:$0xff] %vm1862, %v1769
      %1865 = vst.msk [vmem:[#allocation3 + $0x10] sm:$0xff] %vm1862, %v1771
      %1866 = vst.msk [vmem:[#allocation3 + $0x18] sm:$0xff] %vm1862, %v1773
      %1867 = vst.msk [vmem:[#allocation3 + $0x20] sm:$0xff] %vm1862, %v1775
      %1868 = vst.msk [vmem:[#allocation3 + $0x28] sm:$0xff] %vm1862, %v1777
      %1869 = vst.msk [vmem:[#allocation3 + $0x30] sm:$0xff] %vm1862, %v1779
      %1870 = vst.msk [vmem:[#allocation3 + $0x38] sm:$0xff] %vm1862, %v1781
      %1871 = vst.msk [vmem:[#allocation3 + $0x40] sm:$0xff] %vm1862, %v1783
      %1872 = vst.msk [vmem:[#allocation3 + $0x48] sm:$0xff] %vm1862, %v1785
      %1873 = vst.msk [vmem:[#allocation3 + $0x50] sm:$0xff] %vm1862, %v1787
      %1874 = vst.msk [vmem:[#allocation3 + $0x58] sm:$0xff] %vm1862, %v1789
      %1875 = vst.msk [vmem:[#allocation3 + $0x60] sm:$0xff] %vm1862, %v1791
      %1876 = vst.msk [vmem:[#allocation3 + $0x68] sm:$0xff] %vm1862, %v1793
      %1877 = vst.msk [vmem:[#allocation3 + $0x70] sm:$0xff] %vm1862, %v1795
      %1878 = vst.msk [vmem:[#allocation3 + $0x78] sm:$0xff] %vm1862, %v1797
      %1879 = vst.msk [vmem:[#allocation3 + $0x80] sm:$0xff] %vm1862, %v1799
      %1880 = vst.msk [vmem:[#allocation3 + $0x88] sm:$0xff] %vm1862, %v1801
      %1881 = vst.msk [vmem:[#allocation3 + $0x90] sm:$0xff] %vm1862, %v1803
      %1882 = vst.msk [vmem:[#allocation3 + $0x98] sm:$0xff] %vm1862, %v1805
      %1883 = vst.msk [vmem:[#allocation3 + $0xa0] sm:$0xff] %vm1862, %v1807
      %1884 = vst.msk [vmem:[#allocation3 + $0xa8] sm:$0xff] %vm1862, %v1809
      %1885 = vst.msk [vmem:[#allocation3 + $0xb0] sm:$0xff] %vm1862, %v1811
      %1886 = vst.msk [vmem:[#allocation3 + $0xb8] sm:$0xff] %vm1862, %v1813
      %1887 = vst.msk [vmem:[#allocation3 + $0xc0] sm:$0xff] %vm1862, %v1815
      %1888 = vst.msk [vmem:[#allocation3 + $0xc8] sm:$0xff] %vm1862, %v1817
      %1889 = vst.msk [vmem:[#allocation3 + $0xd0] sm:$0xff] %vm1862, %v1819
      %1890 = vst.msk [vmem:[#allocation3 + $0xd8] sm:$0xff] %vm1862, %v1821
      %1891 = vst.msk [vmem:[#allocation3 + $0xe0] sm:$0xff] %vm1862, %v1823
      %1892 = vst.msk [vmem:[#allocation3 + $0xe8] sm:$0xff] %vm1862, %v1825
      %1893 = vst.msk [vmem:[#allocation3 + $0xf0] sm:$0xff] %vm1862, %v1827
      %1894 = vst.msk [vmem:[#allocation3 + $0xf8] sm:$0xff] %vm1862, %v1829
      %v1895 = vld [vmem:[%s1508 + $0x2] sm:$0xff]
      %v1896 = vld [vmem:[%s1508 + $0xa] sm:$0xff]
      %v1897 = vld [vmem:[%s1508 + $0x1a] sm:$0xff]
      %v1898 = vld [vmem:[%s1508 + $0x22] sm:$0xff]
      %v1899 = vld [vmem:[%s1508 + $0x32] sm:$0xff]
      %v1900 = vld [vmem:[%s1508 + $0x3a] sm:$0xff]
      %v1901 = vld [vmem:[%s1508 + $0x4a] sm:$0xff]
      %v1902 = vld [vmem:[%s1508 + $0x52] sm:$0xff]
      %v1903 = vld [vmem:[%s1508 + $0x62] sm:$0xff]
      %v1904 = vld [vmem:[%s1508 + $0x6a] sm:$0xff]
      %v1905 = vld [vmem:[%s1508 + $0x7a] sm:$0xff]
      %v1906 = vld [vmem:[%s1508 + $0x82] sm:$0xff]
      %v1907 = vld [vmem:[%s1508 + $0x92] sm:$0xff]
      %v1908 = vld [vmem:[%s1508 + $0x9a] sm:$0xff]
      %v1909 = vld [vmem:[%s1508 + $0xaa] sm:$0xff]
      %v1910 = vld [vmem:[%s1508 + $0xb2] sm:$0xff]
      %v1911 = vld [vmem:[%s1508 + $0xc2] sm:$0xff]
      %v1912 = vld [vmem:[%s1508 + $0xca] sm:$0xff]
      %v1913 = vld [vmem:[%s1508 + $0xda] sm:$0xff]
      %v1914 = vld [vmem:[%s1508 + $0xe2] sm:$0xff]
      %v1915 = vld [vmem:[%s1508 + $0xf2] sm:$0xff]
      %v1916 = vld [vmem:[%s1508 + $0xfa] sm:$0xff]
      %v1917 = vld [vmem:[%s1508 + $0x10a] sm:$0xff]
      %v1918 = vld [vmem:[%s1508 + $0x112] sm:$0xff]
      %v1919 = vld [vmem:[%s1508 + $0x122] sm:$0xff]
      %v1920 = vld [vmem:[%s1508 + $0x12a] sm:$0xff]
      %v1921 = vld [vmem:[%s1508 + $0x13a] sm:$0xff]
      %v1922 = vld [vmem:[%s1508 + $0x142] sm:$0xff]
      %v1923 = vld [vmem:[%s1508 + $0x152] sm:$0xff]
      %v1924 = vld [vmem:[%s1508 + $0x15a] sm:$0xff]
      %v1925 = vld [vmem:[%s1508 + $0x16a] sm:$0xff]
      %v1926 = vld [vmem:[%s1508 + $0x172] sm:$0xff]
      %1959 = vrot.lane.b32.xlu0 %v1895, 32
      %v1960 = vpop.permute.xlu0 %1959
      %1961 = vrot.lane.b32.xlu0 %v1896, 32
      %v1962 = vpop.permute.xlu0 %1961
      %1963 = vrot.lane.b32.xlu0 %v1897, 32
      %v1964 = vpop.permute.xlu0 %1963
      %1965 = vrot.lane.b32.xlu0 %v1898, 32
      %v1966 = vpop.permute.xlu0 %1965
      %1967 = vrot.lane.b32.xlu0 %v1899, 32
      %v1968 = vpop.permute.xlu0 %1967
      %1969 = vrot.lane.b32.xlu0 %v1900, 32
      %v1970 = vpop.permute.xlu0 %1969
      %1971 = vrot.lane.b32.xlu0 %v1901, 32
      %v1972 = vpop.permute.xlu0 %1971
      %1973 = vrot.lane.b32.xlu0 %v1902, 32
      %v1974 = vpop.permute.xlu0 %1973
      %1975 = vrot.lane.b32.xlu0 %v1903, 32
      %v1976 = vpop.permute.xlu0 %1975
      %1977 = vrot.lane.b32.xlu0 %v1904, 32
      %v1978 = vpop.permute.xlu0 %1977
      %1979 = vrot.lane.b32.xlu0 %v1905, 32
      %v1980 = vpop.permute.xlu0 %1979
      %1981 = vrot.lane.b32.xlu0 %v1906, 32
      %v1982 = vpop.permute.xlu0 %1981
      %1983 = vrot.lane.b32.xlu0 %v1907, 32
      %v1984 = vpop.permute.xlu0 %1983
      %1985 = vrot.lane.b32.xlu0 %v1908, 32
      %v1986 = vpop.permute.xlu0 %1985
      %1987 = vrot.lane.b32.xlu0 %v1909, 32
      %v1988 = vpop.permute.xlu0 %1987
      %1989 = vrot.lane.b32.xlu0 %v1910, 32
      %v1990 = vpop.permute.xlu0 %1989
      %1991 = vrot.lane.b32.xlu0 %v1911, 32
      %v1992 = vpop.permute.xlu0 %1991
      %1993 = vrot.lane.b32.xlu0 %v1912, 32
      %v1994 = vpop.permute.xlu0 %1993
      %1995 = vrot.lane.b32.xlu0 %v1913, 32
      %v1996 = vpop.permute.xlu0 %1995
      %1997 = vrot.lane.b32.xlu0 %v1914, 32
      %v1998 = vpop.permute.xlu0 %1997
      %1999 = vrot.lane.b32.xlu0 %v1915, 32
      %v2000 = vpop.permute.xlu0 %1999
      %2001 = vrot.lane.b32.xlu0 %v1916, 32
      %v2002 = vpop.permute.xlu0 %2001
      %2003 = vrot.lane.b32.xlu0 %v1917, 32
      %v2004 = vpop.permute.xlu0 %2003
      %2005 = vrot.lane.b32.xlu0 %v1918, 32
      %v2006 = vpop.permute.xlu0 %2005
      %2007 = vrot.lane.b32.xlu0 %v1919, 32
      %v2008 = vpop.permute.xlu0 %2007
      %2009 = vrot.lane.b32.xlu0 %v1920, 32
      %v2010 = vpop.permute.xlu0 %2009
      %2011 = vrot.lane.b32.xlu0 %v1921, 32
      %v2012 = vpop.permute.xlu0 %2011
      %2013 = vrot.lane.b32.xlu0 %v1922, 32
      %v2014 = vpop.permute.xlu0 %2013
      %2015 = vrot.lane.b32.xlu0 %v1923, 32
      %v2016 = vpop.permute.xlu0 %2015
      %2017 = vrot.lane.b32.xlu0 %v1924, 32
      %v2018 = vpop.permute.xlu0 %2017
      %2019 = vrot.lane.b32.xlu0 %v1925, 32
      %v2020 = vpop.permute.xlu0 %2019
      %2021 = vrot.lane.b32.xlu0 %v1926, 32
      %v2022 = vpop.permute.xlu0 %2021
      %vm2055 = vcmask 294144
      %2056 = vst.msk [vmem:[#allocation3] sm:$0xff] %vm2055, %v1960
      %2057 = vst.msk [vmem:[#allocation3 + $0x8] sm:$0xff] %vm2055, %v1962
      %2058 = vst.msk [vmem:[#allocation3 + $0x10] sm:$0xff] %vm2055, %v1964
      %2059 = vst.msk [vmem:[#allocation3 + $0x18] sm:$0xff] %vm2055, %v1966
      %2060 = vst.msk [vmem:[#allocation3 + $0x20] sm:$0xff] %vm2055, %v1968
      %2061 = vst.msk [vmem:[#allocation3 + $0x28] sm:$0xff] %vm2055, %v1970
      %2062 = vst.msk [vmem:[#allocation3 + $0x30] sm:$0xff] %vm2055, %v1972
      %2063 = vst.msk [vmem:[#allocation3 + $0x38] sm:$0xff] %vm2055, %v1974
      %2064 = vst.msk [vmem:[#allocation3 + $0x40] sm:$0xff] %vm2055, %v1976
      %2065 = vst.msk [vmem:[#allocation3 + $0x48] sm:$0xff] %vm2055, %v1978
      %2066 = vst.msk [vmem:[#allocation3 + $0x50] sm:$0xff] %vm2055, %v1980
      %2067 = vst.msk [vmem:[#allocation3 + $0x58] sm:$0xff] %vm2055, %v1982
      %2068 = vst.msk [vmem:[#allocation3 + $0x60] sm:$0xff] %vm2055, %v1984
      %2069 = vst.msk [vmem:[#allocation3 + $0x68] sm:$0xff] %vm2055, %v1986
      %2070 = vst.msk [vmem:[#allocation3 + $0x70] sm:$0xff] %vm2055, %v1988
      %2071 = vst.msk [vmem:[#allocation3 + $0x78] sm:$0xff] %vm2055, %v1990
      %2072 = vst.msk [vmem:[#allocation3 + $0x80] sm:$0xff] %vm2055, %v1992
      %2073 = vst.msk [vmem:[#allocation3 + $0x88] sm:$0xff] %vm2055, %v1994
      %2074 = vst.msk [vmem:[#allocation3 + $0x90] sm:$0xff] %vm2055, %v1996
      %2075 = vst.msk [vmem:[#allocation3 + $0x98] sm:$0xff] %vm2055, %v1998
      %2076 = vst.msk [vmem:[#allocation3 + $0xa0] sm:$0xff] %vm2055, %v2000
      %2077 = vst.msk [vmem:[#allocation3 + $0xa8] sm:$0xff] %vm2055, %v2002
      %2078 = vst.msk [vmem:[#allocation3 + $0xb0] sm:$0xff] %vm2055, %v2004
      %2079 = vst.msk [vmem:[#allocation3 + $0xb8] sm:$0xff] %vm2055, %v2006
      %2080 = vst.msk [vmem:[#allocation3 + $0xc0] sm:$0xff] %vm2055, %v2008
      %2081 = vst.msk [vmem:[#allocation3 + $0xc8] sm:$0xff] %vm2055, %v2010
      %2082 = vst.msk [vmem:[#allocation3 + $0xd0] sm:$0xff] %vm2055, %v2012
      %2083 = vst.msk [vmem:[#allocation3 + $0xd8] sm:$0xff] %vm2055, %v2014
      %2084 = vst.msk [vmem:[#allocation3 + $0xe0] sm:$0xff] %vm2055, %v2016
      %2085 = vst.msk [vmem:[#allocation3 + $0xe8] sm:$0xff] %vm2055, %v2018
      %2086 = vst.msk [vmem:[#allocation3 + $0xf0] sm:$0xff] %vm2055, %v2020
      %2087 = vst.msk [vmem:[#allocation3 + $0xf8] sm:$0xff] %vm2055, %v2022
      %v2088 = vld [vmem:[#allocation3] sm:$0xff]
      %v2089 = vld [vmem:[#allocation3 + $0x8] sm:$0xff]
      %v2090 = vld [vmem:[#allocation3 + $0x10] sm:$0xff]
      %v2091 = vld [vmem:[#allocation3 + $0x18] sm:$0xff]
      %v2092 = vld [vmem:[#allocation3 + $0x20] sm:$0xff]
      %v2093 = vld [vmem:[#allocation3 + $0x28] sm:$0xff]
      %v2094 = vld [vmem:[#allocation3 + $0x30] sm:$0xff]
      %v2095 = vld [vmem:[#allocation3 + $0x38] sm:$0xff]
      %v2096 = vld [vmem:[#allocation3 + $0x40] sm:$0xff]
      %v2097 = vld [vmem:[#allocation3 + $0x48] sm:$0xff]
      %v2098 = vld [vmem:[#allocation3 + $0x50] sm:$0xff]
      %v2099 = vld [vmem:[#allocation3 + $0x58] sm:$0xff]
      %v2100 = vld [vmem:[#allocation3 + $0x60] sm:$0xff]
      %v2101 = vld [vmem:[#allocation3 + $0x68] sm:$0xff]
      %v2102 = vld [vmem:[#allocation3 + $0x70] sm:$0xff]
      %v2103 = vld [vmem:[#allocation3 + $0x78] sm:$0xff]
      %v2104 = vld [vmem:[#allocation3 + $0x80] sm:$0xff]
      %v2105 = vld [vmem:[#allocation3 + $0x88] sm:$0xff]
      %v2106 = vld [vmem:[#allocation3 + $0x90] sm:$0xff]
      %v2107 = vld [vmem:[#allocation3 + $0x98] sm:$0xff]
      %v2108 = vld [vmem:[#allocation3 + $0xa0] sm:$0xff]
      %v2109 = vld [vmem:[#allocation3 + $0xa8] sm:$0xff]
      %v2110 = vld [vmem:[#allocation3 + $0xb0] sm:$0xff]
      %v2111 = vld [vmem:[#allocation3 + $0xb8] sm:$0xff]
      %v2112 = vld [vmem:[#allocation3 + $0xc0] sm:$0xff]
      %v2113 = vld [vmem:[#allocation3 + $0xc8] sm:$0xff]
      %v2114 = vld [vmem:[#allocation3 + $0xd0] sm:$0xff]
      %v2115 = vld [vmem:[#allocation3 + $0xd8] sm:$0xff]
      %v2116 = vld [vmem:[#allocation3 + $0xe0] sm:$0xff]
      %v2117 = vld [vmem:[#allocation3 + $0xe8] sm:$0xff]
      %v2118 = vld [vmem:[#allocation3 + $0xf0] sm:$0xff]
      %v2119 = vld [vmem:[#allocation3 + $0xf8] sm:$0xff]
      %v2120 = vpack.c.bf16 %v2089, %v2088
      %v2121 = vpack.c.bf16 %v2091, %v2090
      %v2122 = vpack.c.bf16 %v2093, %v2092
      %v2123 = vpack.c.bf16 %v2095, %v2094
      %v2124 = vpack.c.bf16 %v2097, %v2096
      %v2125 = vpack.c.bf16 %v2099, %v2098
      %v2126 = vpack.c.bf16 %v2101, %v2100
      %v2127 = vpack.c.bf16 %v2103, %v2102
      %v2128 = vpack.c.bf16 %v2105, %v2104
      %v2129 = vpack.c.bf16 %v2107, %v2106
      %v2130 = vpack.c.bf16 %v2109, %v2108
      %v2131 = vpack.c.bf16 %v2111, %v2110
      %v2132 = vpack.c.bf16 %v2113, %v2112
      %v2133 = vpack.c.bf16 %v2115, %v2114
      %v2134 = vpack.c.bf16 %v2117, %v2116
      %v2135 = vpack.c.bf16 %v2119, %v2118
      %v2136 = vld [vmem:[%s3] sm:$0xf]
      %v2137 = vld [vmem:[%s3 + $0x4] sm:$0xf]
      %v2138 = vld [vmem:[%s3 + $0x8] sm:$0xf]
      %v2139 = vld [vmem:[%s3 + $0xc] sm:$0xf]
      %v2140 = vld [vmem:[%s3 + $0x10] sm:$0x3]
      %v2141 = vld [vmem:[%s4] sm:$0x1]
      %v2143 = vperm.slane %v2141, 0
      %v2150 = vunpack.c.l.b16 %v2136
      %v2151 = vunpack.c.l.b16 %v2137
      %v2152 = vunpack.c.l.b16 %v2138
      %v2153 = vunpack.c.l.b16 %v2139
      %v2154 = vunpack.c.l.b16 %v2140
      %v2155 = vpack.c.b16 %v2151, %v2150
      %v2156 = vpack.c.b16 %v2153, %v2152
      %v2157 = vpack.c.b16 %v2154, %v2154
      %vm2160 = vcmask 293888
      %v2162 = vsel %vm2160, %v2120, 0
      %v2165 = vsel %vm2160, %v2121, 0
      %v2168 = vsel %vm2160, %v2122, 0
      %v2171 = vsel %vm2160, %v2123, 0
      %v2174 = vsel %vm2160, %v2124, 0
      %v2177 = vsel %vm2160, %v2125, 0
      %v2180 = vsel %vm2160, %v2126, 0
      %v2183 = vsel %vm2160, %v2127, 0
      %v2186 = vsel %vm2160, %v2128, 0
      %v2189 = vsel %vm2160, %v2129, 0
      %v2192 = vsel %vm2160, %v2130, 0
      %v2195 = vsel %vm2160, %v2131, 0
      %v2198 = vsel %vm2160, %v2132, 0
      %v2201 = vsel %vm2160, %v2133, 0
      %v2204 = vsel %vm2160, %v2134, 0
      %v2207 = vsel %vm2160, %v2135, 0
      %vm2209 = vcmask 1041408
      %v2211 = vsel %vm2209, %v2157, 0
      %2213 = vmatpush.bf16.msra.mxu0 0
      %2214 = vmatpush.bf16.msra.mxu0 0
      %2215 = vmatpush.bf16.msra.mxu0 0
      %2216 = vmatpush.bf16.msra.mxu0 0
      %2217 = vmatpush.bf16.msra.mxu0 0
      %2218 = vmatpush.bf16.msra.mxu0 %v2211
      %2219 = vmatpush.bf16.msra.mxu0 %v2156
      %2220 = vmatpush.bf16.msra.mxu0 %v2155
      %2221 = vmatmul.bf16.gmra.mxu0 %v2162
      %v2222 = vpop.f32.mrf.mxu0
      %v2223 = vadd.f32 %v2143, %v2222
      %v2224 = vpop.f32.mrf.mxu0
      %v2225 = vadd.f32 %v2143, %v2224
      %2226 = vmatmul.bf16.gmra.mxu0 %v2165
      %v2227 = vpop.f32.mrf.mxu0
      %v2228 = vadd.f32 %v2143, %v2227
      %v2229 = vpop.f32.mrf.mxu0
      %v2230 = vadd.f32 %v2143, %v2229
      %2231 = vmatmul.bf16.gmra.mxu0 %v2168
      %v2232 = vpop.f32.mrf.mxu0
      %v2233 = vadd.f32 %v2143, %v2232
      %v2234 = vpop.f32.mrf.mxu0
      %v2235 = vadd.f32 %v2143, %v2234
      %2236 = vmatmul.bf16.gmra.mxu0 %v2171
      %v2237 = vpop.f32.mrf.mxu0
      %v2238 = vadd.f32 %v2143, %v2237
      %v2239 = vpop.f32.mrf.mxu0
      %v2240 = vadd.f32 %v2143, %v2239
      %2241 = vmatmul.bf16.gmra.mxu0 %v2174
      %v2242 = vpop.f32.mrf.mxu0
      %v2243 = vadd.f32 %v2143, %v2242
      %v2244 = vpop.f32.mrf.mxu0
      %v2245 = vadd.f32 %v2143, %v2244
      %2246 = vmatmul.bf16.gmra.mxu0 %v2177
      %v2247 = vpop.f32.mrf.mxu0
      %v2248 = vadd.f32 %v2143, %v2247
      %v2249 = vpop.f32.mrf.mxu0
      %v2250 = vadd.f32 %v2143, %v2249
      %2251 = vmatmul.bf16.gmra.mxu0 %v2180
      %v2252 = vpop.f32.mrf.mxu0
      %v2253 = vadd.f32 %v2143, %v2252
      %v2254 = vpop.f32.mrf.mxu0
      %v2255 = vadd.f32 %v2143, %v2254
      %2256 = vmatmul.bf16.gmra.mxu0 %v2183
      %v2257 = vpop.f32.mrf.mxu0
      %v2258 = vadd.f32 %v2143, %v2257
      %v2259 = vpop.f32.mrf.mxu0
      %v2260 = vadd.f32 %v2143, %v2259
      %2261 = vmatmul.bf16.gmra.mxu0 %v2186
      %v2262 = vpop.f32.mrf.mxu0
      %v2263 = vadd.f32 %v2143, %v2262
      %v2264 = vpop.f32.mrf.mxu0
      %v2265 = vadd.f32 %v2143, %v2264
      %2266 = vmatmul.bf16.gmra.mxu0 %v2189
      %v2267 = vpop.f32.mrf.mxu0
      %v2268 = vadd.f32 %v2143, %v2267
      %v2269 = vpop.f32.mrf.mxu0
      %v2270 = vadd.f32 %v2143, %v2269
      %2271 = vmatmul.bf16.gmra.mxu0 %v2192
      %v2272 = vpop.f32.mrf.mxu0
      %v2273 = vadd.f32 %v2143, %v2272
      %v2274 = vpop.f32.mrf.mxu0
      %v2275 = vadd.f32 %v2143, %v2274
      %2276 = vmatmul.bf16.gmra.mxu0 %v2195
      %v2277 = vpop.f32.mrf.mxu0
      %v2278 = vadd.f32 %v2143, %v2277
      %v2279 = vpop.f32.mrf.mxu0
      %v2280 = vadd.f32 %v2143, %v2279
      %2281 = vmatmul.bf16.gmra.mxu0 %v2198
      %v2282 = vpop.f32.mrf.mxu0
      %v2283 = vadd.f32 %v2143, %v2282
      %v2284 = vpop.f32.mrf.mxu0
      %v2285 = vadd.f32 %v2143, %v2284
      %2286 = vmatmul.bf16.gmra.mxu0 %v2201
      %v2287 = vpop.f32.mrf.mxu0
      %v2288 = vadd.f32 %v2143, %v2287
      %v2289 = vpop.f32.mrf.mxu0
      %v2290 = vadd.f32 %v2143, %v2289
      %2291 = vmatmul.bf16.gmra.mxu0 %v2204
      %v2292 = vpop.f32.mrf.mxu0
      %v2293 = vadd.f32 %v2143, %v2292
      %v2294 = vpop.f32.mrf.mxu0
      %v2295 = vadd.f32 %v2143, %v2294
      %2296 = vmatmul.bf16.gmra.mxu0 %v2207
      %v2297 = vpop.f32.mrf.mxu0
      %v2298 = vadd.f32 %v2143, %v2297
      %v2299 = vpop.f32.mrf.mxu0
      %v2300 = vadd.f32 %v2143, %v2299
      %2301 = vdwg.mxu0
      %vm2302 = vcmask 64512
      %2303 = vst.msk [vmem:[%s258] sm:$0xff] %vm2302, %v2223
      %2304 = vst.msk [vmem:[%s258 + $0x8] sm:$0xff] %vm2302, %v2225
      %2305 = vst.msk [vmem:[%s258 + $0x10] sm:$0xff] %vm2302, %v2228
      %2306 = vst.msk [vmem:[%s258 + $0x18] sm:$0xff] %vm2302, %v2230
      %2307 = vst.msk [vmem:[%s258 + $0x20] sm:$0xff] %vm2302, %v2233
      %2308 = vst.msk [vmem:[%s258 + $0x28] sm:$0xff] %vm2302, %v2235
      %2309 = vst.msk [vmem:[%s258 + $0x30] sm:$0xff] %vm2302, %v2238
      %2310 = vst.msk [vmem:[%s258 + $0x38] sm:$0xff] %vm2302, %v2240
      %2311 = vst.msk [vmem:[%s258 + $0x40] sm:$0xff] %vm2302, %v2243
      %2312 = vst.msk [vmem:[%s258 + $0x48] sm:$0xff] %vm2302, %v2245
      %2313 = vst.msk [vmem:[%s258 + $0x50] sm:$0xff] %vm2302, %v2248
      %2314 = vst.msk [vmem:[%s258 + $0x58] sm:$0xff] %vm2302, %v2250
      %2315 = vst.msk [vmem:[%s258 + $0x60] sm:$0xff] %vm2302, %v2253
      %2316 = vst.msk [vmem:[%s258 + $0x68] sm:$0xff] %vm2302, %v2255
      %2317 = vst.msk [vmem:[%s258 + $0x70] sm:$0xff] %vm2302, %v2258
      %2318 = vst.msk [vmem:[%s258 + $0x78] sm:$0xff] %vm2302, %v2260
      %2319 = vst.msk [vmem:[%s258 + $0x80] sm:$0xff] %vm2302, %v2263
      %2320 = vst.msk [vmem:[%s258 + $0x88] sm:$0xff] %vm2302, %v2265
      %2321 = vst.msk [vmem:[%s258 + $0x90] sm:$0xff] %vm2302, %v2268
      %2322 = vst.msk [vmem:[%s258 + $0x98] sm:$0xff] %vm2302, %v2270
      %2323 = vst.msk [vmem:[%s258 + $0xa0] sm:$0xff] %vm2302, %v2273
      %2324 = vst.msk [vmem:[%s258 + $0xa8] sm:$0xff] %vm2302, %v2275
      %2325 = vst.msk [vmem:[%s258 + $0xb0] sm:$0xff] %vm2302, %v2278
      %2326 = vst.msk [vmem:[%s258 + $0xb8] sm:$0xff] %vm2302, %v2280
      %2327 = vst.msk [vmem:[%s258 + $0xc0] sm:$0xff] %vm2302, %v2283
      %2328 = vst.msk [vmem:[%s258 + $0xc8] sm:$0xff] %vm2302, %v2285
      %2329 = vst.msk [vmem:[%s258 + $0xd0] sm:$0xff] %vm2302, %v2288
      %2330 = vst.msk [vmem:[%s258 + $0xd8] sm:$0xff] %vm2302, %v2290
      %2331 = vst.msk [vmem:[%s258 + $0xe0] sm:$0xff] %vm2302, %v2293
      %2332 = vst.msk [vmem:[%s258 + $0xe8] sm:$0xff] %vm2302, %v2295
      %2333 = vst.msk [vmem:[%s258 + $0xf0] sm:$0xff] %vm2302, %v2298
      %2334 = vst.msk [vmem:[%s258 + $0xf8] sm:$0xff] %vm2302, %v2300
      %v2335 = vsel %vm2302, %v2223, 0.0
      %v2336 = vsel %vm2302, %v2225, 0.0
      %v2337 = vadd.f32 %v2335, %v2336
      %v2338 = vsel %vm2302, %v2228, 0.0
      %v2339 = vadd.f32 %v2337, %v2338
      %v2340 = vsel %vm2302, %v2230, 0.0
      %v2341 = vadd.f32 %v2339, %v2340
      %v2342 = vsel %vm2302, %v2233, 0.0
      %v2343 = vadd.f32 %v2341, %v2342
      %v2344 = vsel %vm2302, %v2235, 0.0
      %v2345 = vadd.f32 %v2343, %v2344
      %v2346 = vsel %vm2302, %v2238, 0.0
      %v2347 = vadd.f32 %v2345, %v2346
      %v2348 = vsel %vm2302, %v2240, 0.0
      %v2349 = vadd.f32 %v2347, %v2348
      %v2350 = vsel %vm2302, %v2243, 0.0
      %v2351 = vadd.f32 %v2349, %v2350
      %v2352 = vsel %vm2302, %v2245, 0.0
      %v2353 = vadd.f32 %v2351, %v2352
      %v2354 = vsel %vm2302, %v2248, 0.0
      %v2355 = vadd.f32 %v2353, %v2354
      %v2356 = vsel %vm2302, %v2250, 0.0
      %v2357 = vadd.f32 %v2355, %v2356
      %v2358 = vsel %vm2302, %v2253, 0.0
      %v2359 = vadd.f32 %v2357, %v2358
      %v2360 = vsel %vm2302, %v2255, 0.0
      %v2361 = vadd.f32 %v2359, %v2360
      %v2362 = vsel %vm2302, %v2258, 0.0
      %v2363 = vadd.f32 %v2361, %v2362
      %v2364 = vsel %vm2302, %v2260, 0.0
      %v2365 = vadd.f32 %v2363, %v2364
      %v2366 = vsel %vm2302, %v2263, 0.0
      %v2367 = vadd.f32 %v2365, %v2366
      %v2368 = vsel %vm2302, %v2265, 0.0
      %v2369 = vadd.f32 %v2367, %v2368
      %v2370 = vsel %vm2302, %v2268, 0.0
      %v2371 = vadd.f32 %v2369, %v2370
      %v2372 = vsel %vm2302, %v2270, 0.0
      %v2373 = vadd.f32 %v2371, %v2372
      %v2374 = vsel %vm2302, %v2273, 0.0
      %v2375 = vadd.f32 %v2373, %v2374
      %v2376 = vsel %vm2302, %v2275, 0.0
      %v2377 = vadd.f32 %v2375, %v2376
      %v2378 = vsel %vm2302, %v2278, 0.0
      %v2379 = vadd.f32 %v2377, %v2378
      %v2380 = vsel %vm2302, %v2280, 0.0
      %v2381 = vadd.f32 %v2379, %v2380
      %v2382 = vsel %vm2302, %v2283, 0.0
      %v2383 = vadd.f32 %v2381, %v2382
      %v2384 = vsel %vm2302, %v2285, 0.0
      %v2385 = vadd.f32 %v2383, %v2384
      %v2386 = vsel %vm2302, %v2288, 0.0
      %v2387 = vadd.f32 %v2385, %v2386
      %v2388 = vsel %vm2302, %v2290, 0.0
      %v2389 = vadd.f32 %v2387, %v2388
      %v2390 = vsel %vm2302, %v2293, 0.0
      %v2391 = vadd.f32 %v2389, %v2390
      %v2392 = vsel %vm2302, %v2295, 0.0
      %v2393 = vadd.f32 %v2391, %v2392
      %v2394 = vsel %vm2302, %v2298, 0.0
      %v2395 = vadd.f32 %v2393, %v2394
      %v2396 = vsel %vm2302, %v2300, 0.0
      %v2397 = vadd.f32 %v2395, %v2396
      %v2398 = vrot.slane %v2397, 4
      %v2399 = vadd.f32 %v2397, %v2398
      %v2400 = vrot.slane %v2399, 2
      %v2401 = vadd.f32 %v2399, %v2400
      %v2402 = vrot.slane %v2401, 1
      %v2403 = vadd.f32 %v2401, %v2402
      %v2404 = vmul.f32 %v2403, 0.00390625
      %v2405 = vsub.f32 %v2223, %v2404
      %v2406 = vsub.f32 %v2225, %v2404
      %v2407 = vsub.f32 %v2228, %v2404
      %v2408 = vsub.f32 %v2230, %v2404
      %v2409 = vsub.f32 %v2233, %v2404
      %v2410 = vsub.f32 %v2235, %v2404
      %v2411 = vsub.f32 %v2238, %v2404
      %v2412 = vsub.f32 %v2240, %v2404
      %v2413 = vsub.f32 %v2243, %v2404
      %v2414 = vsub.f32 %v2245, %v2404
      %v2415 = vsub.f32 %v2248, %v2404
      %v2416 = vsub.f32 %v2250, %v2404
      %v2417 = vsub.f32 %v2253, %v2404
      %v2418 = vsub.f32 %v2255, %v2404
      %v2419 = vsub.f32 %v2258, %v2404
      %v2420 = vsub.f32 %v2260, %v2404
      %v2421 = vsub.f32 %v2263, %v2404
      %v2422 = vsub.f32 %v2265, %v2404
      %v2423 = vsub.f32 %v2268, %v2404
      %v2424 = vsub.f32 %v2270, %v2404
      %v2425 = vsub.f32 %v2273, %v2404
      %v2426 = vsub.f32 %v2275, %v2404
      %v2427 = vsub.f32 %v2278, %v2404
      %v2428 = vsub.f32 %v2280, %v2404
      %v2429 = vsub.f32 %v2283, %v2404
      %v2430 = vsub.f32 %v2285, %v2404
      %v2431 = vsub.f32 %v2288, %v2404
      %v2432 = vsub.f32 %v2290, %v2404
      %v2433 = vsub.f32 %v2293, %v2404
      %v2434 = vsub.f32 %v2295, %v2404
      %v2435 = vsub.f32 %v2298, %v2404
      %v2436 = vsub.f32 %v2300, %v2404
      %v2437 = vmul.f32 %v2405, %v2405
      %v2438 = vmul.f32 %v2406, %v2406
      %v2439 = vmul.f32 %v2407, %v2407
      %v2440 = vmul.f32 %v2408, %v2408
      %v2441 = vmul.f32 %v2409, %v2409
      %v2442 = vmul.f32 %v2410, %v2410
      %v2443 = vmul.f32 %v2411, %v2411
      %v2444 = vmul.f32 %v2412, %v2412
      %v2445 = vmul.f32 %v2413, %v2413
      %v2446 = vmul.f32 %v2414, %v2414
      %v2447 = vmul.f32 %v2415, %v2415
      %v2448 = vmul.f32 %v2416, %v2416
      %v2449 = vmul.f32 %v2417, %v2417
      %v2450 = vmul.f32 %v2418, %v2418
      %v2451 = vmul.f32 %v2419, %v2419
      %v2452 = vmul.f32 %v2420, %v2420
      %v2453 = vmul.f32 %v2421, %v2421
      %v2454 = vmul.f32 %v2422, %v2422
      %v2455 = vmul.f32 %v2423, %v2423
      %v2456 = vmul.f32 %v2424, %v2424
      %v2457 = vmul.f32 %v2425, %v2425
      %v2458 = vmul.f32 %v2426, %v2426
      %v2459 = vmul.f32 %v2427, %v2427
      %v2460 = vmul.f32 %v2428, %v2428
      %v2461 = vmul.f32 %v2429, %v2429
      %v2462 = vmul.f32 %v2430, %v2430
      %v2463 = vmul.f32 %v2431, %v2431
      %v2464 = vmul.f32 %v2432, %v2432
      %v2465 = vmul.f32 %v2433, %v2433
      %v2466 = vmul.f32 %v2434, %v2434
      %v2467 = vmul.f32 %v2435, %v2435
      %v2468 = vmul.f32 %v2436, %v2436
      %v2469 = vsel %vm2302, %v2437, 0.0
      %v2470 = vsel %vm2302, %v2438, 0.0
      %v2471 = vadd.f32 %v2469, %v2470
      %v2472 = vsel %vm2302, %v2439, 0.0
      %v2473 = vadd.f32 %v2471, %v2472
      %v2474 = vsel %vm2302, %v2440, 0.0
      %v2475 = vadd.f32 %v2473, %v2474
      %v2476 = vsel %vm2302, %v2441, 0.0
      %v2477 = vadd.f32 %v2475, %v2476
      %v2478 = vsel %vm2302, %v2442, 0.0
      %v2479 = vadd.f32 %v2477, %v2478
      %v2480 = vsel %vm2302, %v2443, 0.0
      %v2481 = vadd.f32 %v2479, %v2480
      %v2482 = vsel %vm2302, %v2444, 0.0
      %v2483 = vadd.f32 %v2481, %v2482
      %v2484 = vsel %vm2302, %v2445, 0.0
      %v2485 = vadd.f32 %v2483, %v2484
      %v2486 = vsel %vm2302, %v2446, 0.0
      %v2487 = vadd.f32 %v2485, %v2486
      %v2488 = vsel %vm2302, %v2447, 0.0
      %v2489 = vadd.f32 %v2487, %v2488
      %v2490 = vsel %vm2302, %v2448, 0.0
      %v2491 = vadd.f32 %v2489, %v2490
      %v2492 = vsel %vm2302, %v2449, 0.0
      %v2493 = vadd.f32 %v2491, %v2492
      %v2494 = vsel %vm2302, %v2450, 0.0
      %v2495 = vadd.f32 %v2493, %v2494
      %v2496 = vsel %vm2302, %v2451, 0.0
      %v2497 = vadd.f32 %v2495, %v2496
      %v2498 = vsel %vm2302, %v2452, 0.0
      %v2499 = vadd.f32 %v2497, %v2498
      %v2500 = vsel %vm2302, %v2453, 0.0
      %v2501 = vadd.f32 %v2499, %v2500
      %v2502 = vsel %vm2302, %v2454, 0.0
      %v2503 = vadd.f32 %v2501, %v2502
      %v2504 = vsel %vm2302, %v2455, 0.0
      %v2505 = vadd.f32 %v2503, %v2504
      %v2506 = vsel %vm2302, %v2456, 0.0
      %v2507 = vadd.f32 %v2505, %v2506
      %v2508 = vsel %vm2302, %v2457, 0.0
      %v2509 = vadd.f32 %v2507, %v2508
      %v2510 = vsel %vm2302, %v2458, 0.0
      %v2511 = vadd.f32 %v2509, %v2510
      %v2512 = vsel %vm2302, %v2459, 0.0
      %v2513 = vadd.f32 %v2511, %v2512
      %v2514 = vsel %vm2302, %v2460, 0.0
      %v2515 = vadd.f32 %v2513, %v2514
      %v2516 = vsel %vm2302, %v2461, 0.0
      %v2517 = vadd.f32 %v2515, %v2516
      %v2518 = vsel %vm2302, %v2462, 0.0
      %v2519 = vadd.f32 %v2517, %v2518
      %v2520 = vsel %vm2302, %v2463, 0.0
      %v2521 = vadd.f32 %v2519, %v2520
      %v2522 = vsel %vm2302, %v2464, 0.0
      %v2523 = vadd.f32 %v2521, %v2522
      %v2524 = vsel %vm2302, %v2465, 0.0
      %v2525 = vadd.f32 %v2523, %v2524
      %v2526 = vsel %vm2302, %v2466, 0.0
      %v2527 = vadd.f32 %v2525, %v2526
      %v2528 = vsel %vm2302, %v2467, 0.0
      %v2529 = vadd.f32 %v2527, %v2528
      %v2530 = vsel %vm2302, %v2468, 0.0
      %v2531 = vadd.f32 %v2529, %v2530
      %v2532 = vrot.slane %v2531, 4
      %v2533 = vadd.f32 %v2531, %v2532
      %v2534 = vrot.slane %v2533, 2
      %v2535 = vadd.f32 %v2533, %v2534
      %v2536 = vrot.slane %v2535, 1
      %v2537 = vadd.f32 %v2535, %v2536
      %vm2538 = vcmask 1040384
      %v2539 = vsel %vm2538, %v2403, %v2537
      %vm2540 = vcmask 58368
      %2541 = vst.msk [vmem:[%s262] sm:$0x3] %vm2540, %v2539
      %p2542 = scmp.lt.s32.totalorder %s18, 1
      %s2543 = scalar_select %p2542, %s18, 1
      %s2544 = smul.addr %s2543, 32
      %s2545 = smul.addr %s2544, 8
      %s2546 = scalar_lea.vmem %s5, %s2545
      %p2547 = scmp.lt.s32.totalorder %s18, 1
      %s2548 = scalar_select %p2547, %s18, 1
      %s2549 = smul.addr %s2548, 2
      %s2550 = scalar_lea.vmem %s6, %s2549
      // Predicated region
      $region41: #{up_forward.6} parent=39 // pred_check
        %p2551 = pneg %p146
      $region42: #{up_forward.6} parent=39 // pred_check_branch
        %2553 = sbr.rel (%p2551) target = $region44
      $region43: #{up_forward.6} parent=39 // pred_region
        _
      $region44: #{up_forward.6} parent=39 // pred_fallthru
        _
      // Predicated region
      $region45: #{up_forward.6} parent=39 // pred_check
        %p2554 = pneg %p172
      $region46: #{up_forward.6} parent=39 // pred_check_branch
        %2556 = sbr.rel (%p2554) target = $region48
      $region47: #{up_forward.6} parent=39 // pred_region
        _
      $region48: #{up_forward.6} parent=39 // pred_fallthru
        _
    $region40: #{up_forward.6} parent=5 // pred_fallthru
      _
    %p2557 = scmp.le.s32.totalorder 2, %s13
    // Predicated region
    $region49: #{up_forward.6} parent=5 // pred_check
      %p2558 = pneg %p2557
    $region50: #{up_forward.6} parent=5 // pred_check_branch
      %2560 = sbr.rel (%p2558) target = $region52
    $region51: #{up_forward.6} parent=5 // pred_region
      %s2561 = ssub.s32 %s13, 2
      // Predicated region
      $region53: #{up_forward.6} parent=51 // pred_check
        %p2562 = pneg %p152
      $region54: #{up_forward.6} parent=51 // pred_check_branch
        %2564 = sbr.rel (%p2562) target = $region56
      $region55: #{up_forward.6} parent=51 // pred_region
        %p2565 = scmp.lt.s32.totalorder %s19, 1
        %s2566 = scalar_select %p2565, %s19, 1
        %s2567 = smul.addr %s2566, 32
        %s2568 = smul.addr %s2567, 8
        %s2569 = scalar_lea.vmem %s5, %s2568
      $region56: #{up_forward.6} parent=51 // pred_fallthru
        _
      // Predicated region
      $region57: #{up_forward.6} parent=51 // pred_check
        %p2570 = pneg %p178
      $region58: #{up_forward.6} parent=51 // pred_check_branch
        %2572 = sbr.rel (%p2570) target = $region60
      $region59: #{up_forward.6} parent=51 // pred_region
        %p2573 = scmp.lt.s32.totalorder %s19, 1
        %s2574 = scalar_select %p2573, %s19, 1
        %s2575 = smul.addr %s2574, 2
        %s2576 = scalar_lea.vmem %s6, %s2575
      $region60: #{up_forward.6} parent=51 // pred_fallthru
        _
    $region52: #{up_forward.6} parent=5 // pred_fallthru
      _
  $region6: #{up_forward.6} parent=0 // loop_footer
    %s17 = sadd.s32 1, %s13
  $region7: #{up_forward.6} parent=0 // loop_footer_branch
    %12 = sbr.rel target = $region3
  $region8: #{up_forward.6} parent=0 // loop_exit
    _

// kernel: up_forward.5
$region0: #{up_forward.5}
  #allocation0 [shape = 'u32[]', space=smem, size = 0x4, offset = 0x4, fixed_abs, tag = 'smem constant byte address 0x4 - core index']
  #allocation1 [shape = 'u32[72,128]{1,0:T(1,128)}', space=vmem, size = 0x9000, scoped, tag = 'internal scratch']
  #allocation2 [shape = 'f32[18,18,4]{2,1,0:T(8,128)}', space=vmem, size = 0x36000, scoped, tag = 'scratch operand']
  #allocation3 [shape = 'f32[18,18,4]{2,1,0:T(8,128)}', space=vmem, size = 0x36000, scoped, tag = 'scratch operand']
  #allocation4 [shape = 'f32[256,72]{1,0:T(8,128)}', space=vmem, size = 0x20000, scoped, tag = 'scratch operand']
  %s0 = inlined_call_operand.vmem [shape: f32[2,16,16,4], index: 0, kind: input, shape index: {}]
  %s1 = inlined_call_operand.vmem [shape: f32[2,16,16,4], index: 1, kind: input, shape index: {}]
  %s2 = inlined_call_operand.vmem [shape: bf16[72,4], index: 2, kind: input, shape index: {}]
  %s3 = inlined_call_operand.vmem [shape: f32[1,4], index: 3, kind: input, shape index: {}]
  %s4 = inlined_call_operand.vmem [shape: f32[2,256,4], index: 4, kind: output, shape index: {0}]
  %s5 = inlined_call_operand.vmem [shape: f32[2,2,4], index: 5, kind: output, shape index: {1}]
  %6 = xla_tuple %s4, %s5
  %s7 = sld [smem:[#allocation0]]
  $region57: #{up_forward.5} parent=0
    _
  %s9 = ssub.s32 1, %s7
  %s10 = scalar_select 0, %s9, %s7
  loop: start=0, step=1, limit=4
  $region2: #{up_forward.5} parent=0 // loop_pre_header
    _
  $region3: #{up_forward.5} parent=0 // loop_header
    %s12 = sphi 0, %s16
    %p13 = scmp.ge.s32.totalorder %s12, 4
    %s22 = sphi 0, %s24
    %s25 = sphi 0, %s22
    %s26 = sphi 0, %s25
    %s42 = sphi 0, %s26
    %s48 = sphi 0, %s50
    %s51 = sphi 0, %s48
    %s52 = sphi 0, %s51
    %s68 = sphi 0, %s52
    %s72 = sphi 0, %s72
    %s74 = sphi 0, %s72
    %s75 = sphi 0, %s74
    %s89 = sphi 0, %s75
    %s93 = sphi 0, %s93
    %s95 = sphi 0, %s93
    %s96 = sphi 0, %s95
    %s110 = sphi 0, %s96
    %s116 = sphi 0, %s118
    %s119 = sphi 0, %s116
    %s120 = sphi 0, %s119
    %s136 = sphi 0, %s120
    %s142 = sphi 0, %s144
    %s145 = sphi 0, %s142
    %s146 = sphi 0, %s145
    %s162 = sphi 0, %s146
  $region4: #{up_forward.5} parent=0 // loop_header_branch
    %15 = sbr.rel (%p13) target = $region8
  $region5: #{up_forward.5} parent=0 // loop_body
    %s17 = ssub.s32 %s12, 1
    %s18 = ssub.s32 %s12, 2
    %s19 = sadd.s32 %s12, 1
    %s20 = ssub.s32 %s12, %s19
    %p21 = scmp.eq.s32.totalorder %s20, 0
    %s23 = sadd.s32 %s22, 1
    %s24 = scalar_select %p21, %s22, %s23
    %p27 = pneg %p21
    %p28 = scmp.eq.s32.totalorder %s12, 1
    %p29 = por %p27, %p28
    %p30 = scmp.ne.s32.totalorder %s22, %s25
    %p31 = scmp.eq.s32.totalorder %s12, 0
    %p32 = por %p30, %p31
    %p33 = scmp.ne.s32.totalorder %s22, %s25
    %p34 = scmp.eq.s32.totalorder %s17, 1
    %p35 = por %p33, %p34
    %p36 = scmp.ne.s32.totalorder %s25, %s26
    %p37 = scmp.eq.s32.totalorder %s17, 0
    %p38 = por %p36, %p37
    %p39 = scmp.ne.s32.totalorder %s25, %s26
    %p40 = scmp.eq.s32.totalorder %s18, 1
    %p41 = por %p39, %p40
    %p43 = scmp.ne.s32.totalorder %s26, %s42
    %p44 = scmp.eq.s32.totalorder %s18, 0
    %p45 = por %p43, %p44
    %s46 = ssub.s32 %s12, %s19
    %p47 = scmp.eq.s32.totalorder %s46, 0
    %s49 = sadd.s32 %s48, 1
    %s50 = scalar_select %p47, %s48, %s49
    %p53 = pneg %p47
    %p54 = scmp.eq.s32.totalorder %s12, 1
    %p55 = por %p53, %p54
    %p56 = scmp.ne.s32.totalorder %s48, %s51
    %p57 = scmp.eq.s32.totalorder %s12, 0
    %p58 = por %p56, %p57
    %p59 = scmp.ne.s32.totalorder %s48, %s51
    %p60 = scmp.eq.s32.totalorder %s17, 1
    %p61 = por %p59, %p60
    %p62 = scmp.ne.s32.totalorder %s51, %s52
    %p63 = scmp.eq.s32.totalorder %s17, 0
    %p64 = por %p62, %p63
    %p65 = scmp.ne.s32.totalorder %s51, %s52
    %p66 = scmp.eq.s32.totalorder %s18, 1
    %p67 = por %p65, %p66
    %p69 = scmp.ne.s32.totalorder %s52, %s68
    %p70 = scmp.eq.s32.totalorder %s18, 0
    %p71 = por %p69, %p70
    %s73 = sadd.s32 %s72, 1
    %p76 = scmp.eq.s32.totalorder %s12, 1
    %p77 = scmp.ne.s32.totalorder %s72, %s74
    %p78 = scmp.eq.s32.totalorder %s12, 0
    %p79 = por %p77, %p78
    %p80 = scmp.ne.s32.totalorder %s72, %s74
    %p81 = scmp.eq.s32.totalorder %s17, 1
    %p82 = por %p80, %p81
    %p83 = scmp.ne.s32.totalorder %s74, %s75
    %p84 = scmp.eq.s32.totalorder %s17, 0
    %p85 = por %p83, %p84
    %p86 = scmp.ne.s32.totalorder %s74, %s75
    %p87 = scmp.eq.s32.totalorder %s18, 1
    %p88 = por %p86, %p87
    %p90 = scmp.ne.s32.totalorder %s75, %s89
    %p91 = scmp.eq.s32.totalorder %s18, 0
    %p92 = por %p90, %p91
    %s94 = sadd.s32 %s93, 1
    %p97 = scmp.eq.s32.totalorder %s12, 1
    %p98 = scmp.ne.s32.totalorder %s93, %s95
    %p99 = scmp.eq.s32.totalorder %s12, 0
    %p100 = por %p98, %p99
    %p101 = scmp.ne.s32.totalorder %s93, %s95
    %p102 = scmp.eq.s32.totalorder %s17, 1
    %p103 = por %p101, %p102
    %p104 = scmp.ne.s32.totalorder %s95, %s96
    %p105 = scmp.eq.s32.totalorder %s17, 0
    %p106 = por %p104, %p105
    %p107 = scmp.ne.s32.totalorder %s95, %s96
    %p108 = scmp.eq.s32.totalorder %s18, 1
    %p109 = por %p107, %p108
    %p111 = scmp.ne.s32.totalorder %s96, %s110
    %p112 = scmp.eq.s32.totalorder %s18, 0
    %p113 = por %p111, %p112
    %s114 = ssub.s32 %s12, %s19
    %p115 = scmp.eq.s32.totalorder %s114, 0
    %s117 = sadd.s32 %s116, 1
    %s118 = scalar_select %p115, %s116, %s117
    %p121 = pneg %p115
    %p122 = scmp.eq.s32.totalorder %s12, 1
    %p123 = por %p121, %p122
    %p124 = scmp.ne.s32.totalorder %s116, %s119
    %p125 = scmp.eq.s32.totalorder %s12, 0
    %p126 = por %p124, %p125
    %p127 = scmp.ne.s32.totalorder %s116, %s119
    %p128 = scmp.eq.s32.totalorder %s17, 1
    %p129 = por %p127, %p128
    %p130 = scmp.ne.s32.totalorder %s119, %s120
    %p131 = scmp.eq.s32.totalorder %s17, 0
    %p132 = por %p130, %p131
    %p133 = scmp.ne.s32.totalorder %s119, %s120
    %p134 = scmp.eq.s32.totalorder %s18, 1
    %p135 = por %p133, %p134
    %p137 = scmp.ne.s32.totalorder %s120, %s136
    %p138 = scmp.eq.s32.totalorder %s18, 0
    %p139 = por %p137, %p138
    %s140 = ssub.s32 %s12, %s19
    %p141 = scmp.eq.s32.totalorder %s140, 0
    %s143 = sadd.s32 %s142, 1
    %s144 = scalar_select %p141, %s142, %s143
    %p147 = pneg %p141
    %p148 = scmp.eq.s32.totalorder %s12, 1
    %p149 = por %p147, %p148
    %p150 = scmp.ne.s32.totalorder %s142, %s145
    %p151 = scmp.eq.s32.totalorder %s12, 0
    %p152 = por %p150, %p151
    %p153 = scmp.ne.s32.totalorder %s142, %s145
    %p154 = scmp.eq.s32.totalorder %s17, 1
    %p155 = por %p153, %p154
    %p156 = scmp.ne.s32.totalorder %s145, %s146
    %p157 = scmp.eq.s32.totalorder %s17, 0
    %p158 = por %p156, %p157
    %p159 = scmp.ne.s32.totalorder %s145, %s146
    %p160 = scmp.eq.s32.totalorder %s18, 1
    %p161 = por %p159, %p160
    %p163 = scmp.ne.s32.totalorder %s146, %s162
    %p164 = scmp.eq.s32.totalorder %s18, 0
    %p165 = por %p163, %p164
    %p166 = scmp.le.s32.totalorder 1, %s12
    %p167 = scmp.lt.s32.totalorder %s12, 3
    %p168 = pnand %p166, %p167
    %p169 = pneg %p168
    // Predicated region
    $region9: #{up_forward.5} parent=5 // pred_check
      _
    $region10: #{up_forward.5} parent=5 // pred_check_branch
      %171 = sbr.rel (%p168) target = $region12
    $region11: #{up_forward.5} parent=5 // pred_region
      %s172 = ssub.s32 %s12, 1
      // Predicated region
      $region13: #{up_forward.5} parent=11 // pred_check
        %p173 = pneg %p85
      $region14: #{up_forward.5} parent=11 // pred_check_branch
        %175 = sbr.rel (%p173) target = $region16
      $region15: #{up_forward.5} parent=11 // pred_region
        _
      $region16: #{up_forward.5} parent=11 // pred_fallthru
        _
      // Predicated region
      $region17: #{up_forward.5} parent=11 // pred_check
        %p176 = pneg %p106
      $region18: #{up_forward.5} parent=11 // pred_check_branch
        %178 = sbr.rel (%p176) target = $region20
      $region19: #{up_forward.5} parent=11 // pred_region
        _
      $region20: #{up_forward.5} parent=11 // pred_fallthru
        _
    $region12: #{up_forward.5} parent=5 // pred_fallthru
      _
    %p179 = scmp.lt.s32.totalorder %s12, 2
    // Predicated region
    $region21: #{up_forward.5} parent=5 // pred_check
      %p180 = pneg %p179
    $region22: #{up_forward.5} parent=5 // pred_check_branch
      %182 = sbr.rel (%p180) target = $region24
    $region23: #{up_forward.5} parent=5 // pred_region
      // Predicated region
      $region25: #{up_forward.5} parent=23 // pred_check
        %p183 = pneg %p32
      $region26: #{up_forward.5} parent=23 // pred_check_branch
        %185 = sbr.rel (%p183) target = $region28
      $region27: #{up_forward.5} parent=23 // pred_region
        %p186 = scmp.lt.s32.totalorder %s12, 1
        %s187 = scalar_select %p186, %s12, 1
        %s188 = smul.addr %s187, 32
        %s189 = smul.addr %s188, 8
        %s190 = scalar_lea.vmem %s0, %s189
      $region28: #{up_forward.5} parent=23 // pred_fallthru
        _
      // Predicated region
      $region29: #{up_forward.5} parent=23 // pred_check
        %p191 = pneg %p58
      $region30: #{up_forward.5} parent=23 // pred_check_branch
        %193 = sbr.rel (%p191) target = $region32
      $region31: #{up_forward.5} parent=23 // pred_region
        %p194 = scmp.lt.s32.totalorder %s12, 1
        %s195 = scalar_select %p194, %s12, 1
        %s196 = smul.addr %s195, 32
        %s197 = smul.addr %s196, 8
        %s198 = scalar_lea.vmem %s1, %s197
      $region32: #{up_forward.5} parent=23 // pred_fallthru
        _
    $region24: #{up_forward.5} parent=5 // pred_fallthru
      _
    %p199 = scmp.le.s32.totalorder 1, %s12
    %p200 = scmp.lt.s32.totalorder %s12, 3
    %p201 = pnand %p199, %p200
    %p202 = pneg %p201
    // Predicated region
    $region33: #{up_forward.5} parent=5 // pred_check
      _
    $region34: #{up_forward.5} parent=5 // pred_check_branch
      %204 = sbr.rel (%p201) target = $region36
    $region35: #{up_forward.5} parent=5 // pred_region
      %s205 = ssub.s32 %s12, 1
      %p206 = scmp.lt.s32.totalorder %s17, 1
      %s207 = scalar_select %p206, %s17, 1
      %s208 = smul.addr %s207, 32
      %s209 = smul.addr %s208, 8
      %s210 = scalar_lea.vmem %s0, %s209
      %p211 = pneg %p38
      %p212 = pneg %p35
      %p213 = scmp.lt.s32.totalorder %s17, 1
      %s214 = scalar_select %p213, %s17, 1
      %s215 = smul.addr %s214, 32
      %s216 = smul.addr %s215, 8
      %s217 = scalar_lea.vmem %s1, %s216
      %p218 = pneg %p64
      %p219 = pneg %p61
      %p220 = pneg %p85
      %p221 = pneg %p82
      %p222 = pneg %p106
      %p223 = pneg %p103
      %p224 = pneg %p132
      %p225 = pneg %p129
      %p226 = scmp.lt.s32.totalorder %s17, 1
      %s227 = scalar_select %p226, %s17, 1
      %s228 = smul.addr %s227, 32
      %s229 = smul.addr %s228, 8
      %s230 = scalar_lea.vmem %s4, %s229
      %p231 = pneg %p158
      %p232 = pneg %p155
      %p233 = scmp.lt.s32.totalorder %s17, 1
      %s234 = scalar_select %p233, %s17, 1
      %s235 = smul.addr %s234, 2
      %s236 = scalar_lea.vmem %s5, %s235
      %p237 = scmp.lt.s32.totalorder %s17, 1
      %s238 = scalar_select %p237, %s17, 1
      %s239 = smul.addr %s238, 32
      %s240 = smul.addr %s239, 8
      %s241 = scalar_lea.vmem %s0, %s240
      %p242 = scmp.lt.s32.totalorder %s17, 1
      %s243 = scalar_select %p242, %s17, 1
      %s244 = smul.addr %s243, 32
      %s245 = smul.addr %s244, 8
      %s246 = scalar_lea.vmem %s1, %s245
      %p247 = scmp.lt.s32.totalorder %s17, 1
      %s248 = scalar_select %p247, %s17, 1
      %s249 = smul.addr %s248, 32
      %s250 = smul.addr %s249, 8
      %s251 = scalar_lea.vmem %s4, %s250
      %p252 = scmp.lt.s32.totalorder %s17, 1
      %s253 = scalar_select %p252, %s17, 1
      %s254 = smul.addr %s253, 2
      %s255 = scalar_lea.vmem %s5, %s254
      %v257 = vld [vmem:[%s241] sm:$0xff]
      %v258 = vld [vmem:[%s241 + $0x8] sm:$0xff]
      %v259 = vld [vmem:[%s241 + $0x10] sm:$0xff]
      %v260 = vld [vmem:[%s241 + $0x18] sm:$0xff]
      %v261 = vld [vmem:[%s241 + $0x20] sm:$0xff]
      %v262 = vld [vmem:[%s241 + $0x28] sm:$0xff]
      %v263 = vld [vmem:[%s241 + $0x30] sm:$0xff]
      %v264 = vld [vmem:[%s241 + $0x38] sm:$0xff]
      %v265 = vld [vmem:[%s241 + $0x40] sm:$0xff]
      %v266 = vld [vmem:[%s241 + $0x48] sm:$0xff]
      %v267 = vld [vmem:[%s241 + $0x50] sm:$0xff]
      %v268 = vld [vmem:[%s241 + $0x58] sm:$0xff]
      %v269 = vld [vmem:[%s241 + $0x60] sm:$0xff]
      %v270 = vld [vmem:[%s241 + $0x68] sm:$0xff]
      %v271 = vld [vmem:[%s241 + $0x70] sm:$0xff]
      %v272 = vld [vmem:[%s241 + $0x78] sm:$0xff]
      %v273 = vld [vmem:[%s241 + $0x80] sm:$0xff]
      %v274 = vld [vmem:[%s241 + $0x88] sm:$0xff]
      %v275 = vld [vmem:[%s241 + $0x90] sm:$0xff]
      %v276 = vld [vmem:[%s241 + $0x98] sm:$0xff]
      %v277 = vld [vmem:[%s241 + $0xa0] sm:$0xff]
      %v278 = vld [vmem:[%s241 + $0xa8] sm:$0xff]
      %v279 = vld [vmem:[%s241 + $0xb0] sm:$0xff]
      %v280 = vld [vmem:[%s241 + $0xb8] sm:$0xff]
      %v281 = vld [vmem:[%s241 + $0xc0] sm:$0xff]
      %v282 = vld [vmem:[%s241 + $0xc8] sm:$0xff]
      %v283 = vld [vmem:[%s241 + $0xd0] sm:$0xff]
      %v284 = vld [vmem:[%s241 + $0xd8] sm:$0xff]
      %v285 = vld [vmem:[%s241 + $0xe0] sm:$0xff]
      %v286 = vld [vmem:[%s241 + $0xe8] sm:$0xff]
      %v287 = vld [vmem:[%s241 + $0xf0] sm:$0xff]
      %v288 = vld [vmem:[%s241 + $0xf8] sm:$0xff]
      %vm289 = vcmask 31744
      %290 = vst.msk [vmem:[#allocation2] sm:$0xff] %vm289, 0.0
      %291 = vst.msk [vmem:[#allocation2 + $0x8] sm:$0xff] %vm289, 0.0
      %vm292 = vcmask 25600
      %293 = vst.msk [vmem:[#allocation2 + $0x10] sm:$0x3] %vm292, 0.0
      %s294 = scalar_lea.vmem [#allocation2], 408
      %295 = vst.msk [vmem:[%s294] sm:$0xff] %vm289, 0.0
      %296 = vst.msk [vmem:[%s294 + $0x8] sm:$0xff] %vm289, 0.0
      %297 = vst.msk [vmem:[%s294 + $0x10] sm:$0x3] %vm292, 0.0
      %vm298 = vcmask 24576
      %299 = vst.msk [vmem:[#allocation2] sm:$0x1] %vm298, 0.0
      %300 = vst.msk [vmem:[#allocation2 + $0x18] sm:$0x1] %vm298, 0.0
      %301 = vst.msk [vmem:[#allocation2 + $0x30] sm:$0x1] %vm298, 0.0
      %302 = vst.msk [vmem:[#allocation2 + $0x48] sm:$0x1] %vm298, 0.0
      %303 = vst.msk [vmem:[#allocation2 + $0x60] sm:$0x1] %vm298, 0.0
      %304 = vst.msk [vmem:[#allocation2 + $0x78] sm:$0x1] %vm298, 0.0
      %305 = vst.msk [vmem:[#allocation2 + $0x90] sm:$0x1] %vm298, 0.0
      %306 = vst.msk [vmem:[#allocation2 + $0xa8] sm:$0x1] %vm298, 0.0
      %307 = vst.msk [vmem:[#allocation2 + $0xc0] sm:$0x1] %vm298, 0.0
      %308 = vst.msk [vmem:[#allocation2 + $0xd8] sm:$0x1] %vm298, 0.0
      %309 = vst.msk [vmem:[#allocation2 + $0xf0] sm:$0x1] %vm298, 0.0
      %310 = vst.msk [vmem:[#allocation2 + $0x108] sm:$0x1] %vm298, 0.0
      %311 = vst.msk [vmem:[#allocation2 + $0x120] sm:$0x1] %vm298, 0.0
      %312 = vst.msk [vmem:[#allocation2 + $0x138] sm:$0x1] %vm298, 0.0
      %313 = vst.msk [vmem:[#allocation2 + $0x150] sm:$0x1] %vm298, 0.0
      %314 = vst.msk [vmem:[#allocation2 + $0x168] sm:$0x1] %vm298, 0.0
      %315 = vst.msk [vmem:[#allocation2 + $0x180] sm:$0x1] %vm298, 0.0
      %316 = vst.msk [vmem:[#allocation2 + $0x198] sm:$0x1] %vm298, 0.0
      %317 = vst.msk [vmem:[#allocation2 + $0x11] sm:$0x1] %vm298, 0.0
      %318 = vst.msk [vmem:[#allocation2 + $0x29] sm:$0x1] %vm298, 0.0
      %319 = vst.msk [vmem:[#allocation2 + $0x41] sm:$0x1] %vm298, 0.0
      %320 = vst.msk [vmem:[#allocation2 + $0x59] sm:$0x1] %vm298, 0.0
      %321 = vst.msk [vmem:[#allocation2 + $0x71] sm:$0x1] %vm298, 0.0
      %322 = vst.msk [vmem:[#allocation2 + $0x89] sm:$0x1] %vm298, 0.0
      %323 = vst.msk [vmem:[#allocation2 + $0xa1] sm:$0x1] %vm298, 0.0
      %324 = vst.msk [vmem:[#allocation2 + $0xb9] sm:$0x1] %vm298, 0.0
      %325 = vst.msk [vmem:[#allocation2 + $0xd1] sm:$0x1] %vm298, 0.0
      %326 = vst.msk [vmem:[#allocation2 + $0xe9] sm:$0x1] %vm298, 0.0
      %327 = vst.msk [vmem:[#allocation2 + $0x101] sm:$0x1] %vm298, 0.0
      %328 = vst.msk [vmem:[#allocation2 + $0x119] sm:$0x1] %vm298, 0.0
      %329 = vst.msk [vmem:[#allocation2 + $0x131] sm:$0x1] %vm298, 0.0
      %330 = vst.msk [vmem:[#allocation2 + $0x149] sm:$0x1] %vm298, 0.0
      %331 = vst.msk [vmem:[#allocation2 + $0x161] sm:$0x1] %vm298, 0.0
      %332 = vst.msk [vmem:[#allocation2 + $0x179] sm:$0x1] %vm298, 0.0
      %333 = vst.msk [vmem:[#allocation2 + $0x191] sm:$0x1] %vm298, 0.0
      %334 = vst.msk [vmem:[#allocation2 + $0x1a9] sm:$0x1] %vm298, 0.0
      %s335 = scalar_lea.vmem [#allocation2], 24
      %336 = vst.msk [vmem:[%s335 + $0x1] sm:$0xff] %vm289, %v257
      %337 = vst.msk [vmem:[%s335 + $0x9] sm:$0xff] %vm289, %v258
      %338 = vst.msk [vmem:[%s335 + $0x19] sm:$0xff] %vm289, %v259
      %339 = vst.msk [vmem:[%s335 + $0x21] sm:$0xff] %vm289, %v260
      %340 = vst.msk [vmem:[%s335 + $0x31] sm:$0xff] %vm289, %v261
      %341 = vst.msk [vmem:[%s335 + $0x39] sm:$0xff] %vm289, %v262
      %342 = vst.msk [vmem:[%s335 + $0x49] sm:$0xff] %vm289, %v263
      %343 = vst.msk [vmem:[%s335 + $0x51] sm:$0xff] %vm289, %v264
      %344 = vst.msk [vmem:[%s335 + $0x61] sm:$0xff] %vm289, %v265
      %345 = vst.msk [vmem:[%s335 + $0x69] sm:$0xff] %vm289, %v266
      %346 = vst.msk [vmem:[%s335 + $0x79] sm:$0xff] %vm289, %v267
      %347 = vst.msk [vmem:[%s335 + $0x81] sm:$0xff] %vm289, %v268
      %348 = vst.msk [vmem:[%s335 + $0x91] sm:$0xff] %vm289, %v269
      %349 = vst.msk [vmem:[%s335 + $0x99] sm:$0xff] %vm289, %v270
      %350 = vst.msk [vmem:[%s335 + $0xa9] sm:$0xff] %vm289, %v271
      %351 = vst.msk [vmem:[%s335 + $0xb1] sm:$0xff] %vm289, %v272
      %352 = vst.msk [vmem:[%s335 + $0xc1] sm:$0xff] %vm289, %v273
      %353 = vst.msk [vmem:[%s335 + $0xc9] sm:$0xff] %vm289, %v274
      %354 = vst.msk [vmem:[%s335 + $0xd9] sm:$0xff] %vm289, %v275
      %355 = vst.msk [vmem:[%s335 + $0xe1] sm:$0xff] %vm289, %v276
      %356 = vst.msk [vmem:[%s335 + $0xf1] sm:$0xff] %vm289, %v277
      %357 = vst.msk [vmem:[%s335 + $0xf9] sm:$0xff] %vm289, %v278
      %358 = vst.msk [vmem:[%s335 + $0x109] sm:$0xff] %vm289, %v279
      %359 = vst.msk [vmem:[%s335 + $0x111] sm:$0xff] %vm289, %v280
      %360 = vst.msk [vmem:[%s335 + $0x121] sm:$0xff] %vm289, %v281
      %361 = vst.msk [vmem:[%s335 + $0x129] sm:$0xff] %vm289, %v282
      %362 = vst.msk [vmem:[%s335 + $0x139] sm:$0xff] %vm289, %v283
      %363 = vst.msk [vmem:[%s335 + $0x141] sm:$0xff] %vm289, %v284
      %364 = vst.msk [vmem:[%s335 + $0x151] sm:$0xff] %vm289, %v285
      %365 = vst.msk [vmem:[%s335 + $0x159] sm:$0xff] %vm289, %v286
      %366 = vst.msk [vmem:[%s335 + $0x169] sm:$0xff] %vm289, %v287
      %367 = vst.msk [vmem:[%s335 + $0x171] sm:$0xff] %vm289, %v288
      %v368 = vld [vmem:[#allocation2] sm:$0xff]
      %v369 = vld [vmem:[#allocation2 + $0x8] sm:$0xff]
      %v370 = vld [vmem:[#allocation2 + $0x18] sm:$0xff]
      %v371 = vld [vmem:[#allocation2 + $0x20] sm:$0xff]
      %v372 = vld [vmem:[#allocation2 + $0x30] sm:$0xff]
      %v373 = vld [vmem:[#allocation2 + $0x38] sm:$0xff]
      %v374 = vld [vmem:[#allocation2 + $0x48] sm:$0xff]
      %v375 = vld [vmem:[#allocation2 + $0x50] sm:$0xff]
      %v376 = vld [vmem:[#allocation2 + $0x60] sm:$0xff]
      %v377 = vld [vmem:[#allocation2 + $0x68] sm:$0xff]
      %v378 = vld [vmem:[#allocation2 + $0x78] sm:$0xff]
      %v379 = vld [vmem:[#allocation2 + $0x80] sm:$0xff]
      %v380 = vld [vmem:[#allocation2 + $0x90] sm:$0xff]
      %v381 = vld [vmem:[#allocation2 + $0x98] sm:$0xff]
      %v382 = vld [vmem:[#allocation2 + $0xa8] sm:$0xff]
      %v383 = vld [vmem:[#allocation2 + $0xb0] sm:$0xff]
      %v384 = vld [vmem:[#allocation2 + $0xc0] sm:$0xff]
      %v385 = vld [vmem:[#allocation2 + $0xc8] sm:$0xff]
      %v386 = vld [vmem:[#allocation2 + $0xd8] sm:$0xff]
      %v387 = vld [vmem:[#allocation2 + $0xe0] sm:$0xff]
      %v388 = vld [vmem:[#allocation2 + $0xf0] sm:$0xff]
      %v389 = vld [vmem:[#allocation2 + $0xf8] sm:$0xff]
      %v390 = vld [vmem:[#allocation2 + $0x108] sm:$0xff]
      %v391 = vld [vmem:[#allocation2 + $0x110] sm:$0xff]
      %v392 = vld [vmem:[#allocation2 + $0x120] sm:$0xff]
      %v393 = vld [vmem:[#allocation2 + $0x128] sm:$0xff]
      %v394 = vld [vmem:[#allocation2 + $0x138] sm:$0xff]
      %v395 = vld [vmem:[#allocation2 + $0x140] sm:$0xff]
      %v396 = vld [vmem:[#allocation2 + $0x150] sm:$0xff]
      %v397 = vld [vmem:[#allocation2 + $0x158] sm:$0xff]
      %v398 = vld [vmem:[#allocation2 + $0x168] sm:$0xff]
      %v399 = vld [vmem:[#allocation2 + $0x170] sm:$0xff]
      %400 = vst.msk [vmem:[#allocation4] sm:$0xff] %vm289, %v368
      %401 = vst.msk [vmem:[#allocation4 + $0x8] sm:$0xff] %vm289, %v369
      %402 = vst.msk [vmem:[#allocation4 + $0x10] sm:$0xff] %vm289, %v370
      %403 = vst.msk [vmem:[#allocation4 + $0x18] sm:$0xff] %vm289, %v371
      %404 = vst.msk [vmem:[#allocation4 + $0x20] sm:$0xff] %vm289, %v372
      %405 = vst.msk [vmem:[#allocation4 + $0x28] sm:$0xff] %vm289, %v373
      %406 = vst.msk [vmem:[#allocation4 + $0x30] sm:$0xff] %vm289, %v374
      %407 = vst.msk [vmem:[#allocation4 + $0x38] sm:$0xff] %vm289, %v375
      %408 = vst.msk [vmem:[#allocation4 + $0x40] sm:$0xff] %vm289, %v376
      %409 = vst.msk [vmem:[#allocation4 + $0x48] sm:$0xff] %vm289, %v377
      %410 = vst.msk [vmem:[#allocation4 + $0x50] sm:$0xff] %vm289, %v378
      %411 = vst.msk [vmem:[#allocation4 + $0x58] sm:$0xff] %vm289, %v379
      %412 = vst.msk [vmem:[#allocation4 + $0x60] sm:$0xff] %vm289, %v380
      %413 = vst.msk [vmem:[#allocation4 + $0x68] sm:$0xff] %vm289, %v381
      %414 = vst.msk [vmem:[#allocation4 + $0x70] sm:$0xff] %vm289, %v382
      %415 = vst.msk [vmem:[#allocation4 + $0x78] sm:$0xff] %vm289, %v383
      %416 = vst.msk [vmem:[#allocation4 + $0x80] sm:$0xff] %vm289, %v384
      %417 = vst.msk [vmem:[#allocation4 + $0x88] sm:$0xff] %vm289, %v385
      %418 = vst.msk [vmem:[#allocation4 + $0x90] sm:$0xff] %vm289, %v386
      %419 = vst.msk [vmem:[#allocation4 + $0x98] sm:$0xff] %vm289, %v387
      %420 = vst.msk [vmem:[#allocation4 + $0xa0] sm:$0xff] %vm289, %v388
      %421 = vst.msk [vmem:[#allocation4 + $0xa8] sm:$0xff] %vm289, %v389
      %422 = vst.msk [vmem:[#allocation4 + $0xb0] sm:$0xff] %vm289, %v390
      %423 = vst.msk [vmem:[#allocation4 + $0xb8] sm:$0xff] %vm289, %v391
      %424 = vst.msk [vmem:[#allocation4 + $0xc0] sm:$0xff] %vm289, %v392
      %425 = vst.msk [vmem:[#allocation4 + $0xc8] sm:$0xff] %vm289, %v393
      %426 = vst.msk [vmem:[#allocation4 + $0xd0] sm:$0xff] %vm289, %v394
      %427 = vst.msk [vmem:[#allocation4 + $0xd8] sm:$0xff] %vm289, %v395
      %428 = vst.msk [vmem:[#allocation4 + $0xe0] sm:$0xff] %vm289, %v396
      %429 = vst.msk [vmem:[#allocation4 + $0xe8] sm:$0xff] %vm289, %v397
      %430 = vst.msk [vmem:[#allocation4 + $0xf0] sm:$0xff] %vm289, %v398
      %431 = vst.msk [vmem:[#allocation4 + $0xf8] sm:$0xff] %vm289, %v399
      %v432 = vld [vmem:[#allocation2 + $0x1] sm:$0xff]
      %v433 = vld [vmem:[#allocation2 + $0x9] sm:$0xff]
      %v434 = vld [vmem:[#allocation2 + $0x19] sm:$0xff]
      %v435 = vld [vmem:[#allocation2 + $0x21] sm:$0xff]
      %v436 = vld [vmem:[#allocation2 + $0x31] sm:$0xff]
      %v437 = vld [vmem:[#allocation2 + $0x39] sm:$0xff]
      %v438 = vld [vmem:[#allocation2 + $0x49] sm:$0xff]
      %v439 = vld [vmem:[#allocation2 + $0x51] sm:$0xff]
      %v440 = vld [vmem:[#allocation2 + $0x61] sm:$0xff]
      %v441 = vld [vmem:[#allocation2 + $0x69] sm:$0xff]
      %v442 = vld [vmem:[#allocation2 + $0x79] sm:$0xff]
      %v443 = vld [vmem:[#allocation2 + $0x81] sm:$0xff]
      %v444 = vld [vmem:[#allocation2 + $0x91] sm:$0xff]
      %v445 = vld [vmem:[#allocation2 + $0x99] sm:$0xff]
      %v446 = vld [vmem:[#allocation2 + $0xa9] sm:$0xff]
      %v447 = vld [vmem:[#allocation2 + $0xb1] sm:$0xff]
      %v448 = vld [vmem:[#allocation2 + $0xc1] sm:$0xff]
      %v449 = vld [vmem:[#allocation2 + $0xc9] sm:$0xff]
      %v450 = vld [vmem:[#allocation2 + $0xd9] sm:$0xff]
      %v451 = vld [vmem:[#allocation2 + $0xe1] sm:$0xff]
      %v452 = vld [vmem:[#allocation2 + $0xf1] sm:$0xff]
      %v453 = vld [vmem:[#allocation2 + $0xf9] sm:$0xff]
      %v454 = vld [vmem:[#allocation2 + $0x109] sm:$0xff]
      %v455 = vld [vmem:[#allocation2 + $0x111] sm:$0xff]
      %v456 = vld [vmem:[#allocation2 + $0x121] sm:$0xff]
      %v457 = vld [vmem:[#allocation2 + $0x129] sm:$0xff]
      %v458 = vld [vmem:[#allocation2 + $0x139] sm:$0xff]
      %v459 = vld [vmem:[#allocation2 + $0x141] sm:$0xff]
      %v460 = vld [vmem:[#allocation2 + $0x151] sm:$0xff]
      %v461 = vld [vmem:[#allocation2 + $0x159] sm:$0xff]
      %v462 = vld [vmem:[#allocation2 + $0x169] sm:$0xff]
      %v463 = vld [vmem:[#allocation2 + $0x171] sm:$0xff]
      %496 = vrot.lane.b32.xlu0 %v432, 8
      %v497 = vpop.permute.xlu0 %496
      %498 = vrot.lane.b32.xlu0 %v433, 8
      %v499 = vpop.permute.xlu0 %498
      %500 = vrot.lane.b32.xlu0 %v434, 8
      %v501 = vpop.permute.xlu0 %500
      %502 = vrot.lane.b32.xlu0 %v435, 8
      %v503 = vpop.permute.xlu0 %502
      %504 = vrot.lane.b32.xlu0 %v436, 8
      %v505 = vpop.permute.xlu0 %504
      %506 = vrot.lane.b32.xlu0 %v437, 8
      %v507 = vpop.permute.xlu0 %506
      %508 = vrot.lane.b32.xlu0 %v438, 8
      %v509 = vpop.permute.xlu0 %508
      %510 = vrot.lane.b32.xlu0 %v439, 8
      %v511 = vpop.permute.xlu0 %510
      %512 = vrot.lane.b32.xlu0 %v440, 8
      %v513 = vpop.permute.xlu0 %512
      %514 = vrot.lane.b32.xlu0 %v441, 8
      %v515 = vpop.permute.xlu0 %514
      %516 = vrot.lane.b32.xlu0 %v442, 8
      %v517 = vpop.permute.xlu0 %516
      %518 = vrot.lane.b32.xlu0 %v443, 8
      %v519 = vpop.permute.xlu0 %518
      %520 = vrot.lane.b32.xlu0 %v444, 8
      %v521 = vpop.permute.xlu0 %520
      %522 = vrot.lane.b32.xlu0 %v445, 8
      %v523 = vpop.permute.xlu0 %522
      %524 = vrot.lane.b32.xlu0 %v446, 8
      %v525 = vpop.permute.xlu0 %524
      %526 = vrot.lane.b32.xlu0 %v447, 8
      %v527 = vpop.permute.xlu0 %526
      %528 = vrot.lane.b32.xlu0 %v448, 8
      %v529 = vpop.permute.xlu0 %528
      %530 = vrot.lane.b32.xlu0 %v449, 8
      %v531 = vpop.permute.xlu0 %530
      %532 = vrot.lane.b32.xlu0 %v450, 8
      %v533 = vpop.permute.xlu0 %532
      %534 = vrot.lane.b32.xlu0 %v451, 8
      %v535 = vpop.permute.xlu0 %534
      %536 = vrot.lane.b32.xlu0 %v452, 8
      %v537 = vpop.permute.xlu0 %536
      %538 = vrot.lane.b32.xlu0 %v453, 8
      %v539 = vpop.permute.xlu0 %538
      %540 = vrot.lane.b32.xlu0 %v454, 8
      %v541 = vpop.permute.xlu0 %540
      %542 = vrot.lane.b32.xlu0 %v455, 8
      %v543 = vpop.permute.xlu0 %542
      %544 = vrot.lane.b32.xlu0 %v456, 8
      %v545 = vpop.permute.xlu0 %544
      %546 = vrot.lane.b32.xlu0 %v457, 8
      %v547 = vpop.permute.xlu0 %546
      %548 = vrot.lane.b32.xlu0 %v458, 8
      %v549 = vpop.permute.xlu0 %548
      %550 = vrot.lane.b32.xlu0 %v459, 8
      %v551 = vpop.permute.xlu0 %550
      %552 = vrot.lane.b32.xlu0 %v460, 8
      %v553 = vpop.permute.xlu0 %552
      %554 = vrot.lane.b32.xlu0 %v461, 8
      %v555 = vpop.permute.xlu0 %554
      %556 = vrot.lane.b32.xlu0 %v462, 8
      %v557 = vpop.permute.xlu0 %556
      %558 = vrot.lane.b32.xlu0 %v463, 8
      %v559 = vpop.permute.xlu0 %558
      %vm592 = vcmask 97344
      %593 = vst.msk [vmem:[#allocation4] sm:$0xff] %vm592, %v497
      %594 = vst.msk [vmem:[#allocation4 + $0x8] sm:$0xff] %vm592, %v499
      %595 = vst.msk [vmem:[#allocation4 + $0x10] sm:$0xff] %vm592, %v501
      %596 = vst.msk [vmem:[#allocation4 + $0x18] sm:$0xff] %vm592, %v503
      %597 = vst.msk [vmem:[#allocation4 + $0x20] sm:$0xff] %vm592, %v505
      %598 = vst.msk [vmem:[#allocation4 + $0x28] sm:$0xff] %vm592, %v507
      %599 = vst.msk [vmem:[#allocation4 + $0x30] sm:$0xff] %vm592, %v509
      %600 = vst.msk [vmem:[#allocation4 + $0x38] sm:$0xff] %vm592, %v511
      %601 = vst.msk [vmem:[#allocation4 + $0x40] sm:$0xff] %vm592, %v513
      %602 = vst.msk [vmem:[#allocation4 + $0x48] sm:$0xff] %vm592, %v515
      %603 = vst.msk [vmem:[#allocation4 + $0x50] sm:$0xff] %vm592, %v517
      %604 = vst.msk [vmem:[#allocation4 + $0x58] sm:$0xff] %vm592, %v519
      %605 = vst.msk [vmem:[#allocation4 + $0x60] sm:$0xff] %vm592, %v521
      %606 = vst.msk [vmem:[#allocation4 + $0x68] sm:$0xff] %vm592, %v523
      %607 = vst.msk [vmem:[#allocation4 + $0x70] sm:$0xff] %vm592, %v525
      %608 = vst.msk [vmem:[#allocation4 + $0x78] sm:$0xff] %vm592, %v527
      %609 = vst.msk [vmem:[#allocation4 + $0x80] sm:$0xff] %vm592, %v529
      %610 = vst.msk [vmem:[#allocation4 + $0x88] sm:$0xff] %vm592, %v531
      %611 = vst.msk [vmem:[#allocation4 + $0x90] sm:$0xff] %vm592, %v533
      %612 = vst.msk [vmem:[#allocation4 + $0x98] sm:$0xff] %vm592, %v535
      %613 = vst.msk [vmem:[#allocation4 + $0xa0] sm:$0xff] %vm592, %v537
      %614 = vst.msk [vmem:[#allocation4 + $0xa8] sm:$0xff] %vm592, %v539
      %615 = vst.msk [vmem:[#allocation4 + $0xb0] sm:$0xff] %vm592, %v541
      %616 = vst.msk [vmem:[#allocation4 + $0xb8] sm:$0xff] %vm592, %v543
      %617 = vst.msk [vmem:[#allocation4 + $0xc0] sm:$0xff] %vm592, %v545
      %618 = vst.msk [vmem:[#allocation4 + $0xc8] sm:$0xff] %vm592, %v547
      %619 = vst.msk [vmem:[#allocation4 + $0xd0] sm:$0xff] %vm592, %v549
      %620 = vst.msk [vmem:[#allocation4 + $0xd8] sm:$0xff] %vm592, %v551
      %621 = vst.msk [vmem:[#allocation4 + $0xe0] sm:$0xff] %vm592, %v553
      %622 = vst.msk [vmem:[#allocation4 + $0xe8] sm:$0xff] %vm592, %v555
      %623 = vst.msk [vmem:[#allocation4 + $0xf0] sm:$0xff] %vm592, %v557
      %624 = vst.msk [vmem:[#allocation4 + $0xf8] sm:$0xff] %vm592, %v559
      %v625 = vld [vmem:[#allocation2 + $0x2] sm:$0xff]
      %v626 = vld [vmem:[#allocation2 + $0xa] sm:$0xff]
      %v627 = vld [vmem:[#allocation2 + $0x1a] sm:$0xff]
      %v628 = vld [vmem:[#allocation2 + $0x22] sm:$0xff]
      %v629 = vld [vmem:[#allocation2 + $0x32] sm:$0xff]
      %v630 = vld [vmem:[#allocation2 + $0x3a] sm:$0xff]
      %v631 = vld [vmem:[#allocation2 + $0x4a] sm:$0xff]
      %v632 = vld [vmem:[#allocation2 + $0x52] sm:$0xff]
      %v633 = vld [vmem:[#allocation2 + $0x62] sm:$0xff]
      %v634 = vld [vmem:[#allocation2 + $0x6a] sm:$0xff]
      %v635 = vld [vmem:[#allocation2 + $0x7a] sm:$0xff]
      %v636 = vld [vmem:[#allocation2 + $0x82] sm:$0xff]
      %v637 = vld [vmem:[#allocation2 + $0x92] sm:$0xff]
      %v638 = vld [vmem:[#allocation2 + $0x9a] sm:$0xff]
      %v639 = vld [vmem:[#allocation2 + $0xaa] sm:$0xff]
      %v640 = vld [vmem:[#allocation2 + $0xb2] sm:$0xff]
      %v641 = vld [vmem:[#allocation2 + $0xc2] sm:$0xff]
      %v642 = vld [vmem:[#allocation2 + $0xca] sm:$0xff]
      %v643 = vld [vmem:[#allocation2 + $0xda] sm:$0xff]
      %v644 = vld [vmem:[#allocation2 + $0xe2] sm:$0xff]
      %v645 = vld [vmem:[#allocation2 + $0xf2] sm:$0xff]
      %v646 = vld [vmem:[#allocation2 + $0xfa] sm:$0xff]
      %v647 = vld [vmem:[#allocation2 + $0x10a] sm:$0xff]
      %v648 = vld [vmem:[#allocation2 + $0x112] sm:$0xff]
      %v649 = vld [vmem:[#allocation2 + $0x122] sm:$0xff]
      %v650 = vld [vmem:[#allocation2 + $0x12a] sm:$0xff]
      %v651 = vld [vmem:[#allocation2 + $0x13a] sm:$0xff]
      %v652 = vld [vmem:[#allocation2 + $0x142] sm:$0xff]
      %v653 = vld [vmem:[#allocation2 + $0x152] sm:$0xff]
      %v654 = vld [vmem:[#allocation2 + $0x15a] sm:$0xff]
      %v655 = vld [vmem:[#allocation2 + $0x16a] sm:$0xff]
      %v656 = vld [vmem:[#allocation2 + $0x172] sm:$0xff]
      %689 = vrot.lane.b32.xlu0 %v625, 16
      %v690 = vpop.permute.xlu0 %689
      %691 = vrot.lane.b32.xlu0 %v626, 16
      %v692 = vpop.permute.xlu0 %691
      %693 = vrot.lane.b32.xlu0 %v627, 16
      %v694 = vpop.permute.xlu0 %693
      %695 = vrot.lane.b32.xlu0 %v628, 16
      %v696 = vpop.permute.xlu0 %695
      %697 = vrot.lane.b32.xlu0 %v629, 16
      %v698 = vpop.permute.xlu0 %697
      %699 = vrot.lane.b32.xlu0 %v630, 16
      %v700 = vpop.permute.xlu0 %699
      %701 = vrot.lane.b32.xlu0 %v631, 16
      %v702 = vpop.permute.xlu0 %701
      %703 = vrot.lane.b32.xlu0 %v632, 16
      %v704 = vpop.permute.xlu0 %703
      %705 = vrot.lane.b32.xlu0 %v633, 16
      %v706 = vpop.permute.xlu0 %705
      %707 = vrot.lane.b32.xlu0 %v634, 16
      %v708 = vpop.permute.xlu0 %707
      %709 = vrot.lane.b32.xlu0 %v635, 16
      %v710 = vpop.permute.xlu0 %709
      %711 = vrot.lane.b32.xlu0 %v636, 16
      %v712 = vpop.permute.xlu0 %711
      %713 = vrot.lane.b32.xlu0 %v637, 16
      %v714 = vpop.permute.xlu0 %713
      %715 = vrot.lane.b32.xlu0 %v638, 16
      %v716 = vpop.permute.xlu0 %715
      %717 = vrot.lane.b32.xlu0 %v639, 16
      %v718 = vpop.permute.xlu0 %717
      %719 = vrot.lane.b32.xlu0 %v640, 16
      %v720 = vpop.permute.xlu0 %719
      %721 = vrot.lane.b32.xlu0 %v641, 16
      %v722 = vpop.permute.xlu0 %721
      %723 = vrot.lane.b32.xlu0 %v642, 16
      %v724 = vpop.permute.xlu0 %723
      %725 = vrot.lane.b32.xlu0 %v643, 16
      %v726 = vpop.permute.xlu0 %725
      %727 = vrot.lane.b32.xlu0 %v644, 16
      %v728 = vpop.permute.xlu0 %727
      %729 = vrot.lane.b32.xlu0 %v645, 16
      %v730 = vpop.permute.xlu0 %729
      %731 = vrot.lane.b32.xlu0 %v646, 16
      %v732 = vpop.permute.xlu0 %731
      %733 = vrot.lane.b32.xlu0 %v647, 16
      %v734 = vpop.permute.xlu0 %733
      %735 = vrot.lane.b32.xlu0 %v648, 16
      %v736 = vpop.permute.xlu0 %735
      %737 = vrot.lane.b32.xlu0 %v649, 16
      %v738 = vpop.permute.xlu0 %737
      %739 = vrot.lane.b32.xlu0 %v650, 16
      %v740 = vpop.permute.xlu0 %739
      %741 = vrot.lane.b32.xlu0 %v651, 16
      %v742 = vpop.permute.xlu0 %741
      %743 = vrot.lane.b32.xlu0 %v652, 16
      %v744 = vpop.permute.xlu0 %743
      %745 = vrot.lane.b32.xlu0 %v653, 16
      %v746 = vpop.permute.xlu0 %745
      %747 = vrot.lane.b32.xlu0 %v654, 16
      %v748 = vpop.permute.xlu0 %747
      %749 = vrot.lane.b32.xlu0 %v655, 16
      %v750 = vpop.permute.xlu0 %749
      %751 = vrot.lane.b32.xlu0 %v656, 16
      %v752 = vpop.permute.xlu0 %751
      %vm785 = vcmask 162944
      %786 = vst.msk [vmem:[#allocation4] sm:$0xff] %vm785, %v690
      %787 = vst.msk [vmem:[#allocation4 + $0x8] sm:$0xff] %vm785, %v692
      %788 = vst.msk [vmem:[#allocation4 + $0x10] sm:$0xff] %vm785, %v694
      %789 = vst.msk [vmem:[#allocation4 + $0x18] sm:$0xff] %vm785, %v696
      %790 = vst.msk [vmem:[#allocation4 + $0x20] sm:$0xff] %vm785, %v698
      %791 = vst.msk [vmem:[#allocation4 + $0x28] sm:$0xff] %vm785, %v700
      %792 = vst.msk [vmem:[#allocation4 + $0x30] sm:$0xff] %vm785, %v702
      %793 = vst.msk [vmem:[#allocation4 + $0x38] sm:$0xff] %vm785, %v704
      %794 = vst.msk [vmem:[#allocation4 + $0x40] sm:$0xff] %vm785, %v706
      %795 = vst.msk [vmem:[#allocation4 + $0x48] sm:$0xff] %vm785, %v708
      %796 = vst.msk [vmem:[#allocation4 + $0x50] sm:$0xff] %vm785, %v710
      %797 = vst.msk [vmem:[#allocation4 + $0x58] sm:$0xff] %vm785, %v712
      %798 = vst.msk [vmem:[#allocation4 + $0x60] sm:$0xff] %vm785, %v714
      %799 = vst.msk [vmem:[#allocation4 + $0x68] sm:$0xff] %vm785, %v716
      %800 = vst.msk [vmem:[#allocation4 + $0x70] sm:$0xff] %vm785, %v718
      %801 = vst.msk [vmem:[#allocation4 + $0x78] sm:$0xff] %vm785, %v720
      %802 = vst.msk [vmem:[#allocation4 + $0x80] sm:$0xff] %vm785, %v722
      %803 = vst.msk [vmem:[#allocation4 + $0x88] sm:$0xff] %vm785, %v724
      %804 = vst.msk [vmem:[#allocation4 + $0x90] sm:$0xff] %vm785, %v726
      %805 = vst.msk [vmem:[#allocation4 + $0x98] sm:$0xff] %vm785, %v728
      %806 = vst.msk [vmem:[#allocation4 + $0xa0] sm:$0xff] %vm785, %v730
      %807 = vst.msk [vmem:[#allocation4 + $0xa8] sm:$0xff] %vm785, %v732
      %808 = vst.msk [vmem:[#allocation4 + $0xb0] sm:$0xff] %vm785, %v734
      %809 = vst.msk [vmem:[#allocation4 + $0xb8] sm:$0xff] %vm785, %v736
      %810 = vst.msk [vmem:[#allocation4 + $0xc0] sm:$0xff] %vm785, %v738
      %811 = vst.msk [vmem:[#allocation4 + $0xc8] sm:$0xff] %vm785, %v740
      %812 = vst.msk [vmem:[#allocation4 + $0xd0] sm:$0xff] %vm785, %v742
      %813 = vst.msk [vmem:[#allocation4 + $0xd8] sm:$0xff] %vm785, %v744
      %814 = vst.msk [vmem:[#allocation4 + $0xe0] sm:$0xff] %vm785, %v746
      %815 = vst.msk [vmem:[#allocation4 + $0xe8] sm:$0xff] %vm785, %v748
      %816 = vst.msk [vmem:[#allocation4 + $0xf0] sm:$0xff] %vm785, %v750
      %817 = vst.msk [vmem:[#allocation4 + $0xf8] sm:$0xff] %vm785, %v752
      %v818 = vld [vmem:[%s335] sm:$0xff]
      %v819 = vld [vmem:[%s335 + $0x8] sm:$0xff]
      %v820 = vld [vmem:[%s335 + $0x18] sm:$0xff]
      %v821 = vld [vmem:[%s335 + $0x20] sm:$0xff]
      %v822 = vld [vmem:[%s335 + $0x30] sm:$0xff]
      %v823 = vld [vmem:[%s335 + $0x38] sm:$0xff]
      %v824 = vld [vmem:[%s335 + $0x48] sm:$0xff]
      %v825 = vld [vmem:[%s335 + $0x50] sm:$0xff]
      %v826 = vld [vmem:[%s335 + $0x60] sm:$0xff]
      %v827 = vld [vmem:[%s335 + $0x68] sm:$0xff]
      %v828 = vld [vmem:[%s335 + $0x78] sm:$0xff]
      %v829 = vld [vmem:[%s335 + $0x80] sm:$0xff]
      %v830 = vld [vmem:[%s335 + $0x90] sm:$0xff]
      %v831 = vld [vmem:[%s335 + $0x98] sm:$0xff]
      %v832 = vld [vmem:[%s335 + $0xa8] sm:$0xff]
      %v833 = vld [vmem:[%s335 + $0xb0] sm:$0xff]
      %v834 = vld [vmem:[%s335 + $0xc0] sm:$0xff]
      %v835 = vld [vmem:[%s335 + $0xc8] sm:$0xff]
      %v836 = vld [vmem:[%s335 + $0xd8] sm:$0xff]
      %v837 = vld [vmem:[%s335 + $0xe0] sm:$0xff]
      %v838 = vld [vmem:[%s335 + $0xf0] sm:$0xff]
      %v839 = vld [vmem:[%s335 + $0xf8] sm:$0xff]
      %v840 = vld [vmem:[%s335 + $0x108] sm:$0xff]
      %v841 = vld [vmem:[%s335 + $0x110] sm:$0xff]
      %v842 = vld [vmem:[%s335 + $0x120] sm:$0xff]
      %v843 = vld [vmem:[%s335 + $0x128] sm:$0xff]
      %v844 = vld [vmem:[%s335 + $0x138] sm:$0xff]
      %v845 = vld [vmem:[%s335 + $0x140] sm:$0xff]
      %v846 = vld [vmem:[%s335 + $0x150] sm:$0xff]
      %v847 = vld [vmem:[%s335 + $0x158] sm:$0xff]
      %v848 = vld [vmem:[%s335 + $0x168] sm:$0xff]
      %v849 = vld [vmem:[%s335 + $0x170] sm:$0xff]
      %882 = vrot.lane.b32.xlu0 %v818, 24
      %v883 = vpop.permute.xlu0 %882
      %884 = vrot.lane.b32.xlu0 %v819, 24
      %v885 = vpop.permute.xlu0 %884
      %886 = vrot.lane.b32.xlu0 %v820, 24
      %v887 = vpop.permute.xlu0 %886
      %888 = vrot.lane.b32.xlu0 %v821, 24
      %v889 = vpop.permute.xlu0 %888
      %890 = vrot.lane.b32.xlu0 %v822, 24
      %v891 = vpop.permute.xlu0 %890
      %892 = vrot.lane.b32.xlu0 %v823, 24
      %v893 = vpop.permute.xlu0 %892
      %894 = vrot.lane.b32.xlu0 %v824, 24
      %v895 = vpop.permute.xlu0 %894
      %896 = vrot.lane.b32.xlu0 %v825, 24
      %v897 = vpop.permute.xlu0 %896
      %898 = vrot.lane.b32.xlu0 %v826, 24
      %v899 = vpop.permute.xlu0 %898
      %900 = vrot.lane.b32.xlu0 %v827, 24
      %v901 = vpop.permute.xlu0 %900
      %902 = vrot.lane.b32.xlu0 %v828, 24
      %v903 = vpop.permute.xlu0 %902
      %904 = vrot.lane.b32.xlu0 %v829, 24
      %v905 = vpop.permute.xlu0 %904
      %906 = vrot.lane.b32.xlu0 %v830, 24
      %v907 = vpop.permute.xlu0 %906
      %908 = vrot.lane.b32.xlu0 %v831, 24
      %v909 = vpop.permute.xlu0 %908
      %910 = vrot.lane.b32.xlu0 %v832, 24
      %v911 = vpop.permute.xlu0 %910
      %912 = vrot.lane.b32.xlu0 %v833, 24
      %v913 = vpop.permute.xlu0 %912
      %914 = vrot.lane.b32.xlu0 %v834, 24
      %v915 = vpop.permute.xlu0 %914
      %916 = vrot.lane.b32.xlu0 %v835, 24
      %v917 = vpop.permute.xlu0 %916
      %918 = vrot.lane.b32.xlu0 %v836, 24
      %v919 = vpop.permute.xlu0 %918
      %920 = vrot.lane.b32.xlu0 %v837, 24
      %v921 = vpop.permute.xlu0 %920
      %922 = vrot.lane.b32.xlu0 %v838, 24
      %v923 = vpop.permute.xlu0 %922
      %924 = vrot.lane.b32.xlu0 %v839, 24
      %v925 = vpop.permute.xlu0 %924
      %926 = vrot.lane.b32.xlu0 %v840, 24
      %v927 = vpop.permute.xlu0 %926
      %928 = vrot.lane.b32.xlu0 %v841, 24
      %v929 = vpop.permute.xlu0 %928
      %930 = vrot.lane.b32.xlu0 %v842, 24
      %v931 = vpop.permute.xlu0 %930
      %932 = vrot.lane.b32.xlu0 %v843, 24
      %v933 = vpop.permute.xlu0 %932
      %934 = vrot.lane.b32.xlu0 %v844, 24
      %v935 = vpop.permute.xlu0 %934
      %936 = vrot.lane.b32.xlu0 %v845, 24
      %v937 = vpop.permute.xlu0 %936
      %938 = vrot.lane.b32.xlu0 %v846, 24
      %v939 = vpop.permute.xlu0 %938
      %940 = vrot.lane.b32.xlu0 %v847, 24
      %v941 = vpop.permute.xlu0 %940
      %942 = vrot.lane.b32.xlu0 %v848, 24
      %v943 = vpop.permute.xlu0 %942
      %944 = vrot.lane.b32.xlu0 %v849, 24
      %v945 = vpop.permute.xlu0 %944
      %vm978 = vcmask 228544
      %979 = vst.msk [vmem:[#allocation4] sm:$0xff] %vm978, %v883
      %980 = vst.msk [vmem:[#allocation4 + $0x8] sm:$0xff] %vm978, %v885
      %981 = vst.msk [vmem:[#allocation4 + $0x10] sm:$0xff] %vm978, %v887
      %982 = vst.msk [vmem:[#allocation4 + $0x18] sm:$0xff] %vm978, %v889
      %983 = vst.msk [vmem:[#allocation4 + $0x20] sm:$0xff] %vm978, %v891
      %984 = vst.msk [vmem:[#allocation4 + $0x28] sm:$0xff] %vm978, %v893
      %985 = vst.msk [vmem:[#allocation4 + $0x30] sm:$0xff] %vm978, %v895
      %986 = vst.msk [vmem:[#allocation4 + $0x38] sm:$0xff] %vm978, %v897
      %987 = vst.msk [vmem:[#allocation4 + $0x40] sm:$0xff] %vm978, %v899
      %988 = vst.msk [vmem:[#allocation4 + $0x48] sm:$0xff] %vm978, %v901
      %989 = vst.msk [vmem:[#allocation4 + $0x50] sm:$0xff] %vm978, %v903
      %990 = vst.msk [vmem:[#allocation4 + $0x58] sm:$0xff] %vm978, %v905
      %991 = vst.msk [vmem:[#allocation4 + $0x60] sm:$0xff] %vm978, %v907
      %992 = vst.msk [vmem:[#allocation4 + $0x68] sm:$0xff] %vm978, %v909
      %993 = vst.msk [vmem:[#allocation4 + $0x70] sm:$0xff] %vm978, %v911
      %994 = vst.msk [vmem:[#allocation4 + $0x78] sm:$0xff] %vm978, %v913
      %995 = vst.msk [vmem:[#allocation4 + $0x80] sm:$0xff] %vm978, %v915
      %996 = vst.msk [vmem:[#allocation4 + $0x88] sm:$0xff] %vm978, %v917
      %997 = vst.msk [vmem:[#allocation4 + $0x90] sm:$0xff] %vm978, %v919
      %998 = vst.msk [vmem:[#allocation4 + $0x98] sm:$0xff] %vm978, %v921
      %999 = vst.msk [vmem:[#allocation4 + $0xa0] sm:$0xff] %vm978, %v923
      %1000 = vst.msk [vmem:[#allocation4 + $0xa8] sm:$0xff] %vm978, %v925
      %1001 = vst.msk [vmem:[#allocation4 + $0xb0] sm:$0xff] %vm978, %v927
      %1002 = vst.msk [vmem:[#allocation4 + $0xb8] sm:$0xff] %vm978, %v929
      %1003 = vst.msk [vmem:[#allocation4 + $0xc0] sm:$0xff] %vm978, %v931
      %1004 = vst.msk [vmem:[#allocation4 + $0xc8] sm:$0xff] %vm978, %v933
      %1005 = vst.msk [vmem:[#allocation4 + $0xd0] sm:$0xff] %vm978, %v935
      %1006 = vst.msk [vmem:[#allocation4 + $0xd8] sm:$0xff] %vm978, %v937
      %1007 = vst.msk [vmem:[#allocation4 + $0xe0] sm:$0xff] %vm978, %v939
      %1008 = vst.msk [vmem:[#allocation4 + $0xe8] sm:$0xff] %vm978, %v941
      %1009 = vst.msk [vmem:[#allocation4 + $0xf0] sm:$0xff] %vm978, %v943
      %1010 = vst.msk [vmem:[#allocation4 + $0xf8] sm:$0xff] %vm978, %v945
      %v1011 = vld [vmem:[%s335 + $0x1] sm:$0xff]
      %v1012 = vld [vmem:[%s335 + $0x9] sm:$0xff]
      %v1013 = vld [vmem:[%s335 + $0x19] sm:$0xff]
      %v1014 = vld [vmem:[%s335 + $0x21] sm:$0xff]
      %v1015 = vld [vmem:[%s335 + $0x31] sm:$0xff]
      %v1016 = vld [vmem:[%s335 + $0x39] sm:$0xff]
      %v1017 = vld [vmem:[%s335 + $0x49] sm:$0xff]
      %v1018 = vld [vmem:[%s335 + $0x51] sm:$0xff]
      %v1019 = vld [vmem:[%s335 + $0x61] sm:$0xff]
      %v1020 = vld [vmem:[%s335 + $0x69] sm:$0xff]
      %v1021 = vld [vmem:[%s335 + $0x79] sm:$0xff]
      %v1022 = vld [vmem:[%s335 + $0x81] sm:$0xff]
      %v1023 = vld [vmem:[%s335 + $0x91] sm:$0xff]
      %v1024 = vld [vmem:[%s335 + $0x99] sm:$0xff]
      %v1025 = vld [vmem:[%s335 + $0xa9] sm:$0xff]
      %v1026 = vld [vmem:[%s335 + $0xb1] sm:$0xff]
      %v1027 = vld [vmem:[%s335 + $0xc1] sm:$0xff]
      %v1028 = vld [vmem:[%s335 + $0xc9] sm:$0xff]
      %v1029 = vld [vmem:[%s335 + $0xd9] sm:$0xff]
      %v1030 = vld [vmem:[%s335 + $0xe1] sm:$0xff]
      %v1031 = vld [vmem:[%s335 + $0xf1] sm:$0xff]
      %v1032 = vld [vmem:[%s335 + $0xf9] sm:$0xff]
      %v1033 = vld [vmem:[%s335 + $0x109] sm:$0xff]
      %v1034 = vld [vmem:[%s335 + $0x111] sm:$0xff]
      %v1035 = vld [vmem:[%s335 + $0x121] sm:$0xff]
      %v1036 = vld [vmem:[%s335 + $0x129] sm:$0xff]
      %v1037 = vld [vmem:[%s335 + $0x139] sm:$0xff]
      %v1038 = vld [vmem:[%s335 + $0x141] sm:$0xff]
      %v1039 = vld [vmem:[%s335 + $0x151] sm:$0xff]
      %v1040 = vld [vmem:[%s335 + $0x159] sm:$0xff]
      %v1041 = vld [vmem:[%s335 + $0x169] sm:$0xff]
      %v1042 = vld [vmem:[%s335 + $0x171] sm:$0xff]
      %1075 = vrot.lane.b32.xlu0 %v1011, 32
      %v1076 = vpop.permute.xlu0 %1075
      %1077 = vrot.lane.b32.xlu0 %v1012, 32
      %v1078 = vpop.permute.xlu0 %1077
      %1079 = vrot.lane.b32.xlu0 %v1013, 32
      %v1080 = vpop.permute.xlu0 %1079
      %1081 = vrot.lane.b32.xlu0 %v1014, 32
      %v1082 = vpop.permute.xlu0 %1081
      %1083 = vrot.lane.b32.xlu0 %v1015, 32
      %v1084 = vpop.permute.xlu0 %1083
      %1085 = vrot.lane.b32.xlu0 %v1016, 32
      %v1086 = vpop.permute.xlu0 %1085
      %1087 = vrot.lane.b32.xlu0 %v1017, 32
      %v1088 = vpop.permute.xlu0 %1087
      %1089 = vrot.lane.b32.xlu0 %v1018, 32
      %v1090 = vpop.permute.xlu0 %1089
      %1091 = vrot.lane.b32.xlu0 %v1019, 32
      %v1092 = vpop.permute.xlu0 %1091
      %1093 = vrot.lane.b32.xlu0 %v1020, 32
      %v1094 = vpop.permute.xlu0 %1093
      %1095 = vrot.lane.b32.xlu0 %v1021, 32
      %v1096 = vpop.permute.xlu0 %1095
      %1097 = vrot.lane.b32.xlu0 %v1022, 32
      %v1098 = vpop.permute.xlu0 %1097
      %1099 = vrot.lane.b32.xlu0 %v1023, 32
      %v1100 = vpop.permute.xlu0 %1099
      %1101 = vrot.lane.b32.xlu0 %v1024, 32
      %v1102 = vpop.permute.xlu0 %1101
      %1103 = vrot.lane.b32.xlu0 %v1025, 32
      %v1104 = vpop.permute.xlu0 %1103
      %1105 = vrot.lane.b32.xlu0 %v1026, 32
      %v1106 = vpop.permute.xlu0 %1105
      %1107 = vrot.lane.b32.xlu0 %v1027, 32
      %v1108 = vpop.permute.xlu0 %1107
      %1109 = vrot.lane.b32.xlu0 %v1028, 32
      %v1110 = vpop.permute.xlu0 %1109
      %1111 = vrot.lane.b32.xlu0 %v1029, 32
      %v1112 = vpop.permute.xlu0 %1111
      %1113 = vrot.lane.b32.xlu0 %v1030, 32
      %v1114 = vpop.permute.xlu0 %1113
      %1115 = vrot.lane.b32.xlu0 %v1031, 32
      %v1116 = vpop.permute.xlu0 %1115
      %1117 = vrot.lane.b32.xlu0 %v1032, 32
      %v1118 = vpop.permute.xlu0 %1117
      %1119 = vrot.lane.b32.xlu0 %v1033, 32
      %v1120 = vpop.permute.xlu0 %1119
      %1121 = vrot.lane.b32.xlu0 %v1034, 32
      %v1122 = vpop.permute.xlu0 %1121
      %1123 = vrot.lane.b32.xlu0 %v1035, 32
      %v1124 = vpop.permute.xlu0 %1123
      %1125 = vrot.lane.b32.xlu0 %v1036, 32
      %v1126 = vpop.permute.xlu0 %1125
      %1127 = vrot.lane.b32.xlu0 %v1037, 32
      %v1128 = vpop.permute.xlu0 %1127
      %1129 = vrot.lane.b32.xlu0 %v1038, 32
      %v1130 = vpop.permute.xlu0 %1129
      %1131 = vrot.lane.b32.xlu0 %v1039, 32
      %v1132 = vpop.permute.xlu0 %1131
      %1133 = vrot.lane.b32.xlu0 %v1040, 32
      %v1134 = vpop.permute.xlu0 %1133
      %1135 = vrot.lane.b32.xlu0 %v1041, 32
      %v1136 = vpop.permute.xlu0 %1135
      %1137 = vrot.lane.b32.xlu0 %v1042, 32
      %v1138 = vpop.permute.xlu0 %1137
      %vm1171 = vcmask 294144
      %1172 = vst.msk [vmem:[#allocation4] sm:$0xff] %vm1171, %v1076
      %1173 = vst.msk [vmem:[#allocation4 + $0x8] sm:$0xff] %vm1171, %v1078
      %1174 = vst.msk [vmem:[#allocation4 + $0x10] sm:$0xff] %vm1171, %v1080
      %1175 = vst.msk [vmem:[#allocation4 + $0x18] sm:$0xff] %vm1171, %v1082
      %1176 = vst.msk [vmem:[#allocation4 + $0x20] sm:$0xff] %vm1171, %v1084
      %1177 = vst.msk [vmem:[#allocation4 + $0x28] sm:$0xff] %vm1171, %v1086
      %1178 = vst.msk [vmem:[#allocation4 + $0x30] sm:$0xff] %vm1171, %v1088
      %1179 = vst.msk [vmem:[#allocation4 + $0x38] sm:$0xff] %vm1171, %v1090
      %1180 = vst.msk [vmem:[#allocation4 + $0x40] sm:$0xff] %vm1171, %v1092
      %1181 = vst.msk [vmem:[#allocation4 + $0x48] sm:$0xff] %vm1171, %v1094
      %1182 = vst.msk [vmem:[#allocation4 + $0x50] sm:$0xff] %vm1171, %v1096
      %1183 = vst.msk [vmem:[#allocation4 + $0x58] sm:$0xff] %vm1171, %v1098
      %1184 = vst.msk [vmem:[#allocation4 + $0x60] sm:$0xff] %vm1171, %v1100
      %1185 = vst.msk [vmem:[#allocation4 + $0x68] sm:$0xff] %vm1171, %v1102
      %1186 = vst.msk [vmem:[#allocation4 + $0x70] sm:$0xff] %vm1171, %v1104
      %1187 = vst.msk [vmem:[#allocation4 + $0x78] sm:$0xff] %vm1171, %v1106
      %1188 = vst.msk [vmem:[#allocation4 + $0x80] sm:$0xff] %vm1171, %v1108
      %1189 = vst.msk [vmem:[#allocation4 + $0x88] sm:$0xff] %vm1171, %v1110
      %1190 = vst.msk [vmem:[#allocation4 + $0x90] sm:$0xff] %vm1171, %v1112
      %1191 = vst.msk [vmem:[#allocation4 + $0x98] sm:$0xff] %vm1171, %v1114
      %1192 = vst.msk [vmem:[#allocation4 + $0xa0] sm:$0xff] %vm1171, %v1116
      %1193 = vst.msk [vmem:[#allocation4 + $0xa8] sm:$0xff] %vm1171, %v1118
      %1194 = vst.msk [vmem:[#allocation4 + $0xb0] sm:$0xff] %vm1171, %v1120
      %1195 = vst.msk [vmem:[#allocation4 + $0xb8] sm:$0xff] %vm1171, %v1122
      %1196 = vst.msk [vmem:[#allocation4 + $0xc0] sm:$0xff] %vm1171, %v1124
      %1197 = vst.msk [vmem:[#allocation4 + $0xc8] sm:$0xff] %vm1171, %v1126
      %1198 = vst.msk [vmem:[#allocation4 + $0xd0] sm:$0xff] %vm1171, %v1128
      %1199 = vst.msk [vmem:[#allocation4 + $0xd8] sm:$0xff] %vm1171, %v1130
      %1200 = vst.msk [vmem:[#allocation4 + $0xe0] sm:$0xff] %vm1171, %v1132
      %1201 = vst.msk [vmem:[#allocation4 + $0xe8] sm:$0xff] %vm1171, %v1134
      %1202 = vst.msk [vmem:[#allocation4 + $0xf0] sm:$0xff] %vm1171, %v1136
      %1203 = vst.msk [vmem:[#allocation4 + $0xf8] sm:$0xff] %vm1171, %v1138
      %v1204 = vld [vmem:[%s335 + $0x2] sm:$0xff]
      %v1205 = vld [vmem:[%s335 + $0xa] sm:$0xff]
      %v1206 = vld [vmem:[%s335 + $0x1a] sm:$0xff]
      %v1207 = vld [vmem:[%s335 + $0x22] sm:$0xff]
      %v1208 = vld [vmem:[%s335 + $0x32] sm:$0xff]
      %v1209 = vld [vmem:[%s335 + $0x3a] sm:$0xff]
      %v1210 = vld [vmem:[%s335 + $0x4a] sm:$0xff]
      %v1211 = vld [vmem:[%s335 + $0x52] sm:$0xff]
      %v1212 = vld [vmem:[%s335 + $0x62] sm:$0xff]
      %v1213 = vld [vmem:[%s335 + $0x6a] sm:$0xff]
      %v1214 = vld [vmem:[%s335 + $0x7a] sm:$0xff]
      %v1215 = vld [vmem:[%s335 + $0x82] sm:$0xff]
      %v1216 = vld [vmem:[%s335 + $0x92] sm:$0xff]
      %v1217 = vld [vmem:[%s335 + $0x9a] sm:$0xff]
      %v1218 = vld [vmem:[%s335 + $0xaa] sm:$0xff]
      %v1219 = vld [vmem:[%s335 + $0xb2] sm:$0xff]
      %v1220 = vld [vmem:[%s335 + $0xc2] sm:$0xff]
      %v1221 = vld [vmem:[%s335 + $0xca] sm:$0xff]
      %v1222 = vld [vmem:[%s335 + $0xda] sm:$0xff]
      %v1223 = vld [vmem:[%s335 + $0xe2] sm:$0xff]
      %v1224 = vld [vmem:[%s335 + $0xf2] sm:$0xff]
      %v1225 = vld [vmem:[%s335 + $0xfa] sm:$0xff]
      %v1226 = vld [vmem:[%s335 + $0x10a] sm:$0xff]
      %v1227 = vld [vmem:[%s335 + $0x112] sm:$0xff]
      %v1228 = vld [vmem:[%s335 + $0x122] sm:$0xff]
      %v1229 = vld [vmem:[%s335 + $0x12a] sm:$0xff]
      %v1230 = vld [vmem:[%s335 + $0x13a] sm:$0xff]
      %v1231 = vld [vmem:[%s335 + $0x142] sm:$0xff]
      %v1232 = vld [vmem:[%s335 + $0x152] sm:$0xff]
      %v1233 = vld [vmem:[%s335 + $0x15a] sm:$0xff]
      %v1234 = vld [vmem:[%s335 + $0x16a] sm:$0xff]
      %v1235 = vld [vmem:[%s335 + $0x172] sm:$0xff]
      %1268 = vrot.lane.b32.xlu0 %v1204, 40
      %v1269 = vpop.permute.xlu0 %1268
      %1270 = vrot.lane.b32.xlu0 %v1205, 40
      %v1271 = vpop.permute.xlu0 %1270
      %1272 = vrot.lane.b32.xlu0 %v1206, 40
      %v1273 = vpop.permute.xlu0 %1272
      %1274 = vrot.lane.b32.xlu0 %v1207, 40
      %v1275 = vpop.permute.xlu0 %1274
      %1276 = vrot.lane.b32.xlu0 %v1208, 40
      %v1277 = vpop.permute.xlu0 %1276
      %1278 = vrot.lane.b32.xlu0 %v1209, 40
      %v1279 = vpop.permute.xlu0 %1278
      %1280 = vrot.lane.b32.xlu0 %v1210, 40
      %v1281 = vpop.permute.xlu0 %1280
      %1282 = vrot.lane.b32.xlu0 %v1211, 40
      %v1283 = vpop.permute.xlu0 %1282
      %1284 = vrot.lane.b32.xlu0 %v1212, 40
      %v1285 = vpop.permute.xlu0 %1284
      %1286 = vrot.lane.b32.xlu0 %v1213, 40
      %v1287 = vpop.permute.xlu0 %1286
      %1288 = vrot.lane.b32.xlu0 %v1214, 40
      %v1289 = vpop.permute.xlu0 %1288
      %1290 = vrot.lane.b32.xlu0 %v1215, 40
      %v1291 = vpop.permute.xlu0 %1290
      %1292 = vrot.lane.b32.xlu0 %v1216, 40
      %v1293 = vpop.permute.xlu0 %1292
      %1294 = vrot.lane.b32.xlu0 %v1217, 40
      %v1295 = vpop.permute.xlu0 %1294
      %1296 = vrot.lane.b32.xlu0 %v1218, 40
      %v1297 = vpop.permute.xlu0 %1296
      %1298 = vrot.lane.b32.xlu0 %v1219, 40
      %v1299 = vpop.permute.xlu0 %1298
      %1300 = vrot.lane.b32.xlu0 %v1220, 40
      %v1301 = vpop.permute.xlu0 %1300
      %1302 = vrot.lane.b32.xlu0 %v1221, 40
      %v1303 = vpop.permute.xlu0 %1302
      %1304 = vrot.lane.b32.xlu0 %v1222, 40
      %v1305 = vpop.permute.xlu0 %1304
      %1306 = vrot.lane.b32.xlu0 %v1223, 40
      %v1307 = vpop.permute.xlu0 %1306
      %1308 = vrot.lane.b32.xlu0 %v1224, 40
      %v1309 = vpop.permute.xlu0 %1308
      %1310 = vrot.lane.b32.xlu0 %v1225, 40
      %v1311 = vpop.permute.xlu0 %1310
      %1312 = vrot.lane.b32.xlu0 %v1226, 40
      %v1313 = vpop.permute.xlu0 %1312
      %1314 = vrot.lane.b32.xlu0 %v1227, 40
      %v1315 = vpop.permute.xlu0 %1314
      %1316 = vrot.lane.b32.xlu0 %v1228, 40
      %v1317 = vpop.permute.xlu0 %1316
      %1318 = vrot.lane.b32.xlu0 %v1229, 40
      %v1319 = vpop.permute.xlu0 %1318
      %1320 = vrot.lane.b32.xlu0 %v1230, 40
      %v1321 = vpop.permute.xlu0 %1320
      %1322 = vrot.lane.b32.xlu0 %v1231, 40
      %v1323 = vpop.permute.xlu0 %1322
      %1324 = vrot.lane.b32.xlu0 %v1232, 40
      %v1325 = vpop.permute.xlu0 %1324
      %1326 = vrot.lane.b32.xlu0 %v1233, 40
      %v1327 = vpop.permute.xlu0 %1326
      %1328 = vrot.lane.b32.xlu0 %v1234, 40
      %v1329 = vpop.permute.xlu0 %1328
      %1330 = vrot.lane.b32.xlu0 %v1235, 40
      %v1331 = vpop.permute.xlu0 %1330
      %vm1364 = vcmask 359744
      %1365 = vst.msk [vmem:[#allocation4] sm:$0xff] %vm1364, %v1269
      %1366 = vst.msk [vmem:[#allocation4 + $0x8] sm:$0xff] %vm1364, %v1271
      %1367 = vst.msk [vmem:[#allocation4 + $0x10] sm:$0xff] %vm1364, %v1273
      %1368 = vst.msk [vmem:[#allocation4 + $0x18] sm:$0xff] %vm1364, %v1275
      %1369 = vst.msk [vmem:[#allocation4 + $0x20] sm:$0xff] %vm1364, %v1277
      %1370 = vst.msk [vmem:[#allocation4 + $0x28] sm:$0xff] %vm1364, %v1279
      %1371 = vst.msk [vmem:[#allocation4 + $0x30] sm:$0xff] %vm1364, %v1281
      %1372 = vst.msk [vmem:[#allocation4 + $0x38] sm:$0xff] %vm1364, %v1283
      %1373 = vst.msk [vmem:[#allocation4 + $0x40] sm:$0xff] %vm1364, %v1285
      %1374 = vst.msk [vmem:[#allocation4 + $0x48] sm:$0xff] %vm1364, %v1287
      %1375 = vst.msk [vmem:[#allocation4 + $0x50] sm:$0xff] %vm1364, %v1289
      %1376 = vst.msk [vmem:[#allocation4 + $0x58] sm:$0xff] %vm1364, %v1291
      %1377 = vst.msk [vmem:[#allocation4 + $0x60] sm:$0xff] %vm1364, %v1293
      %1378 = vst.msk [vmem:[#allocation4 + $0x68] sm:$0xff] %vm1364, %v1295
      %1379 = vst.msk [vmem:[#allocation4 + $0x70] sm:$0xff] %vm1364, %v1297
      %1380 = vst.msk [vmem:[#allocation4 + $0x78] sm:$0xff] %vm1364, %v1299
      %1381 = vst.msk [vmem:[#allocation4 + $0x80] sm:$0xff] %vm1364, %v1301
      %1382 = vst.msk [vmem:[#allocation4 + $0x88] sm:$0xff] %vm1364, %v1303
      %1383 = vst.msk [vmem:[#allocation4 + $0x90] sm:$0xff] %vm1364, %v1305
      %1384 = vst.msk [vmem:[#allocation4 + $0x98] sm:$0xff] %vm1364, %v1307
      %1385 = vst.msk [vmem:[#allocation4 + $0xa0] sm:$0xff] %vm1364, %v1309
      %1386 = vst.msk [vmem:[#allocation4 + $0xa8] sm:$0xff] %vm1364, %v1311
      %1387 = vst.msk [vmem:[#allocation4 + $0xb0] sm:$0xff] %vm1364, %v1313
      %1388 = vst.msk [vmem:[#allocation4 + $0xb8] sm:$0xff] %vm1364, %v1315
      %1389 = vst.msk [vmem:[#allocation4 + $0xc0] sm:$0xff] %vm1364, %v1317
      %1390 = vst.msk [vmem:[#allocation4 + $0xc8] sm:$0xff] %vm1364, %v1319
      %1391 = vst.msk [vmem:[#allocation4 + $0xd0] sm:$0xff] %vm1364, %v1321
      %1392 = vst.msk [vmem:[#allocation4 + $0xd8] sm:$0xff] %vm1364, %v1323
      %1393 = vst.msk [vmem:[#allocation4 + $0xe0] sm:$0xff] %vm1364, %v1325
      %1394 = vst.msk [vmem:[#allocation4 + $0xe8] sm:$0xff] %vm1364, %v1327
      %1395 = vst.msk [vmem:[#allocation4 + $0xf0] sm:$0xff] %vm1364, %v1329
      %1396 = vst.msk [vmem:[#allocation4 + $0xf8] sm:$0xff] %vm1364, %v1331
      %s1397 = scalar_lea.vmem [#allocation2], 48
      %v1398 = vld [vmem:[%s1397] sm:$0xff]
      %v1399 = vld [vmem:[%s1397 + $0x8] sm:$0xff]
      %v1400 = vld [vmem:[%s1397 + $0x18] sm:$0xff]
      %v1401 = vld [vmem:[%s1397 + $0x20] sm:$0xff]
      %v1402 = vld [vmem:[%s1397 + $0x30] sm:$0xff]
      %v1403 = vld [vmem:[%s1397 + $0x38] sm:$0xff]
      %v1404 = vld [vmem:[%s1397 + $0x48] sm:$0xff]
      %v1405 = vld [vmem:[%s1397 + $0x50] sm:$0xff]
      %v1406 = vld [vmem:[%s1397 + $0x60] sm:$0xff]
      %v1407 = vld [vmem:[%s1397 + $0x68] sm:$0xff]
      %v1408 = vld [vmem:[%s1397 + $0x78] sm:$0xff]
      %v1409 = vld [vmem:[%s1397 + $0x80] sm:$0xff]
      %v1410 = vld [vmem:[%s1397 + $0x90] sm:$0xff]
      %v1411 = vld [vmem:[%s1397 + $0x98] sm:$0xff]
      %v1412 = vld [vmem:[%s1397 + $0xa8] sm:$0xff]
      %v1413 = vld [vmem:[%s1397 + $0xb0] sm:$0xff]
      %v1414 = vld [vmem:[%s1397 + $0xc0] sm:$0xff]
      %v1415 = vld [vmem:[%s1397 + $0xc8] sm:$0xff]
      %v1416 = vld [vmem:[%s1397 + $0xd8] sm:$0xff]
      %v1417 = vld [vmem:[%s1397 + $0xe0] sm:$0xff]
      %v1418 = vld [vmem:[%s1397 + $0xf0] sm:$0xff]
      %v1419 = vld [vmem:[%s1397 + $0xf8] sm:$0xff]
      %v1420 = vld [vmem:[%s1397 + $0x108] sm:$0xff]
      %v1421 = vld [vmem:[%s1397 + $0x110] sm:$0xff]
      %v1422 = vld [vmem:[%s1397 + $0x120] sm:$0xff]
      %v1423 = vld [vmem:[%s1397 + $0x128] sm:$0xff]
      %v1424 = vld [vmem:[%s1397 + $0x138] sm:$0xff]
      %v1425 = vld [vmem:[%s1397 + $0x140] sm:$0xff]
      %v1426 = vld [vmem:[%s1397 + $0x150] sm:$0xff]
      %v1427 = vld [vmem:[%s1397 + $0x158] sm:$0xff]
      %v1428 = vld [vmem:[%s1397 + $0x168] sm:$0xff]
      %v1429 = vld [vmem:[%s1397 + $0x170] sm:$0xff]
      %1462 = vrot.lane.b32.xlu0 %v1398, 48
      %v1463 = vpop.permute.xlu0 %1462
      %1464 = vrot.lane.b32.xlu0 %v1399, 48
      %v1465 = vpop.permute.xlu0 %1464
      %1466 = vrot.lane.b32.xlu0 %v1400, 48
      %v1467 = vpop.permute.xlu0 %1466
      %1468 = vrot.lane.b32.xlu0 %v1401, 48
      %v1469 = vpop.permute.xlu0 %1468
      %1470 = vrot.lane.b32.xlu0 %v1402, 48
      %v1471 = vpop.permute.xlu0 %1470
      %1472 = vrot.lane.b32.xlu0 %v1403, 48
      %v1473 = vpop.permute.xlu0 %1472
      %1474 = vrot.lane.b32.xlu0 %v1404, 48
      %v1475 = vpop.permute.xlu0 %1474
      %1476 = vrot.lane.b32.xlu0 %v1405, 48
      %v1477 = vpop.permute.xlu0 %1476
      %1478 = vrot.lane.b32.xlu0 %v1406, 48
      %v1479 = vpop.permute.xlu0 %1478
      %1480 = vrot.lane.b32.xlu0 %v1407, 48
      %v1481 = vpop.permute.xlu0 %1480
      %1482 = vrot.lane.b32.xlu0 %v1408, 48
      %v1483 = vpop.permute.xlu0 %1482
      %1484 = vrot.lane.b32.xlu0 %v1409, 48
      %v1485 = vpop.permute.xlu0 %1484
      %1486 = vrot.lane.b32.xlu0 %v1410, 48
      %v1487 = vpop.permute.xlu0 %1486
      %1488 = vrot.lane.b32.xlu0 %v1411, 48
      %v1489 = vpop.permute.xlu0 %1488
      %1490 = vrot.lane.b32.xlu0 %v1412, 48
      %v1491 = vpop.permute.xlu0 %1490
      %1492 = vrot.lane.b32.xlu0 %v1413, 48
      %v1493 = vpop.permute.xlu0 %1492
      %1494 = vrot.lane.b32.xlu0 %v1414, 48
      %v1495 = vpop.permute.xlu0 %1494
      %1496 = vrot.lane.b32.xlu0 %v1415, 48
      %v1497 = vpop.permute.xlu0 %1496
      %1498 = vrot.lane.b32.xlu0 %v1416, 48
      %v1499 = vpop.permute.xlu0 %1498
      %1500 = vrot.lane.b32.xlu0 %v1417, 48
      %v1501 = vpop.permute.xlu0 %1500
      %1502 = vrot.lane.b32.xlu0 %v1418, 48
      %v1503 = vpop.permute.xlu0 %1502
      %1504 = vrot.lane.b32.xlu0 %v1419, 48
      %v1505 = vpop.permute.xlu0 %1504
      %1506 = vrot.lane.b32.xlu0 %v1420, 48
      %v1507 = vpop.permute.xlu0 %1506
      %1508 = vrot.lane.b32.xlu0 %v1421, 48
      %v1509 = vpop.permute.xlu0 %1508
      %1510 = vrot.lane.b32.xlu0 %v1422, 48
      %v1511 = vpop.permute.xlu0 %1510
      %1512 = vrot.lane.b32.xlu0 %v1423, 48
      %v1513 = vpop.permute.xlu0 %1512
      %1514 = vrot.lane.b32.xlu0 %v1424, 48
      %v1515 = vpop.permute.xlu0 %1514
      %1516 = vrot.lane.b32.xlu0 %v1425, 48
      %v1517 = vpop.permute.xlu0 %1516
      %1518 = vrot.lane.b32.xlu0 %v1426, 48
      %v1519 = vpop.permute.xlu0 %1518
      %1520 = vrot.lane.b32.xlu0 %v1427, 48
      %v1521 = vpop.permute.xlu0 %1520
      %1522 = vrot.lane.b32.xlu0 %v1428, 48
      %v1523 = vpop.permute.xlu0 %1522
      %1524 = vrot.lane.b32.xlu0 %v1429, 48
      %v1525 = vpop.permute.xlu0 %1524
      %vm1558 = vcmask 425344
      %1559 = vst.msk [vmem:[#allocation4] sm:$0xff] %vm1558, %v1463
      %1560 = vst.msk [vmem:[#allocation4 + $0x8] sm:$0xff] %vm1558, %v1465
      %1561 = vst.msk [vmem:[#allocation4 + $0x10] sm:$0xff] %vm1558, %v1467
      %1562 = vst.msk [vmem:[#allocation4 + $0x18] sm:$0xff] %vm1558, %v1469
      %1563 = vst.msk [vmem:[#allocation4 + $0x20] sm:$0xff] %vm1558, %v1471
      %1564 = vst.msk [vmem:[#allocation4 + $0x28] sm:$0xff] %vm1558, %v1473
      %1565 = vst.msk [vmem:[#allocation4 + $0x30] sm:$0xff] %vm1558, %v1475
      %1566 = vst.msk [vmem:[#allocation4 + $0x38] sm:$0xff] %vm1558, %v1477
      %1567 = vst.msk [vmem:[#allocation4 + $0x40] sm:$0xff] %vm1558, %v1479
      %1568 = vst.msk [vmem:[#allocation4 + $0x48] sm:$0xff] %vm1558, %v1481
      %1569 = vst.msk [vmem:[#allocation4 + $0x50] sm:$0xff] %vm1558, %v1483
      %1570 = vst.msk [vmem:[#allocation4 + $0x58] sm:$0xff] %vm1558, %v1485
      %1571 = vst.msk [vmem:[#allocation4 + $0x60] sm:$0xff] %vm1558, %v1487
      %1572 = vst.msk [vmem:[#allocation4 + $0x68] sm:$0xff] %vm1558, %v1489
      %1573 = vst.msk [vmem:[#allocation4 + $0x70] sm:$0xff] %vm1558, %v1491
      %1574 = vst.msk [vmem:[#allocation4 + $0x78] sm:$0xff] %vm1558, %v1493
      %1575 = vst.msk [vmem:[#allocation4 + $0x80] sm:$0xff] %vm1558, %v1495
      %1576 = vst.msk [vmem:[#allocation4 + $0x88] sm:$0xff] %vm1558, %v1497
      %1577 = vst.msk [vmem:[#allocation4 + $0x90] sm:$0xff] %vm1558, %v1499
      %1578 = vst.msk [vmem:[#allocation4 + $0x98] sm:$0xff] %vm1558, %v1501
      %1579 = vst.msk [vmem:[#allocation4 + $0xa0] sm:$0xff] %vm1558, %v1503
      %1580 = vst.msk [vmem:[#allocation4 + $0xa8] sm:$0xff] %vm1558, %v1505
      %1581 = vst.msk [vmem:[#allocation4 + $0xb0] sm:$0xff] %vm1558, %v1507
      %1582 = vst.msk [vmem:[#allocation4 + $0xb8] sm:$0xff] %vm1558, %v1509
      %1583 = vst.msk [vmem:[#allocation4 + $0xc0] sm:$0xff] %vm1558, %v1511
      %1584 = vst.msk [vmem:[#allocation4 + $0xc8] sm:$0xff] %vm1558, %v1513
      %1585 = vst.msk [vmem:[#allocation4 + $0xd0] sm:$0xff] %vm1558, %v1515
      %1586 = vst.msk [vmem:[#allocation4 + $0xd8] sm:$0xff] %vm1558, %v1517
      %1587 = vst.msk [vmem:[#allocation4 + $0xe0] sm:$0xff] %vm1558, %v1519
      %1588 = vst.msk [vmem:[#allocation4 + $0xe8] sm:$0xff] %vm1558, %v1521
      %1589 = vst.msk [vmem:[#allocation4 + $0xf0] sm:$0xff] %vm1558, %v1523
      %1590 = vst.msk [vmem:[#allocation4 + $0xf8] sm:$0xff] %vm1558, %v1525
      %v1591 = vld [vmem:[%s1397 + $0x1] sm:$0xff]
      %v1592 = vld [vmem:[%s1397 + $0x9] sm:$0xff]
      %v1593 = vld [vmem:[%s1397 + $0x19] sm:$0xff]
      %v1594 = vld [vmem:[%s1397 + $0x21] sm:$0xff]
      %v1595 = vld [vmem:[%s1397 + $0x31] sm:$0xff]
      %v1596 = vld [vmem:[%s1397 + $0x39] sm:$0xff]
      %v1597 = vld [vmem:[%s1397 + $0x49] sm:$0xff]
      %v1598 = vld [vmem:[%s1397 + $0x51] sm:$0xff]
      %v1599 = vld [vmem:[%s1397 + $0x61] sm:$0xff]
      %v1600 = vld [vmem:[%s1397 + $0x69] sm:$0xff]
      %v1601 = vld [vmem:[%s1397 + $0x79] sm:$0xff]
      %v1602 = vld [vmem:[%s1397 + $0x81] sm:$0xff]
      %v1603 = vld [vmem:[%s1397 + $0x91] sm:$0xff]
      %v1604 = vld [vmem:[%s1397 + $0x99] sm:$0xff]
      %v1605 = vld [vmem:[%s1397 + $0xa9] sm:$0xff]
      %v1606 = vld [vmem:[%s1397 + $0xb1] sm:$0xff]
      %v1607 = vld [vmem:[%s1397 + $0xc1] sm:$0xff]
      %v1608 = vld [vmem:[%s1397 + $0xc9] sm:$0xff]
      %v1609 = vld [vmem:[%s1397 + $0xd9] sm:$0xff]
      %v1610 = vld [vmem:[%s1397 + $0xe1] sm:$0xff]
      %v1611 = vld [vmem:[%s1397 + $0xf1] sm:$0xff]
      %v1612 = vld [vmem:[%s1397 + $0xf9] sm:$0xff]
      %v1613 = vld [vmem:[%s1397 + $0x109] sm:$0xff]
      %v1614 = vld [vmem:[%s1397 + $0x111] sm:$0xff]
      %v1615 = vld [vmem:[%s1397 + $0x121] sm:$0xff]
      %v1616 = vld [vmem:[%s1397 + $0x129] sm:$0xff]
      %v1617 = vld [vmem:[%s1397 + $0x139] sm:$0xff]
      %v1618 = vld [vmem:[%s1397 + $0x141] sm:$0xff]
      %v1619 = vld [vmem:[%s1397 + $0x151] sm:$0xff]
      %v1620 = vld [vmem:[%s1397 + $0x159] sm:$0xff]
      %v1621 = vld [vmem:[%s1397 + $0x169] sm:$0xff]
      %v1622 = vld [vmem:[%s1397 + $0x171] sm:$0xff]
      %1655 = vrot.lane.b32.xlu0 %v1591, 56
      %v1656 = vpop.permute.xlu0 %1655
      %1657 = vrot.lane.b32.xlu0 %v1592, 56
      %v1658 = vpop.permute.xlu0 %1657
      %1659 = vrot.lane.b32.xlu0 %v1593, 56
      %v1660 = vpop.permute.xlu0 %1659
      %1661 = vrot.lane.b32.xlu0 %v1594, 56
      %v1662 = vpop.permute.xlu0 %1661
      %1663 = vrot.lane.b32.xlu0 %v1595, 56
      %v1664 = vpop.permute.xlu0 %1663
      %1665 = vrot.lane.b32.xlu0 %v1596, 56
      %v1666 = vpop.permute.xlu0 %1665
      %1667 = vrot.lane.b32.xlu0 %v1597, 56
      %v1668 = vpop.permute.xlu0 %1667
      %1669 = vrot.lane.b32.xlu0 %v1598, 56
      %v1670 = vpop.permute.xlu0 %1669
      %1671 = vrot.lane.b32.xlu0 %v1599, 56
      %v1672 = vpop.permute.xlu0 %1671
      %1673 = vrot.lane.b32.xlu0 %v1600, 56
      %v1674 = vpop.permute.xlu0 %1673
      %1675 = vrot.lane.b32.xlu0 %v1601, 56
      %v1676 = vpop.permute.xlu0 %1675
      %1677 = vrot.lane.b32.xlu0 %v1602, 56
      %v1678 = vpop.permute.xlu0 %1677
      %1679 = vrot.lane.b32.xlu0 %v1603, 56
      %v1680 = vpop.permute.xlu0 %1679
      %1681 = vrot.lane.b32.xlu0 %v1604, 56
      %v1682 = vpop.permute.xlu0 %1681
      %1683 = vrot.lane.b32.xlu0 %v1605, 56
      %v1684 = vpop.permute.xlu0 %1683
      %1685 = vrot.lane.b32.xlu0 %v1606, 56
      %v1686 = vpop.permute.xlu0 %1685
      %1687 = vrot.lane.b32.xlu0 %v1607, 56
      %v1688 = vpop.permute.xlu0 %1687
      %1689 = vrot.lane.b32.xlu0 %v1608, 56
      %v1690 = vpop.permute.xlu0 %1689
      %1691 = vrot.lane.b32.xlu0 %v1609, 56
      %v1692 = vpop.permute.xlu0 %1691
      %1693 = vrot.lane.b32.xlu0 %v1610, 56
      %v1694 = vpop.permute.xlu0 %1693
      %1695 = vrot.lane.b32.xlu0 %v1611, 56
      %v1696 = vpop.permute.xlu0 %1695
      %1697 = vrot.lane.b32.xlu0 %v1612, 56
      %v1698 = vpop.permute.xlu0 %1697
      %1699 = vrot.lane.b32.xlu0 %v1613, 56
      %v1700 = vpop.permute.xlu0 %1699
      %1701 = vrot.lane.b32.xlu0 %v1614, 56
      %v1702 = vpop.permute.xlu0 %1701
      %1703 = vrot.lane.b32.xlu0 %v1615, 56
      %v1704 = vpop.permute.xlu0 %1703
      %1705 = vrot.lane.b32.xlu0 %v1616, 56
      %v1706 = vpop.permute.xlu0 %1705
      %1707 = vrot.lane.b32.xlu0 %v1617, 56
      %v1708 = vpop.permute.xlu0 %1707
      %1709 = vrot.lane.b32.xlu0 %v1618, 56
      %v1710 = vpop.permute.xlu0 %1709
      %1711 = vrot.lane.b32.xlu0 %v1619, 56
      %v1712 = vpop.permute.xlu0 %1711
      %1713 = vrot.lane.b32.xlu0 %v1620, 56
      %v1714 = vpop.permute.xlu0 %1713
      %1715 = vrot.lane.b32.xlu0 %v1621, 56
      %v1716 = vpop.permute.xlu0 %1715
      %1717 = vrot.lane.b32.xlu0 %v1622, 56
      %v1718 = vpop.permute.xlu0 %1717
      %vm1751 = vcmask 490944
      %1752 = vst.msk [vmem:[#allocation4] sm:$0xff] %vm1751, %v1656
      %1753 = vst.msk [vmem:[#allocation4 + $0x8] sm:$0xff] %vm1751, %v1658
      %1754 = vst.msk [vmem:[#allocation4 + $0x10] sm:$0xff] %vm1751, %v1660
      %1755 = vst.msk [vmem:[#allocation4 + $0x18] sm:$0xff] %vm1751, %v1662
      %1756 = vst.msk [vmem:[#allocation4 + $0x20] sm:$0xff] %vm1751, %v1664
      %1757 = vst.msk [vmem:[#allocation4 + $0x28] sm:$0xff] %vm1751, %v1666
      %1758 = vst.msk [vmem:[#allocation4 + $0x30] sm:$0xff] %vm1751, %v1668
      %1759 = vst.msk [vmem:[#allocation4 + $0x38] sm:$0xff] %vm1751, %v1670
      %1760 = vst.msk [vmem:[#allocation4 + $0x40] sm:$0xff] %vm1751, %v1672
      %1761 = vst.msk [vmem:[#allocation4 + $0x48] sm:$0xff] %vm1751, %v1674
      %1762 = vst.msk [vmem:[#allocation4 + $0x50] sm:$0xff] %vm1751, %v1676
      %1763 = vst.msk [vmem:[#allocation4 + $0x58] sm:$0xff] %vm1751, %v1678
      %1764 = vst.msk [vmem:[#allocation4 + $0x60] sm:$0xff] %vm1751, %v1680
      %1765 = vst.msk [vmem:[#allocation4 + $0x68] sm:$0xff] %vm1751, %v1682
      %1766 = vst.msk [vmem:[#allocation4 + $0x70] sm:$0xff] %vm1751, %v1684
      %1767 = vst.msk [vmem:[#allocation4 + $0x78] sm:$0xff] %vm1751, %v1686
      %1768 = vst.msk [vmem:[#allocation4 + $0x80] sm:$0xff] %vm1751, %v1688
      %1769 = vst.msk [vmem:[#allocation4 + $0x88] sm:$0xff] %vm1751, %v1690
      %1770 = vst.msk [vmem:[#allocation4 + $0x90] sm:$0xff] %vm1751, %v1692
      %1771 = vst.msk [vmem:[#allocation4 + $0x98] sm:$0xff] %vm1751, %v1694
      %1772 = vst.msk [vmem:[#allocation4 + $0xa0] sm:$0xff] %vm1751, %v1696
      %1773 = vst.msk [vmem:[#allocation4 + $0xa8] sm:$0xff] %vm1751, %v1698
      %1774 = vst.msk [vmem:[#allocation4 + $0xb0] sm:$0xff] %vm1751, %v1700
      %1775 = vst.msk [vmem:[#allocation4 + $0xb8] sm:$0xff] %vm1751, %v1702
      %1776 = vst.msk [vmem:[#allocation4 + $0xc0] sm:$0xff] %vm1751, %v1704
      %1777 = vst.msk [vmem:[#allocation4 + $0xc8] sm:$0xff] %vm1751, %v1706
      %1778 = vst.msk [vmem:[#allocation4 + $0xd0] sm:$0xff] %vm1751, %v1708
      %1779 = vst.msk [vmem:[#allocation4 + $0xd8] sm:$0xff] %vm1751, %v1710
      %1780 = vst.msk [vmem:[#allocation4 + $0xe0] sm:$0xff] %vm1751, %v1712
      %1781 = vst.msk [vmem:[#allocation4 + $0xe8] sm:$0xff] %vm1751, %v1714
      %1782 = vst.msk [vmem:[#allocation4 + $0xf0] sm:$0xff] %vm1751, %v1716
      %1783 = vst.msk [vmem:[#allocation4 + $0xf8] sm:$0xff] %vm1751, %v1718
      %v1784 = vld [vmem:[%s1397 + $0x2] sm:$0xff]
      %v1785 = vld [vmem:[%s1397 + $0xa] sm:$0xff]
      %v1786 = vld [vmem:[%s1397 + $0x1a] sm:$0xff]
      %v1787 = vld [vmem:[%s1397 + $0x22] sm:$0xff]
      %v1788 = vld [vmem:[%s1397 + $0x32] sm:$0xff]
      %v1789 = vld [vmem:[%s1397 + $0x3a] sm:$0xff]
      %v1790 = vld [vmem:[%s1397 + $0x4a] sm:$0xff]
      %v1791 = vld [vmem:[%s1397 + $0x52] sm:$0xff]
      %v1792 = vld [vmem:[%s1397 + $0x62] sm:$0xff]
      %v1793 = vld [vmem:[%s1397 + $0x6a] sm:$0xff]
      %v1794 = vld [vmem:[%s1397 + $0x7a] sm:$0xff]
      %v1795 = vld [vmem:[%s1397 + $0x82] sm:$0xff]
      %v1796 = vld [vmem:[%s1397 + $0x92] sm:$0xff]
      %v1797 = vld [vmem:[%s1397 + $0x9a] sm:$0xff]
      %v1798 = vld [vmem:[%s1397 + $0xaa] sm:$0xff]
      %v1799 = vld [vmem:[%s1397 + $0xb2] sm:$0xff]
      %v1800 = vld [vmem:[%s1397 + $0xc2] sm:$0xff]
      %v1801 = vld [vmem:[%s1397 + $0xca] sm:$0xff]
      %v1802 = vld [vmem:[%s1397 + $0xda] sm:$0xff]
      %v1803 = vld [vmem:[%s1397 + $0xe2] sm:$0xff]
      %v1804 = vld [vmem:[%s1397 + $0xf2] sm:$0xff]
      %v1805 = vld [vmem:[%s1397 + $0xfa] sm:$0xff]
      %v1806 = vld [vmem:[%s1397 + $0x10a] sm:$0xff]
      %v1807 = vld [vmem:[%s1397 + $0x112] sm:$0xff]
      %v1808 = vld [vmem:[%s1397 + $0x122] sm:$0xff]
      %v1809 = vld [vmem:[%s1397 + $0x12a] sm:$0xff]
      %v1810 = vld [vmem:[%s1397 + $0x13a] sm:$0xff]
      %v1811 = vld [vmem:[%s1397 + $0x142] sm:$0xff]
      %v1812 = vld [vmem:[%s1397 + $0x152] sm:$0xff]
      %v1813 = vld [vmem:[%s1397 + $0x15a] sm:$0xff]
      %v1814 = vld [vmem:[%s1397 + $0x16a] sm:$0xff]
      %v1815 = vld [vmem:[%s1397 + $0x172] sm:$0xff]
      %1848 = vrot.lane.b32.xlu0 %v1784, 64
      %v1849 = vpop.permute.xlu0 %1848
      %1850 = vrot.lane.b32.xlu0 %v1785, 64
      %v1851 = vpop.permute.xlu0 %1850
      %1852 = vrot.lane.b32.xlu0 %v1786, 64
      %v1853 = vpop.permute.xlu0 %1852
      %1854 = vrot.lane.b32.xlu0 %v1787, 64
      %v1855 = vpop.permute.xlu0 %1854
      %1856 = vrot.lane.b32.xlu0 %v1788, 64
      %v1857 = vpop.permute.xlu0 %1856
      %1858 = vrot.lane.b32.xlu0 %v1789, 64
      %v1859 = vpop.permute.xlu0 %1858
      %1860 = vrot.lane.b32.xlu0 %v1790, 64
      %v1861 = vpop.permute.xlu0 %1860
      %1862 = vrot.lane.b32.xlu0 %v1791, 64
      %v1863 = vpop.permute.xlu0 %1862
      %1864 = vrot.lane.b32.xlu0 %v1792, 64
      %v1865 = vpop.permute.xlu0 %1864
      %1866 = vrot.lane.b32.xlu0 %v1793, 64
      %v1867 = vpop.permute.xlu0 %1866
      %1868 = vrot.lane.b32.xlu0 %v1794, 64
      %v1869 = vpop.permute.xlu0 %1868
      %1870 = vrot.lane.b32.xlu0 %v1795, 64
      %v1871 = vpop.permute.xlu0 %1870
      %1872 = vrot.lane.b32.xlu0 %v1796, 64
      %v1873 = vpop.permute.xlu0 %1872
      %1874 = vrot.lane.b32.xlu0 %v1797, 64
      %v1875 = vpop.permute.xlu0 %1874
      %1876 = vrot.lane.b32.xlu0 %v1798, 64
      %v1877 = vpop.permute.xlu0 %1876
      %1878 = vrot.lane.b32.xlu0 %v1799, 64
      %v1879 = vpop.permute.xlu0 %1878
      %1880 = vrot.lane.b32.xlu0 %v1800, 64
      %v1881 = vpop.permute.xlu0 %1880
      %1882 = vrot.lane.b32.xlu0 %v1801, 64
      %v1883 = vpop.permute.xlu0 %1882
      %1884 = vrot.lane.b32.xlu0 %v1802, 64
      %v1885 = vpop.permute.xlu0 %1884
      %1886 = vrot.lane.b32.xlu0 %v1803, 64
      %v1887 = vpop.permute.xlu0 %1886
      %1888 = vrot.lane.b32.xlu0 %v1804, 64
      %v1889 = vpop.permute.xlu0 %1888
      %1890 = vrot.lane.b32.xlu0 %v1805, 64
      %v1891 = vpop.permute.xlu0 %1890
      %1892 = vrot.lane.b32.xlu0 %v1806, 64
      %v1893 = vpop.permute.xlu0 %1892
      %1894 = vrot.lane.b32.xlu0 %v1807, 64
      %v1895 = vpop.permute.xlu0 %1894
      %1896 = vrot.lane.b32.xlu0 %v1808, 64
      %v1897 = vpop.permute.xlu0 %1896
      %1898 = vrot.lane.b32.xlu0 %v1809, 64
      %v1899 = vpop.permute.xlu0 %1898
      %1900 = vrot.lane.b32.xlu0 %v1810, 64
      %v1901 = vpop.permute.xlu0 %1900
      %1902 = vrot.lane.b32.xlu0 %v1811, 64
      %v1903 = vpop.permute.xlu0 %1902
      %1904 = vrot.lane.b32.xlu0 %v1812, 64
      %v1905 = vpop.permute.xlu0 %1904
      %1906 = vrot.lane.b32.xlu0 %v1813, 64
      %v1907 = vpop.permute.xlu0 %1906
      %1908 = vrot.lane.b32.xlu0 %v1814, 64
      %v1909 = vpop.permute.xlu0 %1908
      %1910 = vrot.lane.b32.xlu0 %v1815, 64
      %v1911 = vpop.permute.xlu0 %1910
      %vm1944 = vcmask 556544
      %1945 = vst.msk [vmem:[#allocation4] sm:$0xff] %vm1944, %v1849
      %1946 = vst.msk [vmem:[#allocation4 + $0x8] sm:$0xff] %vm1944, %v1851
      %1947 = vst.msk [vmem:[#allocation4 + $0x10] sm:$0xff] %vm1944, %v1853
      %1948 = vst.msk [vmem:[#allocation4 + $0x18] sm:$0xff] %vm1944, %v1855
      %1949 = vst.msk [vmem:[#allocation4 + $0x20] sm:$0xff] %vm1944, %v1857
      %1950 = vst.msk [vmem:[#allocation4 + $0x28] sm:$0xff] %vm1944, %v1859
      %1951 = vst.msk [vmem:[#allocation4 + $0x30] sm:$0xff] %vm1944, %v1861
      %1952 = vst.msk [vmem:[#allocation4 + $0x38] sm:$0xff] %vm1944, %v1863
      %1953 = vst.msk [vmem:[#allocation4 + $0x40] sm:$0xff] %vm1944, %v1865
      %1954 = vst.msk [vmem:[#allocation4 + $0x48] sm:$0xff] %vm1944, %v1867
      %1955 = vst.msk [vmem:[#allocation4 + $0x50] sm:$0xff] %vm1944, %v1869
      %1956 = vst.msk [vmem:[#allocation4 + $0x58] sm:$0xff] %vm1944, %v1871
      %1957 = vst.msk [vmem:[#allocation4 + $0x60] sm:$0xff] %vm1944, %v1873
      %1958 = vst.msk [vmem:[#allocation4 + $0x68] sm:$0xff] %vm1944, %v1875
      %1959 = vst.msk [vmem:[#allocation4 + $0x70] sm:$0xff] %vm1944, %v1877
      %1960 = vst.msk [vmem:[#allocation4 + $0x78] sm:$0xff] %vm1944, %v1879
      %1961 = vst.msk [vmem:[#allocation4 + $0x80] sm:$0xff] %vm1944, %v1881
      %1962 = vst.msk [vmem:[#allocation4 + $0x88] sm:$0xff] %vm1944, %v1883
      %1963 = vst.msk [vmem:[#allocation4 + $0x90] sm:$0xff] %vm1944, %v1885
      %1964 = vst.msk [vmem:[#allocation4 + $0x98] sm:$0xff] %vm1944, %v1887
      %1965 = vst.msk [vmem:[#allocation4 + $0xa0] sm:$0xff] %vm1944, %v1889
      %1966 = vst.msk [vmem:[#allocation4 + $0xa8] sm:$0xff] %vm1944, %v1891
      %1967 = vst.msk [vmem:[#allocation4 + $0xb0] sm:$0xff] %vm1944, %v1893
      %1968 = vst.msk [vmem:[#allocation4 + $0xb8] sm:$0xff] %vm1944, %v1895
      %1969 = vst.msk [vmem:[#allocation4 + $0xc0] sm:$0xff] %vm1944, %v1897
      %1970 = vst.msk [vmem:[#allocation4 + $0xc8] sm:$0xff] %vm1944, %v1899
      %1971 = vst.msk [vmem:[#allocation4 + $0xd0] sm:$0xff] %vm1944, %v1901
      %1972 = vst.msk [vmem:[#allocation4 + $0xd8] sm:$0xff] %vm1944, %v1903
      %1973 = vst.msk [vmem:[#allocation4 + $0xe0] sm:$0xff] %vm1944, %v1905
      %1974 = vst.msk [vmem:[#allocation4 + $0xe8] sm:$0xff] %vm1944, %v1907
      %1975 = vst.msk [vmem:[#allocation4 + $0xf0] sm:$0xff] %vm1944, %v1909
      %1976 = vst.msk [vmem:[#allocation4 + $0xf8] sm:$0xff] %vm1944, %v1911
      %v1977 = vld [vmem:[%s246] sm:$0xff]
      %v1978 = vld [vmem:[%s246 + $0x8] sm:$0xff]
      %v1979 = vld [vmem:[%s246 + $0x10] sm:$0xff]
      %v1980 = vld [vmem:[%s246 + $0x18] sm:$0xff]
      %v1981 = vld [vmem:[%s246 + $0x20] sm:$0xff]
      %v1982 = vld [vmem:[%s246 + $0x28] sm:$0xff]
      %v1983 = vld [vmem:[%s246 + $0x30] sm:$0xff]
      %v1984 = vld [vmem:[%s246 + $0x38] sm:$0xff]
      %v1985 = vld [vmem:[%s246 + $0x40] sm:$0xff]
      %v1986 = vld [vmem:[%s246 + $0x48] sm:$0xff]
      %v1987 = vld [vmem:[%s246 + $0x50] sm:$0xff]
      %v1988 = vld [vmem:[%s246 + $0x58] sm:$0xff]
      %v1989 = vld [vmem:[%s246 + $0x60] sm:$0xff]
      %v1990 = vld [vmem:[%s246 + $0x68] sm:$0xff]
      %v1991 = vld [vmem:[%s246 + $0x70] sm:$0xff]
      %v1992 = vld [vmem:[%s246 + $0x78] sm:$0xff]
      %v1993 = vld [vmem:[%s246 + $0x80] sm:$0xff]
      %v1994 = vld [vmem:[%s246 + $0x88] sm:$0xff]
      %v1995 = vld [vmem:[%s246 + $0x90] sm:$0xff]
      %v1996 = vld [vmem:[%s246 + $0x98] sm:$0xff]
      %v1997 = vld [vmem:[%s246 + $0xa0] sm:$0xff]
      %v1998 = vld [vmem:[%s246 + $0xa8] sm:$0xff]
      %v1999 = vld [vmem:[%s246 + $0xb0] sm:$0xff]
      %v2000 = vld [vmem:[%s246 + $0xb8] sm:$0xff]
      %v2001 = vld [vmem:[%s246 + $0xc0] sm:$0xff]
      %v2002 = vld [vmem:[%s246 + $0xc8] sm:$0xff]
      %v2003 = vld [vmem:[%s246 + $0xd0] sm:$0xff]
      %v2004 = vld [vmem:[%s246 + $0xd8] sm:$0xff]
      %v2005 = vld [vmem:[%s246 + $0xe0] sm:$0xff]
      %v2006 = vld [vmem:[%s246 + $0xe8] sm:$0xff]
      %v2007 = vld [vmem:[%s246 + $0xf0] sm:$0xff]
      %v2008 = vld [vmem:[%s246 + $0xf8] sm:$0xff]
      %2009 = vst.msk [vmem:[#allocation3] sm:$0xff] %vm289, 0.0
      %2010 = vst.msk [vmem:[#allocation3 + $0x8] sm:$0xff] %vm289, 0.0
      %2011 = vst.msk [vmem:[#allocation3 + $0x10] sm:$0x3] %vm292, 0.0
      %s2012 = scalar_lea.vmem [#allocation3], 408
      %2013 = vst.msk [vmem:[%s2012] sm:$0xff] %vm289, 0.0
      %2014 = vst.msk [vmem:[%s2012 + $0x8] sm:$0xff] %vm289, 0.0
      %2015 = vst.msk [vmem:[%s2012 + $0x10] sm:$0x3] %vm292, 0.0
      %2016 = vst.msk [vmem:[#allocation3] sm:$0x1] %vm298, 0.0
      %2017 = vst.msk [vmem:[#allocation3 + $0x18] sm:$0x1] %vm298, 0.0
      %2018 = vst.msk [vmem:[#allocation3 + $0x30] sm:$0x1] %vm298, 0.0
      %2019 = vst.msk [vmem:[#allocation3 + $0x48] sm:$0x1] %vm298, 0.0
      %2020 = vst.msk [vmem:[#allocation3 + $0x60] sm:$0x1] %vm298, 0.0
      %2021 = vst.msk [vmem:[#allocation3 + $0x78] sm:$0x1] %vm298, 0.0
      %2022 = vst.msk [vmem:[#allocation3 + $0x90] sm:$0x1] %vm298, 0.0
      %2023 = vst.msk [vmem:[#allocation3 + $0xa8] sm:$0x1] %vm298, 0.0
      %2024 = vst.msk [vmem:[#allocation3 + $0xc0] sm:$0x1] %vm298, 0.0
      %2025 = vst.msk [vmem:[#allocation3 + $0xd8] sm:$0x1] %vm298, 0.0
      %2026 = vst.msk [vmem:[#allocation3 + $0xf0] sm:$0x1] %vm298, 0.0
      %2027 = vst.msk [vmem:[#allocation3 + $0x108] sm:$0x1] %vm298, 0.0
      %2028 = vst.msk [vmem:[#allocation3 + $0x120] sm:$0x1] %vm298, 0.0
      %2029 = vst.msk [vmem:[#allocation3 + $0x138] sm:$0x1] %vm298, 0.0
      %2030 = vst.msk [vmem:[#allocation3 + $0x150] sm:$0x1] %vm298, 0.0
      %2031 = vst.msk [vmem:[#allocation3 + $0x168] sm:$0x1] %vm298, 0.0
      %2032 = vst.msk [vmem:[#allocation3 + $0x180] sm:$0x1] %vm298, 0.0
      %2033 = vst.msk [vmem:[#allocation3 + $0x198] sm:$0x1] %vm298, 0.0
      %2034 = vst.msk [vmem:[#allocation3 + $0x11] sm:$0x1] %vm298, 0.0
      %2035 = vst.msk [vmem:[#allocation3 + $0x29] sm:$0x1] %vm298, 0.0
      %2036 = vst.msk [vmem:[#allocation3 + $0x41] sm:$0x1] %vm298, 0.0
      %2037 = vst.msk [vmem:[#allocation3 + $0x59] sm:$0x1] %vm298, 0.0
      %2038 = vst.msk [vmem:[#allocation3 + $0x71] sm:$0x1] %vm298, 0.0
      %2039 = vst.msk [vmem:[#allocation3 + $0x89] sm:$0x1] %vm298, 0.0
      %2040 = vst.msk [vmem:[#allocation3 + $0xa1] sm:$0x1] %vm298, 0.0
      %2041 = vst.msk [vmem:[#allocation3 + $0xb9] sm:$0x1] %vm298, 0.0
      %2042 = vst.msk [vmem:[#allocation3 + $0xd1] sm:$0x1] %vm298, 0.0
      %2043 = vst.msk [vmem:[#allocation3 + $0xe9] sm:$0x1] %vm298, 0.0
      %2044 = vst.msk [vmem:[#allocation3 + $0x101] sm:$0x1] %vm298, 0.0
      %2045 = vst.msk [vmem:[#allocation3 + $0x119] sm:$0x1] %vm298, 0.0
      %2046 = vst.msk [vmem:[#allocation3 + $0x131] sm:$0x1] %vm298, 0.0
      %2047 = vst.msk [vmem:[#allocation3 + $0x149] sm:$0x1] %vm298, 0.0
      %2048 = vst.msk [vmem:[#allocation3 + $0x161] sm:$0x1] %vm298, 0.0
      %2049 = vst.msk [vmem:[#allocation3 + $0x179] sm:$0x1] %vm298, 0.0
      %2050 = vst.msk [vmem:[#allocation3 + $0x191] sm:$0x1] %vm298, 0.0
      %2051 = vst.msk [vmem:[#allocation3 + $0x1a9] sm:$0x1] %vm298, 0.0
      %s2052 = scalar_lea.vmem [#allocation3], 24
      %2053 = vst.msk [vmem:[%s2052 + $0x1] sm:$0xff] %vm289, %v1977
      %2054 = vst.msk [vmem:[%s2052 + $0x9] sm:$0xff] %vm289, %v1978
      %2055 = vst.msk [vmem:[%s2052 + $0x19] sm:$0xff] %vm289, %v1979
      %2056 = vst.msk [vmem:[%s2052 + $0x21] sm:$0xff] %vm289, %v1980
      %2057 = vst.msk [vmem:[%s2052 + $0x31] sm:$0xff] %vm289, %v1981
      %2058 = vst.msk [vmem:[%s2052 + $0x39] sm:$0xff] %vm289, %v1982
      %2059 = vst.msk [vmem:[%s2052 + $0x49] sm:$0xff] %vm289, %v1983
      %2060 = vst.msk [vmem:[%s2052 + $0x51] sm:$0xff] %vm289, %v1984
      %2061 = vst.msk [vmem:[%s2052 + $0x61] sm:$0xff] %vm289, %v1985
      %2062 = vst.msk [vmem:[%s2052 + $0x69] sm:$0xff] %vm289, %v1986
      %2063 = vst.msk [vmem:[%s2052 + $0x79] sm:$0xff] %vm289, %v1987
      %2064 = vst.msk [vmem:[%s2052 + $0x81] sm:$0xff] %vm289, %v1988
      %2065 = vst.msk [vmem:[%s2052 + $0x91] sm:$0xff] %vm289, %v1989
      %2066 = vst.msk [vmem:[%s2052 + $0x99] sm:$0xff] %vm289, %v1990
      %2067 = vst.msk [vmem:[%s2052 + $0xa9] sm:$0xff] %vm289, %v1991
      %2068 = vst.msk [vmem:[%s2052 + $0xb1] sm:$0xff] %vm289, %v1992
      %2069 = vst.msk [vmem:[%s2052 + $0xc1] sm:$0xff] %vm289, %v1993
      %2070 = vst.msk [vmem:[%s2052 + $0xc9] sm:$0xff] %vm289, %v1994
      %2071 = vst.msk [vmem:[%s2052 + $0xd9] sm:$0xff] %vm289, %v1995
      %2072 = vst.msk [vmem:[%s2052 + $0xe1] sm:$0xff] %vm289, %v1996
      %2073 = vst.msk [vmem:[%s2052 + $0xf1] sm:$0xff] %vm289, %v1997
      %2074 = vst.msk [vmem:[%s2052 + $0xf9] sm:$0xff] %vm289, %v1998
      %2075 = vst.msk [vmem:[%s2052 + $0x109] sm:$0xff] %vm289, %v1999
      %2076 = vst.msk [vmem:[%s2052 + $0x111] sm:$0xff] %vm289, %v2000
      %2077 = vst.msk [vmem:[%s2052 + $0x121] sm:$0xff] %vm289, %v2001
      %2078 = vst.msk [vmem:[%s2052 + $0x129] sm:$0xff] %vm289, %v2002
      %2079 = vst.msk [vmem:[%s2052 + $0x139] sm:$0xff] %vm289, %v2003
      %2080 = vst.msk [vmem:[%s2052 + $0x141] sm:$0xff] %vm289, %v2004
      %2081 = vst.msk [vmem:[%s2052 + $0x151] sm:$0xff] %vm289, %v2005
      %2082 = vst.msk [vmem:[%s2052 + $0x159] sm:$0xff] %vm289, %v2006
      %2083 = vst.msk [vmem:[%s2052 + $0x169] sm:$0xff] %vm289, %v2007
      %2084 = vst.msk [vmem:[%s2052 + $0x171] sm:$0xff] %vm289, %v2008
      %v2085 = vld [vmem:[#allocation3] sm:$0xff]
      %v2086 = vld [vmem:[#allocation3 + $0x8] sm:$0xff]
      %v2087 = vld [vmem:[#allocation3 + $0x18] sm:$0xff]
      %v2088 = vld [vmem:[#allocation3 + $0x20] sm:$0xff]
      %v2089 = vld [vmem:[#allocation3 + $0x30] sm:$0xff]
      %v2090 = vld [vmem:[#allocation3 + $0x38] sm:$0xff]
      %v2091 = vld [vmem:[#allocation3 + $0x48] sm:$0xff]
      %v2092 = vld [vmem:[#allocation3 + $0x50] sm:$0xff]
      %v2093 = vld [vmem:[#allocation3 + $0x60] sm:$0xff]
      %v2094 = vld [vmem:[#allocation3 + $0x68] sm:$0xff]
      %v2095 = vld [vmem:[#allocation3 + $0x78] sm:$0xff]
      %v2096 = vld [vmem:[#allocation3 + $0x80] sm:$0xff]
      %v2097 = vld [vmem:[#allocation3 + $0x90] sm:$0xff]
      %v2098 = vld [vmem:[#allocation3 + $0x98] sm:$0xff]
      %v2099 = vld [vmem:[#allocation3 + $0xa8] sm:$0xff]
      %v2100 = vld [vmem:[#allocation3 + $0xb0] sm:$0xff]
      %v2101 = vld [vmem:[#allocation3 + $0xc0] sm:$0xff]
      %v2102 = vld [vmem:[#allocation3 + $0xc8] sm:$0xff]
      %v2103 = vld [vmem:[#allocation3 + $0xd8] sm:$0xff]
      %v2104 = vld [vmem:[#allocation3 + $0xe0] sm:$0xff]
      %v2105 = vld [vmem:[#allocation3 + $0xf0] sm:$0xff]
      %v2106 = vld [vmem:[#allocation3 + $0xf8] sm:$0xff]
      %v2107 = vld [vmem:[#allocation3 + $0x108] sm:$0xff]
      %v2108 = vld [vmem:[#allocation3 + $0x110] sm:$0xff]
      %v2109 = vld [vmem:[#allocation3 + $0x120] sm:$0xff]
      %v2110 = vld [vmem:[#allocation3 + $0x128] sm:$0xff]
      %v2111 = vld [vmem:[#allocation3 + $0x138] sm:$0xff]
      %v2112 = vld [vmem:[#allocation3 + $0x140] sm:$0xff]
      %v2113 = vld [vmem:[#allocation3 + $0x150] sm:$0xff]
      %v2114 = vld [vmem:[#allocation3 + $0x158] sm:$0xff]
      %v2115 = vld [vmem:[#allocation3 + $0x168] sm:$0xff]
      %v2116 = vld [vmem:[#allocation3 + $0x170] sm:$0xff]
      %2149 = vrot.lane.b32.xlu0 %v2085, 4
      %v2150 = vpop.permute.xlu0 %2149
      %2151 = vrot.lane.b32.xlu0 %v2086, 4
      %v2152 = vpop.permute.xlu0 %2151
      %2153 = vrot.lane.b32.xlu0 %v2087, 4
      %v2154 = vpop.permute.xlu0 %2153
      %2155 = vrot.lane.b32.xlu0 %v2088, 4
      %v2156 = vpop.permute.xlu0 %2155
      %2157 = vrot.lane.b32.xlu0 %v2089, 4
      %v2158 = vpop.permute.xlu0 %2157
      %2159 = vrot.lane.b32.xlu0 %v2090, 4
      %v2160 = vpop.permute.xlu0 %2159
      %2161 = vrot.lane.b32.xlu0 %v2091, 4
      %v2162 = vpop.permute.xlu0 %2161
      %2163 = vrot.lane.b32.xlu0 %v2092, 4
      %v2164 = vpop.permute.xlu0 %2163
      %2165 = vrot.lane.b32.xlu0 %v2093, 4
      %v2166 = vpop.permute.xlu0 %2165
      %2167 = vrot.lane.b32.xlu0 %v2094, 4
      %v2168 = vpop.permute.xlu0 %2167
      %2169 = vrot.lane.b32.xlu0 %v2095, 4
      %v2170 = vpop.permute.xlu0 %2169
      %2171 = vrot.lane.b32.xlu0 %v2096, 4
      %v2172 = vpop.permute.xlu0 %2171
      %2173 = vrot.lane.b32.xlu0 %v2097, 4
      %v2174 = vpop.permute.xlu0 %2173
      %2175 = vrot.lane.b32.xlu0 %v2098, 4
      %v2176 = vpop.permute.xlu0 %2175
      %2177 = vrot.lane.b32.xlu0 %v2099, 4
      %v2178 = vpop.permute.xlu0 %2177
      %2179 = vrot.lane.b32.xlu0 %v2100, 4
      %v2180 = vpop.permute.xlu0 %2179
      %2181 = vrot.lane.b32.xlu0 %v2101, 4
      %v2182 = vpop.permute.xlu0 %2181
      %2183 = vrot.lane.b32.xlu0 %v2102, 4
      %v2184 = vpop.permute.xlu0 %2183
      %2185 = vrot.lane.b32.xlu0 %v2103, 4
      %v2186 = vpop.permute.xlu0 %2185
      %2187 = vrot.lane.b32.xlu0 %v2104, 4
      %v2188 = vpop.permute.xlu0 %2187
      %2189 = vrot.lane.b32.xlu0 %v2105, 4
      %v2190 = vpop.permute.xlu0 %2189
      %2191 = vrot.lane.b32.xlu0 %v2106, 4
      %v2192 = vpop.permute.xlu0 %2191
      %2193 = vrot.lane.b32.xlu0 %v2107, 4
      %v2194 = vpop.permute.xlu0 %2193
      %2195 = vrot.lane.b32.xlu0 %v2108, 4
      %v2196 = vpop.permute.xlu0 %2195
      %2197 = vrot.lane.b32.xlu0 %v2109, 4
      %v2198 = vpop.permute.xlu0 %2197
      %2199 = vrot.lane.b32.xlu0 %v2110, 4
      %v2200 = vpop.permute.xlu0 %2199
      %2201 = vrot.lane.b32.xlu0 %v2111, 4
      %v2202 = vpop.permute.xlu0 %2201
      %2203 = vrot.lane.b32.xlu0 %v2112, 4
      %v2204 = vpop.permute.xlu0 %2203
      %2205 = vrot.lane.b32.xlu0 %v2113, 4
      %v2206 = vpop.permute.xlu0 %2205
      %2207 = vrot.lane.b32.xlu0 %v2114, 4
      %v2208 = vpop.permute.xlu0 %2207
      %2209 = vrot.lane.b32.xlu0 %v2115, 4
      %v2210 = vpop.permute.xlu0 %2209
      %2211 = vrot.lane.b32.xlu0 %v2116, 4
      %v2212 = vpop.permute.xlu0 %2211
      %vm2245 = vcmask 64544
      %2246 = vst.msk [vmem:[#allocation4] sm:$0xff] %vm2245, %v2150
      %2247 = vst.msk [vmem:[#allocation4 + $0x8] sm:$0xff] %vm2245, %v2152
      %2248 = vst.msk [vmem:[#allocation4 + $0x10] sm:$0xff] %vm2245, %v2154
      %2249 = vst.msk [vmem:[#allocation4 + $0x18] sm:$0xff] %vm2245, %v2156
      %2250 = vst.msk [vmem:[#allocation4 + $0x20] sm:$0xff] %vm2245, %v2158
      %2251 = vst.msk [vmem:[#allocation4 + $0x28] sm:$0xff] %vm2245, %v2160
      %2252 = vst.msk [vmem:[#allocation4 + $0x30] sm:$0xff] %vm2245, %v2162
      %2253 = vst.msk [vmem:[#allocation4 + $0x38] sm:$0xff] %vm2245, %v2164
      %2254 = vst.msk [vmem:[#allocation4 + $0x40] sm:$0xff] %vm2245, %v2166
      %2255 = vst.msk [vmem:[#allocation4 + $0x48] sm:$0xff] %vm2245, %v2168
      %2256 = vst.msk [vmem:[#allocation4 + $0x50] sm:$0xff] %vm2245, %v2170
      %2257 = vst.msk [vmem:[#allocation4 + $0x58] sm:$0xff] %vm2245, %v2172
      %2258 = vst.msk [vmem:[#allocation4 + $0x60] sm:$0xff] %vm2245, %v2174
      %2259 = vst.msk [vmem:[#allocation4 + $0x68] sm:$0xff] %vm2245, %v2176
      %2260 = vst.msk [vmem:[#allocation4 + $0x70] sm:$0xff] %vm2245, %v2178
      %2261 = vst.msk [vmem:[#allocation4 + $0x78] sm:$0xff] %vm2245, %v2180
      %2262 = vst.msk [vmem:[#allocation4 + $0x80] sm:$0xff] %vm2245, %v2182
      %2263 = vst.msk [vmem:[#allocation4 + $0x88] sm:$0xff] %vm2245, %v2184
      %2264 = vst.msk [vmem:[#allocation4 + $0x90] sm:$0xff] %vm2245, %v2186
      %2265 = vst.msk [vmem:[#allocation4 + $0x98] sm:$0xff] %vm2245, %v2188
      %2266 = vst.msk [vmem:[#allocation4 + $0xa0] sm:$0xff] %vm2245, %v2190
      %2267 = vst.msk [vmem:[#allocation4 + $0xa8] sm:$0xff] %vm2245, %v2192
      %2268 = vst.msk [vmem:[#allocation4 + $0xb0] sm:$0xff] %vm2245, %v2194
      %2269 = vst.msk [vmem:[#allocation4 + $0xb8] sm:$0xff] %vm2245, %v2196
      %2270 = vst.msk [vmem:[#allocation4 + $0xc0] sm:$0xff] %vm2245, %v2198
      %2271 = vst.msk [vmem:[#allocation4 + $0xc8] sm:$0xff] %vm2245, %v2200
      %2272 = vst.msk [vmem:[#allocation4 + $0xd0] sm:$0xff] %vm2245, %v2202
      %2273 = vst.msk [vmem:[#allocation4 + $0xd8] sm:$0xff] %vm2245, %v2204
      %2274 = vst.msk [vmem:[#allocation4 + $0xe0] sm:$0xff] %vm2245, %v2206
      %2275 = vst.msk [vmem:[#allocation4 + $0xe8] sm:$0xff] %vm2245, %v2208
      %2276 = vst.msk [vmem:[#allocation4 + $0xf0] sm:$0xff] %vm2245, %v2210
      %2277 = vst.msk [vmem:[#allocation4 + $0xf8] sm:$0xff] %vm2245, %v2212
      %v2278 = vld [vmem:[#allocation3 + $0x1] sm:$0xff]
      %v2279 = vld [vmem:[#allocation3 + $0x9] sm:$0xff]
      %v2280 = vld [vmem:[#allocation3 + $0x19] sm:$0xff]
      %v2281 = vld [vmem:[#allocation3 + $0x21] sm:$0xff]
      %v2282 = vld [vmem:[#allocation3 + $0x31] sm:$0xff]
      %v2283 = vld [vmem:[#allocation3 + $0x39] sm:$0xff]
      %v2284 = vld [vmem:[#allocation3 + $0x49] sm:$0xff]
      %v2285 = vld [vmem:[#allocation3 + $0x51] sm:$0xff]
      %v2286 = vld [vmem:[#allocation3 + $0x61] sm:$0xff]
      %v2287 = vld [vmem:[#allocation3 + $0x69] sm:$0xff]
      %v2288 = vld [vmem:[#allocation3 + $0x79] sm:$0xff]
      %v2289 = vld [vmem:[#allocation3 + $0x81] sm:$0xff]
      %v2290 = vld [vmem:[#allocation3 + $0x91] sm:$0xff]
      %v2291 = vld [vmem:[#allocation3 + $0x99] sm:$0xff]
      %v2292 = vld [vmem:[#allocation3 + $0xa9] sm:$0xff]
      %v2293 = vld [vmem:[#allocation3 + $0xb1] sm:$0xff]
      %v2294 = vld [vmem:[#allocation3 + $0xc1] sm:$0xff]
      %v2295 = vld [vmem:[#allocation3 + $0xc9] sm:$0xff]
      %v2296 = vld [vmem:[#allocation3 + $0xd9] sm:$0xff]
      %v2297 = vld [vmem:[#allocation3 + $0xe1] sm:$0xff]
      %v2298 = vld [vmem:[#allocation3 + $0xf1] sm:$0xff]
      %v2299 = vld [vmem:[#allocation3 + $0xf9] sm:$0xff]
      %v2300 = vld [vmem:[#allocation3 + $0x109] sm:$0xff]
      %v2301 = vld [vmem:[#allocation3 + $0x111] sm:$0xff]
      %v2302 = vld [vmem:[#allocation3 + $0x121] sm:$0xff]
      %v2303 = vld [vmem:[#allocation3 + $0x129] sm:$0xff]
      %v2304 = vld [vmem:[#allocation3 + $0x139] sm:$0xff]
      %v2305 = vld [vmem:[#allocation3 + $0x141] sm:$0xff]
      %v2306 = vld [vmem:[#allocation3 + $0x151] sm:$0xff]
      %v2307 = vld [vmem:[#allocation3 + $0x159] sm:$0xff]
      %v2308 = vld [vmem:[#allocation3 + $0x169] sm:$0xff]
      %v2309 = vld [vmem:[#allocation3 + $0x171] sm:$0xff]
      %2342 = vrot.lane.b32.xlu0 %v2278, 12
      %v2343 = vpop.permute.xlu0 %2342
      %2344 = vrot.lane.b32.xlu0 %v2279, 12
      %v2345 = vpop.permute.xlu0 %2344
      %2346 = vrot.lane.b32.xlu0 %v2280, 12
      %v2347 = vpop.permute.xlu0 %2346
      %2348 = vrot.lane.b32.xlu0 %v2281, 12
      %v2349 = vpop.permute.xlu0 %2348
      %2350 = vrot.lane.b32.xlu0 %v2282, 12
      %v2351 = vpop.permute.xlu0 %2350
      %2352 = vrot.lane.b32.xlu0 %v2283, 12
      %v2353 = vpop.permute.xlu0 %2352
      %2354 = vrot.lane.b32.xlu0 %v2284, 12
      %v2355 = vpop.permute.xlu0 %2354
      %2356 = vrot.lane.b32.xlu0 %v2285, 12
      %v2357 = vpop.permute.xlu0 %2356
      %2358 = vrot.lane.b32.xlu0 %v2286, 12
      %v2359 = vpop.permute.xlu0 %2358
      %2360 = vrot.lane.b32.xlu0 %v2287, 12
      %v2361 = vpop.permute.xlu0 %2360
      %2362 = vrot.lane.b32.xlu0 %v2288, 12
      %v2363 = vpop.permute.xlu0 %2362
      %2364 = vrot.lane.b32.xlu0 %v2289, 12
      %v2365 = vpop.permute.xlu0 %2364
      %2366 = vrot.lane.b32.xlu0 %v2290, 12
      %v2367 = vpop.permute.xlu0 %2366
      %2368 = vrot.lane.b32.xlu0 %v2291, 12
      %v2369 = vpop.permute.xlu0 %2368
      %2370 = vrot.lane.b32.xlu0 %v2292, 12
      %v2371 = vpop.permute.xlu0 %2370
      %2372 = vrot.lane.b32.xlu0 %v2293, 12
      %v2373 = vpop.permute.xlu0 %2372
      %2374 = vrot.lane.b32.xlu0 %v2294, 12
      %v2375 = vpop.permute.xlu0 %2374
      %2376 = vrot.lane.b32.xlu0 %v2295, 12
      %v2377 = vpop.permute.xlu0 %2376
      %2378 = vrot.lane.b32.xlu0 %v2296, 12
      %v2379 = vpop.permute.xlu0 %2378
      %2380 = vrot.lane.b32.xlu0 %v2297, 12
      %v2381 = vpop.permute.xlu0 %2380
      %2382 = vrot.lane.b32.xlu0 %v2298, 12
      %v2383 = vpop.permute.xlu0 %2382
      %2384 = vrot.lane.b32.xlu0 %v2299, 12
      %v2385 = vpop.permute.xlu0 %2384
      %2386 = vrot.lane.b32.xlu0 %v2300, 12
      %v2387 = vpop.permute.xlu0 %2386
      %2388 = vrot.lane.b32.xlu0 %v2301, 12
      %v2389 = vpop.permute.xlu0 %2388
      %2390 = vrot.lane.b32.xlu0 %v2302, 12
      %v2391 = vpop.permute.xlu0 %2390
      %2392 = vrot.lane.b32.xlu0 %v2303, 12
      %v2393 = vpop.permute.xlu0 %2392
      %2394 = vrot.lane.b32.xlu0 %v2304, 12
      %v2395 = vpop.permute.xlu0 %2394
      %2396 = vrot.lane.b32.xlu0 %v2305, 12
      %v2397 = vpop.permute.xlu0 %2396
      %2398 = vrot.lane.b32.xlu0 %v2306, 12
      %v2399 = vpop.permute.xlu0 %2398
      %2400 = vrot.lane.b32.xlu0 %v2307, 12
      %v2401 = vpop.permute.xlu0 %2400
      %2402 = vrot.lane.b32.xlu0 %v2308, 12
      %v2403 = vpop.permute.xlu0 %2402
      %2404 = vrot.lane.b32.xlu0 %v2309, 12
      %v2405 = vpop.permute.xlu0 %2404
      %vm2438 = vcmask 130144
      %2439 = vst.msk [vmem:[#allocation4] sm:$0xff] %vm2438, %v2343
      %2440 = vst.msk [vmem:[#allocation4 + $0x8] sm:$0xff] %vm2438, %v2345
      %2441 = vst.msk [vmem:[#allocation4 + $0x10] sm:$0xff] %vm2438, %v2347
      %2442 = vst.msk [vmem:[#allocation4 + $0x18] sm:$0xff] %vm2438, %v2349
      %2443 = vst.msk [vmem:[#allocation4 + $0x20] sm:$0xff] %vm2438, %v2351
      %2444 = vst.msk [vmem:[#allocation4 + $0x28] sm:$0xff] %vm2438, %v2353
      %2445 = vst.msk [vmem:[#allocation4 + $0x30] sm:$0xff] %vm2438, %v2355
      %2446 = vst.msk [vmem:[#allocation4 + $0x38] sm:$0xff] %vm2438, %v2357
      %2447 = vst.msk [vmem:[#allocation4 + $0x40] sm:$0xff] %vm2438, %v2359
      %2448 = vst.msk [vmem:[#allocation4 + $0x48] sm:$0xff] %vm2438, %v2361
      %2449 = vst.msk [vmem:[#allocation4 + $0x50] sm:$0xff] %vm2438, %v2363
      %2450 = vst.msk [vmem:[#allocation4 + $0x58] sm:$0xff] %vm2438, %v2365
      %2451 = vst.msk [vmem:[#allocation4 + $0x60] sm:$0xff] %vm2438, %v2367
      %2452 = vst.msk [vmem:[#allocation4 + $0x68] sm:$0xff] %vm2438, %v2369
      %2453 = vst.msk [vmem:[#allocation4 + $0x70] sm:$0xff] %vm2438, %v2371
      %2454 = vst.msk [vmem:[#allocation4 + $0x78] sm:$0xff] %vm2438, %v2373
      %2455 = vst.msk [vmem:[#allocation4 + $0x80] sm:$0xff] %vm2438, %v2375
      %2456 = vst.msk [vmem:[#allocation4 + $0x88] sm:$0xff] %vm2438, %v2377
      %2457 = vst.msk [vmem:[#allocation4 + $0x90] sm:$0xff] %vm2438, %v2379
      %2458 = vst.msk [vmem:[#allocation4 + $0x98] sm:$0xff] %vm2438, %v2381
      %2459 = vst.msk [vmem:[#allocation4 + $0xa0] sm:$0xff] %vm2438, %v2383
      %2460 = vst.msk [vmem:[#allocation4 + $0xa8] sm:$0xff] %vm2438, %v2385
      %2461 = vst.msk [vmem:[#allocation4 + $0xb0] sm:$0xff] %vm2438, %v2387
      %2462 = vst.msk [vmem:[#allocation4 + $0xb8] sm:$0xff] %vm2438, %v2389
      %2463 = vst.msk [vmem:[#allocation4 + $0xc0] sm:$0xff] %vm2438, %v2391
      %2464 = vst.msk [vmem:[#allocation4 + $0xc8] sm:$0xff] %vm2438, %v2393
      %2465 = vst.msk [vmem:[#allocation4 + $0xd0] sm:$0xff] %vm2438, %v2395
      %2466 = vst.msk [vmem:[#allocation4 + $0xd8] sm:$0xff] %vm2438, %v2397
      %2467 = vst.msk [vmem:[#allocation4 + $0xe0] sm:$0xff] %vm2438, %v2399
      %2468 = vst.msk [vmem:[#allocation4 + $0xe8] sm:$0xff] %vm2438, %v2401
      %2469 = vst.msk [vmem:[#allocation4 + $0xf0] sm:$0xff] %vm2438, %v2403
      %2470 = vst.msk [vmem:[#allocation4 + $0xf8] sm:$0xff] %vm2438, %v2405
      %v2471 = vld [vmem:[#allocation3 + $0x2] sm:$0xff]
      %v2472 = vld [vmem:[#allocation3 + $0xa] sm:$0xff]
      %v2473 = vld [vmem:[#allocation3 + $0x1a] sm:$0xff]
      %v2474 = vld [vmem:[#allocation3 + $0x22] sm:$0xff]
      %v2475 = vld [vmem:[#allocation3 + $0x32] sm:$0xff]
      %v2476 = vld [vmem:[#allocation3 + $0x3a] sm:$0xff]
      %v2477 = vld [vmem:[#allocation3 + $0x4a] sm:$0xff]
      %v2478 = vld [vmem:[#allocation3 + $0x52] sm:$0xff]
      %v2479 = vld [vmem:[#allocation3 + $0x62] sm:$0xff]
      %v2480 = vld [vmem:[#allocation3 + $0x6a] sm:$0xff]
      %v2481 = vld [vmem:[#allocation3 + $0x7a] sm:$0xff]
      %v2482 = vld [vmem:[#allocation3 + $0x82] sm:$0xff]
      %v2483 = vld [vmem:[#allocation3 + $0x92] sm:$0xff]
      %v2484 = vld [vmem:[#allocation3 + $0x9a] sm:$0xff]
      %v2485 = vld [vmem:[#allocation3 + $0xaa] sm:$0xff]
      %v2486 = vld [vmem:[#allocation3 + $0xb2] sm:$0xff]
      %v2487 = vld [vmem:[#allocation3 + $0xc2] sm:$0xff]
      %v2488 = vld [vmem:[#allocation3 + $0xca] sm:$0xff]
      %v2489 = vld [vmem:[#allocation3 + $0xda] sm:$0xff]
      %v2490 = vld [vmem:[#allocation3 + $0xe2] sm:$0xff]
      %v2491 = vld [vmem:[#allocation3 + $0xf2] sm:$0xff]
      %v2492 = vld [vmem:[#allocation3 + $0xfa] sm:$0xff]
      %v2493 = vld [vmem:[#allocation3 + $0x10a] sm:$0xff]
      %v2494 = vld [vmem:[#allocation3 + $0x112] sm:$0xff]
      %v2495 = vld [vmem:[#allocation3 + $0x122] sm:$0xff]
      %v2496 = vld [vmem:[#allocation3 + $0x12a] sm:$0xff]
      %v2497 = vld [vmem:[#allocation3 + $0x13a] sm:$0xff]
      %v2498 = vld [vmem:[#allocation3 + $0x142] sm:$0xff]
      %v2499 = vld [vmem:[#allocation3 + $0x152] sm:$0xff]
      %v2500 = vld [vmem:[#allocation3 + $0x15a] sm:$0xff]
      %v2501 = vld [vmem:[#allocation3 + $0x16a] sm:$0xff]
      %v2502 = vld [vmem:[#allocation3 + $0x172] sm:$0xff]
      %2535 = vrot.lane.b32.xlu0 %v2471, 20
      %v2536 = vpop.permute.xlu0 %2535
      %2537 = vrot.lane.b32.xlu0 %v2472, 20
      %v2538 = vpop.permute.xlu0 %2537
      %2539 = vrot.lane.b32.xlu0 %v2473, 20
      %v2540 = vpop.permute.xlu0 %2539
      %2541 = vrot.lane.b32.xlu0 %v2474, 20
      %v2542 = vpop.permute.xlu0 %2541
      %2543 = vrot.lane.b32.xlu0 %v2475, 20
      %v2544 = vpop.permute.xlu0 %2543
      %2545 = vrot.lane.b32.xlu0 %v2476, 20
      %v2546 = vpop.permute.xlu0 %2545
      %2547 = vrot.lane.b32.xlu0 %v2477, 20
      %v2548 = vpop.permute.xlu0 %2547
      %2549 = vrot.lane.b32.xlu0 %v2478, 20
      %v2550 = vpop.permute.xlu0 %2549
      %2551 = vrot.lane.b32.xlu0 %v2479, 20
      %v2552 = vpop.permute.xlu0 %2551
      %2553 = vrot.lane.b32.xlu0 %v2480, 20
      %v2554 = vpop.permute.xlu0 %2553
      %2555 = vrot.lane.b32.xlu0 %v2481, 20
      %v2556 = vpop.permute.xlu0 %2555
      %2557 = vrot.lane.b32.xlu0 %v2482, 20
      %v2558 = vpop.permute.xlu0 %2557
      %2559 = vrot.lane.b32.xlu0 %v2483, 20
      %v2560 = vpop.permute.xlu0 %2559
      %2561 = vrot.lane.b32.xlu0 %v2484, 20
      %v2562 = vpop.permute.xlu0 %2561
      %2563 = vrot.lane.b32.xlu0 %v2485, 20
      %v2564 = vpop.permute.xlu0 %2563
      %2565 = vrot.lane.b32.xlu0 %v2486, 20
      %v2566 = vpop.permute.xlu0 %2565
      %2567 = vrot.lane.b32.xlu0 %v2487, 20
      %v2568 = vpop.permute.xlu0 %2567
      %2569 = vrot.lane.b32.xlu0 %v2488, 20
      %v2570 = vpop.permute.xlu0 %2569
      %2571 = vrot.lane.b32.xlu0 %v2489, 20
      %v2572 = vpop.permute.xlu0 %2571
      %2573 = vrot.lane.b32.xlu0 %v2490, 20
      %v2574 = vpop.permute.xlu0 %2573
      %2575 = vrot.lane.b32.xlu0 %v2491, 20
      %v2576 = vpop.permute.xlu0 %2575
      %2577 = vrot.lane.b32.xlu0 %v2492, 20
      %v2578 = vpop.permute.xlu0 %2577
      %2579 = vrot.lane.b32.xlu0 %v2493, 20
      %v2580 = vpop.permute.xlu0 %2579
      %2581 = vrot.lane.b32.xlu0 %v2494, 20
      %v2582 = vpop.permute.xlu0 %2581
      %2583 = vrot.lane.b32.xlu0 %v2495, 20
      %v2584 = vpop.permute.xlu0 %2583
      %2585 = vrot.lane.b32.xlu0 %v2496, 20
      %v2586 = vpop.permute.xlu0 %2585
      %2587 = vrot.lane.b32.xlu0 %v2497, 20
      %v2588 = vpop.permute.xlu0 %2587
      %2589 = vrot.lane.b32.xlu0 %v2498, 20
      %v2590 = vpop.permute.xlu0 %2589
      %2591 = vrot.lane.b32.xlu0 %v2499, 20
      %v2592 = vpop.permute.xlu0 %2591
      %2593 = vrot.lane.b32.xlu0 %v2500, 20
      %v2594 = vpop.permute.xlu0 %2593
      %2595 = vrot.lane.b32.xlu0 %v2501, 20
      %v2596 = vpop.permute.xlu0 %2595
      %2597 = vrot.lane.b32.xlu0 %v2502, 20
      %v2598 = vpop.permute.xlu0 %2597
      %vm2631 = vcmask 195744
      %2632 = vst.msk [vmem:[#allocation4] sm:$0xff] %vm2631, %v2536
      %2633 = vst.msk [vmem:[#allocation4 + $0x8] sm:$0xff] %vm2631, %v2538
      %2634 = vst.msk [vmem:[#allocation4 + $0x10] sm:$0xff] %vm2631, %v2540
      %2635 = vst.msk [vmem:[#allocation4 + $0x18] sm:$0xff] %vm2631, %v2542
      %2636 = vst.msk [vmem:[#allocation4 + $0x20] sm:$0xff] %vm2631, %v2544
      %2637 = vst.msk [vmem:[#allocation4 + $0x28] sm:$0xff] %vm2631, %v2546
      %2638 = vst.msk [vmem:[#allocation4 + $0x30] sm:$0xff] %vm2631, %v2548
      %2639 = vst.msk [vmem:[#allocation4 + $0x38] sm:$0xff] %vm2631, %v2550
      %2640 = vst.msk [vmem:[#allocation4 + $0x40] sm:$0xff] %vm2631, %v2552
      %2641 = vst.msk [vmem:[#allocation4 + $0x48] sm:$0xff] %vm2631, %v2554
      %2642 = vst.msk [vmem:[#allocation4 + $0x50] sm:$0xff] %vm2631, %v2556
      %2643 = vst.msk [vmem:[#allocation4 + $0x58] sm:$0xff] %vm2631, %v2558
      %2644 = vst.msk [vmem:[#allocation4 + $0x60] sm:$0xff] %vm2631, %v2560
      %2645 = vst.msk [vmem:[#allocation4 + $0x68] sm:$0xff] %vm2631, %v2562
      %2646 = vst.msk [vmem:[#allocation4 + $0x70] sm:$0xff] %vm2631, %v2564
      %2647 = vst.msk [vmem:[#allocation4 + $0x78] sm:$0xff] %vm2631, %v2566
      %2648 = vst.msk [vmem:[#allocation4 + $0x80] sm:$0xff] %vm2631, %v2568
      %2649 = vst.msk [vmem:[#allocation4 + $0x88] sm:$0xff] %vm2631, %v2570
      %2650 = vst.msk [vmem:[#allocation4 + $0x90] sm:$0xff] %vm2631, %v2572
      %2651 = vst.msk [vmem:[#allocation4 + $0x98] sm:$0xff] %vm2631, %v2574
      %2652 = vst.msk [vmem:[#allocation4 + $0xa0] sm:$0xff] %vm2631, %v2576
      %2653 = vst.msk [vmem:[#allocation4 + $0xa8] sm:$0xff] %vm2631, %v2578
      %2654 = vst.msk [vmem:[#allocation4 + $0xb0] sm:$0xff] %vm2631, %v2580
      %2655 = vst.msk [vmem:[#allocation4 + $0xb8] sm:$0xff] %vm2631, %v2582
      %2656 = vst.msk [vmem:[#allocation4 + $0xc0] sm:$0xff] %vm2631, %v2584
      %2657 = vst.msk [vmem:[#allocation4 + $0xc8] sm:$0xff] %vm2631, %v2586
      %2658 = vst.msk [vmem:[#allocation4 + $0xd0] sm:$0xff] %vm2631, %v2588
      %2659 = vst.msk [vmem:[#allocation4 + $0xd8] sm:$0xff] %vm2631, %v2590
      %2660 = vst.msk [vmem:[#allocation4 + $0xe0] sm:$0xff] %vm2631, %v2592
      %2661 = vst.msk [vmem:[#allocation4 + $0xe8] sm:$0xff] %vm2631, %v2594
      %2662 = vst.msk [vmem:[#allocation4 + $0xf0] sm:$0xff] %vm2631, %v2596
      %2663 = vst.msk [vmem:[#allocation4 + $0xf8] sm:$0xff] %vm2631, %v2598
      %v2664 = vld [vmem:[%s2052] sm:$0xff]
      %v2665 = vld [vmem:[%s2052 + $0x8] sm:$0xff]
      %v2666 = vld [vmem:[%s2052 + $0x18] sm:$0xff]
      %v2667 = vld [vmem:[%s2052 + $0x20] sm:$0xff]
      %v2668 = vld [vmem:[%s2052 + $0x30] sm:$0xff]
      %v2669 = vld [vmem:[%s2052 + $0x38] sm:$0xff]
      %v2670 = vld [vmem:[%s2052 + $0x48] sm:$0xff]
      %v2671 = vld [vmem:[%s2052 + $0x50] sm:$0xff]
      %v2672 = vld [vmem:[%s2052 + $0x60] sm:$0xff]
      %v2673 = vld [vmem:[%s2052 + $0x68] sm:$0xff]
      %v2674 = vld [vmem:[%s2052 + $0x78] sm:$0xff]
      %v2675 = vld [vmem:[%s2052 + $0x80] sm:$0xff]
      %v2676 = vld [vmem:[%s2052 + $0x90] sm:$0xff]
      %v2677 = vld [vmem:[%s2052 + $0x98] sm:$0xff]
      %v2678 = vld [vmem:[%s2052 + $0xa8] sm:$0xff]
      %v2679 = vld [vmem:[%s2052 + $0xb0] sm:$0xff]
      %v2680 = vld [vmem:[%s2052 + $0xc0] sm:$0xff]
      %v2681 = vld [vmem:[%s2052 + $0xc8] sm:$0xff]
      %v2682 = vld [vmem:[%s2052 + $0xd8] sm:$0xff]
      %v2683 = vld [vmem:[%s2052 + $0xe0] sm:$0xff]
      %v2684 = vld [vmem:[%s2052 + $0xf0] sm:$0xff]
      %v2685 = vld [vmem:[%s2052 + $0xf8] sm:$0xff]
      %v2686 = vld [vmem:[%s2052 + $0x108] sm:$0xff]
      %v2687 = vld [vmem:[%s2052 + $0x110] sm:$0xff]
      %v2688 = vld [vmem:[%s2052 + $0x120] sm:$0xff]
      %v2689 = vld [vmem:[%s2052 + $0x128] sm:$0xff]
      %v2690 = vld [vmem:[%s2052 + $0x138] sm:$0xff]
      %v2691 = vld [vmem:[%s2052 + $0x140] sm:$0xff]
      %v2692 = vld [vmem:[%s2052 + $0x150] sm:$0xff]
      %v2693 = vld [vmem:[%s2052 + $0x158] sm:$0xff]
      %v2694 = vld [vmem:[%s2052 + $0x168] sm:$0xff]
      %v2695 = vld [vmem:[%s2052 + $0x170] sm:$0xff]
      %2728 = vrot.lane.b32.xlu0 %v2664, 28
      %v2729 = vpop.permute.xlu0 %2728
      %2730 = vrot.lane.b32.xlu0 %v2665, 28
      %v2731 = vpop.permute.xlu0 %2730
      %2732 = vrot.lane.b32.xlu0 %v2666, 28
      %v2733 = vpop.permute.xlu0 %2732
      %2734 = vrot.lane.b32.xlu0 %v2667, 28
      %v2735 = vpop.permute.xlu0 %2734
      %2736 = vrot.lane.b32.xlu0 %v2668, 28
      %v2737 = vpop.permute.xlu0 %2736
      %2738 = vrot.lane.b32.xlu0 %v2669, 28
      %v2739 = vpop.permute.xlu0 %2738
      %2740 = vrot.lane.b32.xlu0 %v2670, 28
      %v2741 = vpop.permute.xlu0 %2740
      %2742 = vrot.lane.b32.xlu0 %v2671, 28
      %v2743 = vpop.permute.xlu0 %2742
      %2744 = vrot.lane.b32.xlu0 %v2672, 28
      %v2745 = vpop.permute.xlu0 %2744
      %2746 = vrot.lane.b32.xlu0 %v2673, 28
      %v2747 = vpop.permute.xlu0 %2746
      %2748 = vrot.lane.b32.xlu0 %v2674, 28
      %v2749 = vpop.permute.xlu0 %2748
      %2750 = vrot.lane.b32.xlu0 %v2675, 28
      %v2751 = vpop.permute.xlu0 %2750
      %2752 = vrot.lane.b32.xlu0 %v2676, 28
      %v2753 = vpop.permute.xlu0 %2752
      %2754 = vrot.lane.b32.xlu0 %v2677, 28
      %v2755 = vpop.permute.xlu0 %2754
      %2756 = vrot.lane.b32.xlu0 %v2678, 28
      %v2757 = vpop.permute.xlu0 %2756
      %2758 = vrot.lane.b32.xlu0 %v2679, 28
      %v2759 = vpop.permute.xlu0 %2758
      %2760 = vrot.lane.b32.xlu0 %v2680, 28
      %v2761 = vpop.permute.xlu0 %2760
      %2762 = vrot.lane.b32.xlu0 %v2681, 28
      %v2763 = vpop.permute.xlu0 %2762
      %2764 = vrot.lane.b32.xlu0 %v2682, 28
      %v2765 = vpop.permute.xlu0 %2764
      %2766 = vrot.lane.b32.xlu0 %v2683, 28
      %v2767 = vpop.permute.xlu0 %2766
      %2768 = vrot.lane.b32.xlu0 %v2684, 28
      %v2769 = vpop.permute.xlu0 %2768
      %2770 = vrot.lane.b32.xlu0 %v2685, 28
      %v2771 = vpop.permute.xlu0 %2770
      %2772 = vrot.lane.b32.xlu0 %v2686, 28
      %v2773 = vpop.permute.xlu0 %2772
      %2774 = vrot.lane.b32.xlu0 %v2687, 28
      %v2775 = vpop.permute.xlu0 %2774
      %2776 = vrot.lane.b32.xlu0 %v2688, 28
      %v2777 = vpop.permute.xlu0 %2776
      %2778 = vrot.lane.b32.xlu0 %v2689, 28
      %v2779 = vpop.permute.xlu0 %2778
      %2780 = vrot.lane.b32.xlu0 %v2690, 28
      %v2781 = vpop.permute.xlu0 %2780
      %2782 = vrot.lane.b32.xlu0 %v2691, 28
      %v2783 = vpop.permute.xlu0 %2782
      %2784 = vrot.lane.b32.xlu0 %v2692, 28
      %v2785 = vpop.permute.xlu0 %2784
      %2786 = vrot.lane.b32.xlu0 %v2693, 28
      %v2787 = vpop.permute.xlu0 %2786
      %2788 = vrot.lane.b32.xlu0 %v2694, 28
      %v2789 = vpop.permute.xlu0 %2788
      %2790 = vrot.lane.b32.xlu0 %v2695, 28
      %v2791 = vpop.permute.xlu0 %2790
      %vm2824 = vcmask 261344
      %2825 = vst.msk [vmem:[#allocation4] sm:$0xff] %vm2824, %v2729
      %2826 = vst.msk [vmem:[#allocation4 + $0x8] sm:$0xff] %vm2824, %v2731
      %2827 = vst.msk [vmem:[#allocation4 + $0x10] sm:$0xff] %vm2824, %v2733
      %2828 = vst.msk [vmem:[#allocation4 + $0x18] sm:$0xff] %vm2824, %v2735
      %2829 = vst.msk [vmem:[#allocation4 + $0x20] sm:$0xff] %vm2824, %v2737
      %2830 = vst.msk [vmem:[#allocation4 + $0x28] sm:$0xff] %vm2824, %v2739
      %2831 = vst.msk [vmem:[#allocation4 + $0x30] sm:$0xff] %vm2824, %v2741
      %2832 = vst.msk [vmem:[#allocation4 + $0x38] sm:$0xff] %vm2824, %v2743
      %2833 = vst.msk [vmem:[#allocation4 + $0x40] sm:$0xff] %vm2824, %v2745
      %2834 = vst.msk [vmem:[#allocation4 + $0x48] sm:$0xff] %vm2824, %v2747
      %2835 = vst.msk [vmem:[#allocation4 + $0x50] sm:$0xff] %vm2824, %v2749
      %2836 = vst.msk [vmem:[#allocation4 + $0x58] sm:$0xff] %vm2824, %v2751
      %2837 = vst.msk [vmem:[#allocation4 + $0x60] sm:$0xff] %vm2824, %v2753
      %2838 = vst.msk [vmem:[#allocation4 + $0x68] sm:$0xff] %vm2824, %v2755
      %2839 = vst.msk [vmem:[#allocation4 + $0x70] sm:$0xff] %vm2824, %v2757
      %2840 = vst.msk [vmem:[#allocation4 + $0x78] sm:$0xff] %vm2824, %v2759
      %2841 = vst.msk [vmem:[#allocation4 + $0x80] sm:$0xff] %vm2824, %v2761
      %2842 = vst.msk [vmem:[#allocation4 + $0x88] sm:$0xff] %vm2824, %v2763
      %2843 = vst.msk [vmem:[#allocation4 + $0x90] sm:$0xff] %vm2824, %v2765
      %2844 = vst.msk [vmem:[#allocation4 + $0x98] sm:$0xff] %vm2824, %v2767
      %2845 = vst.msk [vmem:[#allocation4 + $0xa0] sm:$0xff] %vm2824, %v2769
      %2846 = vst.msk [vmem:[#allocation4 + $0xa8] sm:$0xff] %vm2824, %v2771
      %2847 = vst.msk [vmem:[#allocation4 + $0xb0] sm:$0xff] %vm2824, %v2773
      %2848 = vst.msk [vmem:[#allocation4 + $0xb8] sm:$0xff] %vm2824, %v2775
      %2849 = vst.msk [vmem:[#allocation4 + $0xc0] sm:$0xff] %vm2824, %v2777
      %2850 = vst.msk [vmem:[#allocation4 + $0xc8] sm:$0xff] %vm2824, %v2779
      %2851 = vst.msk [vmem:[#allocation4 + $0xd0] sm:$0xff] %vm2824, %v2781
      %2852 = vst.msk [vmem:[#allocation4 + $0xd8] sm:$0xff] %vm2824, %v2783
      %2853 = vst.msk [vmem:[#allocation4 + $0xe0] sm:$0xff] %vm2824, %v2785
      %2854 = vst.msk [vmem:[#allocation4 + $0xe8] sm:$0xff] %vm2824, %v2787
      %2855 = vst.msk [vmem:[#allocation4 + $0xf0] sm:$0xff] %vm2824, %v2789
      %2856 = vst.msk [vmem:[#allocation4 + $0xf8] sm:$0xff] %vm2824, %v2791
      %v2857 = vld [vmem:[%s2052 + $0x1] sm:$0xff]
      %v2858 = vld [vmem:[%s2052 + $0x9] sm:$0xff]
      %v2859 = vld [vmem:[%s2052 + $0x19] sm:$0xff]
      %v2860 = vld [vmem:[%s2052 + $0x21] sm:$0xff]
      %v2861 = vld [vmem:[%s2052 + $0x31] sm:$0xff]
      %v2862 = vld [vmem:[%s2052 + $0x39] sm:$0xff]
      %v2863 = vld [vmem:[%s2052 + $0x49] sm:$0xff]
      %v2864 = vld [vmem:[%s2052 + $0x51] sm:$0xff]
      %v2865 = vld [vmem:[%s2052 + $0x61] sm:$0xff]
      %v2866 = vld [vmem:[%s2052 + $0x69] sm:$0xff]
      %v2867 = vld [vmem:[%s2052 + $0x79] sm:$0xff]
      %v2868 = vld [vmem:[%s2052 + $0x81] sm:$0xff]
      %v2869 = vld [vmem:[%s2052 + $0x91] sm:$0xff]
      %v2870 = vld [vmem:[%s2052 + $0x99] sm:$0xff]
      %v2871 = vld [vmem:[%s2052 + $0xa9] sm:$0xff]
      %v2872 = vld [vmem:[%s2052 + $0xb1] sm:$0xff]
      %v2873 = vld [vmem:[%s2052 + $0xc1] sm:$0xff]
      %v2874 = vld [vmem:[%s2052 + $0xc9] sm:$0xff]
      %v2875 = vld [vmem:[%s2052 + $0xd9] sm:$0xff]
      %v2876 = vld [vmem:[%s2052 + $0xe1] sm:$0xff]
      %v2877 = vld [vmem:[%s2052 + $0xf1] sm:$0xff]
      %v2878 = vld [vmem:[%s2052 + $0xf9] sm:$0xff]
      %v2879 = vld [vmem:[%s2052 + $0x109] sm:$0xff]
      %v2880 = vld [vmem:[%s2052 + $0x111] sm:$0xff]
      %v2881 = vld [vmem:[%s2052 + $0x121] sm:$0xff]
      %v2882 = vld [vmem:[%s2052 + $0x129] sm:$0xff]
      %v2883 = vld [vmem:[%s2052 + $0x139] sm:$0xff]
      %v2884 = vld [vmem:[%s2052 + $0x141] sm:$0xff]
      %v2885 = vld [vmem:[%s2052 + $0x151] sm:$0xff]
      %v2886 = vld [vmem:[%s2052 + $0x159] sm:$0xff]
      %v2887 = vld [vmem:[%s2052 + $0x169] sm:$0xff]
      %v2888 = vld [vmem:[%s2052 + $0x171] sm:$0xff]
      %2921 = vrot.lane.b32.xlu0 %v2857, 36
      %v2922 = vpop.permute.xlu0 %2921
      %2923 = vrot.lane.b32.xlu0 %v2858, 36
      %v2924 = vpop.permute.xlu0 %2923
      %2925 = vrot.lane.b32.xlu0 %v2859, 36
      %v2926 = vpop.permute.xlu0 %2925
      %2927 = vrot.lane.b32.xlu0 %v2860, 36
      %v2928 = vpop.permute.xlu0 %2927
      %2929 = vrot.lane.b32.xlu0 %v2861, 36
      %v2930 = vpop.permute.xlu0 %2929
      %2931 = vrot.lane.b32.xlu0 %v2862, 36
      %v2932 = vpop.permute.xlu0 %2931
      %2933 = vrot.lane.b32.xlu0 %v2863, 36
      %v2934 = vpop.permute.xlu0 %2933
      %2935 = vrot.lane.b32.xlu0 %v2864, 36
      %v2936 = vpop.permute.xlu0 %2935
      %2937 = vrot.lane.b32.xlu0 %v2865, 36
      %v2938 = vpop.permute.xlu0 %2937
      %2939 = vrot.lane.b32.xlu0 %v2866, 36
      %v2940 = vpop.permute.xlu0 %2939
      %2941 = vrot.lane.b32.xlu0 %v2867, 36
      %v2942 = vpop.permute.xlu0 %2941
      %2943 = vrot.lane.b32.xlu0 %v2868, 36
      %v2944 = vpop.permute.xlu0 %2943
      %2945 = vrot.lane.b32.xlu0 %v2869, 36
      %v2946 = vpop.permute.xlu0 %2945
      %2947 = vrot.lane.b32.xlu0 %v2870, 36
      %v2948 = vpop.permute.xlu0 %2947
      %2949 = vrot.lane.b32.xlu0 %v2871, 36
      %v2950 = vpop.permute.xlu0 %2949
      %2951 = vrot.lane.b32.xlu0 %v2872, 36
      %v2952 = vpop.permute.xlu0 %2951
      %2953 = vrot.lane.b32.xlu0 %v2873, 36
      %v2954 = vpop.permute.xlu0 %2953
      %2955 = vrot.lane.b32.xlu0 %v2874, 36
      %v2956 = vpop.permute.xlu0 %2955
      %2957 = vrot.lane.b32.xlu0 %v2875, 36
      %v2958 = vpop.permute.xlu0 %2957
      %2959 = vrot.lane.b32.xlu0 %v2876, 36
      %v2960 = vpop.permute.xlu0 %2959
      %2961 = vrot.lane.b32.xlu0 %v2877, 36
      %v2962 = vpop.permute.xlu0 %2961
      %2963 = vrot.lane.b32.xlu0 %v2878, 36
      %v2964 = vpop.permute.xlu0 %2963
      %2965 = vrot.lane.b32.xlu0 %v2879, 36
      %v2966 = vpop.permute.xlu0 %2965
      %2967 = vrot.lane.b32.xlu0 %v2880, 36
      %v2968 = vpop.permute.xlu0 %2967
      %2969 = vrot.lane.b32.xlu0 %v2881, 36
      %v2970 = vpop.permute.xlu0 %2969
      %2971 = vrot.lane.b32.xlu0 %v2882, 36
      %v2972 = vpop.permute.xlu0 %2971
      %2973 = vrot.lane.b32.xlu0 %v2883, 36
      %v2974 = vpop.permute.xlu0 %2973
      %2975 = vrot.lane.b32.xlu0 %v2884, 36
      %v2976 = vpop.permute.xlu0 %2975
      %2977 = vrot.lane.b32.xlu0 %v2885, 36
      %v2978 = vpop.permute.xlu0 %2977
      %2979 = vrot.lane.b32.xlu0 %v2886, 36
      %v2980 = vpop.permute.xlu0 %2979
      %2981 = vrot.lane.b32.xlu0 %v2887, 36
      %v2982 = vpop.permute.xlu0 %2981
      %2983 = vrot.lane.b32.xlu0 %v2888, 36
      %v2984 = vpop.permute.xlu0 %2983
      %vm3017 = vcmask 326944
      %3018 = vst.msk [vmem:[#allocation4] sm:$0xff] %vm3017, %v2922
      %3019 = vst.msk [vmem:[#allocation4 + $0x8] sm:$0xff] %vm3017, %v2924
      %3020 = vst.msk [vmem:[#allocation4 + $0x10] sm:$0xff] %vm3017, %v2926
      %3021 = vst.msk [vmem:[#allocation4 + $0x18] sm:$0xff] %vm3017, %v2928
      %3022 = vst.msk [vmem:[#allocation4 + $0x20] sm:$0xff] %vm3017, %v2930
      %3023 = vst.msk [vmem:[#allocation4 + $0x28] sm:$0xff] %vm3017, %v2932
      %3024 = vst.msk [vmem:[#allocation4 + $0x30] sm:$0xff] %vm3017, %v2934
      %3025 = vst.msk [vmem:[#allocation4 + $0x38] sm:$0xff] %vm3017, %v2936
      %3026 = vst.msk [vmem:[#allocation4 + $0x40] sm:$0xff] %vm3017, %v2938
      %3027 = vst.msk [vmem:[#allocation4 + $0x48] sm:$0xff] %vm3017, %v2940
      %3028 = vst.msk [vmem:[#allocation4 + $0x50] sm:$0xff] %vm3017, %v2942
      %3029 = vst.msk [vmem:[#allocation4 + $0x58] sm:$0xff] %vm3017, %v2944
      %3030 = vst.msk [vmem:[#allocation4 + $0x60] sm:$0xff] %vm3017, %v2946
      %3031 = vst.msk [vmem:[#allocation4 + $0x68] sm:$0xff] %vm3017, %v2948
      %3032 = vst.msk [vmem:[#allocation4 + $0x70] sm:$0xff] %vm3017, %v2950
      %3033 = vst.msk [vmem:[#allocation4 + $0x78] sm:$0xff] %vm3017, %v2952
      %3034 = vst.msk [vmem:[#allocation4 + $0x80] sm:$0xff] %vm3017, %v2954
      %3035 = vst.msk [vmem:[#allocation4 + $0x88] sm:$0xff] %vm3017, %v2956
      %3036 = vst.msk [vmem:[#allocation4 + $0x90] sm:$0xff] %vm3017, %v2958
      %3037 = vst.msk [vmem:[#allocation4 + $0x98] sm:$0xff] %vm3017, %v2960
      %3038 = vst.msk [vmem:[#allocation4 + $0xa0] sm:$0xff] %vm3017, %v2962
      %3039 = vst.msk [vmem:[#allocation4 + $0xa8] sm:$0xff] %vm3017, %v2964
      %3040 = vst.msk [vmem:[#allocation4 + $0xb0] sm:$0xff] %vm3017, %v2966
      %3041 = vst.msk [vmem:[#allocation4 + $0xb8] sm:$0xff] %vm3017, %v2968
      %3042 = vst.msk [vmem:[#allocation4 + $0xc0] sm:$0xff] %vm3017, %v2970
      %3043 = vst.msk [vmem:[#allocation4 + $0xc8] sm:$0xff] %vm3017, %v2972
      %3044 = vst.msk [vmem:[#allocation4 + $0xd0] sm:$0xff] %vm3017, %v2974
      %3045 = vst.msk [vmem:[#allocation4 + $0xd8] sm:$0xff] %vm3017, %v2976
      %3046 = vst.msk [vmem:[#allocation4 + $0xe0] sm:$0xff] %vm3017, %v2978
      %3047 = vst.msk [vmem:[#allocation4 + $0xe8] sm:$0xff] %vm3017, %v2980
      %3048 = vst.msk [vmem:[#allocation4 + $0xf0] sm:$0xff] %vm3017, %v2982
      %3049 = vst.msk [vmem:[#allocation4 + $0xf8] sm:$0xff] %vm3017, %v2984
      %v3050 = vld [vmem:[%s2052 + $0x2] sm:$0xff]
      %v3051 = vld [vmem:[%s2052 + $0xa] sm:$0xff]
      %v3052 = vld [vmem:[%s2052 + $0x1a] sm:$0xff]
      %v3053 = vld [vmem:[%s2052 + $0x22] sm:$0xff]
      %v3054 = vld [vmem:[%s2052 + $0x32] sm:$0xff]
      %v3055 = vld [vmem:[%s2052 + $0x3a] sm:$0xff]
      %v3056 = vld [vmem:[%s2052 + $0x4a] sm:$0xff]
      %v3057 = vld [vmem:[%s2052 + $0x52] sm:$0xff]
      %v3058 = vld [vmem:[%s2052 + $0x62] sm:$0xff]
      %v3059 = vld [vmem:[%s2052 + $0x6a] sm:$0xff]
      %v3060 = vld [vmem:[%s2052 + $0x7a] sm:$0xff]
      %v3061 = vld [vmem:[%s2052 + $0x82] sm:$0xff]
      %v3062 = vld [vmem:[%s2052 + $0x92] sm:$0xff]
      %v3063 = vld [vmem:[%s2052 + $0x9a] sm:$0xff]
      %v3064 = vld [vmem:[%s2052 + $0xaa] sm:$0xff]
      %v3065 = vld [vmem:[%s2052 + $0xb2] sm:$0xff]
      %v3066 = vld [vmem:[%s2052 + $0xc2] sm:$0xff]
      %v3067 = vld [vmem:[%s2052 + $0xca] sm:$0xff]
      %v3068 = vld [vmem:[%s2052 + $0xda] sm:$0xff]
      %v3069 = vld [vmem:[%s2052 + $0xe2] sm:$0xff]
      %v3070 = vld [vmem:[%s2052 + $0xf2] sm:$0xff]
      %v3071 = vld [vmem:[%s2052 + $0xfa] sm:$0xff]
      %v3072 = vld [vmem:[%s2052 + $0x10a] sm:$0xff]
      %v3073 = vld [vmem:[%s2052 + $0x112] sm:$0xff]
      %v3074 = vld [vmem:[%s2052 + $0x122] sm:$0xff]
      %v3075 = vld [vmem:[%s2052 + $0x12a] sm:$0xff]
      %v3076 = vld [vmem:[%s2052 + $0x13a] sm:$0xff]
      %v3077 = vld [vmem:[%s2052 + $0x142] sm:$0xff]
      %v3078 = vld [vmem:[%s2052 + $0x152] sm:$0xff]
      %v3079 = vld [vmem:[%s2052 + $0x15a] sm:$0xff]
      %v3080 = vld [vmem:[%s2052 + $0x16a] sm:$0xff]
      %v3081 = vld [vmem:[%s2052 + $0x172] sm:$0xff]
      %3114 = vrot.lane.b32.xlu0 %v3050, 44
      %v3115 = vpop.permute.xlu0 %3114
      %3116 = vrot.lane.b32.xlu0 %v3051, 44
      %v3117 = vpop.permute.xlu0 %3116
      %3118 = vrot.lane.b32.xlu0 %v3052, 44
      %v3119 = vpop.permute.xlu0 %3118
      %3120 = vrot.lane.b32.xlu0 %v3053, 44
      %v3121 = vpop.permute.xlu0 %3120
      %3122 = vrot.lane.b32.xlu0 %v3054, 44
      %v3123 = vpop.permute.xlu0 %3122
      %3124 = vrot.lane.b32.xlu0 %v3055, 44
      %v3125 = vpop.permute.xlu0 %3124
      %3126 = vrot.lane.b32.xlu0 %v3056, 44
      %v3127 = vpop.permute.xlu0 %3126
      %3128 = vrot.lane.b32.xlu0 %v3057, 44
      %v3129 = vpop.permute.xlu0 %3128
      %3130 = vrot.lane.b32.xlu0 %v3058, 44
      %v3131 = vpop.permute.xlu0 %3130
      %3132 = vrot.lane.b32.xlu0 %v3059, 44
      %v3133 = vpop.permute.xlu0 %3132
      %3134 = vrot.lane.b32.xlu0 %v3060, 44
      %v3135 = vpop.permute.xlu0 %3134
      %3136 = vrot.lane.b32.xlu0 %v3061, 44
      %v3137 = vpop.permute.xlu0 %3136
      %3138 = vrot.lane.b32.xlu0 %v3062, 44
      %v3139 = vpop.permute.xlu0 %3138
      %3140 = vrot.lane.b32.xlu0 %v3063, 44
      %v3141 = vpop.permute.xlu0 %3140
      %3142 = vrot.lane.b32.xlu0 %v3064, 44
      %v3143 = vpop.permute.xlu0 %3142
      %3144 = vrot.lane.b32.xlu0 %v3065, 44
      %v3145 = vpop.permute.xlu0 %3144
      %3146 = vrot.lane.b32.xlu0 %v3066, 44
      %v3147 = vpop.permute.xlu0 %3146
      %3148 = vrot.lane.b32.xlu0 %v3067, 44
      %v3149 = vpop.permute.xlu0 %3148
      %3150 = vrot.lane.b32.xlu0 %v3068, 44
      %v3151 = vpop.permute.xlu0 %3150
      %3152 = vrot.lane.b32.xlu0 %v3069, 44
      %v3153 = vpop.permute.xlu0 %3152
      %3154 = vrot.lane.b32.xlu0 %v3070, 44
      %v3155 = vpop.permute.xlu0 %3154
      %3156 = vrot.lane.b32.xlu0 %v3071, 44
      %v3157 = vpop.permute.xlu0 %3156
      %3158 = vrot.lane.b32.xlu0 %v3072, 44
      %v3159 = vpop.permute.xlu0 %3158
      %3160 = vrot.lane.b32.xlu0 %v3073, 44
      %v3161 = vpop.permute.xlu0 %3160
      %3162 = vrot.lane.b32.xlu0 %v3074, 44
      %v3163 = vpop.permute.xlu0 %3162
      %3164 = vrot.lane.b32.xlu0 %v3075, 44
      %v3165 = vpop.permute.xlu0 %3164
      %3166 = vrot.lane.b32.xlu0 %v3076, 44
      %v3167 = vpop.permute.xlu0 %3166
      %3168 = vrot.lane.b32.xlu0 %v3077, 44
      %v3169 = vpop.permute.xlu0 %3168
      %3170 = vrot.lane.b32.xlu0 %v3078, 44
      %v3171 = vpop.permute.xlu0 %3170
      %3172 = vrot.lane.b32.xlu0 %v3079, 44
      %v3173 = vpop.permute.xlu0 %3172
      %3174 = vrot.lane.b32.xlu0 %v3080, 44
      %v3175 = vpop.permute.xlu0 %3174
      %3176 = vrot.lane.b32.xlu0 %v3081, 44
      %v3177 = vpop.permute.xlu0 %3176
      %vm3210 = vcmask 392544
      %3211 = vst.msk [vmem:[#allocation4] sm:$0xff] %vm3210, %v3115
      %3212 = vst.msk [vmem:[#allocation4 + $0x8] sm:$0xff] %vm3210, %v3117
      %3213 = vst.msk [vmem:[#allocation4 + $0x10] sm:$0xff] %vm3210, %v3119
      %3214 = vst.msk [vmem:[#allocation4 + $0x18] sm:$0xff] %vm3210, %v3121
      %3215 = vst.msk [vmem:[#allocation4 + $0x20] sm:$0xff] %vm3210, %v3123
      %3216 = vst.msk [vmem:[#allocation4 + $0x28] sm:$0xff] %vm3210, %v3125
      %3217 = vst.msk [vmem:[#allocation4 + $0x30] sm:$0xff] %vm3210, %v3127
      %3218 = vst.msk [vmem:[#allocation4 + $0x38] sm:$0xff] %vm3210, %v3129
      %3219 = vst.msk [vmem:[#allocation4 + $0x40] sm:$0xff] %vm3210, %v3131
      %3220 = vst.msk [vmem:[#allocation4 + $0x48] sm:$0xff] %vm3210, %v3133
      %3221 = vst.msk [vmem:[#allocation4 + $0x50] sm:$0xff] %vm3210, %v3135
      %3222 = vst.msk [vmem:[#allocation4 + $0x58] sm:$0xff] %vm3210, %v3137
      %3223 = vst.msk [vmem:[#allocation4 + $0x60] sm:$0xff] %vm3210, %v3139
      %3224 = vst.msk [vmem:[#allocation4 + $0x68] sm:$0xff] %vm3210, %v3141
      %3225 = vst.msk [vmem:[#allocation4 + $0x70] sm:$0xff] %vm3210, %v3143
      %3226 = vst.msk [vmem:[#allocation4 + $0x78] sm:$0xff] %vm3210, %v3145
      %3227 = vst.msk [vmem:[#allocation4 + $0x80] sm:$0xff] %vm3210, %v3147
      %3228 = vst.msk [vmem:[#allocation4 + $0x88] sm:$0xff] %vm3210, %v3149
      %3229 = vst.msk [vmem:[#allocation4 + $0x90] sm:$0xff] %vm3210, %v3151
      %3230 = vst.msk [vmem:[#allocation4 + $0x98] sm:$0xff] %vm3210, %v3153
      %3231 = vst.msk [vmem:[#allocation4 + $0xa0] sm:$0xff] %vm3210, %v3155
      %3232 = vst.msk [vmem:[#allocation4 + $0xa8] sm:$0xff] %vm3210, %v3157
      %3233 = vst.msk [vmem:[#allocation4 + $0xb0] sm:$0xff] %vm3210, %v3159
      %3234 = vst.msk [vmem:[#allocation4 + $0xb8] sm:$0xff] %vm3210, %v3161
      %3235 = vst.msk [vmem:[#allocation4 + $0xc0] sm:$0xff] %vm3210, %v3163
      %3236 = vst.msk [vmem:[#allocation4 + $0xc8] sm:$0xff] %vm3210, %v3165
      %3237 = vst.msk [vmem:[#allocation4 + $0xd0] sm:$0xff] %vm3210, %v3167
      %3238 = vst.msk [vmem:[#allocation4 + $0xd8] sm:$0xff] %vm3210, %v3169
      %3239 = vst.msk [vmem:[#allocation4 + $0xe0] sm:$0xff] %vm3210, %v3171
      %3240 = vst.msk [vmem:[#allocation4 + $0xe8] sm:$0xff] %vm3210, %v3173
      %3241 = vst.msk [vmem:[#allocation4 + $0xf0] sm:$0xff] %vm3210, %v3175
      %3242 = vst.msk [vmem:[#allocation4 + $0xf8] sm:$0xff] %vm3210, %v3177
      %s3243 = scalar_lea.vmem [#allocation3], 48
      %v3244 = vld [vmem:[%s3243] sm:$0xff]
      %v3245 = vld [vmem:[%s3243 + $0x8] sm:$0xff]
      %v3246 = vld [vmem:[%s3243 + $0x18] sm:$0xff]
      %v3247 = vld [vmem:[%s3243 + $0x20] sm:$0xff]
      %v3248 = vld [vmem:[%s3243 + $0x30] sm:$0xff]
      %v3249 = vld [vmem:[%s3243 + $0x38] sm:$0xff]
      %v3250 = vld [vmem:[%s3243 + $0x48] sm:$0xff]
      %v3251 = vld [vmem:[%s3243 + $0x50] sm:$0xff]
      %v3252 = vld [vmem:[%s3243 + $0x60] sm:$0xff]
      %v3253 = vld [vmem:[%s3243 + $0x68] sm:$0xff]
      %v3254 = vld [vmem:[%s3243 + $0x78] sm:$0xff]
      %v3255 = vld [vmem:[%s3243 + $0x80] sm:$0xff]
      %v3256 = vld [vmem:[%s3243 + $0x90] sm:$0xff]
      %v3257 = vld [vmem:[%s3243 + $0x98] sm:$0xff]
      %v3258 = vld [vmem:[%s3243 + $0xa8] sm:$0xff]
      %v3259 = vld [vmem:[%s3243 + $0xb0] sm:$0xff]
      %v3260 = vld [vmem:[%s3243 + $0xc0] sm:$0xff]
      %v3261 = vld [vmem:[%s3243 + $0xc8] sm:$0xff]
      %v3262 = vld [vmem:[%s3243 + $0xd8] sm:$0xff]
      %v3263 = vld [vmem:[%s3243 + $0xe0] sm:$0xff]
      %v3264 = vld [vmem:[%s3243 + $0xf0] sm:$0xff]
      %v3265 = vld [vmem:[%s3243 + $0xf8] sm:$0xff]
      %v3266 = vld [vmem:[%s3243 + $0x108] sm:$0xff]
      %v3267 = vld [vmem:[%s3243 + $0x110] sm:$0xff]
      %v3268 = vld [vmem:[%s3243 + $0x120] sm:$0xff]
      %v3269 = vld [vmem:[%s3243 + $0x128] sm:$0xff]
      %v3270 = vld [vmem:[%s3243 + $0x138] sm:$0xff]
      %v3271 = vld [vmem:[%s3243 + $0x140] sm:$0xff]
      %v3272 = vld [vmem:[%s3243 + $0x150] sm:$0xff]
      %v3273 = vld [vmem:[%s3243 + $0x158] sm:$0xff]
      %v3274 = vld [vmem:[%s3243 + $0x168] sm:$0xff]
      %v3275 = vld [vmem:[%s3243 + $0x170] sm:$0xff]
      %3308 = vrot.lane.b32.xlu0 %v3244, 52
      %v3309 = vpop.permute.xlu0 %3308
      %3310 = vrot.lane.b32.xlu0 %v3245, 52
      %v3311 = vpop.permute.xlu0 %3310
      %3312 = vrot.lane.b32.xlu0 %v3246, 52
      %v3313 = vpop.permute.xlu0 %3312
      %3314 = vrot.lane.b32.xlu0 %v3247, 52
      %v3315 = vpop.permute.xlu0 %3314
      %3316 = vrot.lane.b32.xlu0 %v3248, 52
      %v3317 = vpop.permute.xlu0 %3316
      %3318 = vrot.lane.b32.xlu0 %v3249, 52
      %v3319 = vpop.permute.xlu0 %3318
      %3320 = vrot.lane.b32.xlu0 %v3250, 52
      %v3321 = vpop.permute.xlu0 %3320
      %3322 = vrot.lane.b32.xlu0 %v3251, 52
      %v3323 = vpop.permute.xlu0 %3322
      %3324 = vrot.lane.b32.xlu0 %v3252, 52
      %v3325 = vpop.permute.xlu0 %3324
      %3326 = vrot.lane.b32.xlu0 %v3253, 52
      %v3327 = vpop.permute.xlu0 %3326
      %3328 = vrot.lane.b32.xlu0 %v3254, 52
      %v3329 = vpop.permute.xlu0 %3328
      %3330 = vrot.lane.b32.xlu0 %v3255, 52
      %v3331 = vpop.permute.xlu0 %3330
      %3332 = vrot.lane.b32.xlu0 %v3256, 52
      %v3333 = vpop.permute.xlu0 %3332
      %3334 = vrot.lane.b32.xlu0 %v3257, 52
      %v3335 = vpop.permute.xlu0 %3334
      %3336 = vrot.lane.b32.xlu0 %v3258, 52
      %v3337 = vpop.permute.xlu0 %3336
      %3338 = vrot.lane.b32.xlu0 %v3259, 52
      %v3339 = vpop.permute.xlu0 %3338
      %3340 = vrot.lane.b32.xlu0 %v3260, 52
      %v3341 = vpop.permute.xlu0 %3340
      %3342 = vrot.lane.b32.xlu0 %v3261, 52
      %v3343 = vpop.permute.xlu0 %3342
      %3344 = vrot.lane.b32.xlu0 %v3262, 52
      %v3345 = vpop.permute.xlu0 %3344
      %3346 = vrot.lane.b32.xlu0 %v3263, 52
      %v3347 = vpop.permute.xlu0 %3346
      %3348 = vrot.lane.b32.xlu0 %v3264, 52
      %v3349 = vpop.permute.xlu0 %3348
      %3350 = vrot.lane.b32.xlu0 %v3265, 52
      %v3351 = vpop.permute.xlu0 %3350
      %3352 = vrot.lane.b32.xlu0 %v3266, 52
      %v3353 = vpop.permute.xlu0 %3352
      %3354 = vrot.lane.b32.xlu0 %v3267, 52
      %v3355 = vpop.permute.xlu0 %3354
      %3356 = vrot.lane.b32.xlu0 %v3268, 52
      %v3357 = vpop.permute.xlu0 %3356
      %3358 = vrot.lane.b32.xlu0 %v3269, 52
      %v3359 = vpop.permute.xlu0 %3358
      %3360 = vrot.lane.b32.xlu0 %v3270, 52
      %v3361 = vpop.permute.xlu0 %3360
      %3362 = vrot.lane.b32.xlu0 %v3271, 52
      %v3363 = vpop.permute.xlu0 %3362
      %3364 = vrot.lane.b32.xlu0 %v3272, 52
      %v3365 = vpop.permute.xlu0 %3364
      %3366 = vrot.lane.b32.xlu0 %v3273, 52
      %v3367 = vpop.permute.xlu0 %3366
      %3368 = vrot.lane.b32.xlu0 %v3274, 52
      %v3369 = vpop.permute.xlu0 %3368
      %3370 = vrot.lane.b32.xlu0 %v3275, 52
      %v3371 = vpop.permute.xlu0 %3370
      %vm3404 = vcmask 458144
      %3405 = vst.msk [vmem:[#allocation4] sm:$0xff] %vm3404, %v3309
      %3406 = vst.msk [vmem:[#allocation4 + $0x8] sm:$0xff] %vm3404, %v3311
      %3407 = vst.msk [vmem:[#allocation4 + $0x10] sm:$0xff] %vm3404, %v3313
      %3408 = vst.msk [vmem:[#allocation4 + $0x18] sm:$0xff] %vm3404, %v3315
      %3409 = vst.msk [vmem:[#allocation4 + $0x20] sm:$0xff] %vm3404, %v3317
      %3410 = vst.msk [vmem:[#allocation4 + $0x28] sm:$0xff] %vm3404, %v3319
      %3411 = vst.msk [vmem:[#allocation4 + $0x30] sm:$0xff] %vm3404, %v3321
      %3412 = vst.msk [vmem:[#allocation4 + $0x38] sm:$0xff] %vm3404, %v3323
      %3413 = vst.msk [vmem:[#allocation4 + $0x40] sm:$0xff] %vm3404, %v3325
      %3414 = vst.msk [vmem:[#allocation4 + $0x48] sm:$0xff] %vm3404, %v3327
      %3415 = vst.msk [vmem:[#allocation4 + $0x50] sm:$0xff] %vm3404, %v3329
      %3416 = vst.msk [vmem:[#allocation4 + $0x58] sm:$0xff] %vm3404, %v3331
      %3417 = vst.msk [vmem:[#allocation4 + $0x60] sm:$0xff] %vm3404, %v3333
      %3418 = vst.msk [vmem:[#allocation4 + $0x68] sm:$0xff] %vm3404, %v3335
      %3419 = vst.msk [vmem:[#allocation4 + $0x70] sm:$0xff] %vm3404, %v3337
      %3420 = vst.msk [vmem:[#allocation4 + $0x78] sm:$0xff] %vm3404, %v3339
      %3421 = vst.msk [vmem:[#allocation4 + $0x80] sm:$0xff] %vm3404, %v3341
      %3422 = vst.msk [vmem:[#allocation4 + $0x88] sm:$0xff] %vm3404, %v3343
      %3423 = vst.msk [vmem:[#allocation4 + $0x90] sm:$0xff] %vm3404, %v3345
      %3424 = vst.msk [vmem:[#allocation4 + $0x98] sm:$0xff] %vm3404, %v3347
      %3425 = vst.msk [vmem:[#allocation4 + $0xa0] sm:$0xff] %vm3404, %v3349
      %3426 = vst.msk [vmem:[#allocation4 + $0xa8] sm:$0xff] %vm3404, %v3351
      %3427 = vst.msk [vmem:[#allocation4 + $0xb0] sm:$0xff] %vm3404, %v3353
      %3428 = vst.msk [vmem:[#allocation4 + $0xb8] sm:$0xff] %vm3404, %v3355
      %3429 = vst.msk [vmem:[#allocation4 + $0xc0] sm:$0xff] %vm3404, %v3357
      %3430 = vst.msk [vmem:[#allocation4 + $0xc8] sm:$0xff] %vm3404, %v3359
      %3431 = vst.msk [vmem:[#allocation4 + $0xd0] sm:$0xff] %vm3404, %v3361
      %3432 = vst.msk [vmem:[#allocation4 + $0xd8] sm:$0xff] %vm3404, %v3363
      %3433 = vst.msk [vmem:[#allocation4 + $0xe0] sm:$0xff] %vm3404, %v3365
      %3434 = vst.msk [vmem:[#allocation4 + $0xe8] sm:$0xff] %vm3404, %v3367
      %3435 = vst.msk [vmem:[#allocation4 + $0xf0] sm:$0xff] %vm3404, %v3369
      %3436 = vst.msk [vmem:[#allocation4 + $0xf8] sm:$0xff] %vm3404, %v3371
      %v3437 = vld [vmem:[%s3243 + $0x1] sm:$0xff]
      %v3438 = vld [vmem:[%s3243 + $0x9] sm:$0xff]
      %v3439 = vld [vmem:[%s3243 + $0x19] sm:$0xff]
      %v3440 = vld [vmem:[%s3243 + $0x21] sm:$0xff]
      %v3441 = vld [vmem:[%s3243 + $0x31] sm:$0xff]
      %v3442 = vld [vmem:[%s3243 + $0x39] sm:$0xff]
      %v3443 = vld [vmem:[%s3243 + $0x49] sm:$0xff]
      %v3444 = vld [vmem:[%s3243 + $0x51] sm:$0xff]
      %v3445 = vld [vmem:[%s3243 + $0x61] sm:$0xff]
      %v3446 = vld [vmem:[%s3243 + $0x69] sm:$0xff]
      %v3447 = vld [vmem:[%s3243 + $0x79] sm:$0xff]
      %v3448 = vld [vmem:[%s3243 + $0x81] sm:$0xff]
      %v3449 = vld [vmem:[%s3243 + $0x91] sm:$0xff]
      %v3450 = vld [vmem:[%s3243 + $0x99] sm:$0xff]
      %v3451 = vld [vmem:[%s3243 + $0xa9] sm:$0xff]
      %v3452 = vld [vmem:[%s3243 + $0xb1] sm:$0xff]
      %v3453 = vld [vmem:[%s3243 + $0xc1] sm:$0xff]
      %v3454 = vld [vmem:[%s3243 + $0xc9] sm:$0xff]
      %v3455 = vld [vmem:[%s3243 + $0xd9] sm:$0xff]
      %v3456 = vld [vmem:[%s3243 + $0xe1] sm:$0xff]
      %v3457 = vld [vmem:[%s3243 + $0xf1] sm:$0xff]
      %v3458 = vld [vmem:[%s3243 + $0xf9] sm:$0xff]
      %v3459 = vld [vmem:[%s3243 + $0x109] sm:$0xff]
      %v3460 = vld [vmem:[%s3243 + $0x111] sm:$0xff]
      %v3461 = vld [vmem:[%s3243 + $0x121] sm:$0xff]
      %v3462 = vld [vmem:[%s3243 + $0x129] sm:$0xff]
      %v3463 = vld [vmem:[%s3243 + $0x139] sm:$0xff]
      %v3464 = vld [vmem:[%s3243 + $0x141] sm:$0xff]
      %v3465 = vld [vmem:[%s3243 + $0x151] sm:$0xff]
      %v3466 = vld [vmem:[%s3243 + $0x159] sm:$0xff]
      %v3467 = vld [vmem:[%s3243 + $0x169] sm:$0xff]
      %v3468 = vld [vmem:[%s3243 + $0x171] sm:$0xff]
      %3501 = vrot.lane.b32.xlu0 %v3437, 60
      %v3502 = vpop.permute.xlu0 %3501
      %3503 = vrot.lane.b32.xlu0 %v3438, 60
      %v3504 = vpop.permute.xlu0 %3503
      %3505 = vrot.lane.b32.xlu0 %v3439, 60
      %v3506 = vpop.permute.xlu0 %3505
      %3507 = vrot.lane.b32.xlu0 %v3440, 60
      %v3508 = vpop.permute.xlu0 %3507
      %3509 = vrot.lane.b32.xlu0 %v3441, 60
      %v3510 = vpop.permute.xlu0 %3509
      %3511 = vrot.lane.b32.xlu0 %v3442, 60
      %v3512 = vpop.permute.xlu0 %3511
      %3513 = vrot.lane.b32.xlu0 %v3443, 60
      %v3514 = vpop.permute.xlu0 %3513
      %3515 = vrot.lane.b32.xlu0 %v3444, 60
      %v3516 = vpop.permute.xlu0 %3515
      %3517 = vrot.lane.b32.xlu0 %v3445, 60
      %v3518 = vpop.permute.xlu0 %3517
      %3519 = vrot.lane.b32.xlu0 %v3446, 60
      %v3520 = vpop.permute.xlu0 %3519
      %3521 = vrot.lane.b32.xlu0 %v3447, 60
      %v3522 = vpop.permute.xlu0 %3521
      %3523 = vrot.lane.b32.xlu0 %v3448, 60
      %v3524 = vpop.permute.xlu0 %3523
      %3525 = vrot.lane.b32.xlu0 %v3449, 60
      %v3526 = vpop.permute.xlu0 %3525
      %3527 = vrot.lane.b32.xlu0 %v3450, 60
      %v3528 = vpop.permute.xlu0 %3527
      %3529 = vrot.lane.b32.xlu0 %v3451, 60
      %v3530 = vpop.permute.xlu0 %3529
      %3531 = vrot.lane.b32.xlu0 %v3452, 60
      %v3532 = vpop.permute.xlu0 %3531
      %3533 = vrot.lane.b32.xlu0 %v3453, 60
      %v3534 = vpop.permute.xlu0 %3533
      %3535 = vrot.lane.b32.xlu0 %v3454, 60
      %v3536 = vpop.permute.xlu0 %3535
      %3537 = vrot.lane.b32.xlu0 %v3455, 60
      %v3538 = vpop.permute.xlu0 %3537
      %3539 = vrot.lane.b32.xlu0 %v3456, 60
      %v3540 = vpop.permute.xlu0 %3539
      %3541 = vrot.lane.b32.xlu0 %v3457, 60
      %v3542 = vpop.permute.xlu0 %3541
      %3543 = vrot.lane.b32.xlu0 %v3458, 60
      %v3544 = vpop.permute.xlu0 %3543
      %3545 = vrot.lane.b32.xlu0 %v3459, 60
      %v3546 = vpop.permute.xlu0 %3545
      %3547 = vrot.lane.b32.xlu0 %v3460, 60
      %v3548 = vpop.permute.xlu0 %3547
      %3549 = vrot.lane.b32.xlu0 %v3461, 60
      %v3550 = vpop.permute.xlu0 %3549
      %3551 = vrot.lane.b32.xlu0 %v3462, 60
      %v3552 = vpop.permute.xlu0 %3551
      %3553 = vrot.lane.b32.xlu0 %v3463, 60
      %v3554 = vpop.permute.xlu0 %3553
      %3555 = vrot.lane.b32.xlu0 %v3464, 60
      %v3556 = vpop.permute.xlu0 %3555
      %3557 = vrot.lane.b32.xlu0 %v3465, 60
      %v3558 = vpop.permute.xlu0 %3557
      %3559 = vrot.lane.b32.xlu0 %v3466, 60
      %v3560 = vpop.permute.xlu0 %3559
      %3561 = vrot.lane.b32.xlu0 %v3467, 60
      %v3562 = vpop.permute.xlu0 %3561
      %3563 = vrot.lane.b32.xlu0 %v3468, 60
      %v3564 = vpop.permute.xlu0 %3563
      %vm3597 = vcmask 523744
      %3598 = vst.msk [vmem:[#allocation4] sm:$0xff] %vm3597, %v3502
      %3599 = vst.msk [vmem:[#allocation4 + $0x8] sm:$0xff] %vm3597, %v3504
      %3600 = vst.msk [vmem:[#allocation4 + $0x10] sm:$0xff] %vm3597, %v3506
      %3601 = vst.msk [vmem:[#allocation4 + $0x18] sm:$0xff] %vm3597, %v3508
      %3602 = vst.msk [vmem:[#allocation4 + $0x20] sm:$0xff] %vm3597, %v3510
      %3603 = vst.msk [vmem:[#allocation4 + $0x28] sm:$0xff] %vm3597, %v3512
      %3604 = vst.msk [vmem:[#allocation4 + $0x30] sm:$0xff] %vm3597, %v3514
      %3605 = vst.msk [vmem:[#allocation4 + $0x38] sm:$0xff] %vm3597, %v3516
      %3606 = vst.msk [vmem:[#allocation4 + $0x40] sm:$0xff] %vm3597, %v3518
      %3607 = vst.msk [vmem:[#allocation4 + $0x48] sm:$0xff] %vm3597, %v3520
      %3608 = vst.msk [vmem:[#allocation4 + $0x50] sm:$0xff] %vm3597, %v3522
      %3609 = vst.msk [vmem:[#allocation4 + $0x58] sm:$0xff] %vm3597, %v3524
      %3610 = vst.msk [vmem:[#allocation4 + $0x60] sm:$0xff] %vm3597, %v3526
      %3611 = vst.msk [vmem:[#allocation4 + $0x68] sm:$0xff] %vm3597, %v3528
      %3612 = vst.msk [vmem:[#allocation4 + $0x70] sm:$0xff] %vm3597, %v3530
      %3613 = vst.msk [vmem:[#allocation4 + $0x78] sm:$0xff] %vm3597, %v3532
      %3614 = vst.msk [vmem:[#allocation4 + $0x80] sm:$0xff] %vm3597, %v3534
      %3615 = vst.msk [vmem:[#allocation4 + $0x88] sm:$0xff] %vm3597, %v3536
      %3616 = vst.msk [vmem:[#allocation4 + $0x90] sm:$0xff] %vm3597, %v3538
      %3617 = vst.msk [vmem:[#allocation4 + $0x98] sm:$0xff] %vm3597, %v3540
      %3618 = vst.msk [vmem:[#allocation4 + $0xa0] sm:$0xff] %vm3597, %v3542
      %3619 = vst.msk [vmem:[#allocation4 + $0xa8] sm:$0xff] %vm3597, %v3544
      %3620 = vst.msk [vmem:[#allocation4 + $0xb0] sm:$0xff] %vm3597, %v3546
      %3621 = vst.msk [vmem:[#allocation4 + $0xb8] sm:$0xff] %vm3597, %v3548
      %3622 = vst.msk [vmem:[#allocation4 + $0xc0] sm:$0xff] %vm3597, %v3550
      %3623 = vst.msk [vmem:[#allocation4 + $0xc8] sm:$0xff] %vm3597, %v3552
      %3624 = vst.msk [vmem:[#allocation4 + $0xd0] sm:$0xff] %vm3597, %v3554
      %3625 = vst.msk [vmem:[#allocation4 + $0xd8] sm:$0xff] %vm3597, %v3556
      %3626 = vst.msk [vmem:[#allocation4 + $0xe0] sm:$0xff] %vm3597, %v3558
      %3627 = vst.msk [vmem:[#allocation4 + $0xe8] sm:$0xff] %vm3597, %v3560
      %3628 = vst.msk [vmem:[#allocation4 + $0xf0] sm:$0xff] %vm3597, %v3562
      %3629 = vst.msk [vmem:[#allocation4 + $0xf8] sm:$0xff] %vm3597, %v3564
      %v3630 = vld [vmem:[%s3243 + $0x2] sm:$0xff]
      %v3631 = vld [vmem:[%s3243 + $0xa] sm:$0xff]
      %v3632 = vld [vmem:[%s3243 + $0x1a] sm:$0xff]
      %v3633 = vld [vmem:[%s3243 + $0x22] sm:$0xff]
      %v3634 = vld [vmem:[%s3243 + $0x32] sm:$0xff]
      %v3635 = vld [vmem:[%s3243 + $0x3a] sm:$0xff]
      %v3636 = vld [vmem:[%s3243 + $0x4a] sm:$0xff]
      %v3637 = vld [vmem:[%s3243 + $0x52] sm:$0xff]
      %v3638 = vld [vmem:[%s3243 + $0x62] sm:$0xff]
      %v3639 = vld [vmem:[%s3243 + $0x6a] sm:$0xff]
      %v3640 = vld [vmem:[%s3243 + $0x7a] sm:$0xff]
      %v3641 = vld [vmem:[%s3243 + $0x82] sm:$0xff]
      %v3642 = vld [vmem:[%s3243 + $0x92] sm:$0xff]
      %v3643 = vld [vmem:[%s3243 + $0x9a] sm:$0xff]
      %v3644 = vld [vmem:[%s3243 + $0xaa] sm:$0xff]
      %v3645 = vld [vmem:[%s3243 + $0xb2] sm:$0xff]
      %v3646 = vld [vmem:[%s3243 + $0xc2] sm:$0xff]
      %v3647 = vld [vmem:[%s3243 + $0xca] sm:$0xff]
      %v3648 = vld [vmem:[%s3243 + $0xda] sm:$0xff]
      %v3649 = vld [vmem:[%s3243 + $0xe2] sm:$0xff]
      %v3650 = vld [vmem:[%s3243 + $0xf2] sm:$0xff]
      %v3651 = vld [vmem:[%s3243 + $0xfa] sm:$0xff]
      %v3652 = vld [vmem:[%s3243 + $0x10a] sm:$0xff]
      %v3653 = vld [vmem:[%s3243 + $0x112] sm:$0xff]
      %v3654 = vld [vmem:[%s3243 + $0x122] sm:$0xff]
      %v3655 = vld [vmem:[%s3243 + $0x12a] sm:$0xff]
      %v3656 = vld [vmem:[%s3243 + $0x13a] sm:$0xff]
      %v3657 = vld [vmem:[%s3243 + $0x142] sm:$0xff]
      %v3658 = vld [vmem:[%s3243 + $0x152] sm:$0xff]
      %v3659 = vld [vmem:[%s3243 + $0x15a] sm:$0xff]
      %v3660 = vld [vmem:[%s3243 + $0x16a] sm:$0xff]
      %v3661 = vld [vmem:[%s3243 + $0x172] sm:$0xff]
      %3694 = vrot.lane.b32.xlu0 %v3630, 68
      %v3695 = vpop.permute.xlu0 %3694
      %3696 = vrot.lane.b32.xlu0 %v3631, 68
      %v3697 = vpop.permute.xlu0 %3696
      %3698 = vrot.lane.b32.xlu0 %v3632, 68
      %v3699 = vpop.permute.xlu0 %3698
      %3700 = vrot.lane.b32.xlu0 %v3633, 68
      %v3701 = vpop.permute.xlu0 %3700
      %3702 = vrot.lane.b32.xlu0 %v3634, 68
      %v3703 = vpop.permute.xlu0 %3702
      %3704 = vrot.lane.b32.xlu0 %v3635, 68
      %v3705 = vpop.permute.xlu0 %3704
      %3706 = vrot.lane.b32.xlu0 %v3636, 68
      %v3707 = vpop.permute.xlu0 %3706
      %3708 = vrot.lane.b32.xlu0 %v3637, 68
      %v3709 = vpop.permute.xlu0 %3708
      %3710 = vrot.lane.b32.xlu0 %v3638, 68
      %v3711 = vpop.permute.xlu0 %3710
      %3712 = vrot.lane.b32.xlu0 %v3639, 68
      %v3713 = vpop.permute.xlu0 %3712
      %3714 = vrot.lane.b32.xlu0 %v3640, 68
      %v3715 = vpop.permute.xlu0 %3714
      %3716 = vrot.lane.b32.xlu0 %v3641, 68
      %v3717 = vpop.permute.xlu0 %3716
      %3718 = vrot.lane.b32.xlu0 %v3642, 68
      %v3719 = vpop.permute.xlu0 %3718
      %3720 = vrot.lane.b32.xlu0 %v3643, 68
      %v3721 = vpop.permute.xlu0 %3720
      %3722 = vrot.lane.b32.xlu0 %v3644, 68
      %v3723 = vpop.permute.xlu0 %3722
      %3724 = vrot.lane.b32.xlu0 %v3645, 68
      %v3725 = vpop.permute.xlu0 %3724
      %3726 = vrot.lane.b32.xlu0 %v3646, 68
      %v3727 = vpop.permute.xlu0 %3726
      %3728 = vrot.lane.b32.xlu0 %v3647, 68
      %v3729 = vpop.permute.xlu0 %3728
      %3730 = vrot.lane.b32.xlu0 %v3648, 68
      %v3731 = vpop.permute.xlu0 %3730
      %3732 = vrot.lane.b32.xlu0 %v3649, 68
      %v3733 = vpop.permute.xlu0 %3732
      %3734 = vrot.lane.b32.xlu0 %v3650, 68
      %v3735 = vpop.permute.xlu0 %3734
      %3736 = vrot.lane.b32.xlu0 %v3651, 68
      %v3737 = vpop.permute.xlu0 %3736
      %3738 = vrot.lane.b32.xlu0 %v3652, 68
      %v3739 = vpop.permute.xlu0 %3738
      %3740 = vrot.lane.b32.xlu0 %v3653, 68
      %v3741 = vpop.permute.xlu0 %3740
      %3742 = vrot.lane.b32.xlu0 %v3654, 68
      %v3743 = vpop.permute.xlu0 %3742
      %3744 = vrot.lane.b32.xlu0 %v3655, 68
      %v3745 = vpop.permute.xlu0 %3744
      %3746 = vrot.lane.b32.xlu0 %v3656, 68
      %v3747 = vpop.permute.xlu0 %3746
      %3748 = vrot.lane.b32.xlu0 %v3657, 68
      %v3749 = vpop.permute.xlu0 %3748
      %3750 = vrot.lane.b32.xlu0 %v3658, 68
      %v3751 = vpop.permute.xlu0 %3750
      %3752 = vrot.lane.b32.xlu0 %v3659, 68
      %v3753 = vpop.permute.xlu0 %3752
      %3754 = vrot.lane.b32.xlu0 %v3660, 68
      %v3755 = vpop.permute.xlu0 %3754
      %3756 = vrot.lane.b32.xlu0 %v3661, 68
      %v3757 = vpop.permute.xlu0 %3756
      %vm3790 = vcmask 589344
      %3791 = vst.msk [vmem:[#allocation4] sm:$0xff] %vm3790, %v3695
      %3792 = vst.msk [vmem:[#allocation4 + $0x8] sm:$0xff] %vm3790, %v3697
      %3793 = vst.msk [vmem:[#allocation4 + $0x10] sm:$0xff] %vm3790, %v3699
      %3794 = vst.msk [vmem:[#allocation4 + $0x18] sm:$0xff] %vm3790, %v3701
      %3795 = vst.msk [vmem:[#allocation4 + $0x20] sm:$0xff] %vm3790, %v3703
      %3796 = vst.msk [vmem:[#allocation4 + $0x28] sm:$0xff] %vm3790, %v3705
      %3797 = vst.msk [vmem:[#allocation4 + $0x30] sm:$0xff] %vm3790, %v3707
      %3798 = vst.msk [vmem:[#allocation4 + $0x38] sm:$0xff] %vm3790, %v3709
      %3799 = vst.msk [vmem:[#allocation4 + $0x40] sm:$0xff] %vm3790, %v3711
      %3800 = vst.msk [vmem:[#allocation4 + $0x48] sm:$0xff] %vm3790, %v3713
      %3801 = vst.msk [vmem:[#allocation4 + $0x50] sm:$0xff] %vm3790, %v3715
      %3802 = vst.msk [vmem:[#allocation4 + $0x58] sm:$0xff] %vm3790, %v3717
      %3803 = vst.msk [vmem:[#allocation4 + $0x60] sm:$0xff] %vm3790, %v3719
      %3804 = vst.msk [vmem:[#allocation4 + $0x68] sm:$0xff] %vm3790, %v3721
      %3805 = vst.msk [vmem:[#allocation4 + $0x70] sm:$0xff] %vm3790, %v3723
      %3806 = vst.msk [vmem:[#allocation4 + $0x78] sm:$0xff] %vm3790, %v3725
      %3807 = vst.msk [vmem:[#allocation4 + $0x80] sm:$0xff] %vm3790, %v3727
      %3808 = vst.msk [vmem:[#allocation4 + $0x88] sm:$0xff] %vm3790, %v3729
      %3809 = vst.msk [vmem:[#allocation4 + $0x90] sm:$0xff] %vm3790, %v3731
      %3810 = vst.msk [vmem:[#allocation4 + $0x98] sm:$0xff] %vm3790, %v3733
      %3811 = vst.msk [vmem:[#allocation4 + $0xa0] sm:$0xff] %vm3790, %v3735
      %3812 = vst.msk [vmem:[#allocation4 + $0xa8] sm:$0xff] %vm3790, %v3737
      %3813 = vst.msk [vmem:[#allocation4 + $0xb0] sm:$0xff] %vm3790, %v3739
      %3814 = vst.msk [vmem:[#allocation4 + $0xb8] sm:$0xff] %vm3790, %v3741
      %3815 = vst.msk [vmem:[#allocation4 + $0xc0] sm:$0xff] %vm3790, %v3743
      %3816 = vst.msk [vmem:[#allocation4 + $0xc8] sm:$0xff] %vm3790, %v3745
      %3817 = vst.msk [vmem:[#allocation4 + $0xd0] sm:$0xff] %vm3790, %v3747
      %3818 = vst.msk [vmem:[#allocation4 + $0xd8] sm:$0xff] %vm3790, %v3749
      %3819 = vst.msk [vmem:[#allocation4 + $0xe0] sm:$0xff] %vm3790, %v3751
      %3820 = vst.msk [vmem:[#allocation4 + $0xe8] sm:$0xff] %vm3790, %v3753
      %3821 = vst.msk [vmem:[#allocation4 + $0xf0] sm:$0xff] %vm3790, %v3755
      %3822 = vst.msk [vmem:[#allocation4 + $0xf8] sm:$0xff] %vm3790, %v3757
      %v3823 = vld [vmem:[#allocation4] sm:$0xff]
      %v3824 = vld [vmem:[#allocation4 + $0x8] sm:$0xff]
      %v3825 = vld [vmem:[#allocation4 + $0x10] sm:$0xff]
      %v3826 = vld [vmem:[#allocation4 + $0x18] sm:$0xff]
      %v3827 = vld [vmem:[#allocation4 + $0x20] sm:$0xff]
      %v3828 = vld [vmem:[#allocation4 + $0x28] sm:$0xff]
      %v3829 = vld [vmem:[#allocation4 + $0x30] sm:$0xff]
      %v3830 = vld [vmem:[#allocation4 + $0x38] sm:$0xff]
      %v3831 = vld [vmem:[#allocation4 + $0x40] sm:$0xff]
      %v3832 = vld [vmem:[#allocation4 + $0x48] sm:$0xff]
      %v3833 = vld [vmem:[#allocation4 + $0x50] sm:$0xff]
      %v3834 = vld [vmem:[#allocation4 + $0x58] sm:$0xff]
      %v3835 = vld [vmem:[#allocation4 + $0x60] sm:$0xff]
      %v3836 = vld [vmem:[#allocation4 + $0x68] sm:$0xff]
      %v3837 = vld [vmem:[#allocation4 + $0x70] sm:$0xff]
      %v3838 = vld [vmem:[#allocation4 + $0x78] sm:$0xff]
      %v3839 = vld [vmem:[#allocation4 + $0x80] sm:$0xff]
      %v3840 = vld [vmem:[#allocation4 + $0x88] sm:$0xff]
      %v3841 = vld [vmem:[#allocation4 + $0x90] sm:$0xff]
      %v3842 = vld [vmem:[#allocation4 + $0x98] sm:$0xff]
      %v3843 = vld [vmem:[#allocation4 + $0xa0] sm:$0xff]
      %v3844 = vld [vmem:[#allocation4 + $0xa8] sm:$0xff]
      %v3845 = vld [vmem:[#allocation4 + $0xb0] sm:$0xff]
      %v3846 = vld [vmem:[#allocation4 + $0xb8] sm:$0xff]
      %v3847 = vld [vmem:[#allocation4 + $0xc0] sm:$0xff]
      %v3848 = vld [vmem:[#allocation4 + $0xc8] sm:$0xff]
      %v3849 = vld [vmem:[#allocation4 + $0xd0] sm:$0xff]
      %v3850 = vld [vmem:[#allocation4 + $0xd8] sm:$0xff]
      %v3851 = vld [vmem:[#allocation4 + $0xe0] sm:$0xff]
      %v3852 = vld [vmem:[#allocation4 + $0xe8] sm:$0xff]
      %v3853 = vld [vmem:[#allocation4 + $0xf0] sm:$0xff]
      %v3854 = vld [vmem:[#allocation4 + $0xf8] sm:$0xff]
      %v3855 = vpack.c.bf16 %v3824, %v3823
      %v3856 = vpack.c.bf16 %v3826, %v3825
      %v3857 = vpack.c.bf16 %v3828, %v3827
      %v3858 = vpack.c.bf16 %v3830, %v3829
      %v3859 = vpack.c.bf16 %v3832, %v3831
      %v3860 = vpack.c.bf16 %v3834, %v3833
      %v3861 = vpack.c.bf16 %v3836, %v3835
      %v3862 = vpack.c.bf16 %v3838, %v3837
      %v3863 = vpack.c.bf16 %v3840, %v3839
      %v3864 = vpack.c.bf16 %v3842, %v3841
      %v3865 = vpack.c.bf16 %v3844, %v3843
      %v3866 = vpack.c.bf16 %v3846, %v3845
      %v3867 = vpack.c.bf16 %v3848, %v3847
      %v3868 = vpack.c.bf16 %v3850, %v3849
      %v3869 = vpack.c.bf16 %v3852, %v3851
      %v3870 = vpack.c.bf16 %v3854, %v3853
      %v3871 = vld [vmem:[%s2] sm:$0xf]
      %v3872 = vld [vmem:[%s2 + $0x4] sm:$0xf]
      %v3873 = vld [vmem:[%s2 + $0x8] sm:$0xf]
      %v3874 = vld [vmem:[%s2 + $0xc] sm:$0xf]
      %v3875 = vld [vmem:[%s2 + $0x10] sm:$0xf]
      %v3876 = vld [vmem:[%s2 + $0x14] sm:$0xf]
      %v3877 = vld [vmem:[%s2 + $0x18] sm:$0xf]
      %v3878 = vld [vmem:[%s2 + $0x1c] sm:$0xf]
      %v3879 = vld [vmem:[%s2 + $0x20] sm:$0xf]
      %v3880 = vld [vmem:[%s3] sm:$0x1]
      %v3882 = vperm.slane %v3880, 0
      %v3893 = vunpack.c.l.b16 %v3871
      %v3894 = vunpack.c.l.b16 %v3872
      %v3895 = vunpack.c.l.b16 %v3873
      %v3896 = vunpack.c.l.b16 %v3874
      %v3897 = vunpack.c.l.b16 %v3875
      %v3898 = vunpack.c.l.b16 %v3876
      %v3899 = vunpack.c.l.b16 %v3877
      %v3900 = vunpack.c.l.b16 %v3878
      %v3901 = vunpack.c.l.b16 %v3879
      %v3902 = vpack.c.b16 %v3894, %v3893
      %v3903 = vpack.c.b16 %v3896, %v3895
      %v3904 = vpack.c.b16 %v3898, %v3897
      %v3905 = vpack.c.b16 %v3900, %v3899
      %v3906 = vpack.c.b16 %v3901, %v3901
      %vm3911 = vcmask 588800
      %v3913 = vsel %vm3911, %v3855, 0
      %v3916 = vsel %vm3911, %v3856, 0
      %v3919 = vsel %vm3911, %v3857, 0
      %v3922 = vsel %vm3911, %v3858, 0
      %v3925 = vsel %vm3911, %v3859, 0
      %v3928 = vsel %vm3911, %v3860, 0
      %v3931 = vsel %vm3911, %v3861, 0
      %v3934 = vsel %vm3911, %v3862, 0
      %v3937 = vsel %vm3911, %v3863, 0
      %v3940 = vsel %vm3911, %v3864, 0
      %v3943 = vsel %vm3911, %v3865, 0
      %v3946 = vsel %vm3911, %v3866, 0
      %v3949 = vsel %vm3911, %v3867, 0
      %v3952 = vsel %vm3911, %v3868, 0
      %v3955 = vsel %vm3911, %v3869, 0
      %v3958 = vsel %vm3911, %v3870, 0
      %vm3960 = vcmask 1043456
      %v3962 = vsel %vm3960, %v3906, 0
      %3964 = vmatpush.bf16.msra.mxu0 0
      %3965 = vmatpush.bf16.msra.mxu0 0
      %3966 = vmatpush.bf16.msra.mxu0 0
      %3967 = vmatpush.bf16.msra.mxu0 %v3962
      %3968 = vmatpush.bf16.msra.mxu0 %v3905
      %3969 = vmatpush.bf16.msra.mxu0 %v3904
      %3970 = vmatpush.bf16.msra.mxu0 %v3903
      %3971 = vmatpush.bf16.msra.mxu0 %v3902
      %3972 = vmatmul.bf16.gmra.mxu0 %v3913
      %v3973 = vpop.f32.mrf.mxu0
      %v3974 = vadd.f32 %v3882, %v3973
      %v3975 = vpop.f32.mrf.mxu0
      %v3976 = vadd.f32 %v3882, %v3975
      %3977 = vmatmul.bf16.gmra.mxu0 %v3916
      %v3978 = vpop.f32.mrf.mxu0
      %v3979 = vadd.f32 %v3882, %v3978
      %v3980 = vpop.f32.mrf.mxu0
      %v3981 = vadd.f32 %v3882, %v3980
      %3982 = vmatmul.bf16.gmra.mxu0 %v3919
      %v3983 = vpop.f32.mrf.mxu0
      %v3984 = vadd.f32 %v3882, %v3983
      %v3985 = vpop.f32.mrf.mxu0
      %v3986 = vadd.f32 %v3882, %v3985
      %3987 = vmatmul.bf16.gmra.mxu0 %v3922
      %v3988 = vpop.f32.mrf.mxu0
      %v3989 = vadd.f32 %v3882, %v3988
      %v3990 = vpop.f32.mrf.mxu0
      %v3991 = vadd.f32 %v3882, %v3990
      %3992 = vmatmul.bf16.gmra.mxu0 %v3925
      %v3993 = vpop.f32.mrf.mxu0
      %v3994 = vadd.f32 %v3882, %v3993
      %v3995 = vpop.f32.mrf.mxu0
      %v3996 = vadd.f32 %v3882, %v3995
      %3997 = vmatmul.bf16.gmra.mxu0 %v3928
      %v3998 = vpop.f32.mrf.mxu0
      %v3999 = vadd.f32 %v3882, %v3998
      %v4000 = vpop.f32.mrf.mxu0
      %v4001 = vadd.f32 %v3882, %v4000
      %4002 = vmatmul.bf16.gmra.mxu0 %v3931
      %v4003 = vpop.f32.mrf.mxu0
      %v4004 = vadd.f32 %v3882, %v4003
      %v4005 = vpop.f32.mrf.mxu0
      %v4006 = vadd.f32 %v3882, %v4005
      %4007 = vmatmul.bf16.gmra.mxu0 %v3934
      %v4008 = vpop.f32.mrf.mxu0
      %v4009 = vadd.f32 %v3882, %v4008
      %v4010 = vpop.f32.mrf.mxu0
      %v4011 = vadd.f32 %v3882, %v4010
      %4012 = vmatmul.bf16.gmra.mxu0 %v3937
      %v4013 = vpop.f32.mrf.mxu0
      %v4014 = vadd.f32 %v3882, %v4013
      %v4015 = vpop.f32.mrf.mxu0
      %v4016 = vadd.f32 %v3882, %v4015
      %4017 = vmatmul.bf16.gmra.mxu0 %v3940
      %v4018 = vpop.f32.mrf.mxu0
      %v4019 = vadd.f32 %v3882, %v4018
      %v4020 = vpop.f32.mrf.mxu0
      %v4021 = vadd.f32 %v3882, %v4020
      %4022 = vmatmul.bf16.gmra.mxu0 %v3943
      %v4023 = vpop.f32.mrf.mxu0
      %v4024 = vadd.f32 %v3882, %v4023
      %v4025 = vpop.f32.mrf.mxu0
      %v4026 = vadd.f32 %v3882, %v4025
      %4027 = vmatmul.bf16.gmra.mxu0 %v3946
      %v4028 = vpop.f32.mrf.mxu0
      %v4029 = vadd.f32 %v3882, %v4028
      %v4030 = vpop.f32.mrf.mxu0
      %v4031 = vadd.f32 %v3882, %v4030
      %4032 = vmatmul.bf16.gmra.mxu0 %v3949
      %v4033 = vpop.f32.mrf.mxu0
      %v4034 = vadd.f32 %v3882, %v4033
      %v4035 = vpop.f32.mrf.mxu0
      %v4036 = vadd.f32 %v3882, %v4035
      %4037 = vmatmul.bf16.gmra.mxu0 %v3952
      %v4038 = vpop.f32.mrf.mxu0
      %v4039 = vadd.f32 %v3882, %v4038
      %v4040 = vpop.f32.mrf.mxu0
      %v4041 = vadd.f32 %v3882, %v4040
      %4042 = vmatmul.bf16.gmra.mxu0 %v3955
      %v4043 = vpop.f32.mrf.mxu0
      %v4044 = vadd.f32 %v3882, %v4043
      %v4045 = vpop.f32.mrf.mxu0
      %v4046 = vadd.f32 %v3882, %v4045
      %4047 = vmatmul.bf16.gmra.mxu0 %v3958
      %v4048 = vpop.f32.mrf.mxu0
      %v4049 = vadd.f32 %v3882, %v4048
      %v4050 = vpop.f32.mrf.mxu0
      %v4051 = vadd.f32 %v3882, %v4050
      %4052 = vdwg.mxu0
      %4053 = vst.msk [vmem:[%s251] sm:$0xff] %vm289, %v3974
      %4054 = vst.msk [vmem:[%s251 + $0x8] sm:$0xff] %vm289, %v3976
      %4055 = vst.msk [vmem:[%s251 + $0x10] sm:$0xff] %vm289, %v3979
      %4056 = vst.msk [vmem:[%s251 + $0x18] sm:$0xff] %vm289, %v3981
      %4057 = vst.msk [vmem:[%s251 + $0x20] sm:$0xff] %vm289, %v3984
      %4058 = vst.msk [vmem:[%s251 + $0x28] sm:$0xff] %vm289, %v3986
      %4059 = vst.msk [vmem:[%s251 + $0x30] sm:$0xff] %vm289, %v3989
      %4060 = vst.msk [vmem:[%s251 + $0x38] sm:$0xff] %vm289, %v3991
      %4061 = vst.msk [vmem:[%s251 + $0x40] sm:$0xff] %vm289, %v3994
      %4062 = vst.msk [vmem:[%s251 + $0x48] sm:$0xff] %vm289, %v3996
      %4063 = vst.msk [vmem:[%s251 + $0x50] sm:$0xff] %vm289, %v3999
      %4064 = vst.msk [vmem:[%s251 + $0x58] sm:$0xff] %vm289, %v4001
      %4065 = vst.msk [vmem:[%s251 + $0x60] sm:$0xff] %vm289, %v4004
      %4066 = vst.msk [vmem:[%s251 + $0x68] sm:$0xff] %vm289, %v4006
      %4067 = vst.msk [vmem:[%s251 + $0x70] sm:$0xff] %vm289, %v4009
      %4068 = vst.msk [vmem:[%s251 + $0x78] sm:$0xff] %vm289, %v4011
      %4069 = vst.msk [vmem:[%s251 + $0x80] sm:$0xff] %vm289, %v4014
      %4070 = vst.msk [vmem:[%s251 + $0x88] sm:$0xff] %vm289, %v4016
      %4071 = vst.msk [vmem:[%s251 + $0x90] sm:$0xff] %vm289, %v4019
      %4072 = vst.msk [vmem:[%s251 + $0x98] sm:$0xff] %vm289, %v4021
      %4073 = vst.msk [vmem:[%s251 + $0xa0] sm:$0xff] %vm289, %v4024
      %4074 = vst.msk [vmem:[%s251 + $0xa8] sm:$0xff] %vm289, %v4026
      %4075 = vst.msk [vmem:[%s251 + $0xb0] sm:$0xff] %vm289, %v4029
      %4076 = vst.msk [vmem:[%s251 + $0xb8] sm:$0xff] %vm289, %v4031
      %4077 = vst.msk [vmem:[%s251 + $0xc0] sm:$0xff] %vm289, %v4034
      %4078 = vst.msk [vmem:[%s251 + $0xc8] sm:$0xff] %vm289, %v4036
      %4079 = vst.msk [vmem:[%s251 + $0xd0] sm:$0xff] %vm289, %v4039
      %4080 = vst.msk [vmem:[%s251 + $0xd8] sm:$0xff] %vm289, %v4041
      %4081 = vst.msk [vmem:[%s251 + $0xe0] sm:$0xff] %vm289, %v4044
      %4082 = vst.msk [vmem:[%s251 + $0xe8] sm:$0xff] %vm289, %v4046
      %4083 = vst.msk [vmem:[%s251 + $0xf0] sm:$0xff] %vm289, %v4049
      %4084 = vst.msk [vmem:[%s251 + $0xf8] sm:$0xff] %vm289, %v4051
      %v4085 = vsel %vm289, %v3974, 0.0
      %v4086 = vsel %vm289, %v3976, 0.0
      %v4087 = vadd.f32 %v4085, %v4086
      %v4088 = vsel %vm289, %v3979, 0.0
      %v4089 = vadd.f32 %v4087, %v4088
      %v4090 = vsel %vm289, %v3981, 0.0
      %v4091 = vadd.f32 %v4089, %v4090
      %v4092 = vsel %vm289, %v3984, 0.0
      %v4093 = vadd.f32 %v4091, %v4092
      %v4094 = vsel %vm289, %v3986, 0.0
      %v4095 = vadd.f32 %v4093, %v4094
      %v4096 = vsel %vm289, %v3989, 0.0
      %v4097 = vadd.f32 %v4095, %v4096
      %v4098 = vsel %vm289, %v3991, 0.0
      %v4099 = vadd.f32 %v4097, %v4098
      %v4100 = vsel %vm289, %v3994, 0.0
      %v4101 = vadd.f32 %v4099, %v4100
      %v4102 = vsel %vm289, %v3996, 0.0
      %v4103 = vadd.f32 %v4101, %v4102
      %v4104 = vsel %vm289, %v3999, 0.0
      %v4105 = vadd.f32 %v4103, %v4104
      %v4106 = vsel %vm289, %v4001, 0.0
      %v4107 = vadd.f32 %v4105, %v4106
      %v4108 = vsel %vm289, %v4004, 0.0
      %v4109 = vadd.f32 %v4107, %v4108
      %v4110 = vsel %vm289, %v4006, 0.0
      %v4111 = vadd.f32 %v4109, %v4110
      %v4112 = vsel %vm289, %v4009, 0.0
      %v4113 = vadd.f32 %v4111, %v4112
      %v4114 = vsel %vm289, %v4011, 0.0
      %v4115 = vadd.f32 %v4113, %v4114
      %v4116 = vsel %vm289, %v4014, 0.0
      %v4117 = vadd.f32 %v4115, %v4116
      %v4118 = vsel %vm289, %v4016, 0.0
      %v4119 = vadd.f32 %v4117, %v4118
      %v4120 = vsel %vm289, %v4019, 0.0
      %v4121 = vadd.f32 %v4119, %v4120
      %v4122 = vsel %vm289, %v4021, 0.0
      %v4123 = vadd.f32 %v4121, %v4122
      %v4124 = vsel %vm289, %v4024, 0.0
      %v4125 = vadd.f32 %v4123, %v4124
      %v4126 = vsel %vm289, %v4026, 0.0
      %v4127 = vadd.f32 %v4125, %v4126
      %v4128 = vsel %vm289, %v4029, 0.0
      %v4129 = vadd.f32 %v4127, %v4128
      %v4130 = vsel %vm289, %v4031, 0.0
      %v4131 = vadd.f32 %v4129, %v4130
      %v4132 = vsel %vm289, %v4034, 0.0
      %v4133 = vadd.f32 %v4131, %v4132
      %v4134 = vsel %vm289, %v4036, 0.0
      %v4135 = vadd.f32 %v4133, %v4134
      %v4136 = vsel %vm289, %v4039, 0.0
      %v4137 = vadd.f32 %v4135, %v4136
      %v4138 = vsel %vm289, %v4041, 0.0
      %v4139 = vadd.f32 %v4137, %v4138
      %v4140 = vsel %vm289, %v4044, 0.0
      %v4141 = vadd.f32 %v4139, %v4140
      %v4142 = vsel %vm289, %v4046, 0.0
      %v4143 = vadd.f32 %v4141, %v4142
      %v4144 = vsel %vm289, %v4049, 0.0
      %v4145 = vadd.f32 %v4143, %v4144
      %v4146 = vsel %vm289, %v4051, 0.0
      %v4147 = vadd.f32 %v4145, %v4146
      %v4148 = vrot.slane %v4147, 4
      %v4149 = vadd.f32 %v4147, %v4148
      %v4150 = vrot.slane %v4149, 2
      %v4151 = vadd.f32 %v4149, %v4150
      %v4152 = vrot.slane %v4151, 1
      %v4153 = vadd.f32 %v4151, %v4152
      %v4154 = vmul.f32 %v4153, 0.00390625
      %v4155 = vsub.f32 %v3974, %v4154
      %v4156 = vsub.f32 %v3976, %v4154
      %v4157 = vsub.f32 %v3979, %v4154
      %v4158 = vsub.f32 %v3981, %v4154
      %v4159 = vsub.f32 %v3984, %v4154
      %v4160 = vsub.f32 %v3986, %v4154
      %v4161 = vsub.f32 %v3989, %v4154
      %v4162 = vsub.f32 %v3991, %v4154
      %v4163 = vsub.f32 %v3994, %v4154
      %v4164 = vsub.f32 %v3996, %v4154
      %v4165 = vsub.f32 %v3999, %v4154
      %v4166 = vsub.f32 %v4001, %v4154
      %v4167 = vsub.f32 %v4004, %v4154
      %v4168 = vsub.f32 %v4006, %v4154
      %v4169 = vsub.f32 %v4009, %v4154
      %v4170 = vsub.f32 %v4011, %v4154
      %v4171 = vsub.f32 %v4014, %v4154
      %v4172 = vsub.f32 %v4016, %v4154
      %v4173 = vsub.f32 %v4019, %v4154
      %v4174 = vsub.f32 %v4021, %v4154
      %v4175 = vsub.f32 %v4024, %v4154
      %v4176 = vsub.f32 %v4026, %v4154
      %v4177 = vsub.f32 %v4029, %v4154
      %v4178 = vsub.f32 %v4031, %v4154
      %v4179 = vsub.f32 %v4034, %v4154
      %v4180 = vsub.f32 %v4036, %v4154
      %v4181 = vsub.f32 %v4039, %v4154
      %v4182 = vsub.f32 %v4041, %v4154
      %v4183 = vsub.f32 %v4044, %v4154
      %v4184 = vsub.f32 %v4046, %v4154
      %v4185 = vsub.f32 %v4049, %v4154
      %v4186 = vsub.f32 %v4051, %v4154
      %v4187 = vmul.f32 %v4155, %v4155
      %v4188 = vmul.f32 %v4156, %v4156
      %v4189 = vmul.f32 %v4157, %v4157
      %v4190 = vmul.f32 %v4158, %v4158
      %v4191 = vmul.f32 %v4159, %v4159
      %v4192 = vmul.f32 %v4160, %v4160
      %v4193 = vmul.f32 %v4161, %v4161
      %v4194 = vmul.f32 %v4162, %v4162
      %v4195 = vmul.f32 %v4163, %v4163
      %v4196 = vmul.f32 %v4164, %v4164
      %v4197 = vmul.f32 %v4165, %v4165
      %v4198 = vmul.f32 %v4166, %v4166
      %v4199 = vmul.f32 %v4167, %v4167
      %v4200 = vmul.f32 %v4168, %v4168
      %v4201 = vmul.f32 %v4169, %v4169
      %v4202 = vmul.f32 %v4170, %v4170
      %v4203 = vmul.f32 %v4171, %v4171
      %v4204 = vmul.f32 %v4172, %v4172
      %v4205 = vmul.f32 %v4173, %v4173
      %v4206 = vmul.f32 %v4174, %v4174
      %v4207 = vmul.f32 %v4175, %v4175
      %v4208 = vmul.f32 %v4176, %v4176
      %v4209 = vmul.f32 %v4177, %v4177
      %v4210 = vmul.f32 %v4178, %v4178
      %v4211 = vmul.f32 %v4179, %v4179
      %v4212 = vmul.f32 %v4180, %v4180
      %v4213 = vmul.f32 %v4181, %v4181
      %v4214 = vmul.f32 %v4182, %v4182
      %v4215 = vmul.f32 %v4183, %v4183
      %v4216 = vmul.f32 %v4184, %v4184
      %v4217 = vmul.f32 %v4185, %v4185
      %v4218 = vmul.f32 %v4186, %v4186
      %v4219 = vsel %vm289, %v4187, 0.0
      %v4220 = vsel %vm289, %v4188, 0.0
      %v4221 = vadd.f32 %v4219, %v4220
      %v4222 = vsel %vm289, %v4189, 0.0
      %v4223 = vadd.f32 %v4221, %v4222
      %v4224 = vsel %vm289, %v4190, 0.0
      %v4225 = vadd.f32 %v4223, %v4224
      %v4226 = vsel %vm289, %v4191, 0.0
      %v4227 = vadd.f32 %v4225, %v4226
      %v4228 = vsel %vm289, %v4192, 0.0
      %v4229 = vadd.f32 %v4227, %v4228
      %v4230 = vsel %vm289, %v4193, 0.0
      %v4231 = vadd.f32 %v4229, %v4230
      %v4232 = vsel %vm289, %v4194, 0.0
      %v4233 = vadd.f32 %v4231, %v4232
      %v4234 = vsel %vm289, %v4195, 0.0
      %v4235 = vadd.f32 %v4233, %v4234
      %v4236 = vsel %vm289, %v4196, 0.0
      %v4237 = vadd.f32 %v4235, %v4236
      %v4238 = vsel %vm289, %v4197, 0.0
      %v4239 = vadd.f32 %v4237, %v4238
      %v4240 = vsel %vm289, %v4198, 0.0
      %v4241 = vadd.f32 %v4239, %v4240
      %v4242 = vsel %vm289, %v4199, 0.0
      %v4243 = vadd.f32 %v4241, %v4242
      %v4244 = vsel %vm289, %v4200, 0.0
      %v4245 = vadd.f32 %v4243, %v4244
      %v4246 = vsel %vm289, %v4201, 0.0
      %v4247 = vadd.f32 %v4245, %v4246
      %v4248 = vsel %vm289, %v4202, 0.0
      %v4249 = vadd.f32 %v4247, %v4248
      %v4250 = vsel %vm289, %v4203, 0.0
      %v4251 = vadd.f32 %v4249, %v4250
      %v4252 = vsel %vm289, %v4204, 0.0
      %v4253 = vadd.f32 %v4251, %v4252
      %v4254 = vsel %vm289, %v4205, 0.0
      %v4255 = vadd.f32 %v4253, %v4254
      %v4256 = vsel %vm289, %v4206, 0.0
      %v4257 = vadd.f32 %v4255, %v4256
      %v4258 = vsel %vm289, %v4207, 0.0
      %v4259 = vadd.f32 %v4257, %v4258
      %v4260 = vsel %vm289, %v4208, 0.0
      %v4261 = vadd.f32 %v4259, %v4260
      %v4262 = vsel %vm289, %v4209, 0.0
      %v4263 = vadd.f32 %v4261, %v4262
      %v4264 = vsel %vm289, %v4210, 0.0
      %v4265 = vadd.f32 %v4263, %v4264
      %v4266 = vsel %vm289, %v4211, 0.0
      %v4267 = vadd.f32 %v4265, %v4266
      %v4268 = vsel %vm289, %v4212, 0.0
      %v4269 = vadd.f32 %v4267, %v4268
      %v4270 = vsel %vm289, %v4213, 0.0
      %v4271 = vadd.f32 %v4269, %v4270
      %v4272 = vsel %vm289, %v4214, 0.0
      %v4273 = vadd.f32 %v4271, %v4272
      %v4274 = vsel %vm289, %v4215, 0.0
      %v4275 = vadd.f32 %v4273, %v4274
      %v4276 = vsel %vm289, %v4216, 0.0
      %v4277 = vadd.f32 %v4275, %v4276
      %v4278 = vsel %vm289, %v4217, 0.0
      %v4279 = vadd.f32 %v4277, %v4278
      %v4280 = vsel %vm289, %v4218, 0.0
      %v4281 = vadd.f32 %v4279, %v4280
      %v4282 = vrot.slane %v4281, 4
      %v4283 = vadd.f32 %v4281, %v4282
      %v4284 = vrot.slane %v4283, 2
      %v4285 = vadd.f32 %v4283, %v4284
      %v4286 = vrot.slane %v4285, 1
      %v4287 = vadd.f32 %v4285, %v4286
      %vm4288 = vcmask 1040384
      %v4289 = vsel %vm4288, %v4153, %v4287
      %4290 = vst.msk [vmem:[%s255] sm:$0x3] %vm292, %v4289
      %p4291 = scmp.lt.s32.totalorder %s17, 1
      %s4292 = scalar_select %p4291, %s17, 1
      %s4293 = smul.addr %s4292, 32
      %s4294 = smul.addr %s4293, 8
      %s4295 = scalar_lea.vmem %s4, %s4294
      %p4296 = scmp.lt.s32.totalorder %s17, 1
      %s4297 = scalar_select %p4296, %s17, 1
      %s4298 = smul.addr %s4297, 2
      %s4299 = scalar_lea.vmem %s5, %s4298
      // Predicated region
      $region37: #{up_forward.5} parent=35 // pred_check
        %p4300 = pneg %p129
      $region38: #{up_forward.5} parent=35 // pred_check_branch
        %4302 = sbr.rel (%p4300) target = $region40
      $region39: #{up_forward.5} parent=35 // pred_region
        _
      $region40: #{up_forward.5} parent=35 // pred_fallthru
        _
      // Predicated region
      $region41: #{up_forward.5} parent=35 // pred_check
        %p4303 = pneg %p155
      $region42: #{up_forward.5} parent=35 // pred_check_branch
        %4305 = sbr.rel (%p4303) target = $region44
      $region43: #{up_forward.5} parent=35 // pred_region
        _
      $region44: #{up_forward.5} parent=35 // pred_fallthru
        _
    $region36: #{up_forward.5} parent=5 // pred_fallthru
      _
    %p4306 = scmp.le.s32.totalorder 2, %s12
    // Predicated region
    $region45: #{up_forward.5} parent=5 // pred_check
      %p4307 = pneg %p4306
    $region46: #{up_forward.5} parent=5 // pred_check_branch
      %4309 = sbr.rel (%p4307) target = $region48
    $region47: #{up_forward.5} parent=5 // pred_region
      %s4310 = ssub.s32 %s12, 2
      // Predicated region
      $region49: #{up_forward.5} parent=47 // pred_check
        %p4311 = pneg %p135
      $region50: #{up_forward.5} parent=47 // pred_check_branch
        %4313 = sbr.rel (%p4311) target = $region52
      $region51: #{up_forward.5} parent=47 // pred_region
        %p4314 = scmp.lt.s32.totalorder %s18, 1
        %s4315 = scalar_select %p4314, %s18, 1
        %s4316 = smul.addr %s4315, 32
        %s4317 = smul.addr %s4316, 8
        %s4318 = scalar_lea.vmem %s4, %s4317
      $region52: #{up_forward.5} parent=47 // pred_fallthru
        _
      // Predicated region
      $region53: #{up_forward.5} parent=47 // pred_check
        %p4319 = pneg %p161
      $region54: #{up_forward.5} parent=47 // pred_check_branch
        %4321 = sbr.rel (%p4319) target = $region56
      $region55: #{up_forward.5} parent=47 // pred_region
        %p4322 = scmp.lt.s32.totalorder %s18, 1
        %s4323 = scalar_select %p4322, %s18, 1
        %s4324 = smul.addr %s4323, 2
        %s4325 = scalar_lea.vmem %s5, %s4324
      $region56: #{up_forward.5} parent=47 // pred_fallthru
        _
    $region48: #{up_forward.5} parent=5 // pred_fallthru
      _
  $region6: #{up_forward.5} parent=0 // loop_footer
    %s16 = sadd.s32 1, %s12
  $region7: #{up_forward.5} parent=0 // loop_footer_branch
    %11 = sbr.rel target = $region3
  $region8: #{up_forward.5} parent=0 // loop_exit
    _

</llo_original>
